<compile_context>
chip_gen: v5e
topology: v5e:2x2
jax: 0.10.0
libtpu: 0.0.40
codegen_flags: <defaults>
</compile_context>

<pallas_src>
import jax
import jax.numpy as jnp
from jax.experimental import pallas as pl
from jax.experimental.pallas import tpu as pltpu

HIDDEN_SIZE = 256
N_ACTIONS = 3          # ALE/Skiing-v5 action space
PAD_OUT = 128          # lane-dense padded fc2 output width
FC1_K = 7 * 7 * 64     # 3136


# ----------------------------------------------------------------------------
# Fused forward kernel factory (B images per grid step)
# ----------------------------------------------------------------------------
def _make_policy_kernel(B):
    f32, bf16 = jnp.float32, jnp.bfloat16

    def kernel(p1_ref,              # [B, 2, 90, 256] bf16  conv1 patches (lane-concat slabs)
               w1_ref, b1_ref,      # [256, 256] bf16 block-diag, [1, 256] f32
               w2_ref, b2_ref,      # [4, 256, 128] bf16 (4 taps fused along K), [1, 128] f32
               w3_ref, b3_ref,      # [3, 384, 64] bf16 (3 kj taps fused along K), [1, 64] f32
               wf1_ref, bf1_ref,    # [3136, 256] bf16, [1, 256] f32
               wf2_ref, bf2_ref,    # [256, 128] bf16 padded, [1, 128] f32 (-1e30 pad)
               out_ref,             # [B, 1, 128] f32
               a1_ref,              # scratch [2, 90, 256] bf16  conv1 activations
               a2_ref,              # scratch [63, 384] bf16     conv2 activations (shift x lane-concat)
               fc1_ref):            # scratch [B, 3136] f32      lane-flattened conv3 activations
        w1 = w1_ref[...]
        b1 = b1_ref[...]

        for b in range(B):
            # ---- conv1: 2 dots [90,256]@[256,256] (block-diag weight -> 4 slabs in lanes) ----
            # a1[rp][rh*9+t, (cp*2+s)*64 + c] = relu(conv1)[2*rh+rp, 2*(s+t)+cp, c]
            for rp in range(2):
                acc1 = jnp.dot(p1_ref[b, rp], w1, preferred_element_type=f32)
                a1_ref[rp] = jnp.maximum(acc1 + b1, 0.0).astype(bf16)

            # ---- conv2 (k=4,s=2): 4 dots [81,256]@[256,128], 4 kj-taps fused along K ----
            acc2 = None
            for ki in range(4):
                xs = a1_ref[ki % 2, (ki // 2) * 9:(ki // 2) * 9 + 81, :]   # [81, 256]
                part = jnp.dot(xs, w2_ref[ki], preferred_element_type=f32)
                acc2 = part if acc2 is None else acc2 + part
            a2v = jnp.maximum(acc2 + b2_ref[...], 0.0)                     # [81, 128] f32

            # ---- build conv3 input (63, 384): rows oh2*7+t, lane block kj -> a2v[oh2*9+kj+t] ----
            # assembled with jnp.concatenate in registers -> ONE aligned store (review item 4)
            cols = []
            for kj in range(3):
                rows = [a2v[oh2 * 9 + kj: oh2 * 9 + kj + 7, :] for oh2 in range(9)]
                cols.append(jnp.concatenate(rows, axis=0))                 # [63, 128]
            a2_ref[...] = jnp.concatenate(cols, axis=1).astype(bf16)       # [63, 384]

            # ---- conv3 (k=3,s=1): 3 dots [49,384]@[384,64], 3 kj-taps fused along K ----
            acc3 = None
            for ki in range(3):
                xs = a2_ref[ki * 7: ki * 7 + 49, :]                        # [49, 384]
                part = jnp.dot(xs, w3_ref[ki], preferred_element_type=f32)
                acc3 = part if acc3 is None else acc3 + part
            a3 = jnp.maximum(acc3 + b3_ref[...], 0.0)                      # [49, 64] f32

            # ---- lane-flatten [49,64] -> [1,3136] (row hw at lane offset hw*64, matches wf1) ----
            flat = jnp.concatenate([a3[hw:hw + 1, :] for hw in range(49)], axis=1)
            fc1_ref[b:b + 1, :] = flat

        # ---- fc1: ONE big-K dot [B,3136]@[3136,256] (MXU-internal K accumulation) ----
        h1 = jnp.dot(fc1_ref[...].astype(bf16), wf1_ref[...], preferred_element_type=f32)
        h1 = jnp.maximum(h1 + bf1_ref[...], 0.0).astype(bf16)              # [B, 256]

        # ---- fc2 + softmax over lane-dense padded logits (exact normalization) ----
        logits = jnp.dot(h1, wf2_ref[...], preferred_element_type=f32) + bf2_ref[...]
        m = jnp.max(logits, axis=-1, keepdims=True)
        e = jnp.exp(logits - m)                                            # padded lanes -> 0
        probs = e / jnp.sum(e, axis=-1, keepdims=True)                     # exact divide
        for b in range(B):
            out_ref[b] = probs[b:b + 1, :]

    return kernel


# ----------------------------------------------------------------------------
# Host-side (XLA) prep: conv1 patches arranged into [N, 2, 90, 256] slabs
# slab[n, rp, rh*9+t, (cp*2+s)*64 + (ki*8+kj)] = x[n, 0, 4*(2*rh+rp)+ki, 4*(2*(s+t)+cp)+kj]
# ----------------------------------------------------------------------------
def _conv1_patches_arranged(x_nchw):
    n = x_nchw.shape[0]
    p = jax.lax.conv_general_dilated_patches(
        x_nchw.astype(jnp.float32), filter_shape=(8, 8), window_strides=(4, 4),
        padding="VALID", dimension_numbers=("NCHW", "OIHW", "NHWC"))
    p = p.astype(jnp.bfloat16)                             # [N, 20, 20, 64], cast early
    slabs = []
    for rp in (0, 1):
        q = p[:, rp::2, :, :]                              # [N, 10, 20, 64]
        blocks = [q[:, :, cp::2, :][:, :, s:s + 9, :].reshape(n, 90, 64)
                  for cp in (0, 1) for s in (0, 1)]        # lane block index = cp*2 + s
        slabs.append(jnp.concatenate(blocks, axis=-1))     # [N, 90, 256]
    return jnp.stack(slabs, axis=1)                        # [N, 2, 90, 256]


# ----------------------------------------------------------------------------
# One-time parameter preparation (pre-transpose / fuse / pad, bf16 cast)
# ----------------------------------------------------------------------------
def prepare_params(params):
    f32, bf16 = jnp.float32, jnp.bfloat16
    # conv1 -> block-diagonal [256,256] so one dot fills all 4 lane-concatenated (cp,s) slabs
    w1 = jnp.transpose(params["conv1_w"], (2, 3, 1, 0)).reshape(64, 64)      # [tap, cout]
    w1blk = jnp.kron(jnp.eye(4, dtype=f32), w1)
    b1 = jnp.tile(params["conv1_b"].reshape(1, 64), (1, 4))
    # conv2: the 4 kj taps of each ki stacked along K=256; lane-block order = (kj%2)*2 + kj//2
    w2t = jnp.transpose(params["conv2_w"], (2, 3, 1, 0))                     # [ki, kj, cin, cout]
    w2c = jnp.zeros((4, 256, 128), f32)
    for ki in range(4):
        for kj in range(4):
            blk = (kj % 2) * 2 + kj // 2
            w2c = w2c.at[ki, blk * 64:(blk + 1) * 64, :].set(w2t[ki, kj])
    # conv3: the 3 kj taps of each ki stacked along K=384 (rows = kj*128 + cin)
    w3t = jnp.transpose(params["conv3_w"], (2, 3, 1, 0))                     # [ki, kj, cin, cout]
    w3c = jnp.concatenate([w3t[:, kj] for kj in range(3)], axis=1)           # [3, 384, 64]
    # fc1: permute torch's c*49+hw input order to hw*64+c (matches in-kernel lane flatten)
    wf1 = (params["fc1_w"].reshape(HIDDEN_SIZE, 64, 49)
           .transpose(2, 1, 0).reshape(FC1_K, HIDDEN_SIZE))
    # fc2: pad 3 -> 128 output lanes; padded logits get -1e30 bias (zeroed by softmax)
    wf2 = jnp.zeros((HIDDEN_SIZE, PAD_OUT), f32).at[:, :N_ACTIONS].set(params["fc2_w"].T)
    bf2 = jnp.full((1, PAD_OUT), -1e30, f32).at[0, :N_ACTIONS].set(params["fc2_b"])
    return {
        "w1": w1blk.astype(bf16), "b1": b1.astype(f32),
        "w2": w2c.astype(bf16), "b2": params["conv2_b"].reshape(1, 128).astype(f32),
        "w3": w3c.astype(bf16), "b3": params["conv3_b"].reshape(1, 64).astype(f32),
        "wf1": wf1.astype(bf16), "bf1": params["fc1_b"].reshape(1, HIDDEN_SIZE).astype(f32),
        "wf2": wf2.astype(bf16), "bf2": bf2,
    }


# ----------------------------------------------------------------------------
# Forward pass: one fused, batch-blocked pallas_call
# ----------------------------------------------------------------------------
def policy_forward(prepped, x_nchw, batch_block=None):
    n = x_nchw.shape[0]
    if batch_block is None:
        # Amortize per-step overhead (B images/step) while keeping >=2 grid steps so
        # v7x's two TensorCores both get work on the "parallel" grid axis.
        batch_block = 1 if n < 4 else min(8, n // 2)
    B = int(batch_block)
    n_blocks = pl.cdiv(n, B)
    n_pad = n_blocks * B

    p1s = _conv1_patches_arranged(x_nchw)                  # [n, 2, 90, 256] bf16
    if n_pad != n:
        p1s = jnp.pad(p1s, ((0, n_pad - n), (0, 0), (0, 0), (0, 0)))

    flops_per_img = 2 * (2 * 90 * 256 * 256 + 4 * 81 * 256 * 128
                         + 3 * 49 * 384 * 64 + FC1_K * HIDDEN_SIZE
                         + HIDDEN_SIZE * PAD_OUT)
    weight_bytes = sum(int(v.size) * v.dtype.itemsize for v in prepped.values())
    cost = pl.CostEstimate(
        flops=flops_per_img * n_pad,
        transcendentals=PAD_OUT * n_pad,
        bytes_accessed=int(p1s.size) * 2 + weight_bytes + n_pad * PAD_OUT * 4)

    out = pl.pallas_call(
        _make_policy_kernel(B),
        out_shape=jax.ShapeDtypeStruct((n_pad, 1, PAD_OUT), jnp.float32),
        grid=(n_blocks,),
        in_specs=[
            pl.BlockSpec((B, 2, 90, 256), lambda i: (i, 0, 0, 0)),     # conv1 patch slabs
            pl.BlockSpec((256, 256), lambda i: (0, 0)),                # w1 (block-diag)
            pl.BlockSpec((1, 256), lambda i: (0, 0)),                  # b1 (tiled)
            pl.BlockSpec((4, 256, 128), lambda i: (0, 0, 0)),          # w2 (K-fused taps)
            pl.BlockSpec((1, 128), lambda i: (0, 0)),                  # b2
            pl.BlockSpec((3, 384, 64), lambda i: (0, 0, 0)),           # w3 (K-fused taps)
            pl.BlockSpec((1, 64), lambda i: (0, 0)),                   # b3
            pl.BlockSpec((FC1_K, HIDDEN_SIZE), lambda i: (0, 0)),      # fc1 weight
            pl.BlockSpec((1, HIDDEN_SIZE), lambda i: (0, 0)),          # fc1 bias
            pl.BlockSpec((HIDDEN_SIZE, PAD_OUT), lambda i: (0, 0)),    # fc2 weight (padded)
            pl.BlockSpec((1, PAD_OUT), lambda i: (0, 0)),              # fc2 bias (padded)
        ],
        out_specs=pl.BlockSpec((B, 1, PAD_OUT), lambda i: (i, 0, 0)),
        scratch_shapes=[
            pltpu.VMEM((2, 90, 256), jnp.bfloat16),    # conv1 activations (lane-concat slabs)
            pltpu.VMEM((63, 384), jnp.bfloat16),       # conv2 activations (shift x lane-concat)
            pltpu.VMEM((B, FC1_K), jnp.float32),       # lane-flattened conv3 activations
        ],
        compiler_params=pltpu.CompilerParams(
            dimension_semantics=("parallel",),          # v7x: shard batch across TensorCores
            vmem_limit_bytes=32 * 1024 * 1024,          # explicit budget (~6 MB used at B=8)
        ),
        cost_estimate=cost,
    )(p1s, prepped["w1"], prepped["b1"], prepped["w2"], prepped["b2"],
      prepped["w3"], prepped["b3"], prepped["wf1"], prepped["bf1"],
      prepped["wf2"], prepped["bf2"])

    # Slice off batch padding and the -1e30 padded lanes BEFORE any downstream log().
    return out[:n, 0, :N_ACTIONS]


# ----------------------------------------------------------------------------
# Pure-JAX reference (PyTorch semantics) for a sanity check
# ----------------------------------------------------------------------------
def reference_forward(params, x_nchw):
    dn = ("NCHW", "OIHW", "NCHW")

    def conv(x, w, b, stride):
        y = jax.lax.conv_general_dilated(
            x, w, (stride, stride), "VALID", dimension_numbers=dn,
            preferred_element_type=jnp.float32)
        return jax.nn.relu(y + b[None, :, None, None])

    x = conv(x_nchw, params["conv1_w"], params["conv1_b"], 4)
    x = conv(x, params["conv2_w"], params["conv2_b"], 2)
    x = conv(x, params["conv3_w"], params["conv3_b"], 1)
    x = x.reshape(x.shape[0], -1)
    x = jax.nn.relu(x @ params["fc1_w"].T + params["fc1_b"])
    x = x @ params["fc2_w"].T + params["fc2_b"]
    return jax.nn.softmax(x, axis=-1)


# ----------------------------------------------------------------------------
# Deterministic parameter init (PyTorch-style uniform(-1/sqrt(fan_in), ...))
# ----------------------------------------------------------------------------
def init_params(key):
    def u(k, shape, fan_in):
        bound = 1.0 / jnp.sqrt(fan_in)
        return jax.random.uniform(k, shape, jnp.float32, -bound, bound)

    ks = jax.random.split(key, 10)
    return {
        "conv1_w": u(ks[0], (64, 1, 8, 8), 1 * 8 * 8),
        "conv1_b": u(ks[1], (64,), 1 * 8 * 8),
        "conv2_w": u(ks[2], (128, 64, 4, 4), 64 * 4 * 4),
        "conv2_b": u(ks[3], (128,), 64 * 4 * 4),
        "conv3_w": u(ks[4], (64, 128, 3, 3), 128 * 3 * 3),
        "conv3_b": u(ks[5], (64,), 128 * 3 * 3),
        "fc1_w":   u(ks[6], (HIDDEN_SIZE, FC1_K), FC1_K),
        "fc1_b":   u(ks[7], (HIDDEN_SIZE,), FC1_K),
        "fc2_w":   u(ks[8], (N_ACTIONS, HIDDEN_SIZE), HIDDEN_SIZE),
        "fc2_b":   u(ks[9], (N_ACTIONS,), HIDDEN_SIZE),
    }


if __name__ == "__main__":
    key = jax.random.PRNGKey(0)
    kp, kx = jax.random.split(key)
    params = init_params(kp)
    prepped = prepare_params(params)        # one-time weight prep

    # The FC stack is hard-wired to an 84x84, 1-channel input in the module.
    batch = 2
    x = jax.random.normal(kx, (batch, 1, 84, 84), jnp.float32)

    fwd = jax.jit(policy_forward, static_argnames=("batch_block",))
    probs = jax.block_until_ready(fwd(prepped, x))

    assert probs.shape == (batch, N_ACTIONS), probs.shape
    assert bool(jnp.all(jnp.isfinite(probs)))
    # exact softmax normalization in-kernel -> rows sum to 1
    assert bool(jnp.all(jnp.abs(jnp.sum(probs, axis=-1) - 1.0) < 1e-3))
    # bf16 weights/activations vs the f32 PyTorch-semantics reference (documented choice)
    ref = jax.block_until_ready(reference_forward(params, x))
    err = float(jnp.max(jnp.abs(probs - ref)))
    assert err < 3e-2, err

    print("KERNEL_OK")
</pallas_src>

<mosaic_0001>
module attributes {stable_mosaic.version = 11 : i64} {
  func.func @kernel(%arg0: i32, %arg1: memref<1x2x90x256xbf16, #tpu.memory_space<vmem>>, %arg2: memref<256x256xbf16, #tpu.memory_space<vmem>>, %arg3: memref<1x256xf32, #tpu.memory_space<vmem>>, %arg4: memref<4x256x128xbf16, #tpu.memory_space<vmem>>, %arg5: memref<1x128xf32, #tpu.memory_space<vmem>>, %arg6: memref<3x384x64xbf16, #tpu.memory_space<vmem>>, %arg7: memref<1x64xf32, #tpu.memory_space<vmem>>, %arg8: memref<3136x256xbf16, #tpu.memory_space<vmem>>, %arg9: memref<1x256xf32, #tpu.memory_space<vmem>>, %arg10: memref<256x128xbf16, #tpu.memory_space<vmem>>, %arg11: memref<1x128xf32, #tpu.memory_space<vmem>>, %arg12: memref<1x1x128xf32, #tpu.memory_space<vmem>>, %arg13: memref<2x90x256xbf16, #tpu.memory_space<vmem>>, %arg14: memref<63x384xbf16, #tpu.memory_space<vmem>>, %arg15: memref<1x3136xf32, #tpu.memory_space<vmem>>) attributes {dimension_semantics = [#tpu.dimension_semantics<parallel>], iteration_bounds = array<i64: 2>, scalar_prefetch = 0 : i64, scratch_operands = 3 : i64, tpu.core_type = #tpu.core_type<tc>, window_params = [{transform_indices = @transform_0, window_bounds = array<i64: 1, 2, 90, 256>}, {pipeline_mode = #tpu.pipeline_mode<synchronous>, transform_indices = @transform_1, window_bounds = array<i64: 256, 256>}, {pipeline_mode = #tpu.pipeline_mode<synchronous>, transform_indices = @transform_2, window_bounds = array<i64: 1, 256>}, {pipeline_mode = #tpu.pipeline_mode<synchronous>, transform_indices = @transform_3, window_bounds = array<i64: 4, 256, 128>}, {pipeline_mode = #tpu.pipeline_mode<synchronous>, transform_indices = @transform_4, window_bounds = array<i64: 1, 128>}, {pipeline_mode = #tpu.pipeline_mode<synchronous>, transform_indices = @transform_5, window_bounds = array<i64: 3, 384, 64>}, {pipeline_mode = #tpu.pipeline_mode<synchronous>, transform_indices = @transform_6, window_bounds = array<i64: 1, 64>}, {pipeline_mode = #tpu.pipeline_mode<synchronous>, transform_indices = @transform_7, window_bounds = array<i64: 3136, 256>}, {pipeline_mode = #tpu.pipeline_mode<synchronous>, transform_indices = @transform_8, window_bounds = array<i64: 1, 256>}, {pipeline_mode = #tpu.pipeline_mode<synchronous>, transform_indices = @transform_9, window_bounds = array<i64: 256, 128>}, {pipeline_mode = #tpu.pipeline_mode<synchronous>, transform_indices = @transform_10, window_bounds = array<i64: 1, 128>}, {transform_indices = @transform_11, window_bounds = array<i64: 1, 1, 128>}]} {
    %c0 = arith.constant 0 : index
    %c0_0 = arith.constant 0 : index
    %0 = vector.load %arg2[%c0, %c0_0] : memref<256x256xbf16, #tpu.memory_space<vmem>>, vector<256x256xbf16>
    %c0_1 = arith.constant 0 : index
    %c0_2 = arith.constant 0 : index
    %1 = vector.load %arg3[%c0_1, %c0_2] : memref<1x256xf32, #tpu.memory_space<vmem>>, vector<1x256xf32>
    %c0_3 = arith.constant 0 : index
    %c0_4 = arith.constant 0 : index
    %c0_5 = arith.constant 0 : index
    %c0_6 = arith.constant 0 : index
    %2 = vector.load %arg1[%c0_3, %c0_4, %c0_5, %c0_6] : memref<1x2x90x256xbf16, #tpu.memory_space<vmem>>, vector<1x1x90x256xbf16>
    %3 = vector.shape_cast %2 : vector<1x1x90x256xbf16> to vector<90x256xbf16>
    %cst = arith.constant dense<0.000000e+00> : vector<90x256xf32>
    %4 = tpu.matmul %3, %0, %cst {dimension_numbers = #tpu.dot_dimension_numbers<[1], [0], [0], [1], [0, 0, 1, 1], [], []>} : vector<90x256xbf16>, vector<256x256xbf16>, vector<90x256xf32> -> vector<90x256xf32>
    %5 = vector.broadcast %1 : vector<1x256xf32> to vector<90x256xf32>
    %6 = arith.addf %4, %5 : vector<90x256xf32>
    %cst_7 = arith.constant 0.000000e+00 : f32
    %7 = vector.broadcast %cst_7 : f32 to vector<90x256xf32>
    %8 = arith.maximumf %6, %7 : vector<90x256xf32>
    %9 = arith.truncf %8 : vector<90x256xf32> to vector<90x256xbf16>
    %c0_8 = arith.constant 0 : index
    %c0_9 = arith.constant 0 : index
    %c0_10 = arith.constant 0 : index
    %10 = vector.load %arg13[%c0_8, %c0_9, %c0_10] : memref<2x90x256xbf16, #tpu.memory_space<vmem>>, vector<1x90x256xbf16>
    %11 = vector.shape_cast %10 : vector<1x90x256xbf16> to vector<90x256xbf16>
    %12 = vector.shape_cast %9 : vector<90x256xbf16> to vector<1x90x256xbf16>
    tpu.vector_store %arg13[%c0_8, %c0_9, %c0_10], %12 {strides = array<i32>} : memref<2x90x256xbf16, #tpu.memory_space<vmem>>, vector<1x90x256xbf16>,
    %c0_11 = arith.constant 0 : index
    %c1 = arith.constant 1 : index
    %c0_12 = arith.constant 0 : index
    %c0_13 = arith.constant 0 : index
    %13 = vector.load %arg1[%c0_11, %c1, %c0_12, %c0_13] : memref<1x2x90x256xbf16, #tpu.memory_space<vmem>>, vector<1x1x90x256xbf16>
    %14 = vector.shape_cast %13 : vector<1x1x90x256xbf16> to vector<90x256xbf16>
    %cst_14 = arith.constant dense<0.000000e+00> : vector<90x256xf32>
    %15 = tpu.matmul %14, %0, %cst_14 {dimension_numbers = #tpu.dot_dimension_numbers<[1], [0], [0], [1], [0, 0, 1, 1], [], []>} : vector<90x256xbf16>, vector<256x256xbf16>, vector<90x256xf32> -> vector<90x256xf32>
    %16 = vector.broadcast %1 : vector<1x256xf32> to vector<90x256xf32>
    %17 = arith.addf %15, %16 : vector<90x256xf32>
    %cst_15 = arith.constant 0.000000e+00 : f32
    %18 = vector.broadcast %cst_15 : f32 to vector<90x256xf32>
    %19 = arith.maximumf %17, %18 : vector<90x256xf32>
    %20 = arith.truncf %19 : vector<90x256xf32> to vector<90x256xbf16>
    %c1_16 = arith.constant 1 : index
    %c0_17 = arith.constant 0 : index
    %c0_18 = arith.constant 0 : index
    %21 = vector.load %arg13[%c1_16, %c0_17, %c0_18] : memref<2x90x256xbf16, #tpu.memory_space<vmem>>, vector<1x90x256xbf16>
    %22 = vector.shape_cast %21 : vector<1x90x256xbf16> to vector<90x256xbf16>
    %23 = vector.shape_cast %20 : vector<90x256xbf16> to vector<1x90x256xbf16>
    tpu.vector_store %arg13[%c1_16, %c0_17, %c0_18], %23 {strides = array<i32>} : memref<2x90x256xbf16, #tpu.memory_space<vmem>>, vector<1x90x256xbf16>,
    %c0_19 = arith.constant 0 : index
    %c0_20 = arith.constant 0 : index
    %c0_21 = arith.constant 0 : index
    %24 = vector.load %arg13[%c0_19, %c0_20, %c0_21] : memref<2x90x256xbf16, #tpu.memory_space<vmem>>, vector<1x81x256xbf16>
    %25 = vector.shape_cast %24 : vector<1x81x256xbf16> to vector<81x256xbf16>
    %c0_22 = arith.constant 0 : index
    %c0_23 = arith.constant 0 : index
    %c0_24 = arith.constant 0 : index
    %26 = vector.load %arg4[%c0_22, %c0_23, %c0_24] : memref<4x256x128xbf16, #tpu.memory_space<vmem>>, vector<1x256x128xbf16>
    %27 = vector.shape_cast %26 : vector<1x256x128xbf16> to vector<256x128xbf16>
    %cst_25 = arith.constant dense<0.000000e+00> : vector<81x128xf32>
    %28 = tpu.matmul %25, %27, %cst_25 {dimension_numbers = #tpu.dot_dimension_numbers<[1], [0], [0], [1], [0, 0, 1, 1], [], []>} : vector<81x256xbf16>, vector<256x128xbf16>, vector<81x128xf32> -> vector<81x128xf32>
    %c1_26 = arith.constant 1 : index
    %c0_27 = arith.constant 0 : index
    %c0_28 = arith.constant 0 : index
    %29 = vector.load %arg13[%c1_26, %c0_27, %c0_28] : memref<2x90x256xbf16, #tpu.memory_space<vmem>>, vector<1x81x256xbf16>
    %30 = vector.shape_cast %29 : vector<1x81x256xbf16> to vector<81x256xbf16>
    %c1_29 = arith.constant 1 : index
    %c0_30 = arith.constant 0 : index
    %c0_31 = arith.constant 0 : index
    %31 = vector.load %arg4[%c1_29, %c0_30, %c0_31] : memref<4x256x128xbf16, #tpu.memory_space<vmem>>, vector<1x256x128xbf16>
    %32 = vector.shape_cast %31 : vector<1x256x128xbf16> to vector<256x128xbf16>
    %cst_32 = arith.constant dense<0.000000e+00> : vector<81x128xf32>
    %33 = tpu.matmul %30, %32, %cst_32 {dimension_numbers = #tpu.dot_dimension_numbers<[1], [0], [0], [1], [0, 0, 1, 1], [], []>} : vector<81x256xbf16>, vector<256x128xbf16>, vector<81x128xf32> -> vector<81x128xf32>
    %34 = arith.addf %28, %33 : vector<81x128xf32>
    %c0_33 = arith.constant 0 : index
    %c9 = arith.constant 9 : index
    %c0_34 = arith.constant 0 : index
    %35 = vector.load %arg13[%c0_33, %c9, %c0_34] : memref<2x90x256xbf16, #tpu.memory_space<vmem>>, vector<1x81x256xbf16>
    %36 = vector.shape_cast %35 : vector<1x81x256xbf16> to vector<81x256xbf16>
    %c2 = arith.constant 2 : index
    %c0_35 = arith.constant 0 : index
    %c0_36 = arith.constant 0 : index
    %37 = vector.load %arg4[%c2, %c0_35, %c0_36] : memref<4x256x128xbf16, #tpu.memory_space<vmem>>, vector<1x256x128xbf16>
    %38 = vector.shape_cast %37 : vector<1x256x128xbf16> to vector<256x128xbf16>
    %cst_37 = arith.constant dense<0.000000e+00> : vector<81x128xf32>
    %39 = tpu.matmul %36, %38, %cst_37 {dimension_numbers = #tpu.dot_dimension_numbers<[1], [0], [0], [1], [0, 0, 1, 1], [], []>} : vector<81x256xbf16>, vector<256x128xbf16>, vector<81x128xf32> -> vector<81x128xf32>
    %40 = arith.addf %34, %39 : vector<81x128xf32>
    %c1_38 = arith.constant 1 : index
    %c9_39 = arith.constant 9 : index
    %c0_40 = arith.constant 0 : index
    %41 = vector.load %arg13[%c1_38, %c9_39, %c0_40] : memref<2x90x256xbf16, #tpu.memory_space<vmem>>, vector<1x81x256xbf16>
    %42 = vector.shape_cast %41 : vector<1x81x256xbf16> to vector<81x256xbf16>
    %c3 = arith.constant 3 : index
    %c0_41 = arith.constant 0 : index
    %c0_42 = arith.constant 0 : index
    %43 = vector.load %arg4[%c3, %c0_41, %c0_42] : memref<4x256x128xbf16, #tpu.memory_space<vmem>>, vector<1x256x128xbf16>
    %44 = vector.shape_cast %43 : vector<1x256x128xbf16> to vector<256x128xbf16>
    %cst_43 = arith.constant dense<0.000000e+00> : vector<81x128xf32>
    %45 = tpu.matmul %42, %44, %cst_43 {dimension_numbers = #tpu.dot_dimension_numbers<[1], [0], [0], [1], [0, 0, 1, 1], [], []>} : vector<81x256xbf16>, vector<256x128xbf16>, vector<81x128xf32> -> vector<81x128xf32>
    %46 = arith.addf %40, %45 : vector<81x128xf32>
    %c0_44 = arith.constant 0 : index
    %c0_45 = arith.constant 0 : index
    %47 = vector.load %arg5[%c0_44, %c0_45] : memref<1x128xf32, #tpu.memory_space<vmem>>, vector<1x128xf32>
    %48 = vector.broadcast %47 : vector<1x128xf32> to vector<81x128xf32>
    %49 = arith.addf %46, %48 : vector<81x128xf32>
    %cst_46 = arith.constant 0.000000e+00 : f32
    %50 = vector.broadcast %cst_46 : f32 to vector<81x128xf32>
    %51 = arith.maximumf %49, %50 : vector<81x128xf32>
    %52 = vector.extract_strided_slice %51 {offsets = [0, 0], sizes = [7, 128], strides = [1, 1]} : vector<81x128xf32> to vector<7x128xf32>
    %53 = vector.extract_strided_slice %51 {offsets = [9, 0], sizes = [7, 128], strides = [1, 1]} : vector<81x128xf32> to vector<7x128xf32>
    %54 = vector.extract_strided_slice %51 {offsets = [18, 0], sizes = [7, 128], strides = [1, 1]} : vector<81x128xf32> to vector<7x128xf32>
    %55 = vector.extract_strided_slice %51 {offsets = [27, 0], sizes = [7, 128], strides = [1, 1]} : vector<81x128xf32> to vector<7x128xf32>
    %56 = vector.extract_strided_slice %51 {offsets = [36, 0], sizes = [7, 128], strides = [1, 1]} : vector<81x128xf32> to vector<7x128xf32>
    %57 = vector.extract_strided_slice %51 {offsets = [45, 0], sizes = [7, 128], strides = [1, 1]} : vector<81x128xf32> to vector<7x128xf32>
    %58 = vector.extract_strided_slice %51 {offsets = [54, 0], sizes = [7, 128], strides = [1, 1]} : vector<81x128xf32> to vector<7x128xf32>
    %59 = vector.extract_strided_slice %51 {offsets = [63, 0], sizes = [7, 128], strides = [1, 1]} : vector<81x128xf32> to vector<7x128xf32>
    %60 = vector.extract_strided_slice %51 {offsets = [72, 0], sizes = [7, 128], strides = [1, 1]} : vector<81x128xf32> to vector<7x128xf32>
    %61 = tpu.concatenate %52, %53, %54, %55, %56, %57, %58, %59, %60 in 0 : vector<7x128xf32>, vector<7x128xf32>, vector<7x128xf32>, vector<7x128xf32>, vector<7x128xf32>, vector<7x128xf32>, vector<7x128xf32>, vector<7x128xf32>, vector<7x128xf32> -> vector<63x128xf32>
    %62 = vector.extract_strided_slice %51 {offsets = [1, 0], sizes = [7, 128], strides = [1, 1]} : vector<81x128xf32> to vector<7x128xf32>
    %63 = vector.extract_strided_slice %51 {offsets = [10, 0], sizes = [7, 128], strides = [1, 1]} : vector<81x128xf32> to vector<7x128xf32>
    %64 = vector.extract_strided_slice %51 {offsets = [19, 0], sizes = [7, 128], strides = [1, 1]} : vector<81x128xf32> to vector<7x128xf32>
    %65 = vector.extract_strided_slice %51 {offsets = [28, 0], sizes = [7, 128], strides = [1, 1]} : vector<81x128xf32> to vector<7x128xf32>
    %66 = vector.extract_strided_slice %51 {offsets = [37, 0], sizes = [7, 128], strides = [1, 1]} : vector<81x128xf32> to vector<7x128xf32>
    %67 = vector.extract_strided_slice %51 {offsets = [46, 0], sizes = [7, 128], strides = [1, 1]} : vector<81x128xf32> to vector<7x128xf32>
    %68 = vector.extract_strided_slice %51 {offsets = [55, 0], sizes = [7, 128], strides = [1, 1]} : vector<81x128xf32> to vector<7x128xf32>
    %69 = vector.extract_strided_slice %51 {offsets = [64, 0], sizes = [7, 128], strides = [1, 1]} : vector<81x128xf32> to vector<7x128xf32>
    %70 = vector.extract_strided_slice %51 {offsets = [73, 0], sizes = [7, 128], strides = [1, 1]} : vector<81x128xf32> to vector<7x128xf32>
    %71 = tpu.concatenate %62, %63, %64, %65, %66, %67, %68, %69, %70 in 0 : vector<7x128xf32>, vector<7x128xf32>, vector<7x128xf32>, vector<7x128xf32>, vector<7x128xf32>, vector<7x128xf32>, vector<7x128xf32>, vector<7x128xf32>, vector<7x128xf32> -> vector<63x128xf32>
    %72 = vector.extract_strided_slice %51 {offsets = [2, 0], sizes = [7, 128], strides = [1, 1]} : vector<81x128xf32> to vector<7x128xf32>
    %73 = vector.extract_strided_slice %51 {offsets = [11, 0], sizes = [7, 128], strides = [1, 1]} : vector<81x128xf32> to vector<7x128xf32>
    %74 = vector.extract_strided_slice %51 {offsets = [20, 0], sizes = [7, 128], strides = [1, 1]} : vector<81x128xf32> to vector<7x128xf32>
    %75 = vector.extract_strided_slice %51 {offsets = [29, 0], sizes = [7, 128], strides = [1, 1]} : vector<81x128xf32> to vector<7x128xf32>
    %76 = vector.extract_strided_slice %51 {offsets = [38, 0], sizes = [7, 128], strides = [1, 1]} : vector<81x128xf32> to vector<7x128xf32>
    %77 = vector.extract_strided_slice %51 {offsets = [47, 0], sizes = [7, 128], strides = [1, 1]} : vector<81x128xf32> to vector<7x128xf32>
    %78 = vector.extract_strided_slice %51 {offsets = [56, 0], sizes = [7, 128], strides = [1, 1]} : vector<81x128xf32> to vector<7x128xf32>
    %79 = vector.extract_strided_slice %51 {offsets = [65, 0], sizes = [7, 128], strides = [1, 1]} : vector<81x128xf32> to vector<7x128xf32>
    %80 = vector.extract_strided_slice %51 {offsets = [74, 0], sizes = [7, 128], strides = [1, 1]} : vector<81x128xf32> to vector<7x128xf32>
    %81 = tpu.concatenate %72, %73, %74, %75, %76, %77, %78, %79, %80 in 0 : vector<7x128xf32>, vector<7x128xf32>, vector<7x128xf32>, vector<7x128xf32>, vector<7x128xf32>, vector<7x128xf32>, vector<7x128xf32>, vector<7x128xf32>, vector<7x128xf32> -> vector<63x128xf32>
    %82 = tpu.concatenate %61, %71, %81 in 1 : vector<63x128xf32>, vector<63x128xf32>, vector<63x128xf32> -> vector<63x384xf32>
    %83 = arith.truncf %82 : vector<63x384xf32> to vector<63x384xbf16>
    %c0_47 = arith.constant 0 : index
    %c0_48 = arith.constant 0 : index
    %84 = vector.load %arg14[%c0_47, %c0_48] : memref<63x384xbf16, #tpu.memory_space<vmem>>, vector<63x384xbf16>
    tpu.vector_store %arg14[%c0_47, %c0_48], %83 {strides = array<i32>} : memref<63x384xbf16, #tpu.memory_space<vmem>>, vector<63x384xbf16>,
    %c0_49 = arith.constant 0 : index
    %c0_50 = arith.constant 0 : index
    %85 = vector.load %arg14[%c0_49, %c0_50] : memref<63x384xbf16, #tpu.memory_space<vmem>>, vector<49x384xbf16>
    %c0_51 = arith.constant 0 : index
    %c0_52 = arith.constant 0 : index
    %c0_53 = arith.constant 0 : index
    %86 = vector.load %arg6[%c0_51, %c0_52, %c0_53] : memref<3x384x64xbf16, #tpu.memory_space<vmem>>, vector<1x384x64xbf16>
    %87 = vector.shape_cast %86 : vector<1x384x64xbf16> to vector<384x64xbf16>
    %cst_54 = arith.constant dense<0.000000e+00> : vector<49x64xf32>
    %88 = tpu.matmul %85, %87, %cst_54 {dimension_numbers = #tpu.dot_dimension_numbers<[1], [0], [0], [1], [0, 0, 1, 1], [], []>} : vector<49x384xbf16>, vector<384x64xbf16>, vector<49x64xf32> -> vector<49x64xf32>
    %c7 = arith.constant 7 : index
    %c0_55 = arith.constant 0 : index
    %89 = vector.load %arg14[%c7, %c0_55] : memref<63x384xbf16, #tpu.memory_space<vmem>>, vector<49x384xbf16>
    %c1_56 = arith.constant 1 : index
    %c0_57 = arith.constant 0 : index
    %c0_58 = arith.constant 0 : index
    %90 = vector.load %arg6[%c1_56, %c0_57, %c0_58] : memref<3x384x64xbf16, #tpu.memory_space<vmem>>, vector<1x384x64xbf16>
    %91 = vector.shape_cast %90 : vector<1x384x64xbf16> to vector<384x64xbf16>
    %cst_59 = arith.constant dense<0.000000e+00> : vector<49x64xf32>
    %92 = tpu.matmul %89, %91, %cst_59 {dimension_numbers = #tpu.dot_dimension_numbers<[1], [0], [0], [1], [0, 0, 1, 1], [], []>} : vector<49x384xbf16>, vector<384x64xbf16>, vector<49x64xf32> -> vector<49x64xf32>
    %93 = arith.addf %88, %92 : vector<49x64xf32>
    %c14 = arith.constant 14 : index
    %c0_60 = arith.constant 0 : index
    %94 = vector.load %arg14[%c14, %c0_60] : memref<63x384xbf16, #tpu.memory_space<vmem>>, vector<49x384xbf16>
    %c2_61 = arith.constant 2 : index
    %c0_62 = arith.constant 0 : index
    %c0_63 = arith.constant 0 : index
    %95 = vector.load %arg6[%c2_61, %c0_62, %c0_63] : memref<3x384x64xbf16, #tpu.memory_space<vmem>>, vector<1x384x64xbf16>
    %96 = vector.shape_cast %95 : vector<1x384x64xbf16> to vector<384x64xbf16>
    %cst_64 = arith.constant dense<0.000000e+00> : vector<49x64xf32>
    %97 = tpu.matmul %94, %96, %cst_64 {dimension_numbers = #tpu.dot_dimension_numbers<[1], [0], [0], [1], [0, 0, 1, 1], [], []>} : vector<49x384xbf16>, vector<384x64xbf16>, vector<49x64xf32> -> vector<49x64xf32>
    %98 = arith.addf %93, %97 : vector<49x64xf32>
    %c0_65 = arith.constant 0 : index
    %c0_66 = arith.constant 0 : index
    %99 = vector.load %arg7[%c0_65, %c0_66] : memref<1x64xf32, #tpu.memory_space<vmem>>, vector<1x64xf32>
    %100 = vector.broadcast %99 : vector<1x64xf32> to vector<49x64xf32>
    %101 = arith.addf %98, %100 : vector<49x64xf32>
    %cst_67 = arith.constant 0.000000e+00 : f32
    %102 = vector.broadcast %cst_67 : f32 to vector<49x64xf32>
    %103 = arith.maximumf %101, %102 : vector<49x64xf32>
    %104 = vector.extract_strided_slice %103 {offsets = [0, 0], sizes = [1, 64], strides = [1, 1]} : vector<49x64xf32> to vector<1x64xf32>
    %105 = vector.extract_strided_slice %103 {offsets = [1, 0], sizes = [1, 64], strides = [1, 1]} : vector<49x64xf32> to vector<1x64xf32>
    %106 = vector.extract_strided_slice %103 {offsets = [2, 0], sizes = [1, 64], strides = [1, 1]} : vector<49x64xf32> to vector<1x64xf32>
    %107 = vector.extract_strided_slice %103 {offsets = [3, 0], sizes = [1, 64], strides = [1, 1]} : vector<49x64xf32> to vector<1x64xf32>
    %108 = vector.extract_strided_slice %103 {offsets = [4, 0], sizes = [1, 64], strides = [1, 1]} : vector<49x64xf32> to vector<1x64xf32>
    %109 = vector.extract_strided_slice %103 {offsets = [5, 0], sizes = [1, 64], strides = [1, 1]} : vector<49x64xf32> to vector<1x64xf32>
    %110 = vector.extract_strided_slice %103 {offsets = [6, 0], sizes = [1, 64], strides = [1, 1]} : vector<49x64xf32> to vector<1x64xf32>
    %111 = vector.extract_strided_slice %103 {offsets = [7, 0], sizes = [1, 64], strides = [1, 1]} : vector<49x64xf32> to vector<1x64xf32>
    %112 = vector.extract_strided_slice %103 {offsets = [8, 0], sizes = [1, 64], strides = [1, 1]} : vector<49x64xf32> to vector<1x64xf32>
    %113 = vector.extract_strided_slice %103 {offsets = [9, 0], sizes = [1, 64], strides = [1, 1]} : vector<49x64xf32> to vector<1x64xf32>
    %114 = vector.extract_strided_slice %103 {offsets = [10, 0], sizes = [1, 64], strides = [1, 1]} : vector<49x64xf32> to vector<1x64xf32>
    %115 = vector.extract_strided_slice %103 {offsets = [11, 0], sizes = [1, 64], strides = [1, 1]} : vector<49x64xf32> to vector<1x64xf32>
    %116 = vector.extract_strided_slice %103 {offsets = [12, 0], sizes = [1, 64], strides = [1, 1]} : vector<49x64xf32> to vector<1x64xf32>
    %117 = vector.extract_strided_slice %103 {offsets = [13, 0], sizes = [1, 64], strides = [1, 1]} : vector<49x64xf32> to vector<1x64xf32>
    %118 = vector.extract_strided_slice %103 {offsets = [14, 0], sizes = [1, 64], strides = [1, 1]} : vector<49x64xf32> to vector<1x64xf32>
    %119 = vector.extract_strided_slice %103 {offsets = [15, 0], sizes = [1, 64], strides = [1, 1]} : vector<49x64xf32> to vector<1x64xf32>
    %120 = vector.extract_strided_slice %103 {offsets = [16, 0], sizes = [1, 64], strides = [1, 1]} : vector<49x64xf32> to vector<1x64xf32>
    %121 = vector.extract_strided_slice %103 {offsets = [17, 0], sizes = [1, 64], strides = [1, 1]} : vector<49x64xf32> to vector<1x64xf32>
    %122 = vector.extract_strided_slice %103 {offsets = [18, 0], sizes = [1, 64], strides = [1, 1]} : vector<49x64xf32> to vector<1x64xf32>
    %123 = vector.extract_strided_slice %103 {offsets = [19, 0], sizes = [1, 64], strides = [1, 1]} : vector<49x64xf32> to vector<1x64xf32>
    %124 = vector.extract_strided_slice %103 {offsets = [20, 0], sizes = [1, 64], strides = [1, 1]} : vector<49x64xf32> to vector<1x64xf32>
    %125 = vector.extract_strided_slice %103 {offsets = [21, 0], sizes = [1, 64], strides = [1, 1]} : vector<49x64xf32> to vector<1x64xf32>
    %126 = vector.extract_strided_slice %103 {offsets = [22, 0], sizes = [1, 64], strides = [1, 1]} : vector<49x64xf32> to vector<1x64xf32>
    %127 = vector.extract_strided_slice %103 {offsets = [23, 0], sizes = [1, 64], strides = [1, 1]} : vector<49x64xf32> to vector<1x64xf32>
    %128 = vector.extract_strided_slice %103 {offsets = [24, 0], sizes = [1, 64], strides = [1, 1]} : vector<49x64xf32> to vector<1x64xf32>
    %129 = vector.extract_strided_slice %103 {offsets = [25, 0], sizes = [1, 64], strides = [1, 1]} : vector<49x64xf32> to vector<1x64xf32>
    %130 = vector.extract_strided_slice %103 {offsets = [26, 0], sizes = [1, 64], strides = [1, 1]} : vector<49x64xf32> to vector<1x64xf32>
    %131 = vector.extract_strided_slice %103 {offsets = [27, 0], sizes = [1, 64], strides = [1, 1]} : vector<49x64xf32> to vector<1x64xf32>
    %132 = vector.extract_strided_slice %103 {offsets = [28, 0], sizes = [1, 64], strides = [1, 1]} : vector<49x64xf32> to vector<1x64xf32>
    %133 = vector.extract_strided_slice %103 {offsets = [29, 0], sizes = [1, 64], strides = [1, 1]} : vector<49x64xf32> to vector<1x64xf32>
    %134 = vector.extract_strided_slice %103 {offsets = [30, 0], sizes = [1, 64], strides = [1, 1]} : vector<49x64xf32> to vector<1x64xf32>
    %135 = vector.extract_strided_slice %103 {offsets = [31, 0], sizes = [1, 64], strides = [1, 1]} : vector<49x64xf32> to vector<1x64xf32>
    %136 = vector.extract_strided_slice %103 {offsets = [32, 0], sizes = [1, 64], strides = [1, 1]} : vector<49x64xf32> to vector<1x64xf32>
    %137 = vector.extract_strided_slice %103 {offsets = [33, 0], sizes = [1, 64], strides = [1, 1]} : vector<49x64xf32> to vector<1x64xf32>
    %138 = vector.extract_strided_slice %103 {offsets = [34, 0], sizes = [1, 64], strides = [1, 1]} : vector<49x64xf32> to vector<1x64xf32>
    %139 = vector.extract_strided_slice %103 {offsets = [35, 0], sizes = [1, 64], strides = [1, 1]} : vector<49x64xf32> to vector<1x64xf32>
    %140 = vector.extract_strided_slice %103 {offsets = [36, 0], sizes = [1, 64], strides = [1, 1]} : vector<49x64xf32> to vector<1x64xf32>
    %141 = vector.extract_strided_slice %103 {offsets = [37, 0], sizes = [1, 64], strides = [1, 1]} : vector<49x64xf32> to vector<1x64xf32>
    %142 = vector.extract_strided_slice %103 {offsets = [38, 0], sizes = [1, 64], strides = [1, 1]} : vector<49x64xf32> to vector<1x64xf32>
    %143 = vector.extract_strided_slice %103 {offsets = [39, 0], sizes = [1, 64], strides = [1, 1]} : vector<49x64xf32> to vector<1x64xf32>
    %144 = vector.extract_strided_slice %103 {offsets = [40, 0], sizes = [1, 64], strides = [1, 1]} : vector<49x64xf32> to vector<1x64xf32>
    %145 = vector.extract_strided_slice %103 {offsets = [41, 0], sizes = [1, 64], strides = [1, 1]} : vector<49x64xf32> to vector<1x64xf32>
    %146 = vector.extract_strided_slice %103 {offsets = [42, 0], sizes = [1, 64], strides = [1, 1]} : vector<49x64xf32> to vector<1x64xf32>
    %147 = vector.extract_strided_slice %103 {offsets = [43, 0], sizes = [1, 64], strides = [1, 1]} : vector<49x64xf32> to vector<1x64xf32>
    %148 = vector.extract_strided_slice %103 {offsets = [44, 0], sizes = [1, 64], strides = [1, 1]} : vector<49x64xf32> to vector<1x64xf32>
    %149 = vector.extract_strided_slice %103 {offsets = [45, 0], sizes = [1, 64], strides = [1, 1]} : vector<49x64xf32> to vector<1x64xf32>
    %150 = vector.extract_strided_slice %103 {offsets = [46, 0], sizes = [1, 64], strides = [1, 1]} : vector<49x64xf32> to vector<1x64xf32>
    %151 = vector.extract_strided_slice %103 {offsets = [47, 0], sizes = [1, 64], strides = [1, 1]} : vector<49x64xf32> to vector<1x64xf32>
    %152 = vector.extract_strided_slice %103 {offsets = [48, 0], sizes = [1, 64], strides = [1, 1]} : vector<49x64xf32> to vector<1x64xf32>
    %153 = tpu.concatenate %104, %105, %106, %107, %108, %109, %110, %111, %112, %113, %114, %115, %116, %117, %118, %119 in 1 : vector<1x64xf32>, vector<1x64xf32>, vector<1x64xf32>, vector<1x64xf32>, vector<1x64xf32>, vector<1x64xf32>, vector<1x64xf32>, vector<1x64xf32>, vector<1x64xf32>, vector<1x64xf32>, vector<1x64xf32>, vector<1x64xf32>, vector<1x64xf32>, vector<1x64xf32>, vector<1x64xf32>, vector<1x64xf32> -> vector<1x1024xf32>
    %154 = tpu.concatenate %120, %121, %122, %123, %124, %125, %126, %127, %128, %129, %130, %131, %132, %133, %134, %135 in 1 : vector<1x64xf32>, vector<1x64xf32>, vector<1x64xf32>, vector<1x64xf32>, vector<1x64xf32>, vector<1x64xf32>, vector<1x64xf32>, vector<1x64xf32>, vector<1x64xf32>, vector<1x64xf32>, vector<1x64xf32>, vector<1x64xf32>, vector<1x64xf32>, vector<1x64xf32>, vector<1x64xf32>, vector<1x64xf32> -> vector<1x1024xf32>
    %155 = tpu.concatenate %136, %137, %138, %139, %140, %141, %142, %143, %144, %145, %146, %147, %148, %149, %150, %151 in 1 : vector<1x64xf32>, vector<1x64xf32>, vector<1x64xf32>, vector<1x64xf32>, vector<1x64xf32>, vector<1x64xf32>, vector<1x64xf32>, vector<1x64xf32>, vector<1x64xf32>, vector<1x64xf32>, vector<1x64xf32>, vector<1x64xf32>, vector<1x64xf32>, vector<1x64xf32>, vector<1x64xf32>, vector<1x64xf32> -> vector<1x1024xf32>
    %156 = tpu.concatenate %153, %154, %155, %152 in 1 : vector<1x1024xf32>, vector<1x1024xf32>, vector<1x1024xf32>, vector<1x64xf32> -> vector<1x3136xf32>
    %c0_68 = arith.constant 0 : index
    %c0_69 = arith.constant 0 : index
    %157 = vector.load %arg15[%c0_68, %c0_69] : memref<1x3136xf32, #tpu.memory_space<vmem>>, vector<1x3136xf32>
    tpu.vector_store %arg15[%c0_68, %c0_69], %156 {strides = array<i32>} : memref<1x3136xf32, #tpu.memory_space<vmem>>, vector<1x3136xf32>,
    %c0_70 = arith.constant 0 : index
    %c0_71 = arith.constant 0 : index
    %158 = vector.load %arg15[%c0_70, %c0_71] : memref<1x3136xf32, #tpu.memory_space<vmem>>, vector<1x3136xf32>
    %159 = arith.truncf %158 : vector<1x3136xf32> to vector<1x3136xbf16>
    %c0_72 = arith.constant 0 : index
    %c0_73 = arith.constant 0 : index
    %160 = vector.load %arg8[%c0_72, %c0_73] : memref<3136x256xbf16, #tpu.memory_space<vmem>>, vector<3136x256xbf16>
    %cst_74 = arith.constant dense<0.000000e+00> : vector<1x256xf32>
    %161 = tpu.matmul %159, %160, %cst_74 {dimension_numbers = #tpu.dot_dimension_numbers<[1], [0], [0], [1], [0, 0, 1, 1], [], []>} : vector<1x3136xbf16>, vector<3136x256xbf16>, vector<1x256xf32> -> vector<1x256xf32>
    %c0_75 = arith.constant 0 : index
    %c0_76 = arith.constant 0 : index
    %162 = vector.load %arg9[%c0_75, %c0_76] : memref<1x256xf32, #tpu.memory_space<vmem>>, vector<1x256xf32>
    %163 = arith.addf %161, %162 : vector<1x256xf32>
    %cst_77 = arith.constant 0.000000e+00 : f32
    %164 = vector.broadcast %cst_77 : f32 to vector<1x256xf32>
    %165 = arith.maximumf %163, %164 : vector<1x256xf32>
    %166 = arith.truncf %165 : vector<1x256xf32> to vector<1x256xbf16>
    %c0_78 = arith.constant 0 : index
    %c0_79 = arith.constant 0 : index
    %167 = vector.load %arg10[%c0_78, %c0_79] : memref<256x128xbf16, #tpu.memory_space<vmem>>, vector<256x128xbf16>
    %cst_80 = arith.constant dense<0.000000e+00> : vector<1x128xf32>
    %168 = tpu.matmul %166, %167, %cst_80 {dimension_numbers = #tpu.dot_dimension_numbers<[1], [0], [0], [1], [0, 0, 1, 1], [], []>} : vector<1x256xbf16>, vector<256x128xbf16>, vector<1x128xf32> -> vector<1x128xf32>
    %c0_81 = arith.constant 0 : index
    %c0_82 = arith.constant 0 : index
    %169 = vector.load %arg11[%c0_81, %c0_82] : memref<1x128xf32, #tpu.memory_space<vmem>>, vector<1x128xf32>
    %170 = arith.addf %168, %169 : vector<1x128xf32>
    %cst_83 = arith.constant dense<0xFF800000> : vector<1xf32>
    %171 = vector.multi_reduction <maximumf>, %170, %cst_83 [1] : vector<1x128xf32> to vector<1xf32>
    %172 = vector.shape_cast %171 : vector<1xf32> to vector<1x1xf32>
    %173 = vector.broadcast %172 : vector<1x1xf32> to vector<1x128xf32>
    %174 = arith.subf %170, %173 : vector<1x128xf32>
    %175 = math.exp %174 : vector<1x128xf32>
    %cst_84 = arith.constant dense<0.000000e+00> : vector<1xf32>
    %176 = vector.multi_reduction <add>, %175, %cst_84 [1] : vector<1x128xf32> to vector<1xf32>
    %177 = vector.shape_cast %176 : vector<1xf32> to vector<1x1xf32>
    %178 = vector.broadcast %177 : vector<1x1xf32> to vector<1x128xf32>
    %179 = arith.divf %175, %178 : vector<1x128xf32>
    %c0_85 = arith.constant 0 : index
    %c0_86 = arith.constant 0 : index
    %c0_87 = arith.constant 0 : index
    %180 = vector.load %arg12[%c0_85, %c0_86, %c0_87] : memref<1x1x128xf32, #tpu.memory_space<vmem>>, vector<1x1x128xf32>
    %181 = vector.shape_cast %180 : vector<1x1x128xf32> to vector<1x128xf32>
    %182 = vector.shape_cast %179 : vector<1x128xf32> to vector<1x1x128xf32>
    tpu.vector_store %arg12[%c0_85, %c0_86, %c0_87], %182 {strides = array<i32>} : memref<1x1x128xf32, #tpu.memory_space<vmem>>, vector<1x1x128xf32>,
    return
  }
  func.func @transform_0(%arg0: i32) -> (i32, i32, i32, i32) {
    %c0_i32 = arith.constant 0 : i32
    %c0_i32_0 = arith.constant 0 : i32
    %c0_i32_1 = arith.constant 0 : i32
    %c0_i32_2 = arith.constant 0 : i32
    return %arg0, %c0_i32, %c0_i32_0, %c0_i32_1 : i32, i32, i32, i32
  }
  func.func @transform_1(%arg0: i32) -> (i32, i32) {
    %c0_i32 = arith.constant 0 : i32
    %c0_i32_0 = arith.constant 0 : i32
    %c0_i32_1 = arith.constant 0 : i32
    return %c0_i32, %c0_i32_0 : i32, i32
  }
  func.func @transform_2(%arg0: i32) -> (i32, i32) {
    %c0_i32 = arith.constant 0 : i32
    %c0_i32_0 = arith.constant 0 : i32
    %c0_i32_1 = arith.constant 0 : i32
    return %c0_i32, %c0_i32_0 : i32, i32
  }
  func.func @transform_3(%arg0: i32) -> (i32, i32, i32) {
    %c0_i32 = arith.constant 0 : i32
    %c0_i32_0 = arith.constant 0 : i32
    %c0_i32_1 = arith.constant 0 : i32
    %c0_i32_2 = arith.constant 0 : i32
    return %c0_i32, %c0_i32_0, %c0_i32_1 : i32, i32, i32
  }
  func.func @transform_4(%arg0: i32) -> (i32, i32) {
    %c0_i32 = arith.constant 0 : i32
    %c0_i32_0 = arith.constant 0 : i32
    %c0_i32_1 = arith.constant 0 : i32
    return %c0_i32, %c0_i32_0 : i32, i32
  }
  func.func @transform_5(%arg0: i32) -> (i32, i32, i32) {
    %c0_i32 = arith.constant 0 : i32
    %c0_i32_0 = arith.constant 0 : i32
    %c0_i32_1 = arith.constant 0 : i32
    %c0_i32_2 = arith.constant 0 : i32
    return %c0_i32, %c0_i32_0, %c0_i32_1 : i32, i32, i32
  }
  func.func @transform_6(%arg0: i32) -> (i32, i32) {
    %c0_i32 = arith.constant 0 : i32
    %c0_i32_0 = arith.constant 0 : i32
    %c0_i32_1 = arith.constant 0 : i32
    return %c0_i32, %c0_i32_0 : i32, i32
  }
  func.func @transform_7(%arg0: i32) -> (i32, i32) {
    %c0_i32 = arith.constant 0 : i32
    %c0_i32_0 = arith.constant 0 : i32
    %c0_i32_1 = arith.constant 0 : i32
    return %c0_i32, %c0_i32_0 : i32, i32
  }
  func.func @transform_8(%arg0: i32) -> (i32, i32) {
    %c0_i32 = arith.constant 0 : i32
    %c0_i32_0 = arith.constant 0 : i32
    %c0_i32_1 = arith.constant 0 : i32
    return %c0_i32, %c0_i32_0 : i32, i32
  }
  func.func @transform_9(%arg0: i32) -> (i32, i32) {
    %c0_i32 = arith.constant 0 : i32
    %c0_i32_0 = arith.constant 0 : i32
    %c0_i32_1 = arith.constant 0 : i32
    return %c0_i32, %c0_i32_0 : i32, i32
  }
  func.func @transform_10(%arg0: i32) -> (i32, i32) {
    %c0_i32 = arith.constant 0 : i32
    %c0_i32_0 = arith.constant 0 : i32
    %c0_i32_1 = arith.constant 0 : i32
    return %c0_i32, %c0_i32_0 : i32, i32
  }
  func.func @transform_11(%arg0: i32) -> (i32, i32, i32) {
    %c0_i32 = arith.constant 0 : i32
    %c0_i32_0 = arith.constant 0 : i32
    %c0_i32_1 = arith.constant 0 : i32
    return %arg0, %c0_i32, %c0_i32_0 : i32, i32, i32
  }
}

</mosaic_0001>

<llo_original>
// kernel: policy_forward.1
$region0: #{policy_forward.1}
  #allocation0 [shape = 'u32[]', space=smem, size = 0x4, offset = 0x4, fixed_abs, tag = 'smem constant byte address 0x4 - core index']
  #allocation1 [shape = 'u32[72,128]{1,0:T(1,128)}', space=vmem, size = 0x9000, scoped, tag = 'internal scratch']
  #allocation2 [shape = 'bf16[2,90,256]{2,1,0:T(8,128)(2,1)}', space=vmem, size = 0x18000, scoped, tag = 'scratch operand']
  #allocation3 [shape = 'bf16[63,384]{1,0:T(8,128)(2,1)}', space=vmem, size = 0xc000, scoped, tag = 'scratch operand']
  #allocation4 [shape = 'f32[1,3136]{1,0:T(1,128)}', space=vmem, size = 0x3200, scoped, tag = 'scratch operand']
  %s0 = inlined_call_operand.vmem [shape: bf16[2,2,90,256], index: 0, kind: input, shape index: {}]
  %s1 = inlined_call_operand.vmem [shape: bf16[256,256], index: 1, kind: input, shape index: {}]
  %s2 = inlined_call_operand.vmem [shape: f32[1,256], index: 2, kind: input, shape index: {}]
  %s3 = inlined_call_operand.vmem [shape: bf16[4,256,128], index: 3, kind: input, shape index: {}]
  %s4 = inlined_call_operand.vmem [shape: f32[1,128], index: 4, kind: input, shape index: {}]
  %s5 = inlined_call_operand.vmem [shape: bf16[3,384,64], index: 5, kind: input, shape index: {}]
  %s6 = inlined_call_operand.vmem [shape: f32[1,64], index: 6, kind: input, shape index: {}]
  %s7 = inlined_call_operand.vmem [shape: bf16[3136,256], index: 7, kind: input, shape index: {}]
  %s8 = inlined_call_operand.vmem [shape: f32[1,256], index: 8, kind: input, shape index: {}]
  %s9 = inlined_call_operand.vmem [shape: bf16[256,128], index: 9, kind: input, shape index: {}]
  %s10 = inlined_call_operand.vmem [shape: f32[1,128], index: 10, kind: input, shape index: {}]
  %s11 = inlined_call_operand.hbm [shape: f32[2,1,128], index: 11, kind: output, shape index: {}]
  %s12 = sld [smem:[#allocation0]]
  $region77: #{policy_forward.1} parent=0
    _
  %s14 = ssub.s32 1, %s12
  %s15 = scalar_select 0, %s14, %s12
  $region1: #{policy_forward.1} parent=0
    #allocation5 [shape = 'u8[1024]{0}', space=vmem, size = 0x400, scoped, tag = 'output window, operand 0']
    #allocation6 [shape = 's32[2]{0}', space=sflag, size = 0x8, scoped, tag = 'scoped memory for policy_forward.1']
    %16 = vsyncpa [#allocation6], 0
    %s17 = scalar_lea.sflag [#allocation6], 1
    %18 = vsyncpa %s17, 0
    loop: start=0, step=1, limit=4
    $region2: #{policy_forward.1} parent=1 // loop_pre_header
      _
    $region3: #{policy_forward.1} parent=1 // loop_header
      %s20 = sphi 0, %s24
      %p21 = scmp.ge.s32.totalorder %s20, 4
      %s30 = sphi 0, %s32
      %s33 = sphi 0, %s30
      %s34 = sphi 0, %s33
      %s50 = sphi 0, %s34
      %s54 = sphi 0, %s54
      %s56 = sphi 0, %s54
      %s57 = sphi 0, %s56
      %s71 = sphi 0, %s57
      %s75 = sphi 0, %s75
      %s77 = sphi 0, %s75
      %s78 = sphi 0, %s77
      %s92 = sphi 0, %s78
      %s96 = sphi 0, %s96
      %s98 = sphi 0, %s96
      %s99 = sphi 0, %s98
      %s113 = sphi 0, %s99
      %s117 = sphi 0, %s117
      %s119 = sphi 0, %s117
      %s120 = sphi 0, %s119
      %s134 = sphi 0, %s120
      %s138 = sphi 0, %s138
      %s140 = sphi 0, %s138
      %s141 = sphi 0, %s140
      %s155 = sphi 0, %s141
      %s159 = sphi 0, %s159
      %s161 = sphi 0, %s159
      %s162 = sphi 0, %s161
      %s176 = sphi 0, %s162
      %s180 = sphi 0, %s180
      %s182 = sphi 0, %s180
      %s183 = sphi 0, %s182
      %s197 = sphi 0, %s183
      %s201 = sphi 0, %s201
      %s203 = sphi 0, %s201
      %s204 = sphi 0, %s203
      %s218 = sphi 0, %s204
      %s222 = sphi 0, %s222
      %s224 = sphi 0, %s222
      %s225 = sphi 0, %s224
      %s239 = sphi 0, %s225
      %s243 = sphi 0, %s243
      %s245 = sphi 0, %s243
      %s246 = sphi 0, %s245
      %s260 = sphi 0, %s246
      %s266 = sphi 0, %s268
      %s269 = sphi 0, %s266
      %s270 = sphi 0, %s269
      %s286 = sphi 0, %s270
    $region4: #{policy_forward.1} parent=1 // loop_header_branch
      %23 = sbr.rel (%p21) target = $region8
    $region5: #{policy_forward.1} parent=1 // loop_body
      %s25 = ssub.s32 %s20, 1
      %s26 = ssub.s32 %s20, 2
      %s27 = sadd.s32 %s20, 1
      %s28 = ssub.s32 %s20, %s27
      %p29 = scmp.eq.s32.totalorder %s28, 0
      %s31 = sadd.s32 %s30, 1
      %s32 = scalar_select %p29, %s30, %s31
      %p35 = pneg %p29
      %p36 = scmp.eq.s32.totalorder %s20, 1
      %p37 = por %p35, %p36
      %p38 = scmp.ne.s32.totalorder %s30, %s33
      %p39 = scmp.eq.s32.totalorder %s20, 0
      %p40 = por %p38, %p39
      %p41 = scmp.ne.s32.totalorder %s30, %s33
      %p42 = scmp.eq.s32.totalorder %s25, 1
      %p43 = por %p41, %p42
      %p44 = scmp.ne.s32.totalorder %s33, %s34
      %p45 = scmp.eq.s32.totalorder %s25, 0
      %p46 = por %p44, %p45
      %p47 = scmp.ne.s32.totalorder %s33, %s34
      %p48 = scmp.eq.s32.totalorder %s26, 1
      %p49 = por %p47, %p48
      %p51 = scmp.ne.s32.totalorder %s34, %s50
      %p52 = scmp.eq.s32.totalorder %s26, 0
      %p53 = por %p51, %p52
      %s55 = sadd.s32 %s54, 1
      %p58 = scmp.eq.s32.totalorder %s20, 1
      %p59 = scmp.ne.s32.totalorder %s54, %s56
      %p60 = scmp.eq.s32.totalorder %s20, 0
      %p61 = por %p59, %p60
      %p62 = scmp.ne.s32.totalorder %s54, %s56
      %p63 = scmp.eq.s32.totalorder %s25, 1
      %p64 = por %p62, %p63
      %p65 = scmp.ne.s32.totalorder %s56, %s57
      %p66 = scmp.eq.s32.totalorder %s25, 0
      %p67 = por %p65, %p66
      %p68 = scmp.ne.s32.totalorder %s56, %s57
      %p69 = scmp.eq.s32.totalorder %s26, 1
      %p70 = por %p68, %p69
      %p72 = scmp.ne.s32.totalorder %s57, %s71
      %p73 = scmp.eq.s32.totalorder %s26, 0
      %p74 = por %p72, %p73
      %s76 = sadd.s32 %s75, 1
      %p79 = scmp.eq.s32.totalorder %s20, 1
      %p80 = scmp.ne.s32.totalorder %s75, %s77
      %p81 = scmp.eq.s32.totalorder %s20, 0
      %p82 = por %p80, %p81
      %p83 = scmp.ne.s32.totalorder %s75, %s77
      %p84 = scmp.eq.s32.totalorder %s25, 1
      %p85 = por %p83, %p84
      %p86 = scmp.ne.s32.totalorder %s77, %s78
      %p87 = scmp.eq.s32.totalorder %s25, 0
      %p88 = por %p86, %p87
      %p89 = scmp.ne.s32.totalorder %s77, %s78
      %p90 = scmp.eq.s32.totalorder %s26, 1
      %p91 = por %p89, %p90
      %p93 = scmp.ne.s32.totalorder %s78, %s92
      %p94 = scmp.eq.s32.totalorder %s26, 0
      %p95 = por %p93, %p94
      %s97 = sadd.s32 %s96, 1
      %p100 = scmp.eq.s32.totalorder %s20, 1
      %p101 = scmp.ne.s32.totalorder %s96, %s98
      %p102 = scmp.eq.s32.totalorder %s20, 0
      %p103 = por %p101, %p102
      %p104 = scmp.ne.s32.totalorder %s96, %s98
      %p105 = scmp.eq.s32.totalorder %s25, 1
      %p106 = por %p104, %p105
      %p107 = scmp.ne.s32.totalorder %s98, %s99
      %p108 = scmp.eq.s32.totalorder %s25, 0
      %p109 = por %p107, %p108
      %p110 = scmp.ne.s32.totalorder %s98, %s99
      %p111 = scmp.eq.s32.totalorder %s26, 1
      %p112 = por %p110, %p111
      %p114 = scmp.ne.s32.totalorder %s99, %s113
      %p115 = scmp.eq.s32.totalorder %s26, 0
      %p116 = por %p114, %p115
      %s118 = sadd.s32 %s117, 1
      %p121 = scmp.eq.s32.totalorder %s20, 1
      %p122 = scmp.ne.s32.totalorder %s117, %s119
      %p123 = scmp.eq.s32.totalorder %s20, 0
      %p124 = por %p122, %p123
      %p125 = scmp.ne.s32.totalorder %s117, %s119
      %p126 = scmp.eq.s32.totalorder %s25, 1
      %p127 = por %p125, %p126
      %p128 = scmp.ne.s32.totalorder %s119, %s120
      %p129 = scmp.eq.s32.totalorder %s25, 0
      %p130 = por %p128, %p129
      %p131 = scmp.ne.s32.totalorder %s119, %s120
      %p132 = scmp.eq.s32.totalorder %s26, 1
      %p133 = por %p131, %p132
      %p135 = scmp.ne.s32.totalorder %s120, %s134
      %p136 = scmp.eq.s32.totalorder %s26, 0
      %p137 = por %p135, %p136
      %s139 = sadd.s32 %s138, 1
      %p142 = scmp.eq.s32.totalorder %s20, 1
      %p143 = scmp.ne.s32.totalorder %s138, %s140
      %p144 = scmp.eq.s32.totalorder %s20, 0
      %p145 = por %p143, %p144
      %p146 = scmp.ne.s32.totalorder %s138, %s140
      %p147 = scmp.eq.s32.totalorder %s25, 1
      %p148 = por %p146, %p147
      %p149 = scmp.ne.s32.totalorder %s140, %s141
      %p150 = scmp.eq.s32.totalorder %s25, 0
      %p151 = por %p149, %p150
      %p152 = scmp.ne.s32.totalorder %s140, %s141
      %p153 = scmp.eq.s32.totalorder %s26, 1
      %p154 = por %p152, %p153
      %p156 = scmp.ne.s32.totalorder %s141, %s155
      %p157 = scmp.eq.s32.totalorder %s26, 0
      %p158 = por %p156, %p157
      %s160 = sadd.s32 %s159, 1
      %p163 = scmp.eq.s32.totalorder %s20, 1
      %p164 = scmp.ne.s32.totalorder %s159, %s161
      %p165 = scmp.eq.s32.totalorder %s20, 0
      %p166 = por %p164, %p165
      %p167 = scmp.ne.s32.totalorder %s159, %s161
      %p168 = scmp.eq.s32.totalorder %s25, 1
      %p169 = por %p167, %p168
      %p170 = scmp.ne.s32.totalorder %s161, %s162
      %p171 = scmp.eq.s32.totalorder %s25, 0
      %p172 = por %p170, %p171
      %p173 = scmp.ne.s32.totalorder %s161, %s162
      %p174 = scmp.eq.s32.totalorder %s26, 1
      %p175 = por %p173, %p174
      %p177 = scmp.ne.s32.totalorder %s162, %s176
      %p178 = scmp.eq.s32.totalorder %s26, 0
      %p179 = por %p177, %p178
      %s181 = sadd.s32 %s180, 1
      %p184 = scmp.eq.s32.totalorder %s20, 1
      %p185 = scmp.ne.s32.totalorder %s180, %s182
      %p186 = scmp.eq.s32.totalorder %s20, 0
      %p187 = por %p185, %p186
      %p188 = scmp.ne.s32.totalorder %s180, %s182
      %p189 = scmp.eq.s32.totalorder %s25, 1
      %p190 = por %p188, %p189
      %p191 = scmp.ne.s32.totalorder %s182, %s183
      %p192 = scmp.eq.s32.totalorder %s25, 0
      %p193 = por %p191, %p192
      %p194 = scmp.ne.s32.totalorder %s182, %s183
      %p195 = scmp.eq.s32.totalorder %s26, 1
      %p196 = por %p194, %p195
      %p198 = scmp.ne.s32.totalorder %s183, %s197
      %p199 = scmp.eq.s32.totalorder %s26, 0
      %p200 = por %p198, %p199
      %s202 = sadd.s32 %s201, 1
      %p205 = scmp.eq.s32.totalorder %s20, 1
      %p206 = scmp.ne.s32.totalorder %s201, %s203
      %p207 = scmp.eq.s32.totalorder %s20, 0
      %p208 = por %p206, %p207
      %p209 = scmp.ne.s32.totalorder %s201, %s203
      %p210 = scmp.eq.s32.totalorder %s25, 1
      %p211 = por %p209, %p210
      %p212 = scmp.ne.s32.totalorder %s203, %s204
      %p213 = scmp.eq.s32.totalorder %s25, 0
      %p214 = por %p212, %p213
      %p215 = scmp.ne.s32.totalorder %s203, %s204
      %p216 = scmp.eq.s32.totalorder %s26, 1
      %p217 = por %p215, %p216
      %p219 = scmp.ne.s32.totalorder %s204, %s218
      %p220 = scmp.eq.s32.totalorder %s26, 0
      %p221 = por %p219, %p220
      %s223 = sadd.s32 %s222, 1
      %p226 = scmp.eq.s32.totalorder %s20, 1
      %p227 = scmp.ne.s32.totalorder %s222, %s224
      %p228 = scmp.eq.s32.totalorder %s20, 0
      %p229 = por %p227, %p228
      %p230 = scmp.ne.s32.totalorder %s222, %s224
      %p231 = scmp.eq.s32.totalorder %s25, 1
      %p232 = por %p230, %p231
      %p233 = scmp.ne.s32.totalorder %s224, %s225
      %p234 = scmp.eq.s32.totalorder %s25, 0
      %p235 = por %p233, %p234
      %p236 = scmp.ne.s32.totalorder %s224, %s225
      %p237 = scmp.eq.s32.totalorder %s26, 1
      %p238 = por %p236, %p237
      %p240 = scmp.ne.s32.totalorder %s225, %s239
      %p241 = scmp.eq.s32.totalorder %s26, 0
      %p242 = por %p240, %p241
      %s244 = sadd.s32 %s243, 1
      %p247 = scmp.eq.s32.totalorder %s20, 1
      %p248 = scmp.ne.s32.totalorder %s243, %s245
      %p249 = scmp.eq.s32.totalorder %s20, 0
      %p250 = por %p248, %p249
      %p251 = scmp.ne.s32.totalorder %s243, %s245
      %p252 = scmp.eq.s32.totalorder %s25, 1
      %p253 = por %p251, %p252
      %p254 = scmp.ne.s32.totalorder %s245, %s246
      %p255 = scmp.eq.s32.totalorder %s25, 0
      %p256 = por %p254, %p255
      %p257 = scmp.ne.s32.totalorder %s245, %s246
      %p258 = scmp.eq.s32.totalorder %s26, 1
      %p259 = por %p257, %p258
      %p261 = scmp.ne.s32.totalorder %s246, %s260
      %p262 = scmp.eq.s32.totalorder %s26, 0
      %p263 = por %p261, %p262
      %s264 = ssub.s32 %s20, %s27
      %p265 = scmp.eq.s32.totalorder %s264, 0
      %s267 = sadd.s32 %s266, 1
      %s268 = scalar_select %p265, %s266, %s267
      %p271 = pneg %p265
      %p272 = scmp.eq.s32.totalorder %s20, 1
      %p273 = por %p271, %p272
      %p274 = scmp.ne.s32.totalorder %s266, %s269
      %p275 = scmp.eq.s32.totalorder %s20, 0
      %p276 = por %p274, %p275
      %p277 = scmp.ne.s32.totalorder %s266, %s269
      %p278 = scmp.eq.s32.totalorder %s25, 1
      %p279 = por %p277, %p278
      %p280 = scmp.ne.s32.totalorder %s269, %s270
      %p281 = scmp.eq.s32.totalorder %s25, 0
      %p282 = por %p280, %p281
      %p283 = scmp.ne.s32.totalorder %s269, %s270
      %p284 = scmp.eq.s32.totalorder %s26, 1
      %p285 = por %p283, %p284
      %p287 = scmp.ne.s32.totalorder %s270, %s286
      %p288 = scmp.eq.s32.totalorder %s26, 0
      %p289 = por %p287, %p288
      %p290 = scmp.le.s32.totalorder 1, %s20
      %p291 = scmp.lt.s32.totalorder %s20, 3
      %p292 = pnand %p290, %p291
      %p293 = pneg %p292
      // Predicated region
      $region9: #{policy_forward.1} parent=5 // pred_check
        _
      $region10: #{policy_forward.1} parent=5 // pred_check_branch
        %295 = sbr.rel (%p292) target = $region12
      $region11: #{policy_forward.1} parent=5 // pred_region
        %s296 = ssub.s32 %s20, 1
        // Predicated region
        $region13: #{policy_forward.1} parent=11 // pred_check
          %p297 = pneg %p67
        $region14: #{policy_forward.1} parent=11 // pred_check_branch
          %299 = sbr.rel (%p297) target = $region16
        $region15: #{policy_forward.1} parent=11 // pred_region
          _
        $region16: #{policy_forward.1} parent=11 // pred_fallthru
          _
        // Predicated region
        $region17: #{policy_forward.1} parent=11 // pred_check
          %p300 = pneg %p88
        $region18: #{policy_forward.1} parent=11 // pred_check_branch
          %302 = sbr.rel (%p300) target = $region20
        $region19: #{policy_forward.1} parent=11 // pred_region
          _
        $region20: #{policy_forward.1} parent=11 // pred_fallthru
          _
        // Predicated region
        $region21: #{policy_forward.1} parent=11 // pred_check
          %p303 = pneg %p109
        $region22: #{policy_forward.1} parent=11 // pred_check_branch
          %305 = sbr.rel (%p303) target = $region24
        $region23: #{policy_forward.1} parent=11 // pred_region
          _
        $region24: #{policy_forward.1} parent=11 // pred_fallthru
          _
        // Predicated region
        $region25: #{policy_forward.1} parent=11 // pred_check
          %p306 = pneg %p130
        $region26: #{policy_forward.1} parent=11 // pred_check_branch
          %308 = sbr.rel (%p306) target = $region28
        $region27: #{policy_forward.1} parent=11 // pred_region
          _
        $region28: #{policy_forward.1} parent=11 // pred_fallthru
          _
        // Predicated region
        $region29: #{policy_forward.1} parent=11 // pred_check
          %p309 = pneg %p151
        $region30: #{policy_forward.1} parent=11 // pred_check_branch
          %311 = sbr.rel (%p309) target = $region32
        $region31: #{policy_forward.1} parent=11 // pred_region
          _
        $region32: #{policy_forward.1} parent=11 // pred_fallthru
          _
        // Predicated region
        $region33: #{policy_forward.1} parent=11 // pred_check
          %p312 = pneg %p172
        $region34: #{policy_forward.1} parent=11 // pred_check_branch
          %314 = sbr.rel (%p312) target = $region36
        $region35: #{policy_forward.1} parent=11 // pred_region
          _
        $region36: #{policy_forward.1} parent=11 // pred_fallthru
          _
        // Predicated region
        $region37: #{policy_forward.1} parent=11 // pred_check
          %p315 = pneg %p193
        $region38: #{policy_forward.1} parent=11 // pred_check_branch
          %317 = sbr.rel (%p315) target = $region40
        $region39: #{policy_forward.1} parent=11 // pred_region
          _
        $region40: #{policy_forward.1} parent=11 // pred_fallthru
          _
        // Predicated region
        $region41: #{policy_forward.1} parent=11 // pred_check
          %p318 = pneg %p214
        $region42: #{policy_forward.1} parent=11 // pred_check_branch
          %320 = sbr.rel (%p318) target = $region44
        $region43: #{policy_forward.1} parent=11 // pred_region
          _
        $region44: #{policy_forward.1} parent=11 // pred_fallthru
          _
        // Predicated region
        $region45: #{policy_forward.1} parent=11 // pred_check
          %p321 = pneg %p235
        $region46: #{policy_forward.1} parent=11 // pred_check_branch
          %323 = sbr.rel (%p321) target = $region48
        $region47: #{policy_forward.1} parent=11 // pred_region
          _
        $region48: #{policy_forward.1} parent=11 // pred_fallthru
          _
        // Predicated region
        $region49: #{policy_forward.1} parent=11 // pred_check
          %p324 = pneg %p256
        $region50: #{policy_forward.1} parent=11 // pred_check_branch
          %326 = sbr.rel (%p324) target = $region52
        $region51: #{policy_forward.1} parent=11 // pred_region
          _
        $region52: #{policy_forward.1} parent=11 // pred_fallthru
          _
      $region12: #{policy_forward.1} parent=5 // pred_fallthru
        _
      %p327 = scmp.lt.s32.totalorder %s20, 2
      // Predicated region
      $region53: #{policy_forward.1} parent=5 // pred_check
        %p328 = pneg %p327
      $region54: #{policy_forward.1} parent=5 // pred_check_branch
        %330 = sbr.rel (%p328) target = $region56
      $region55: #{policy_forward.1} parent=5 // pred_region
        // Predicated region
        $region57: #{policy_forward.1} parent=55 // pred_check
          %p331 = pneg %p40
        $region58: #{policy_forward.1} parent=55 // pred_check_branch
          %333 = sbr.rel (%p331) target = $region60
        $region59: #{policy_forward.1} parent=55 // pred_region
          %p334 = scmp.lt.s32.totalorder %s20, 1
          %s335 = scalar_select %p334, %s20, 1
          %s336 = smul.addr %s335, 48
          %s337 = smul.addr %s336, 4
          %s338 = scalar_lea.vmem %s0, %s337
        $region60: #{policy_forward.1} parent=55 // pred_fallthru
          _
      $region56: #{policy_forward.1} parent=5 // pred_fallthru
        _
      %p339 = scmp.le.s32.totalorder 1, %s20
      %p340 = scmp.lt.s32.totalorder %s20, 3
      %p341 = pnand %p339, %p340
      %p342 = pneg %p341
      // Predicated region
      $region61: #{policy_forward.1} parent=5 // pred_check
        _
      $region62: #{policy_forward.1} parent=5 // pred_check_branch
        %344 = sbr.rel (%p341) target = $region64
      $region63: #{policy_forward.1} parent=5 // pred_region
        %s345 = ssub.s32 %s20, 1
        %p346 = scmp.lt.s32.totalorder %s25, 1
        %s347 = scalar_select %p346, %s25, 1
        %s348 = smul.addr %s347, 48
        %s349 = smul.addr %s348, 4
        %s350 = scalar_lea.vmem %s0, %s349
        %p351 = pneg %p46
        %p352 = pneg %p43
        %p353 = pneg %p67
        %p354 = pneg %p64
        %p355 = pneg %p88
        %p356 = pneg %p85
        %p357 = pneg %p109
        %p358 = pneg %p106
        %p359 = pneg %p130
        %p360 = pneg %p127
        %p361 = pneg %p151
        %p362 = pneg %p148
        %p363 = pneg %p172
        %p364 = pneg %p169
        %p365 = pneg %p193
        %p366 = pneg %p190
        %p367 = pneg %p214
        %p368 = pneg %p211
        %p369 = pneg %p235
        %p370 = pneg %p232
        %p371 = pneg %p256
        %p372 = pneg %p253
        %p373 = pneg %p282
        %p374 = pneg %p279
        %s375 = sand.u32 %s269, 1
        %s376 = scalar_lea.sflag [#allocation6], %s375
        %s377 = sand.u32 %s269, 1
        %s378 = scalar_lea.vmem [#allocation5], %s377
        %p379 = scmp.lt.s32.totalorder %s25, 1
        %s380 = scalar_select %p379, %s25, 1
        %s381 = smul.addr %s380, 48
        %s382 = smul.addr %s381, 4
        %s383 = scalar_lea.vmem %s0, %s382
        %v385 = vld [vmem:[%s1] sm:$0xff]
        %v386 = vld [vmem:[%s1 + $0x8] sm:$0xff]
        %v387 = vld [vmem:[%s1 + $0x10] sm:$0xff]
        %v388 = vld [vmem:[%s1 + $0x18] sm:$0xff]
        %v389 = vld [vmem:[%s1 + $0x20] sm:$0xff]
        %v390 = vld [vmem:[%s1 + $0x28] sm:$0xff]
        %v391 = vld [vmem:[%s1 + $0x30] sm:$0xff]
        %v392 = vld [vmem:[%s1 + $0x38] sm:$0xff]
        %v393 = vld [vmem:[%s1 + $0x40] sm:$0xff]
        %v394 = vld [vmem:[%s1 + $0x48] sm:$0xff]
        %v395 = vld [vmem:[%s1 + $0x50] sm:$0xff]
        %v396 = vld [vmem:[%s1 + $0x58] sm:$0xff]
        %v397 = vld [vmem:[%s1 + $0x60] sm:$0xff]
        %v398 = vld [vmem:[%s1 + $0x68] sm:$0xff]
        %v399 = vld [vmem:[%s1 + $0x70] sm:$0xff]
        %v400 = vld [vmem:[%s1 + $0x78] sm:$0xff]
        %v401 = vld [vmem:[%s1 + $0x80] sm:$0xff]
        %v402 = vld [vmem:[%s1 + $0x88] sm:$0xff]
        %v403 = vld [vmem:[%s1 + $0x90] sm:$0xff]
        %v404 = vld [vmem:[%s1 + $0x98] sm:$0xff]
        %v405 = vld [vmem:[%s1 + $0xa0] sm:$0xff]
        %v406 = vld [vmem:[%s1 + $0xa8] sm:$0xff]
        %v407 = vld [vmem:[%s1 + $0xb0] sm:$0xff]
        %v408 = vld [vmem:[%s1 + $0xb8] sm:$0xff]
        %v409 = vld [vmem:[%s1 + $0xc0] sm:$0xff]
        %v410 = vld [vmem:[%s1 + $0xc8] sm:$0xff]
        %v411 = vld [vmem:[%s1 + $0xd0] sm:$0xff]
        %v412 = vld [vmem:[%s1 + $0xd8] sm:$0xff]
        %v413 = vld [vmem:[%s1 + $0xe0] sm:$0xff]
        %v414 = vld [vmem:[%s1 + $0xe8] sm:$0xff]
        %v415 = vld [vmem:[%s1 + $0xf0] sm:$0xff]
        %v416 = vld [vmem:[%s1 + $0xf8] sm:$0xff]
        %v417 = vld [vmem:[%s2] sm:$0x3]
        %v418 = vld [vmem:[%s383] sm:$0xff]
        %v419 = vld [vmem:[%s383 + $0x8] sm:$0xff]
        %v420 = vld [vmem:[%s383 + $0x10] sm:$0xff]
        %v421 = vld [vmem:[%s383 + $0x18] sm:$0xff]
        %v422 = vld [vmem:[%s383 + $0x20] sm:$0xff]
        %v423 = vld [vmem:[%s383 + $0x28] sm:$0xff]
        %v424 = vld [vmem:[%s383 + $0x30] sm:$0xff]
        %v425 = vld [vmem:[%s383 + $0x38] sm:$0xff]
        %v426 = vld [vmem:[%s383 + $0x40] sm:$0xff]
        %v427 = vld [vmem:[%s383 + $0x48] sm:$0xff]
        %v428 = vld [vmem:[%s383 + $0x50] sm:$0xff]
        %v429 = vld [vmem:[%s383 + $0x58] sm:$0x11]
        %v431 = vperm.slane %v417, 0
        %v432 = vperm.slane %v417, 1
        %v447 = vunpack.c.l.b16 %v418
        %v448 = vunpack.c.h.b16 %v418
        %v449 = vunpack.c.l.b16 %v419
        %v450 = vunpack.c.h.b16 %v419
        %v451 = vunpack.c.l.b16 %v420
        %v452 = vunpack.c.h.b16 %v420
        %v453 = vunpack.c.l.b16 %v421
        %v454 = vunpack.c.h.b16 %v421
        %v455 = vunpack.c.l.b16 %v422
        %v456 = vunpack.c.h.b16 %v422
        %v457 = vunpack.c.l.b16 %v423
        %v458 = vunpack.c.h.b16 %v423
        %v459 = vunpack.c.l.b16 %v424
        %v460 = vunpack.c.h.b16 %v424
        %v461 = vunpack.c.l.b16 %v425
        %v462 = vunpack.c.h.b16 %v425
        %v463 = vunpack.c.l.b16 %v426
        %v464 = vunpack.c.h.b16 %v426
        %v465 = vunpack.c.l.b16 %v427
        %v466 = vunpack.c.h.b16 %v427
        %v467 = vunpack.c.l.b16 %v428
        %v468 = vunpack.c.h.b16 %v428
        %v469 = vunpack.c.l.b16 %v429
        %v470 = vunpack.c.h.b16 %v429
        %v471 = vpack.c.b16 %v449, %v447
        %v472 = vpack.c.b16 %v450, %v448
        %v473 = vpack.c.b16 %v453, %v451
        %v474 = vpack.c.b16 %v454, %v452
        %v475 = vpack.c.b16 %v457, %v455
        %v476 = vpack.c.b16 %v458, %v456
        %v477 = vpack.c.b16 %v461, %v459
        %v478 = vpack.c.b16 %v462, %v460
        %v479 = vpack.c.b16 %v465, %v463
        %v480 = vpack.c.b16 %v466, %v464
        %v481 = vpack.c.b16 %v469, %v467
        %v482 = vpack.c.b16 %v470, %v468
        %v527 = vunpack.c.l.b16 %v385
        %v528 = vunpack.c.h.b16 %v385
        %v529 = vunpack.c.l.b16 %v386
        %v530 = vunpack.c.h.b16 %v386
        %v531 = vunpack.c.l.b16 %v387
        %v532 = vunpack.c.h.b16 %v387
        %v533 = vunpack.c.l.b16 %v388
        %v534 = vunpack.c.h.b16 %v388
        %v535 = vunpack.c.l.b16 %v389
        %v536 = vunpack.c.h.b16 %v389
        %v537 = vunpack.c.l.b16 %v390
        %v538 = vunpack.c.h.b16 %v390
        %v539 = vunpack.c.l.b16 %v391
        %v540 = vunpack.c.h.b16 %v391
        %v541 = vunpack.c.l.b16 %v392
        %v542 = vunpack.c.h.b16 %v392
        %v543 = vunpack.c.l.b16 %v393
        %v544 = vunpack.c.h.b16 %v393
        %v545 = vunpack.c.l.b16 %v394
        %v546 = vunpack.c.h.b16 %v394
        %v547 = vunpack.c.l.b16 %v395
        %v548 = vunpack.c.h.b16 %v395
        %v549 = vunpack.c.l.b16 %v396
        %v550 = vunpack.c.h.b16 %v396
        %v551 = vunpack.c.l.b16 %v397
        %v552 = vunpack.c.h.b16 %v397
        %v553 = vunpack.c.l.b16 %v398
        %v554 = vunpack.c.h.b16 %v398
        %v555 = vunpack.c.l.b16 %v399
        %v556 = vunpack.c.h.b16 %v399
        %v557 = vunpack.c.l.b16 %v400
        %v558 = vunpack.c.h.b16 %v400
        %v559 = vunpack.c.l.b16 %v401
        %v560 = vunpack.c.h.b16 %v401
        %v561 = vunpack.c.l.b16 %v402
        %v562 = vunpack.c.h.b16 %v402
        %v563 = vunpack.c.l.b16 %v403
        %v564 = vunpack.c.h.b16 %v403
        %v565 = vunpack.c.l.b16 %v404
        %v566 = vunpack.c.h.b16 %v404
        %v567 = vunpack.c.l.b16 %v405
        %v568 = vunpack.c.h.b16 %v405
        %v569 = vunpack.c.l.b16 %v406
        %v570 = vunpack.c.h.b16 %v406
        %v571 = vunpack.c.l.b16 %v407
        %v572 = vunpack.c.h.b16 %v407
        %v573 = vunpack.c.l.b16 %v408
        %v574 = vunpack.c.h.b16 %v408
        %v575 = vunpack.c.l.b16 %v409
        %v576 = vunpack.c.h.b16 %v409
        %v577 = vunpack.c.l.b16 %v410
        %v578 = vunpack.c.h.b16 %v410
        %v579 = vunpack.c.l.b16 %v411
        %v580 = vunpack.c.h.b16 %v411
        %v581 = vunpack.c.l.b16 %v412
        %v582 = vunpack.c.h.b16 %v412
        %v583 = vunpack.c.l.b16 %v413
        %v584 = vunpack.c.h.b16 %v413
        %v585 = vunpack.c.l.b16 %v414
        %v586 = vunpack.c.h.b16 %v414
        %v587 = vunpack.c.l.b16 %v415
        %v588 = vunpack.c.h.b16 %v415
        %v589 = vunpack.c.l.b16 %v416
        %v590 = vunpack.c.h.b16 %v416
        %v591 = vpack.c.b16 %v529, %v527
        %v592 = vpack.c.b16 %v530, %v528
        %v593 = vpack.c.b16 %v533, %v531
        %v594 = vpack.c.b16 %v534, %v532
        %v595 = vpack.c.b16 %v537, %v535
        %v596 = vpack.c.b16 %v538, %v536
        %v597 = vpack.c.b16 %v541, %v539
        %v598 = vpack.c.b16 %v542, %v540
        %v599 = vpack.c.b16 %v545, %v543
        %v600 = vpack.c.b16 %v546, %v544
        %v601 = vpack.c.b16 %v549, %v547
        %v602 = vpack.c.b16 %v550, %v548
        %v603 = vpack.c.b16 %v553, %v551
        %v604 = vpack.c.b16 %v554, %v552
        %v605 = vpack.c.b16 %v557, %v555
        %v606 = vpack.c.b16 %v558, %v556
        %v607 = vpack.c.b16 %v561, %v559
        %v608 = vpack.c.b16 %v562, %v560
        %v609 = vpack.c.b16 %v565, %v563
        %v610 = vpack.c.b16 %v566, %v564
        %v611 = vpack.c.b16 %v569, %v567
        %v612 = vpack.c.b16 %v570, %v568
        %v613 = vpack.c.b16 %v573, %v571
        %v614 = vpack.c.b16 %v574, %v572
        %v615 = vpack.c.b16 %v577, %v575
        %v616 = vpack.c.b16 %v578, %v576
        %v617 = vpack.c.b16 %v581, %v579
        %v618 = vpack.c.b16 %v582, %v580
        %v619 = vpack.c.b16 %v585, %v583
        %v620 = vpack.c.b16 %v586, %v584
        %v621 = vpack.c.b16 %v589, %v587
        %v622 = vpack.c.b16 %v590, %v588
        %655 = vmatpush.bf16.msra.mxu0 %v605
        %656 = vmatpush.bf16.msra.mxu0 %v603
        %657 = vmatpush.bf16.msra.mxu0 %v601
        %658 = vmatpush.bf16.msra.mxu0 %v599
        %659 = vmatpush.bf16.msra.mxu0 %v597
        %660 = vmatpush.bf16.msra.mxu0 %v595
        %661 = vmatpush.bf16.msra.mxu0 %v593
        %662 = vmatpush.bf16.msra.mxu0 %v591
        %663 = vmatmul.bf16.gmra.mxu0 %v471
        %v664 = vpop.f32.mrf.mxu0
        %v665 = vadd.f32 %v431, %v664
        %v666 = vpop.f32.mrf.mxu0
        %v667 = vadd.f32 %v431, %v666
        %668 = vmatmul.bf16.gmra.mxu0 %v473
        %v669 = vpop.f32.mrf.mxu0
        %v670 = vadd.f32 %v431, %v669
        %v671 = vpop.f32.mrf.mxu0
        %v672 = vadd.f32 %v431, %v671
        %673 = vmatmul.bf16.gmra.mxu0 %v475
        %v674 = vpop.f32.mrf.mxu0
        %v675 = vadd.f32 %v431, %v674
        %v676 = vpop.f32.mrf.mxu0
        %v677 = vadd.f32 %v431, %v676
        %678 = vmatmul.bf16.gmra.mxu0 %v477
        %v679 = vpop.f32.mrf.mxu0
        %v680 = vadd.f32 %v431, %v679
        %v681 = vpop.f32.mrf.mxu0
        %v682 = vadd.f32 %v431, %v681
        %683 = vmatmul.bf16.gmra.mxu0 %v479
        %v684 = vpop.f32.mrf.mxu0
        %v685 = vadd.f32 %v431, %v684
        %v686 = vpop.f32.mrf.mxu0
        %v687 = vadd.f32 %v431, %v686
        %688 = vmatmul.bf16.gmra.mxu0 %v481
        %v689 = vpop.f32.mrf.mxu0
        %v690 = vadd.f32 %v431, %v689
        %v691 = vpop.f32.mrf.mxu0
        %v692 = vadd.f32 %v431, %v691
        %693 = vdwg.mxu0
        %694 = vmatpush.bf16.msra.mxu0 %v621
        %695 = vmatpush.bf16.msra.mxu0 %v619
        %696 = vmatpush.bf16.msra.mxu0 %v617
        %697 = vmatpush.bf16.msra.mxu0 %v615
        %698 = vmatpush.bf16.msra.mxu0 %v613
        %699 = vmatpush.bf16.msra.mxu0 %v611
        %700 = vmatpush.bf16.msra.mxu0 %v609
        %701 = vmatpush.bf16.msra.mxu0 %v607
        %702 = vmatmul.bf16.gmra.mxu0 %v472
        %v703 = vpop.f32.mrf.mxu0
        %v704 = vadd.f32 %v665, %v703
        %v705 = vpop.f32.mrf.mxu0
        %v706 = vadd.f32 %v667, %v705
        %707 = vmatmul.bf16.gmra.mxu0 %v474
        %v708 = vpop.f32.mrf.mxu0
        %v709 = vadd.f32 %v670, %v708
        %v710 = vpop.f32.mrf.mxu0
        %v711 = vadd.f32 %v672, %v710
        %712 = vmatmul.bf16.gmra.mxu0 %v476
        %v713 = vpop.f32.mrf.mxu0
        %v714 = vadd.f32 %v675, %v713
        %v715 = vpop.f32.mrf.mxu0
        %v716 = vadd.f32 %v677, %v715
        %717 = vmatmul.bf16.gmra.mxu0 %v478
        %v718 = vpop.f32.mrf.mxu0
        %v719 = vadd.f32 %v680, %v718
        %v720 = vpop.f32.mrf.mxu0
        %v721 = vadd.f32 %v682, %v720
        %722 = vmatmul.bf16.gmra.mxu0 %v480
        %v723 = vpop.f32.mrf.mxu0
        %v724 = vadd.f32 %v685, %v723
        %v725 = vpop.f32.mrf.mxu0
        %v726 = vadd.f32 %v687, %v725
        %727 = vmatmul.bf16.gmra.mxu0 %v482
        %v728 = vpop.f32.mrf.mxu0
        %v729 = vadd.f32 %v690, %v728
        %v730 = vpop.f32.mrf.mxu0
        %v731 = vadd.f32 %v692, %v730
        %732 = vdwg.mxu0
        %733 = vmatpush.bf16.msra.mxu0 %v606
        %734 = vmatpush.bf16.msra.mxu0 %v604
        %735 = vmatpush.bf16.msra.mxu0 %v602
        %736 = vmatpush.bf16.msra.mxu0 %v600
        %737 = vmatpush.bf16.msra.mxu0 %v598
        %738 = vmatpush.bf16.msra.mxu0 %v596
        %739 = vmatpush.bf16.msra.mxu0 %v594
        %740 = vmatpush.bf16.msra.mxu0 %v592
        %741 = vmatmul.bf16.gmra.mxu0 %v471
        %v742 = vpop.f32.mrf.mxu0
        %v743 = vadd.f32 %v432, %v742
        %v744 = vpop.f32.mrf.mxu0
        %v745 = vadd.f32 %v432, %v744
        %746 = vmatmul.bf16.gmra.mxu0 %v473
        %v747 = vpop.f32.mrf.mxu0
        %v748 = vadd.f32 %v432, %v747
        %v749 = vpop.f32.mrf.mxu0
        %v750 = vadd.f32 %v432, %v749
        %751 = vmatmul.bf16.gmra.mxu0 %v475
        %v752 = vpop.f32.mrf.mxu0
        %v753 = vadd.f32 %v432, %v752
        %v754 = vpop.f32.mrf.mxu0
        %v755 = vadd.f32 %v432, %v754
        %756 = vmatmul.bf16.gmra.mxu0 %v477
        %v757 = vpop.f32.mrf.mxu0
        %v758 = vadd.f32 %v432, %v757
        %v759 = vpop.f32.mrf.mxu0
        %v760 = vadd.f32 %v432, %v759
        %761 = vmatmul.bf16.gmra.mxu0 %v479
        %v762 = vpop.f32.mrf.mxu0
        %v763 = vadd.f32 %v432, %v762
        %v764 = vpop.f32.mrf.mxu0
        %v765 = vadd.f32 %v432, %v764
        %766 = vmatmul.bf16.gmra.mxu0 %v481
        %v767 = vpop.f32.mrf.mxu0
        %v768 = vadd.f32 %v432, %v767
        %v769 = vpop.f32.mrf.mxu0
        %v770 = vadd.f32 %v432, %v769
        %771 = vdwg.mxu0
        %772 = vmatpush.bf16.msra.mxu0 %v622
        %773 = vmatpush.bf16.msra.mxu0 %v620
        %774 = vmatpush.bf16.msra.mxu0 %v618
        %775 = vmatpush.bf16.msra.mxu0 %v616
        %776 = vmatpush.bf16.msra.mxu0 %v614
        %777 = vmatpush.bf16.msra.mxu0 %v612
        %778 = vmatpush.bf16.msra.mxu0 %v610
        %779 = vmatpush.bf16.msra.mxu0 %v608
        %780 = vmatmul.bf16.gmra.mxu0 %v472
        %v781 = vpop.f32.mrf.mxu0
        %v782 = vadd.f32 %v743, %v781
        %v783 = vpop.f32.mrf.mxu0
        %v784 = vadd.f32 %v745, %v783
        %785 = vmatmul.bf16.gmra.mxu0 %v474
        %v786 = vpop.f32.mrf.mxu0
        %v787 = vadd.f32 %v748, %v786
        %v788 = vpop.f32.mrf.mxu0
        %v789 = vadd.f32 %v750, %v788
        %790 = vmatmul.bf16.gmra.mxu0 %v476
        %v791 = vpop.f32.mrf.mxu0
        %v792 = vadd.f32 %v753, %v791
        %v793 = vpop.f32.mrf.mxu0
        %v794 = vadd.f32 %v755, %v793
        %795 = vmatmul.bf16.gmra.mxu0 %v478
        %v796 = vpop.f32.mrf.mxu0
        %v797 = vadd.f32 %v758, %v796
        %v798 = vpop.f32.mrf.mxu0
        %v799 = vadd.f32 %v760, %v798
        %800 = vmatmul.bf16.gmra.mxu0 %v480
        %v801 = vpop.f32.mrf.mxu0
        %v802 = vadd.f32 %v763, %v801
        %v803 = vpop.f32.mrf.mxu0
        %v804 = vadd.f32 %v765, %v803
        %805 = vmatmul.bf16.gmra.mxu0 %v482
        %v806 = vpop.f32.mrf.mxu0
        %v807 = vadd.f32 %v768, %v806
        %v808 = vpop.f32.mrf.mxu0
        %v809 = vadd.f32 %v770, %v808
        %810 = vdwg.mxu0
        %v811 = vmax.f32 %v704, 0.0
        %v812 = vmax.f32 %v782, 0.0
        %v813 = vmax.f32 %v706, 0.0
        %v814 = vmax.f32 %v784, 0.0
        %v815 = vmax.f32 %v709, 0.0
        %v816 = vmax.f32 %v787, 0.0
        %v817 = vmax.f32 %v711, 0.0
        %v818 = vmax.f32 %v789, 0.0
        %v819 = vmax.f32 %v714, 0.0
        %v820 = vmax.f32 %v792, 0.0
        %v821 = vmax.f32 %v716, 0.0
        %v822 = vmax.f32 %v794, 0.0
        %v823 = vmax.f32 %v719, 0.0
        %v824 = vmax.f32 %v797, 0.0
        %v825 = vmax.f32 %v721, 0.0
        %v826 = vmax.f32 %v799, 0.0
        %v827 = vmax.f32 %v724, 0.0
        %v828 = vmax.f32 %v802, 0.0
        %v829 = vmax.f32 %v726, 0.0
        %v830 = vmax.f32 %v804, 0.0
        %v831 = vmax.f32 %v729, 0.0
        %v832 = vmax.f32 %v807, 0.0
        %v833 = vmax.f32 %v731, 0.0
        %v834 = vmax.f32 %v809, 0.0
        %v835 = vpack.c.bf16 %v812, %v811
        %v836 = vpack.c.bf16 %v814, %v813
        %v837 = vpack.c.bf16 %v816, %v815
        %v838 = vpack.c.bf16 %v818, %v817
        %v839 = vpack.c.bf16 %v820, %v819
        %v840 = vpack.c.bf16 %v822, %v821
        %v841 = vpack.c.bf16 %v824, %v823
        %v842 = vpack.c.bf16 %v826, %v825
        %v843 = vpack.c.bf16 %v828, %v827
        %v844 = vpack.c.bf16 %v830, %v829
        %v845 = vpack.c.bf16 %v832, %v831
        %v846 = vpack.c.bf16 %v834, %v833
        %847 = vst [vmem:[#allocation2] sm:$0xff] %v835
        %848 = vst [vmem:[#allocation2 + $0x8] sm:$0xff] %v836
        %849 = vst [vmem:[#allocation2 + $0x10] sm:$0xff] %v837
        %850 = vst [vmem:[#allocation2 + $0x18] sm:$0xff] %v838
        %851 = vst [vmem:[#allocation2 + $0x20] sm:$0xff] %v839
        %852 = vst [vmem:[#allocation2 + $0x28] sm:$0xff] %v840
        %853 = vst [vmem:[#allocation2 + $0x30] sm:$0xff] %v841
        %854 = vst [vmem:[#allocation2 + $0x38] sm:$0xff] %v842
        %855 = vst [vmem:[#allocation2 + $0x40] sm:$0xff] %v843
        %856 = vst [vmem:[#allocation2 + $0x48] sm:$0xff] %v844
        %857 = vst [vmem:[#allocation2 + $0x50] sm:$0xff] %v845
        %858 = vst [vmem:[#allocation2 + $0x58] sm:$0x11] %v846
        %s859 = scalar_lea.vmem %s383, 96
        %v860 = vld [vmem:[%s859] sm:$0xff]
        %v861 = vld [vmem:[%s859 + $0x8] sm:$0xff]
        %v862 = vld [vmem:[%s859 + $0x10] sm:$0xff]
        %v863 = vld [vmem:[%s859 + $0x18] sm:$0xff]
        %v864 = vld [vmem:[%s859 + $0x20] sm:$0xff]
        %v865 = vld [vmem:[%s859 + $0x28] sm:$0xff]
        %v866 = vld [vmem:[%s859 + $0x30] sm:$0xff]
        %v867 = vld [vmem:[%s859 + $0x38] sm:$0xff]
        %v868 = vld [vmem:[%s859 + $0x40] sm:$0xff]
        %v869 = vld [vmem:[%s859 + $0x48] sm:$0xff]
        %v870 = vld [vmem:[%s859 + $0x50] sm:$0xff]
        %v871 = vld [vmem:[%s859 + $0x58] sm:$0x11]
        %v884 = vunpack.c.l.b16 %v860
        %v885 = vunpack.c.h.b16 %v860
        %v886 = vunpack.c.l.b16 %v861
        %v887 = vunpack.c.h.b16 %v861
        %v888 = vunpack.c.l.b16 %v862
        %v889 = vunpack.c.h.b16 %v862
        %v890 = vunpack.c.l.b16 %v863
        %v891 = vunpack.c.h.b16 %v863
        %v892 = vunpack.c.l.b16 %v864
        %v893 = vunpack.c.h.b16 %v864
        %v894 = vunpack.c.l.b16 %v865
        %v895 = vunpack.c.h.b16 %v865
        %v896 = vunpack.c.l.b16 %v866
        %v897 = vunpack.c.h.b16 %v866
        %v898 = vunpack.c.l.b16 %v867
        %v899 = vunpack.c.h.b16 %v867
        %v900 = vunpack.c.l.b16 %v868
        %v901 = vunpack.c.h.b16 %v868
        %v902 = vunpack.c.l.b16 %v869
        %v903 = vunpack.c.h.b16 %v869
        %v904 = vunpack.c.l.b16 %v870
        %v905 = vunpack.c.h.b16 %v870
        %v906 = vunpack.c.l.b16 %v871
        %v907 = vunpack.c.h.b16 %v871
        %v908 = vpack.c.b16 %v886, %v884
        %v909 = vpack.c.b16 %v887, %v885
        %v910 = vpack.c.b16 %v890, %v888
        %v911 = vpack.c.b16 %v891, %v889
        %v912 = vpack.c.b16 %v894, %v892
        %v913 = vpack.c.b16 %v895, %v893
        %v914 = vpack.c.b16 %v898, %v896
        %v915 = vpack.c.b16 %v899, %v897
        %v916 = vpack.c.b16 %v902, %v900
        %v917 = vpack.c.b16 %v903, %v901
        %v918 = vpack.c.b16 %v906, %v904
        %v919 = vpack.c.b16 %v907, %v905
        %932 = vmatpush.bf16.msra.mxu0 %v605
        %933 = vmatpush.bf16.msra.mxu0 %v603
        %934 = vmatpush.bf16.msra.mxu0 %v601
        %935 = vmatpush.bf16.msra.mxu0 %v599
        %936 = vmatpush.bf16.msra.mxu0 %v597
        %937 = vmatpush.bf16.msra.mxu0 %v595
        %938 = vmatpush.bf16.msra.mxu0 %v593
        %939 = vmatpush.bf16.msra.mxu0 %v591
        %940 = vmatmul.bf16.gmra.mxu0 %v908
        %v941 = vpop.f32.mrf.mxu0
        %v942 = vadd.f32 %v431, %v941
        %v943 = vpop.f32.mrf.mxu0
        %v944 = vadd.f32 %v431, %v943
        %945 = vmatmul.bf16.gmra.mxu0 %v910
        %v946 = vpop.f32.mrf.mxu0
        %v947 = vadd.f32 %v431, %v946
        %v948 = vpop.f32.mrf.mxu0
        %v949 = vadd.f32 %v431, %v948
        %950 = vmatmul.bf16.gmra.mxu0 %v912
        %v951 = vpop.f32.mrf.mxu0
        %v952 = vadd.f32 %v431, %v951
        %v953 = vpop.f32.mrf.mxu0
        %v954 = vadd.f32 %v431, %v953
        %955 = vmatmul.bf16.gmra.mxu0 %v914
        %v956 = vpop.f32.mrf.mxu0
        %v957 = vadd.f32 %v431, %v956
        %v958 = vpop.f32.mrf.mxu0
        %v959 = vadd.f32 %v431, %v958
        %960 = vmatmul.bf16.gmra.mxu0 %v916
        %v961 = vpop.f32.mrf.mxu0
        %v962 = vadd.f32 %v431, %v961
        %v963 = vpop.f32.mrf.mxu0
        %v964 = vadd.f32 %v431, %v963
        %965 = vmatmul.bf16.gmra.mxu0 %v918
        %v966 = vpop.f32.mrf.mxu0
        %v967 = vadd.f32 %v431, %v966
        %v968 = vpop.f32.mrf.mxu0
        %v969 = vadd.f32 %v431, %v968
        %970 = vdwg.mxu0
        %971 = vmatpush.bf16.msra.mxu0 %v621
        %972 = vmatpush.bf16.msra.mxu0 %v619
        %973 = vmatpush.bf16.msra.mxu0 %v617
        %974 = vmatpush.bf16.msra.mxu0 %v615
        %975 = vmatpush.bf16.msra.mxu0 %v613
        %976 = vmatpush.bf16.msra.mxu0 %v611
        %977 = vmatpush.bf16.msra.mxu0 %v609
        %978 = vmatpush.bf16.msra.mxu0 %v607
        %979 = vmatmul.bf16.gmra.mxu0 %v909
        %v980 = vpop.f32.mrf.mxu0
        %v981 = vadd.f32 %v942, %v980
        %v982 = vpop.f32.mrf.mxu0
        %v983 = vadd.f32 %v944, %v982
        %984 = vmatmul.bf16.gmra.mxu0 %v911
        %v985 = vpop.f32.mrf.mxu0
        %v986 = vadd.f32 %v947, %v985
        %v987 = vpop.f32.mrf.mxu0
        %v988 = vadd.f32 %v949, %v987
        %989 = vmatmul.bf16.gmra.mxu0 %v913
        %v990 = vpop.f32.mrf.mxu0
        %v991 = vadd.f32 %v952, %v990
        %v992 = vpop.f32.mrf.mxu0
        %v993 = vadd.f32 %v954, %v992
        %994 = vmatmul.bf16.gmra.mxu0 %v915
        %v995 = vpop.f32.mrf.mxu0
        %v996 = vadd.f32 %v957, %v995
        %v997 = vpop.f32.mrf.mxu0
        %v998 = vadd.f32 %v959, %v997
        %999 = vmatmul.bf16.gmra.mxu0 %v917
        %v1000 = vpop.f32.mrf.mxu0
        %v1001 = vadd.f32 %v962, %v1000
        %v1002 = vpop.f32.mrf.mxu0
        %v1003 = vadd.f32 %v964, %v1002
        %1004 = vmatmul.bf16.gmra.mxu0 %v919
        %v1005 = vpop.f32.mrf.mxu0
        %v1006 = vadd.f32 %v967, %v1005
        %v1007 = vpop.f32.mrf.mxu0
        %v1008 = vadd.f32 %v969, %v1007
        %1009 = vdwg.mxu0
        %1010 = vmatpush.bf16.msra.mxu0 %v606
        %1011 = vmatpush.bf16.msra.mxu0 %v604
        %1012 = vmatpush.bf16.msra.mxu0 %v602
        %1013 = vmatpush.bf16.msra.mxu0 %v600
        %1014 = vmatpush.bf16.msra.mxu0 %v598
        %1015 = vmatpush.bf16.msra.mxu0 %v596
        %1016 = vmatpush.bf16.msra.mxu0 %v594
        %1017 = vmatpush.bf16.msra.mxu0 %v592
        %1018 = vmatmul.bf16.gmra.mxu0 %v908
        %v1019 = vpop.f32.mrf.mxu0
        %v1020 = vadd.f32 %v432, %v1019
        %v1021 = vpop.f32.mrf.mxu0
        %v1022 = vadd.f32 %v432, %v1021
        %1023 = vmatmul.bf16.gmra.mxu0 %v910
        %v1024 = vpop.f32.mrf.mxu0
        %v1025 = vadd.f32 %v432, %v1024
        %v1026 = vpop.f32.mrf.mxu0
        %v1027 = vadd.f32 %v432, %v1026
        %1028 = vmatmul.bf16.gmra.mxu0 %v912
        %v1029 = vpop.f32.mrf.mxu0
        %v1030 = vadd.f32 %v432, %v1029
        %v1031 = vpop.f32.mrf.mxu0
        %v1032 = vadd.f32 %v432, %v1031
        %1033 = vmatmul.bf16.gmra.mxu0 %v914
        %v1034 = vpop.f32.mrf.mxu0
        %v1035 = vadd.f32 %v432, %v1034
        %v1036 = vpop.f32.mrf.mxu0
        %v1037 = vadd.f32 %v432, %v1036
        %1038 = vmatmul.bf16.gmra.mxu0 %v916
        %v1039 = vpop.f32.mrf.mxu0
        %v1040 = vadd.f32 %v432, %v1039
        %v1041 = vpop.f32.mrf.mxu0
        %v1042 = vadd.f32 %v432, %v1041
        %1043 = vmatmul.bf16.gmra.mxu0 %v918
        %v1044 = vpop.f32.mrf.mxu0
        %v1045 = vadd.f32 %v432, %v1044
        %v1046 = vpop.f32.mrf.mxu0
        %v1047 = vadd.f32 %v432, %v1046
        %1048 = vdwg.mxu0
        %1049 = vmatpush.bf16.msra.mxu0 %v622
        %1050 = vmatpush.bf16.msra.mxu0 %v620
        %1051 = vmatpush.bf16.msra.mxu0 %v618
        %1052 = vmatpush.bf16.msra.mxu0 %v616
        %1053 = vmatpush.bf16.msra.mxu0 %v614
        %1054 = vmatpush.bf16.msra.mxu0 %v612
        %1055 = vmatpush.bf16.msra.mxu0 %v610
        %1056 = vmatpush.bf16.msra.mxu0 %v608
        %1057 = vmatmul.bf16.gmra.mxu0 %v909
        %v1058 = vpop.f32.mrf.mxu0
        %v1059 = vadd.f32 %v1020, %v1058
        %v1060 = vpop.f32.mrf.mxu0
        %v1061 = vadd.f32 %v1022, %v1060
        %1062 = vmatmul.bf16.gmra.mxu0 %v911
        %v1063 = vpop.f32.mrf.mxu0
        %v1064 = vadd.f32 %v1025, %v1063
        %v1065 = vpop.f32.mrf.mxu0
        %v1066 = vadd.f32 %v1027, %v1065
        %1067 = vmatmul.bf16.gmra.mxu0 %v913
        %v1068 = vpop.f32.mrf.mxu0
        %v1069 = vadd.f32 %v1030, %v1068
        %v1070 = vpop.f32.mrf.mxu0
        %v1071 = vadd.f32 %v1032, %v1070
        %1072 = vmatmul.bf16.gmra.mxu0 %v915
        %v1073 = vpop.f32.mrf.mxu0
        %v1074 = vadd.f32 %v1035, %v1073
        %v1075 = vpop.f32.mrf.mxu0
        %v1076 = vadd.f32 %v1037, %v1075
        %1077 = vmatmul.bf16.gmra.mxu0 %v917
        %v1078 = vpop.f32.mrf.mxu0
        %v1079 = vadd.f32 %v1040, %v1078
        %v1080 = vpop.f32.mrf.mxu0
        %v1081 = vadd.f32 %v1042, %v1080
        %1082 = vmatmul.bf16.gmra.mxu0 %v919
        %v1083 = vpop.f32.mrf.mxu0
        %v1084 = vadd.f32 %v1045, %v1083
        %v1085 = vpop.f32.mrf.mxu0
        %v1086 = vadd.f32 %v1047, %v1085
        %1087 = vdwg.mxu0
        %v1088 = vmax.f32 %v981, 0.0
        %v1089 = vmax.f32 %v1059, 0.0
        %v1090 = vmax.f32 %v983, 0.0
        %v1091 = vmax.f32 %v1061, 0.0
        %v1092 = vmax.f32 %v986, 0.0
        %v1093 = vmax.f32 %v1064, 0.0
        %v1094 = vmax.f32 %v988, 0.0
        %v1095 = vmax.f32 %v1066, 0.0
        %v1096 = vmax.f32 %v991, 0.0
        %v1097 = vmax.f32 %v1069, 0.0
        %v1098 = vmax.f32 %v993, 0.0
        %v1099 = vmax.f32 %v1071, 0.0
        %v1100 = vmax.f32 %v996, 0.0
        %v1101 = vmax.f32 %v1074, 0.0
        %v1102 = vmax.f32 %v998, 0.0
        %v1103 = vmax.f32 %v1076, 0.0
        %v1104 = vmax.f32 %v1001, 0.0
        %v1105 = vmax.f32 %v1079, 0.0
        %v1106 = vmax.f32 %v1003, 0.0
        %v1107 = vmax.f32 %v1081, 0.0
        %v1108 = vmax.f32 %v1006, 0.0
        %v1109 = vmax.f32 %v1084, 0.0
        %v1110 = vmax.f32 %v1008, 0.0
        %v1111 = vmax.f32 %v1086, 0.0
        %v1112 = vpack.c.bf16 %v1089, %v1088
        %v1113 = vpack.c.bf16 %v1091, %v1090
        %v1114 = vpack.c.bf16 %v1093, %v1092
        %v1115 = vpack.c.bf16 %v1095, %v1094
        %v1116 = vpack.c.bf16 %v1097, %v1096
        %v1117 = vpack.c.bf16 %v1099, %v1098
        %v1118 = vpack.c.bf16 %v1101, %v1100
        %v1119 = vpack.c.bf16 %v1103, %v1102
        %v1120 = vpack.c.bf16 %v1105, %v1104
        %v1121 = vpack.c.bf16 %v1107, %v1106
        %v1122 = vpack.c.bf16 %v1109, %v1108
        %v1123 = vpack.c.bf16 %v1111, %v1110
        %s1124 = scalar_lea.vmem [#allocation2], 96
        %1125 = vst [vmem:[%s1124] sm:$0xff] %v1112
        %1126 = vst [vmem:[%s1124 + $0x8] sm:$0xff] %v1113
        %1127 = vst [vmem:[%s1124 + $0x10] sm:$0xff] %v1114
        %1128 = vst [vmem:[%s1124 + $0x18] sm:$0xff] %v1115
        %1129 = vst [vmem:[%s1124 + $0x20] sm:$0xff] %v1116
        %1130 = vst [vmem:[%s1124 + $0x28] sm:$0xff] %v1117
        %1131 = vst [vmem:[%s1124 + $0x30] sm:$0xff] %v1118
        %1132 = vst [vmem:[%s1124 + $0x38] sm:$0xff] %v1119
        %1133 = vst [vmem:[%s1124 + $0x40] sm:$0xff] %v1120
        %1134 = vst [vmem:[%s1124 + $0x48] sm:$0xff] %v1121
        %1135 = vst [vmem:[%s1124 + $0x50] sm:$0xff] %v1122
        %1136 = vst [vmem:[%s1124 + $0x58] sm:$0x11] %v1123
        %v1137 = vld [vmem:[#allocation2] sm:$0xff]
        %v1138 = vld [vmem:[#allocation2 + $0x8] sm:$0xff]
        %v1139 = vld [vmem:[#allocation2 + $0x10] sm:$0xff]
        %v1140 = vld [vmem:[#allocation2 + $0x18] sm:$0xff]
        %v1141 = vld [vmem:[#allocation2 + $0x20] sm:$0xff]
        %v1142 = vld [vmem:[#allocation2 + $0x28] sm:$0xff]
        %v1143 = vld [vmem:[#allocation2 + $0x30] sm:$0xff]
        %v1144 = vld [vmem:[#allocation2 + $0x38] sm:$0xff]
        %v1145 = vld [vmem:[#allocation2 + $0x40] sm:$0xff]
        %v1146 = vld [vmem:[#allocation2 + $0x48] sm:$0xff]
        %v1147 = vld [vmem:[#allocation2 + $0x50] sm:$0x11]
        %v1148 = vld [vmem:[%s3] sm:$0xf]
        %v1149 = vld [vmem:[%s3 + $0x4] sm:$0xf]
        %v1150 = vld [vmem:[%s3 + $0x8] sm:$0xf]
        %v1151 = vld [vmem:[%s3 + $0xc] sm:$0xf]
        %v1152 = vld [vmem:[%s3 + $0x10] sm:$0xf]
        %v1153 = vld [vmem:[%s3 + $0x14] sm:$0xf]
        %v1154 = vld [vmem:[%s3 + $0x18] sm:$0xf]
        %v1155 = vld [vmem:[%s3 + $0x1c] sm:$0xf]
        %v1156 = vld [vmem:[%s3 + $0x20] sm:$0xf]
        %v1157 = vld [vmem:[%s3 + $0x24] sm:$0xf]
        %v1158 = vld [vmem:[%s3 + $0x28] sm:$0xf]
        %v1159 = vld [vmem:[%s3 + $0x2c] sm:$0xf]
        %v1160 = vld [vmem:[%s3 + $0x30] sm:$0xf]
        %v1161 = vld [vmem:[%s3 + $0x34] sm:$0xf]
        %v1162 = vld [vmem:[%s3 + $0x38] sm:$0xf]
        %v1163 = vld [vmem:[%s3 + $0x3c] sm:$0xf]
        %v1164 = vld [vmem:[%s3 + $0x40] sm:$0xf]
        %v1165 = vld [vmem:[%s3 + $0x44] sm:$0xf]
        %v1166 = vld [vmem:[%s3 + $0x48] sm:$0xf]
        %v1167 = vld [vmem:[%s3 + $0x4c] sm:$0xf]
        %v1168 = vld [vmem:[%s3 + $0x50] sm:$0xf]
        %v1169 = vld [vmem:[%s3 + $0x54] sm:$0xf]
        %v1170 = vld [vmem:[%s3 + $0x58] sm:$0xf]
        %v1171 = vld [vmem:[%s3 + $0x5c] sm:$0xf]
        %v1172 = vld [vmem:[%s3 + $0x60] sm:$0xf]
        %v1173 = vld [vmem:[%s3 + $0x64] sm:$0xf]
        %v1174 = vld [vmem:[%s3 + $0x68] sm:$0xf]
        %v1175 = vld [vmem:[%s3 + $0x6c] sm:$0xf]
        %v1176 = vld [vmem:[%s3 + $0x70] sm:$0xf]
        %v1177 = vld [vmem:[%s3 + $0x74] sm:$0xf]
        %v1178 = vld [vmem:[%s3 + $0x78] sm:$0xf]
        %v1179 = vld [vmem:[%s3 + $0x7c] sm:$0xf]
        %v1180 = vld [vmem:[%s1124] sm:$0xff]
        %v1181 = vld [vmem:[%s1124 + $0x8] sm:$0xff]
        %v1182 = vld [vmem:[%s1124 + $0x10] sm:$0xff]
        %v1183 = vld [vmem:[%s1124 + $0x18] sm:$0xff]
        %v1184 = vld [vmem:[%s1124 + $0x20] sm:$0xff]
        %v1185 = vld [vmem:[%s1124 + $0x28] sm:$0xff]
        %v1186 = vld [vmem:[%s1124 + $0x30] sm:$0xff]
        %v1187 = vld [vmem:[%s1124 + $0x38] sm:$0xff]
        %v1188 = vld [vmem:[%s1124 + $0x40] sm:$0xff]
        %v1189 = vld [vmem:[%s1124 + $0x48] sm:$0xff]
        %v1190 = vld [vmem:[%s1124 + $0x50] sm:$0x11]
        %s1191 = scalar_lea.vmem %s3, 128
        %v1192 = vld [vmem:[%s1191] sm:$0xf]
        %v1193 = vld [vmem:[%s1191 + $0x4] sm:$0xf]
        %v1194 = vld [vmem:[%s1191 + $0x8] sm:$0xf]
        %v1195 = vld [vmem:[%s1191 + $0xc] sm:$0xf]
        %v1196 = vld [vmem:[%s1191 + $0x10] sm:$0xf]
        %v1197 = vld [vmem:[%s1191 + $0x14] sm:$0xf]
        %v1198 = vld [vmem:[%s1191 + $0x18] sm:$0xf]
        %v1199 = vld [vmem:[%s1191 + $0x1c] sm:$0xf]
        %v1200 = vld [vmem:[%s1191 + $0x20] sm:$0xf]
        %v1201 = vld [vmem:[%s1191 + $0x24] sm:$0xf]
        %v1202 = vld [vmem:[%s1191 + $0x28] sm:$0xf]
        %v1203 = vld [vmem:[%s1191 + $0x2c] sm:$0xf]
        %v1204 = vld [vmem:[%s1191 + $0x30] sm:$0xf]
        %v1205 = vld [vmem:[%s1191 + $0x34] sm:$0xf]
        %v1206 = vld [vmem:[%s1191 + $0x38] sm:$0xf]
        %v1207 = vld [vmem:[%s1191 + $0x3c] sm:$0xf]
        %v1208 = vld [vmem:[%s1191 + $0x40] sm:$0xf]
        %v1209 = vld [vmem:[%s1191 + $0x44] sm:$0xf]
        %v1210 = vld [vmem:[%s1191 + $0x48] sm:$0xf]
        %v1211 = vld [vmem:[%s1191 + $0x4c] sm:$0xf]
        %v1212 = vld [vmem:[%s1191 + $0x50] sm:$0xf]
        %v1213 = vld [vmem:[%s1191 + $0x54] sm:$0xf]
        %v1214 = vld [vmem:[%s1191 + $0x58] sm:$0xf]
        %v1215 = vld [vmem:[%s1191 + $0x5c] sm:$0xf]
        %v1216 = vld [vmem:[%s1191 + $0x60] sm:$0xf]
        %v1217 = vld [vmem:[%s1191 + $0x64] sm:$0xf]
        %v1218 = vld [vmem:[%s1191 + $0x68] sm:$0xf]
        %v1219 = vld [vmem:[%s1191 + $0x6c] sm:$0xf]
        %v1220 = vld [vmem:[%s1191 + $0x70] sm:$0xf]
        %v1221 = vld [vmem:[%s1191 + $0x74] sm:$0xf]
        %v1222 = vld [vmem:[%s1191 + $0x78] sm:$0xf]
        %v1223 = vld [vmem:[%s1191 + $0x7c] sm:$0xf]
        %v1235 = vunpack.c.l.b16 %v1180
        %v1236 = vunpack.c.h.b16 %v1180
        %v1237 = vunpack.c.l.b16 %v1181
        %v1238 = vunpack.c.h.b16 %v1181
        %v1239 = vunpack.c.l.b16 %v1182
        %v1240 = vunpack.c.h.b16 %v1182
        %v1241 = vunpack.c.l.b16 %v1183
        %v1242 = vunpack.c.h.b16 %v1183
        %v1243 = vunpack.c.l.b16 %v1184
        %v1244 = vunpack.c.h.b16 %v1184
        %v1245 = vunpack.c.l.b16 %v1185
        %v1246 = vunpack.c.h.b16 %v1185
        %v1247 = vunpack.c.l.b16 %v1186
        %v1248 = vunpack.c.h.b16 %v1186
        %v1249 = vunpack.c.l.b16 %v1187
        %v1250 = vunpack.c.h.b16 %v1187
        %v1251 = vunpack.c.l.b16 %v1188
        %v1252 = vunpack.c.h.b16 %v1188
        %v1253 = vunpack.c.l.b16 %v1189
        %v1254 = vunpack.c.h.b16 %v1189
        %v1255 = vunpack.c.l.b16 %v1190
        %v1256 = vunpack.c.h.b16 %v1190
        %v1257 = vpack.c.b16 %v1237, %v1235
        %v1258 = vpack.c.b16 %v1238, %v1236
        %v1259 = vpack.c.b16 %v1241, %v1239
        %v1260 = vpack.c.b16 %v1242, %v1240
        %v1261 = vpack.c.b16 %v1245, %v1243
        %v1262 = vpack.c.b16 %v1246, %v1244
        %v1263 = vpack.c.b16 %v1249, %v1247
        %v1264 = vpack.c.b16 %v1250, %v1248
        %v1265 = vpack.c.b16 %v1253, %v1251
        %v1266 = vpack.c.b16 %v1254, %v1252
        %v1267 = vpack.c.b16 %v1255, %v1255
        %v1268 = vpack.c.b16 %v1256, %v1256
        %v1313 = vunpack.c.l.b16 %v1192
        %v1314 = vunpack.c.l.b16 %v1193
        %v1315 = vunpack.c.l.b16 %v1194
        %v1316 = vunpack.c.l.b16 %v1195
        %v1317 = vunpack.c.l.b16 %v1196
        %v1318 = vunpack.c.l.b16 %v1197
        %v1319 = vunpack.c.l.b16 %v1198
        %v1320 = vunpack.c.l.b16 %v1199
        %v1321 = vunpack.c.l.b16 %v1200
        %v1322 = vunpack.c.l.b16 %v1201
        %v1323 = vunpack.c.l.b16 %v1202
        %v1324 = vunpack.c.l.b16 %v1203
        %v1325 = vunpack.c.l.b16 %v1204
        %v1326 = vunpack.c.l.b16 %v1205
        %v1327 = vunpack.c.l.b16 %v1206
        %v1328 = vunpack.c.l.b16 %v1207
        %v1329 = vunpack.c.l.b16 %v1208
        %v1330 = vunpack.c.l.b16 %v1209
        %v1331 = vunpack.c.l.b16 %v1210
        %v1332 = vunpack.c.l.b16 %v1211
        %v1333 = vunpack.c.l.b16 %v1212
        %v1334 = vunpack.c.l.b16 %v1213
        %v1335 = vunpack.c.l.b16 %v1214
        %v1336 = vunpack.c.l.b16 %v1215
        %v1337 = vunpack.c.l.b16 %v1216
        %v1338 = vunpack.c.l.b16 %v1217
        %v1339 = vunpack.c.l.b16 %v1218
        %v1340 = vunpack.c.l.b16 %v1219
        %v1341 = vunpack.c.l.b16 %v1220
        %v1342 = vunpack.c.l.b16 %v1221
        %v1343 = vunpack.c.l.b16 %v1222
        %v1344 = vunpack.c.l.b16 %v1223
        %v1345 = vpack.c.b16 %v1314, %v1313
        %v1346 = vpack.c.b16 %v1316, %v1315
        %v1347 = vpack.c.b16 %v1318, %v1317
        %v1348 = vpack.c.b16 %v1320, %v1319
        %v1349 = vpack.c.b16 %v1322, %v1321
        %v1350 = vpack.c.b16 %v1324, %v1323
        %v1351 = vpack.c.b16 %v1326, %v1325
        %v1352 = vpack.c.b16 %v1328, %v1327
        %v1353 = vpack.c.b16 %v1330, %v1329
        %v1354 = vpack.c.b16 %v1332, %v1331
        %v1355 = vpack.c.b16 %v1334, %v1333
        %v1356 = vpack.c.b16 %v1336, %v1335
        %v1357 = vpack.c.b16 %v1338, %v1337
        %v1358 = vpack.c.b16 %v1340, %v1339
        %v1359 = vpack.c.b16 %v1342, %v1341
        %v1360 = vpack.c.b16 %v1344, %v1343
        %1377 = vmatpush.bf16.msra.mxu0 %v1352
        %1378 = vmatpush.bf16.msra.mxu0 %v1351
        %1379 = vmatpush.bf16.msra.mxu0 %v1350
        %1380 = vmatpush.bf16.msra.mxu0 %v1349
        %1381 = vmatpush.bf16.msra.mxu0 %v1348
        %1382 = vmatpush.bf16.msra.mxu0 %v1347
        %1383 = vmatpush.bf16.msra.mxu0 %v1346
        %1384 = vmatpush.bf16.msra.mxu0 %v1345
        %1385 = vmatmul.bf16.gmra.mxu0 %v1257
        %v1386 = vpop.f32.mrf.mxu0
        %v1387 = vadd.f32 0.0, %v1386
        %v1388 = vpop.f32.mrf.mxu0
        %v1389 = vadd.f32 0.0, %v1388
        %1390 = vmatmul.bf16.gmra.mxu0 %v1259
        %v1391 = vpop.f32.mrf.mxu0
        %v1392 = vadd.f32 0.0, %v1391
        %v1393 = vpop.f32.mrf.mxu0
        %v1394 = vadd.f32 0.0, %v1393
        %1395 = vmatmul.bf16.gmra.mxu0 %v1261
        %v1396 = vpop.f32.mrf.mxu0
        %v1397 = vadd.f32 0.0, %v1396
        %v1398 = vpop.f32.mrf.mxu0
        %v1399 = vadd.f32 0.0, %v1398
        %1400 = vmatmul.bf16.gmra.mxu0 %v1263
        %v1401 = vpop.f32.mrf.mxu0
        %v1402 = vadd.f32 0.0, %v1401
        %v1403 = vpop.f32.mrf.mxu0
        %v1404 = vadd.f32 0.0, %v1403
        %1405 = vmatmul.bf16.gmra.mxu0 %v1265
        %v1406 = vpop.f32.mrf.mxu0
        %v1407 = vadd.f32 0.0, %v1406
        %v1408 = vpop.f32.mrf.mxu0
        %v1409 = vadd.f32 0.0, %v1408
        %1410 = vmatmul.bf16.gmra.mxu0 %v1267
        %v1411 = vpop.f32.mrf.mxu0
        %v1412 = vadd.f32 0.0, %v1411
        %v1413 = vpop.f32.mrf.mxu0
        %1414 = vdwg.mxu0
        %1415 = vmatpush.bf16.msra.mxu0 %v1360
        %1416 = vmatpush.bf16.msra.mxu0 %v1359
        %1417 = vmatpush.bf16.msra.mxu0 %v1358
        %1418 = vmatpush.bf16.msra.mxu0 %v1357
        %1419 = vmatpush.bf16.msra.mxu0 %v1356
        %1420 = vmatpush.bf16.msra.mxu0 %v1355
        %1421 = vmatpush.bf16.msra.mxu0 %v1354
        %1422 = vmatpush.bf16.msra.mxu0 %v1353
        %1423 = vmatmul.bf16.gmra.mxu0 %v1258
        %v1424 = vpop.f32.mrf.mxu0
        %v1425 = vadd.f32 %v1387, %v1424
        %v1426 = vpop.f32.mrf.mxu0
        %v1427 = vadd.f32 %v1389, %v1426
        %1428 = vmatmul.bf16.gmra.mxu0 %v1260
        %v1429 = vpop.f32.mrf.mxu0
        %v1430 = vadd.f32 %v1392, %v1429
        %v1431 = vpop.f32.mrf.mxu0
        %v1432 = vadd.f32 %v1394, %v1431
        %1433 = vmatmul.bf16.gmra.mxu0 %v1262
        %v1434 = vpop.f32.mrf.mxu0
        %v1435 = vadd.f32 %v1397, %v1434
        %v1436 = vpop.f32.mrf.mxu0
        %v1437 = vadd.f32 %v1399, %v1436
        %1438 = vmatmul.bf16.gmra.mxu0 %v1264
        %v1439 = vpop.f32.mrf.mxu0
        %v1440 = vadd.f32 %v1402, %v1439
        %v1441 = vpop.f32.mrf.mxu0
        %v1442 = vadd.f32 %v1404, %v1441
        %1443 = vmatmul.bf16.gmra.mxu0 %v1266
        %v1444 = vpop.f32.mrf.mxu0
        %v1445 = vadd.f32 %v1407, %v1444
        %v1446 = vpop.f32.mrf.mxu0
        %v1447 = vadd.f32 %v1409, %v1446
        %1448 = vmatmul.bf16.gmra.mxu0 %v1268
        %v1449 = vpop.f32.mrf.mxu0
        %v1450 = vadd.f32 %v1412, %v1449
        %v1451 = vpop.f32.mrf.mxu0
        %1452 = vdwg.mxu0
        %v1464 = vunpack.c.l.b16 %v1137
        %v1465 = vunpack.c.h.b16 %v1137
        %v1466 = vunpack.c.l.b16 %v1138
        %v1467 = vunpack.c.h.b16 %v1138
        %v1468 = vunpack.c.l.b16 %v1139
        %v1469 = vunpack.c.h.b16 %v1139
        %v1470 = vunpack.c.l.b16 %v1140
        %v1471 = vunpack.c.h.b16 %v1140
        %v1472 = vunpack.c.l.b16 %v1141
        %v1473 = vunpack.c.h.b16 %v1141
        %v1474 = vunpack.c.l.b16 %v1142
        %v1475 = vunpack.c.h.b16 %v1142
        %v1476 = vunpack.c.l.b16 %v1143
        %v1477 = vunpack.c.h.b16 %v1143
        %v1478 = vunpack.c.l.b16 %v1144
        %v1479 = vunpack.c.h.b16 %v1144
        %v1480 = vunpack.c.l.b16 %v1145
        %v1481 = vunpack.c.h.b16 %v1145
        %v1482 = vunpack.c.l.b16 %v1146
        %v1483 = vunpack.c.h.b16 %v1146
        %v1484 = vunpack.c.l.b16 %v1147
        %v1485 = vunpack.c.h.b16 %v1147
        %v1486 = vpack.c.b16 %v1466, %v1464
        %v1487 = vpack.c.b16 %v1467, %v1465
        %v1488 = vpack.c.b16 %v1470, %v1468
        %v1489 = vpack.c.b16 %v1471, %v1469
        %v1490 = vpack.c.b16 %v1474, %v1472
        %v1491 = vpack.c.b16 %v1475, %v1473
        %v1492 = vpack.c.b16 %v1478, %v1476
        %v1493 = vpack.c.b16 %v1479, %v1477
        %v1494 = vpack.c.b16 %v1482, %v1480
        %v1495 = vpack.c.b16 %v1483, %v1481
        %v1496 = vpack.c.b16 %v1484, %v1484
        %v1497 = vpack.c.b16 %v1485, %v1485
        %v1542 = vunpack.c.l.b16 %v1148
        %v1543 = vunpack.c.l.b16 %v1149
        %v1544 = vunpack.c.l.b16 %v1150
        %v1545 = vunpack.c.l.b16 %v1151
        %v1546 = vunpack.c.l.b16 %v1152
        %v1547 = vunpack.c.l.b16 %v1153
        %v1548 = vunpack.c.l.b16 %v1154
        %v1549 = vunpack.c.l.b16 %v1155
        %v1550 = vunpack.c.l.b16 %v1156
        %v1551 = vunpack.c.l.b16 %v1157
        %v1552 = vunpack.c.l.b16 %v1158
        %v1553 = vunpack.c.l.b16 %v1159
        %v1554 = vunpack.c.l.b16 %v1160
        %v1555 = vunpack.c.l.b16 %v1161
        %v1556 = vunpack.c.l.b16 %v1162
        %v1557 = vunpack.c.l.b16 %v1163
        %v1558 = vunpack.c.l.b16 %v1164
        %v1559 = vunpack.c.l.b16 %v1165
        %v1560 = vunpack.c.l.b16 %v1166
        %v1561 = vunpack.c.l.b16 %v1167
        %v1562 = vunpack.c.l.b16 %v1168
        %v1563 = vunpack.c.l.b16 %v1169
        %v1564 = vunpack.c.l.b16 %v1170
        %v1565 = vunpack.c.l.b16 %v1171
        %v1566 = vunpack.c.l.b16 %v1172
        %v1567 = vunpack.c.l.b16 %v1173
        %v1568 = vunpack.c.l.b16 %v1174
        %v1569 = vunpack.c.l.b16 %v1175
        %v1570 = vunpack.c.l.b16 %v1176
        %v1571 = vunpack.c.l.b16 %v1177
        %v1572 = vunpack.c.l.b16 %v1178
        %v1573 = vunpack.c.l.b16 %v1179
        %v1574 = vpack.c.b16 %v1543, %v1542
        %v1575 = vpack.c.b16 %v1545, %v1544
        %v1576 = vpack.c.b16 %v1547, %v1546
        %v1577 = vpack.c.b16 %v1549, %v1548
        %v1578 = vpack.c.b16 %v1551, %v1550
        %v1579 = vpack.c.b16 %v1553, %v1552
        %v1580 = vpack.c.b16 %v1555, %v1554
        %v1581 = vpack.c.b16 %v1557, %v1556
        %v1582 = vpack.c.b16 %v1559, %v1558
        %v1583 = vpack.c.b16 %v1561, %v1560
        %v1584 = vpack.c.b16 %v1563, %v1562
        %v1585 = vpack.c.b16 %v1565, %v1564
        %v1586 = vpack.c.b16 %v1567, %v1566
        %v1587 = vpack.c.b16 %v1569, %v1568
        %v1588 = vpack.c.b16 %v1571, %v1570
        %v1589 = vpack.c.b16 %v1573, %v1572
        %1606 = vmatpush.bf16.msra.mxu0 %v1581
        %1607 = vmatpush.bf16.msra.mxu0 %v1580
        %1608 = vmatpush.bf16.msra.mxu0 %v1579
        %1609 = vmatpush.bf16.msra.mxu0 %v1578
        %1610 = vmatpush.bf16.msra.mxu0 %v1577
        %1611 = vmatpush.bf16.msra.mxu0 %v1576
        %1612 = vmatpush.bf16.msra.mxu0 %v1575
        %1613 = vmatpush.bf16.msra.mxu0 %v1574
        %1614 = vmatmul.bf16.gmra.mxu0 %v1486
        %v1615 = vpop.f32.mrf.mxu0
        %v1616 = vadd.f32 %v1425, %v1615
        %v1617 = vpop.f32.mrf.mxu0
        %v1618 = vadd.f32 %v1427, %v1617
        %1619 = vmatmul.bf16.gmra.mxu0 %v1488
        %v1620 = vpop.f32.mrf.mxu0
        %v1621 = vadd.f32 %v1430, %v1620
        %v1622 = vpop.f32.mrf.mxu0
        %v1623 = vadd.f32 %v1432, %v1622
        %1624 = vmatmul.bf16.gmra.mxu0 %v1490
        %v1625 = vpop.f32.mrf.mxu0
        %v1626 = vadd.f32 %v1435, %v1625
        %v1627 = vpop.f32.mrf.mxu0
        %v1628 = vadd.f32 %v1437, %v1627
        %1629 = vmatmul.bf16.gmra.mxu0 %v1492
        %v1630 = vpop.f32.mrf.mxu0
        %v1631 = vadd.f32 %v1440, %v1630
        %v1632 = vpop.f32.mrf.mxu0
        %v1633 = vadd.f32 %v1442, %v1632
        %1634 = vmatmul.bf16.gmra.mxu0 %v1494
        %v1635 = vpop.f32.mrf.mxu0
        %v1636 = vadd.f32 %v1445, %v1635
        %v1637 = vpop.f32.mrf.mxu0
        %v1638 = vadd.f32 %v1447, %v1637
        %1639 = vmatmul.bf16.gmra.mxu0 %v1496
        %v1640 = vpop.f32.mrf.mxu0
        %v1641 = vadd.f32 %v1450, %v1640
        %v1642 = vpop.f32.mrf.mxu0
        %1643 = vdwg.mxu0
        %1644 = vmatpush.bf16.msra.mxu0 %v1589
        %1645 = vmatpush.bf16.msra.mxu0 %v1588
        %1646 = vmatpush.bf16.msra.mxu0 %v1587
        %1647 = vmatpush.bf16.msra.mxu0 %v1586
        %1648 = vmatpush.bf16.msra.mxu0 %v1585
        %1649 = vmatpush.bf16.msra.mxu0 %v1584
        %1650 = vmatpush.bf16.msra.mxu0 %v1583
        %1651 = vmatpush.bf16.msra.mxu0 %v1582
        %1652 = vmatmul.bf16.gmra.mxu0 %v1487
        %v1653 = vpop.f32.mrf.mxu0
        %v1654 = vadd.f32 %v1616, %v1653
        %v1655 = vpop.f32.mrf.mxu0
        %v1656 = vadd.f32 %v1618, %v1655
        %1657 = vmatmul.bf16.gmra.mxu0 %v1489
        %v1658 = vpop.f32.mrf.mxu0
        %v1659 = vadd.f32 %v1621, %v1658
        %v1660 = vpop.f32.mrf.mxu0
        %v1661 = vadd.f32 %v1623, %v1660
        %1662 = vmatmul.bf16.gmra.mxu0 %v1491
        %v1663 = vpop.f32.mrf.mxu0
        %v1664 = vadd.f32 %v1626, %v1663
        %v1665 = vpop.f32.mrf.mxu0
        %v1666 = vadd.f32 %v1628, %v1665
        %1667 = vmatmul.bf16.gmra.mxu0 %v1493
        %v1668 = vpop.f32.mrf.mxu0
        %v1669 = vadd.f32 %v1631, %v1668
        %v1670 = vpop.f32.mrf.mxu0
        %v1671 = vadd.f32 %v1633, %v1670
        %1672 = vmatmul.bf16.gmra.mxu0 %v1495
        %v1673 = vpop.f32.mrf.mxu0
        %v1674 = vadd.f32 %v1636, %v1673
        %v1675 = vpop.f32.mrf.mxu0
        %v1676 = vadd.f32 %v1638, %v1675
        %1677 = vmatmul.bf16.gmra.mxu0 %v1497
        %v1678 = vpop.f32.mrf.mxu0
        %v1679 = vadd.f32 %v1641, %v1678
        %v1680 = vpop.f32.mrf.mxu0
        %1681 = vdwg.mxu0
        %v1682 = vld [vmem:[#allocation2 + $0x8] sm:$0xff]
        %v1683 = vld [vmem:[#allocation2 + $0x10] sm:$0xff]
        %v1684 = vld [vmem:[#allocation2 + $0x18] sm:$0xff]
        %v1685 = vld [vmem:[#allocation2 + $0x20] sm:$0xff]
        %v1686 = vld [vmem:[#allocation2 + $0x28] sm:$0xff]
        %v1687 = vld [vmem:[#allocation2 + $0x30] sm:$0xff]
        %v1688 = vld [vmem:[#allocation2 + $0x38] sm:$0xff]
        %v1689 = vld [vmem:[#allocation2 + $0x40] sm:$0xff]
        %v1690 = vld [vmem:[#allocation2 + $0x48] sm:$0xff]
        %v1691 = vld [vmem:[#allocation2 + $0x50] sm:$0xff]
        %v1692 = vld [vmem:[#allocation2 + $0x58] sm:$0x11]
        %s1693 = scalar_lea.vmem %s3, 256
        %v1694 = vld [vmem:[%s1693] sm:$0xf]
        %v1695 = vld [vmem:[%s1693 + $0x4] sm:$0xf]
        %v1696 = vld [vmem:[%s1693 + $0x8] sm:$0xf]
        %v1697 = vld [vmem:[%s1693 + $0xc] sm:$0xf]
        %v1698 = vld [vmem:[%s1693 + $0x10] sm:$0xf]
        %v1699 = vld [vmem:[%s1693 + $0x14] sm:$0xf]
        %v1700 = vld [vmem:[%s1693 + $0x18] sm:$0xf]
        %v1701 = vld [vmem:[%s1693 + $0x1c] sm:$0xf]
        %v1702 = vld [vmem:[%s1693 + $0x20] sm:$0xf]
        %v1703 = vld [vmem:[%s1693 + $0x24] sm:$0xf]
        %v1704 = vld [vmem:[%s1693 + $0x28] sm:$0xf]
        %v1705 = vld [vmem:[%s1693 + $0x2c] sm:$0xf]
        %v1706 = vld [vmem:[%s1693 + $0x30] sm:$0xf]
        %v1707 = vld [vmem:[%s1693 + $0x34] sm:$0xf]
        %v1708 = vld [vmem:[%s1693 + $0x38] sm:$0xf]
        %v1709 = vld [vmem:[%s1693 + $0x3c] sm:$0xf]
        %v1710 = vld [vmem:[%s1693 + $0x40] sm:$0xf]
        %v1711 = vld [vmem:[%s1693 + $0x44] sm:$0xf]
        %v1712 = vld [vmem:[%s1693 + $0x48] sm:$0xf]
        %v1713 = vld [vmem:[%s1693 + $0x4c] sm:$0xf]
        %v1714 = vld [vmem:[%s1693 + $0x50] sm:$0xf]
        %v1715 = vld [vmem:[%s1693 + $0x54] sm:$0xf]
        %v1716 = vld [vmem:[%s1693 + $0x58] sm:$0xf]
        %v1717 = vld [vmem:[%s1693 + $0x5c] sm:$0xf]
        %v1718 = vld [vmem:[%s1693 + $0x60] sm:$0xf]
        %v1719 = vld [vmem:[%s1693 + $0x64] sm:$0xf]
        %v1720 = vld [vmem:[%s1693 + $0x68] sm:$0xf]
        %v1721 = vld [vmem:[%s1693 + $0x6c] sm:$0xf]
        %v1722 = vld [vmem:[%s1693 + $0x70] sm:$0xf]
        %v1723 = vld [vmem:[%s1693 + $0x74] sm:$0xf]
        %v1724 = vld [vmem:[%s1693 + $0x78] sm:$0xf]
        %v1725 = vld [vmem:[%s1693 + $0x7c] sm:$0xf]
        %v1737 = vunpack.c.l.b16 %v1682
        %v1738 = vunpack.c.h.b16 %v1682
        %v1739 = vunpack.c.l.b16 %v1683
        %v1740 = vunpack.c.h.b16 %v1683
        %v1741 = vunpack.c.l.b16 %v1684
        %v1742 = vunpack.c.h.b16 %v1684
        %v1743 = vunpack.c.l.b16 %v1685
        %v1744 = vunpack.c.h.b16 %v1685
        %v1745 = vunpack.c.l.b16 %v1686
        %v1746 = vunpack.c.h.b16 %v1686
        %v1747 = vunpack.c.l.b16 %v1687
        %v1748 = vunpack.c.h.b16 %v1687
        %v1749 = vunpack.c.l.b16 %v1688
        %v1750 = vunpack.c.h.b16 %v1688
        %v1751 = vunpack.c.l.b16 %v1689
        %v1752 = vunpack.c.h.b16 %v1689
        %v1753 = vunpack.c.l.b16 %v1690
        %v1754 = vunpack.c.h.b16 %v1690
        %v1755 = vunpack.c.l.b16 %v1691
        %v1756 = vunpack.c.h.b16 %v1691
        %v1757 = vunpack.c.l.b16 %v1692
        %v1758 = vunpack.c.h.b16 %v1692
        %v1759 = vpack.c.b16 %v1739, %v1737
        %v1760 = vpack.c.b16 %v1740, %v1738
        %v1761 = vpack.c.b16 %v1743, %v1741
        %v1762 = vpack.c.b16 %v1744, %v1742
        %v1763 = vpack.c.b16 %v1747, %v1745
        %v1764 = vpack.c.b16 %v1748, %v1746
        %v1765 = vpack.c.b16 %v1751, %v1749
        %v1766 = vpack.c.b16 %v1752, %v1750
        %v1767 = vpack.c.b16 %v1755, %v1753
        %v1768 = vpack.c.b16 %v1756, %v1754
        %v1769 = vpack.c.b16 %v1757, %v1757
        %v1770 = vpack.c.b16 %v1758, %v1758
        %vm1771 = vsmask.f32 7424
        %v1773 = vshrl.u32 %v1759, 16
        %v1775 = vshll.u32 %v1759, 16
        %v1777 = vrot.slane %v1775, 1
        %v1778 = vor.u32 %v1773, %v1777
        %v1780 = vshll.u32 %v1761, 16
        %v1782 = vrot.slane %v1780, 1
        %v1783 = vsel %vm1771, %v1778, %v1782
        %v1785 = vshrl.u32 %v1760, 16
        %v1787 = vshll.u32 %v1760, 16
        %v1789 = vrot.slane %v1787, 1
        %v1790 = vor.u32 %v1785, %v1789
        %v1792 = vshll.u32 %v1762, 16
        %v1794 = vrot.slane %v1792, 1
        %v1795 = vsel %vm1771, %v1790, %v1794
        %v1796 = vshrl.u32 %v1761, 16
        %v1798 = vor.u32 %v1796, %v1782
        %v1800 = vshll.u32 %v1763, 16
        %v1802 = vrot.slane %v1800, 1
        %v1803 = vsel %vm1771, %v1798, %v1802
        %v1804 = vshrl.u32 %v1762, 16
        %v1806 = vor.u32 %v1804, %v1794
        %v1808 = vshll.u32 %v1764, 16
        %v1810 = vrot.slane %v1808, 1
        %v1811 = vsel %vm1771, %v1806, %v1810
        %v1812 = vshrl.u32 %v1763, 16
        %v1814 = vor.u32 %v1812, %v1802
        %v1816 = vshll.u32 %v1765, 16
        %v1818 = vrot.slane %v1816, 1
        %v1819 = vsel %vm1771, %v1814, %v1818
        %v1820 = vshrl.u32 %v1764, 16
        %v1822 = vor.u32 %v1820, %v1810
        %v1824 = vshll.u32 %v1766, 16
        %v1826 = vrot.slane %v1824, 1
        %v1827 = vsel %vm1771, %v1822, %v1826
        %v1828 = vshrl.u32 %v1765, 16
        %v1830 = vor.u32 %v1828, %v1818
        %v1832 = vshll.u32 %v1767, 16
        %v1834 = vrot.slane %v1832, 1
        %v1835 = vsel %vm1771, %v1830, %v1834
        %v1836 = vshrl.u32 %v1766, 16
        %v1838 = vor.u32 %v1836, %v1826
        %v1840 = vshll.u32 %v1768, 16
        %v1842 = vrot.slane %v1840, 1
        %v1843 = vsel %vm1771, %v1838, %v1842
        %v1844 = vshrl.u32 %v1767, 16
        %v1846 = vor.u32 %v1844, %v1834
        %v1848 = vshll.u32 %v1769, 16
        %v1850 = vrot.slane %v1848, 1
        %v1851 = vsel %vm1771, %v1846, %v1850
        %v1852 = vshrl.u32 %v1768, 16
        %v1854 = vor.u32 %v1852, %v1842
        %v1856 = vshll.u32 %v1770, 16
        %v1858 = vrot.slane %v1856, 1
        %v1859 = vsel %vm1771, %v1854, %v1858
        %v1860 = vshrl.u32 %v1769, 16
        %v1862 = vshrl.u32 %v1770, 16
        %v1908 = vunpack.c.l.b16 %v1694
        %v1909 = vunpack.c.l.b16 %v1695
        %v1910 = vunpack.c.l.b16 %v1696
        %v1911 = vunpack.c.l.b16 %v1697
        %v1912 = vunpack.c.l.b16 %v1698
        %v1913 = vunpack.c.l.b16 %v1699
        %v1914 = vunpack.c.l.b16 %v1700
        %v1915 = vunpack.c.l.b16 %v1701
        %v1916 = vunpack.c.l.b16 %v1702
        %v1917 = vunpack.c.l.b16 %v1703
        %v1918 = vunpack.c.l.b16 %v1704
        %v1919 = vunpack.c.l.b16 %v1705
        %v1920 = vunpack.c.l.b16 %v1706
        %v1921 = vunpack.c.l.b16 %v1707
        %v1922 = vunpack.c.l.b16 %v1708
        %v1923 = vunpack.c.l.b16 %v1709
        %v1924 = vunpack.c.l.b16 %v1710
        %v1925 = vunpack.c.l.b16 %v1711
        %v1926 = vunpack.c.l.b16 %v1712
        %v1927 = vunpack.c.l.b16 %v1713
        %v1928 = vunpack.c.l.b16 %v1714
        %v1929 = vunpack.c.l.b16 %v1715
        %v1930 = vunpack.c.l.b16 %v1716
        %v1931 = vunpack.c.l.b16 %v1717
        %v1932 = vunpack.c.l.b16 %v1718
        %v1933 = vunpack.c.l.b16 %v1719
        %v1934 = vunpack.c.l.b16 %v1720
        %v1935 = vunpack.c.l.b16 %v1721
        %v1936 = vunpack.c.l.b16 %v1722
        %v1937 = vunpack.c.l.b16 %v1723
        %v1938 = vunpack.c.l.b16 %v1724
        %v1939 = vunpack.c.l.b16 %v1725
        %v1940 = vpack.c.b16 %v1909, %v1908
        %v1941 = vpack.c.b16 %v1911, %v1910
        %v1942 = vpack.c.b16 %v1913, %v1912
        %v1943 = vpack.c.b16 %v1915, %v1914
        %v1944 = vpack.c.b16 %v1917, %v1916
        %v1945 = vpack.c.b16 %v1919, %v1918
        %v1946 = vpack.c.b16 %v1921, %v1920
        %v1947 = vpack.c.b16 %v1923, %v1922
        %v1948 = vpack.c.b16 %v1925, %v1924
        %v1949 = vpack.c.b16 %v1927, %v1926
        %v1950 = vpack.c.b16 %v1929, %v1928
        %v1951 = vpack.c.b16 %v1931, %v1930
        %v1952 = vpack.c.b16 %v1933, %v1932
        %v1953 = vpack.c.b16 %v1935, %v1934
        %v1954 = vpack.c.b16 %v1937, %v1936
        %v1955 = vpack.c.b16 %v1939, %v1938
        %1972 = vmatpush.bf16.msra.mxu0 %v1947
        %1973 = vmatpush.bf16.msra.mxu0 %v1946
        %1974 = vmatpush.bf16.msra.mxu0 %v1945
        %1975 = vmatpush.bf16.msra.mxu0 %v1944
        %1976 = vmatpush.bf16.msra.mxu0 %v1943
        %1977 = vmatpush.bf16.msra.mxu0 %v1942
        %1978 = vmatpush.bf16.msra.mxu0 %v1941
        %1979 = vmatpush.bf16.msra.mxu0 %v1940
        %1980 = vmatmul.bf16.gmra.mxu0 %v1783
        %v1981 = vpop.f32.mrf.mxu0
        %v1982 = vadd.f32 0.0, %v1981
        %v1983 = vpop.f32.mrf.mxu0
        %v1984 = vadd.f32 0.0, %v1983
        %1985 = vmatmul.bf16.gmra.mxu0 %v1803
        %v1986 = vpop.f32.mrf.mxu0
        %v1987 = vadd.f32 0.0, %v1986
        %v1988 = vpop.f32.mrf.mxu0
        %v1989 = vadd.f32 0.0, %v1988
        %1990 = vmatmul.bf16.gmra.mxu0 %v1819
        %v1991 = vpop.f32.mrf.mxu0
        %v1992 = vadd.f32 0.0, %v1991
        %v1993 = vpop.f32.mrf.mxu0
        %v1994 = vadd.f32 0.0, %v1993
        %1995 = vmatmul.bf16.gmra.mxu0 %v1835
        %v1996 = vpop.f32.mrf.mxu0
        %v1997 = vadd.f32 0.0, %v1996
        %v1998 = vpop.f32.mrf.mxu0
        %v1999 = vadd.f32 0.0, %v1998
        %2000 = vmatmul.bf16.gmra.mxu0 %v1851
        %v2001 = vpop.f32.mrf.mxu0
        %v2002 = vadd.f32 0.0, %v2001
        %v2003 = vpop.f32.mrf.mxu0
        %v2004 = vadd.f32 0.0, %v2003
        %2005 = vmatmul.bf16.gmra.mxu0 %v1860
        %v2006 = vpop.f32.mrf.mxu0
        %v2007 = vadd.f32 0.0, %v2006
        %v2008 = vpop.f32.mrf.mxu0
        %2009 = vdwg.mxu0
        %2010 = vmatpush.bf16.msra.mxu0 %v1955
        %2011 = vmatpush.bf16.msra.mxu0 %v1954
        %2012 = vmatpush.bf16.msra.mxu0 %v1953
        %2013 = vmatpush.bf16.msra.mxu0 %v1952
        %2014 = vmatpush.bf16.msra.mxu0 %v1951
        %2015 = vmatpush.bf16.msra.mxu0 %v1950
        %2016 = vmatpush.bf16.msra.mxu0 %v1949
        %2017 = vmatpush.bf16.msra.mxu0 %v1948
        %2018 = vmatmul.bf16.gmra.mxu0 %v1795
        %v2019 = vpop.f32.mrf.mxu0
        %v2020 = vadd.f32 %v1982, %v2019
        %v2021 = vpop.f32.mrf.mxu0
        %v2022 = vadd.f32 %v1984, %v2021
        %2023 = vmatmul.bf16.gmra.mxu0 %v1811
        %v2024 = vpop.f32.mrf.mxu0
        %v2025 = vadd.f32 %v1987, %v2024
        %v2026 = vpop.f32.mrf.mxu0
        %v2027 = vadd.f32 %v1989, %v2026
        %2028 = vmatmul.bf16.gmra.mxu0 %v1827
        %v2029 = vpop.f32.mrf.mxu0
        %v2030 = vadd.f32 %v1992, %v2029
        %v2031 = vpop.f32.mrf.mxu0
        %v2032 = vadd.f32 %v1994, %v2031
        %2033 = vmatmul.bf16.gmra.mxu0 %v1843
        %v2034 = vpop.f32.mrf.mxu0
        %v2035 = vadd.f32 %v1997, %v2034
        %v2036 = vpop.f32.mrf.mxu0
        %v2037 = vadd.f32 %v1999, %v2036
        %2038 = vmatmul.bf16.gmra.mxu0 %v1859
        %v2039 = vpop.f32.mrf.mxu0
        %v2040 = vadd.f32 %v2002, %v2039
        %v2041 = vpop.f32.mrf.mxu0
        %v2042 = vadd.f32 %v2004, %v2041
        %2043 = vmatmul.bf16.gmra.mxu0 %v1862
        %v2044 = vpop.f32.mrf.mxu0
        %v2045 = vadd.f32 %v2007, %v2044
        %v2046 = vpop.f32.mrf.mxu0
        %2047 = vdwg.mxu0
        %v2048 = vadd.f32 %v1654, %v2020
        %v2049 = vadd.f32 %v1656, %v2022
        %v2050 = vadd.f32 %v1659, %v2025
        %v2051 = vadd.f32 %v1661, %v2027
        %v2052 = vadd.f32 %v1664, %v2030
        %v2053 = vadd.f32 %v1666, %v2032
        %v2054 = vadd.f32 %v1669, %v2035
        %v2055 = vadd.f32 %v1671, %v2037
        %v2056 = vadd.f32 %v1674, %v2040
        %v2057 = vadd.f32 %v1676, %v2042
        %v2058 = vadd.f32 %v1679, %v2045
        %v2059 = vld [vmem:[%s1124 + $0x8] sm:$0xff]
        %v2060 = vld [vmem:[%s1124 + $0x10] sm:$0xff]
        %v2061 = vld [vmem:[%s1124 + $0x18] sm:$0xff]
        %v2062 = vld [vmem:[%s1124 + $0x20] sm:$0xff]
        %v2063 = vld [vmem:[%s1124 + $0x28] sm:$0xff]
        %v2064 = vld [vmem:[%s1124 + $0x30] sm:$0xff]
        %v2065 = vld [vmem:[%s1124 + $0x38] sm:$0xff]
        %v2066 = vld [vmem:[%s1124 + $0x40] sm:$0xff]
        %v2067 = vld [vmem:[%s1124 + $0x48] sm:$0xff]
        %v2068 = vld [vmem:[%s1124 + $0x50] sm:$0xff]
        %v2069 = vld [vmem:[%s1124 + $0x58] sm:$0x11]
        %s2070 = scalar_lea.vmem %s3, 384
        %v2071 = vld [vmem:[%s2070] sm:$0xf]
        %v2072 = vld [vmem:[%s2070 + $0x4] sm:$0xf]
        %v2073 = vld [vmem:[%s2070 + $0x8] sm:$0xf]
        %v2074 = vld [vmem:[%s2070 + $0xc] sm:$0xf]
        %v2075 = vld [vmem:[%s2070 + $0x10] sm:$0xf]
        %v2076 = vld [vmem:[%s2070 + $0x14] sm:$0xf]
        %v2077 = vld [vmem:[%s2070 + $0x18] sm:$0xf]
        %v2078 = vld [vmem:[%s2070 + $0x1c] sm:$0xf]
        %v2079 = vld [vmem:[%s2070 + $0x20] sm:$0xf]
        %v2080 = vld [vmem:[%s2070 + $0x24] sm:$0xf]
        %v2081 = vld [vmem:[%s2070 + $0x28] sm:$0xf]
        %v2082 = vld [vmem:[%s2070 + $0x2c] sm:$0xf]
        %v2083 = vld [vmem:[%s2070 + $0x30] sm:$0xf]
        %v2084 = vld [vmem:[%s2070 + $0x34] sm:$0xf]
        %v2085 = vld [vmem:[%s2070 + $0x38] sm:$0xf]
        %v2086 = vld [vmem:[%s2070 + $0x3c] sm:$0xf]
        %v2087 = vld [vmem:[%s2070 + $0x40] sm:$0xf]
        %v2088 = vld [vmem:[%s2070 + $0x44] sm:$0xf]
        %v2089 = vld [vmem:[%s2070 + $0x48] sm:$0xf]
        %v2090 = vld [vmem:[%s2070 + $0x4c] sm:$0xf]
        %v2091 = vld [vmem:[%s2070 + $0x50] sm:$0xf]
        %v2092 = vld [vmem:[%s2070 + $0x54] sm:$0xf]
        %v2093 = vld [vmem:[%s2070 + $0x58] sm:$0xf]
        %v2094 = vld [vmem:[%s2070 + $0x5c] sm:$0xf]
        %v2095 = vld [vmem:[%s2070 + $0x60] sm:$0xf]
        %v2096 = vld [vmem:[%s2070 + $0x64] sm:$0xf]
        %v2097 = vld [vmem:[%s2070 + $0x68] sm:$0xf]
        %v2098 = vld [vmem:[%s2070 + $0x6c] sm:$0xf]
        %v2099 = vld [vmem:[%s2070 + $0x70] sm:$0xf]
        %v2100 = vld [vmem:[%s2070 + $0x74] sm:$0xf]
        %v2101 = vld [vmem:[%s2070 + $0x78] sm:$0xf]
        %v2102 = vld [vmem:[%s2070 + $0x7c] sm:$0xf]
        %v2114 = vunpack.c.l.b16 %v2059
        %v2115 = vunpack.c.h.b16 %v2059
        %v2116 = vunpack.c.l.b16 %v2060
        %v2117 = vunpack.c.h.b16 %v2060
        %v2118 = vunpack.c.l.b16 %v2061
        %v2119 = vunpack.c.h.b16 %v2061
        %v2120 = vunpack.c.l.b16 %v2062
        %v2121 = vunpack.c.h.b16 %v2062
        %v2122 = vunpack.c.l.b16 %v2063
        %v2123 = vunpack.c.h.b16 %v2063
        %v2124 = vunpack.c.l.b16 %v2064
        %v2125 = vunpack.c.h.b16 %v2064
        %v2126 = vunpack.c.l.b16 %v2065
        %v2127 = vunpack.c.h.b16 %v2065
        %v2128 = vunpack.c.l.b16 %v2066
        %v2129 = vunpack.c.h.b16 %v2066
        %v2130 = vunpack.c.l.b16 %v2067
        %v2131 = vunpack.c.h.b16 %v2067
        %v2132 = vunpack.c.l.b16 %v2068
        %v2133 = vunpack.c.h.b16 %v2068
        %v2134 = vunpack.c.l.b16 %v2069
        %v2135 = vunpack.c.h.b16 %v2069
        %v2136 = vpack.c.b16 %v2116, %v2114
        %v2137 = vpack.c.b16 %v2117, %v2115
        %v2138 = vpack.c.b16 %v2120, %v2118
        %v2139 = vpack.c.b16 %v2121, %v2119
        %v2140 = vpack.c.b16 %v2124, %v2122
        %v2141 = vpack.c.b16 %v2125, %v2123
        %v2142 = vpack.c.b16 %v2128, %v2126
        %v2143 = vpack.c.b16 %v2129, %v2127
        %v2144 = vpack.c.b16 %v2132, %v2130
        %v2145 = vpack.c.b16 %v2133, %v2131
        %v2146 = vpack.c.b16 %v2134, %v2134
        %v2147 = vpack.c.b16 %v2135, %v2135
        %v2149 = vshrl.u32 %v2136, 16
        %v2151 = vshll.u32 %v2136, 16
        %v2153 = vrot.slane %v2151, 1
        %v2154 = vor.u32 %v2149, %v2153
        %v2156 = vshll.u32 %v2138, 16
        %v2158 = vrot.slane %v2156, 1
        %v2159 = vsel %vm1771, %v2154, %v2158
        %v2161 = vshrl.u32 %v2137, 16
        %v2163 = vshll.u32 %v2137, 16
        %v2165 = vrot.slane %v2163, 1
        %v2166 = vor.u32 %v2161, %v2165
        %v2168 = vshll.u32 %v2139, 16
        %v2170 = vrot.slane %v2168, 1
        %v2171 = vsel %vm1771, %v2166, %v2170
        %v2172 = vshrl.u32 %v2138, 16
        %v2174 = vor.u32 %v2172, %v2158
        %v2176 = vshll.u32 %v2140, 16
        %v2178 = vrot.slane %v2176, 1
        %v2179 = vsel %vm1771, %v2174, %v2178
        %v2180 = vshrl.u32 %v2139, 16
        %v2182 = vor.u32 %v2180, %v2170
        %v2184 = vshll.u32 %v2141, 16
        %v2186 = vrot.slane %v2184, 1
        %v2187 = vsel %vm1771, %v2182, %v2186
        %v2188 = vshrl.u32 %v2140, 16
        %v2190 = vor.u32 %v2188, %v2178
        %v2192 = vshll.u32 %v2142, 16
        %v2194 = vrot.slane %v2192, 1
        %v2195 = vsel %vm1771, %v2190, %v2194
        %v2196 = vshrl.u32 %v2141, 16
        %v2198 = vor.u32 %v2196, %v2186
        %v2200 = vshll.u32 %v2143, 16
        %v2202 = vrot.slane %v2200, 1
        %v2203 = vsel %vm1771, %v2198, %v2202
        %v2204 = vshrl.u32 %v2142, 16
        %v2206 = vor.u32 %v2204, %v2194
        %v2208 = vshll.u32 %v2144, 16
        %v2210 = vrot.slane %v2208, 1
        %v2211 = vsel %vm1771, %v2206, %v2210
        %v2212 = vshrl.u32 %v2143, 16
        %v2214 = vor.u32 %v2212, %v2202
        %v2216 = vshll.u32 %v2145, 16
        %v2218 = vrot.slane %v2216, 1
        %v2219 = vsel %vm1771, %v2214, %v2218
        %v2220 = vshrl.u32 %v2144, 16
        %v2222 = vor.u32 %v2220, %v2210
        %v2224 = vshll.u32 %v2146, 16
        %v2226 = vrot.slane %v2224, 1
        %v2227 = vsel %vm1771, %v2222, %v2226
        %v2228 = vshrl.u32 %v2145, 16
        %v2230 = vor.u32 %v2228, %v2218
        %v2232 = vshll.u32 %v2147, 16
        %v2234 = vrot.slane %v2232, 1
        %v2235 = vsel %vm1771, %v2230, %v2234
        %v2236 = vshrl.u32 %v2146, 16
        %v2238 = vshrl.u32 %v2147, 16
        %v2284 = vunpack.c.l.b16 %v2071
        %v2285 = vunpack.c.l.b16 %v2072
        %v2286 = vunpack.c.l.b16 %v2073
        %v2287 = vunpack.c.l.b16 %v2074
        %v2288 = vunpack.c.l.b16 %v2075
        %v2289 = vunpack.c.l.b16 %v2076
        %v2290 = vunpack.c.l.b16 %v2077
        %v2291 = vunpack.c.l.b16 %v2078
        %v2292 = vunpack.c.l.b16 %v2079
        %v2293 = vunpack.c.l.b16 %v2080
        %v2294 = vunpack.c.l.b16 %v2081
        %v2295 = vunpack.c.l.b16 %v2082
        %v2296 = vunpack.c.l.b16 %v2083
        %v2297 = vunpack.c.l.b16 %v2084
        %v2298 = vunpack.c.l.b16 %v2085
        %v2299 = vunpack.c.l.b16 %v2086
        %v2300 = vunpack.c.l.b16 %v2087
        %v2301 = vunpack.c.l.b16 %v2088
        %v2302 = vunpack.c.l.b16 %v2089
        %v2303 = vunpack.c.l.b16 %v2090
        %v2304 = vunpack.c.l.b16 %v2091
        %v2305 = vunpack.c.l.b16 %v2092
        %v2306 = vunpack.c.l.b16 %v2093
        %v2307 = vunpack.c.l.b16 %v2094
        %v2308 = vunpack.c.l.b16 %v2095
        %v2309 = vunpack.c.l.b16 %v2096
        %v2310 = vunpack.c.l.b16 %v2097
        %v2311 = vunpack.c.l.b16 %v2098
        %v2312 = vunpack.c.l.b16 %v2099
        %v2313 = vunpack.c.l.b16 %v2100
        %v2314 = vunpack.c.l.b16 %v2101
        %v2315 = vunpack.c.l.b16 %v2102
        %v2316 = vpack.c.b16 %v2285, %v2284
        %v2317 = vpack.c.b16 %v2287, %v2286
        %v2318 = vpack.c.b16 %v2289, %v2288
        %v2319 = vpack.c.b16 %v2291, %v2290
        %v2320 = vpack.c.b16 %v2293, %v2292
        %v2321 = vpack.c.b16 %v2295, %v2294
        %v2322 = vpack.c.b16 %v2297, %v2296
        %v2323 = vpack.c.b16 %v2299, %v2298
        %v2324 = vpack.c.b16 %v2301, %v2300
        %v2325 = vpack.c.b16 %v2303, %v2302
        %v2326 = vpack.c.b16 %v2305, %v2304
        %v2327 = vpack.c.b16 %v2307, %v2306
        %v2328 = vpack.c.b16 %v2309, %v2308
        %v2329 = vpack.c.b16 %v2311, %v2310
        %v2330 = vpack.c.b16 %v2313, %v2312
        %v2331 = vpack.c.b16 %v2315, %v2314
        %2348 = vmatpush.bf16.msra.mxu0 %v2323
        %2349 = vmatpush.bf16.msra.mxu0 %v2322
        %2350 = vmatpush.bf16.msra.mxu0 %v2321
        %2351 = vmatpush.bf16.msra.mxu0 %v2320
        %2352 = vmatpush.bf16.msra.mxu0 %v2319
        %2353 = vmatpush.bf16.msra.mxu0 %v2318
        %2354 = vmatpush.bf16.msra.mxu0 %v2317
        %2355 = vmatpush.bf16.msra.mxu0 %v2316
        %2356 = vmatmul.bf16.gmra.mxu0 %v2159
        %v2357 = vpop.f32.mrf.mxu0
        %v2358 = vadd.f32 0.0, %v2357
        %v2359 = vpop.f32.mrf.mxu0
        %v2360 = vadd.f32 0.0, %v2359
        %2361 = vmatmul.bf16.gmra.mxu0 %v2179
        %v2362 = vpop.f32.mrf.mxu0
        %v2363 = vadd.f32 0.0, %v2362
        %v2364 = vpop.f32.mrf.mxu0
        %v2365 = vadd.f32 0.0, %v2364
        %2366 = vmatmul.bf16.gmra.mxu0 %v2195
        %v2367 = vpop.f32.mrf.mxu0
        %v2368 = vadd.f32 0.0, %v2367
        %v2369 = vpop.f32.mrf.mxu0
        %v2370 = vadd.f32 0.0, %v2369
        %2371 = vmatmul.bf16.gmra.mxu0 %v2211
        %v2372 = vpop.f32.mrf.mxu0
        %v2373 = vadd.f32 0.0, %v2372
        %v2374 = vpop.f32.mrf.mxu0
        %v2375 = vadd.f32 0.0, %v2374
        %2376 = vmatmul.bf16.gmra.mxu0 %v2227
        %v2377 = vpop.f32.mrf.mxu0
        %v2378 = vadd.f32 0.0, %v2377
        %v2379 = vpop.f32.mrf.mxu0
        %v2380 = vadd.f32 0.0, %v2379
        %2381 = vmatmul.bf16.gmra.mxu0 %v2236
        %v2382 = vpop.f32.mrf.mxu0
        %v2383 = vadd.f32 0.0, %v2382
        %v2384 = vpop.f32.mrf.mxu0
        %2385 = vdwg.mxu0
        %2386 = vmatpush.bf16.msra.mxu0 %v2331
        %2387 = vmatpush.bf16.msra.mxu0 %v2330
        %2388 = vmatpush.bf16.msra.mxu0 %v2329
        %2389 = vmatpush.bf16.msra.mxu0 %v2328
        %2390 = vmatpush.bf16.msra.mxu0 %v2327
        %2391 = vmatpush.bf16.msra.mxu0 %v2326
        %2392 = vmatpush.bf16.msra.mxu0 %v2325
        %2393 = vmatpush.bf16.msra.mxu0 %v2324
        %2394 = vmatmul.bf16.gmra.mxu0 %v2171
        %v2395 = vpop.f32.mrf.mxu0
        %v2396 = vadd.f32 %v2358, %v2395
        %v2397 = vpop.f32.mrf.mxu0
        %v2398 = vadd.f32 %v2360, %v2397
        %2399 = vmatmul.bf16.gmra.mxu0 %v2187
        %v2400 = vpop.f32.mrf.mxu0
        %v2401 = vadd.f32 %v2363, %v2400
        %v2402 = vpop.f32.mrf.mxu0
        %v2403 = vadd.f32 %v2365, %v2402
        %2404 = vmatmul.bf16.gmra.mxu0 %v2203
        %v2405 = vpop.f32.mrf.mxu0
        %v2406 = vadd.f32 %v2368, %v2405
        %v2407 = vpop.f32.mrf.mxu0
        %v2408 = vadd.f32 %v2370, %v2407
        %2409 = vmatmul.bf16.gmra.mxu0 %v2219
        %v2410 = vpop.f32.mrf.mxu0
        %v2411 = vadd.f32 %v2373, %v2410
        %v2412 = vpop.f32.mrf.mxu0
        %v2413 = vadd.f32 %v2375, %v2412
        %2414 = vmatmul.bf16.gmra.mxu0 %v2235
        %v2415 = vpop.f32.mrf.mxu0
        %v2416 = vadd.f32 %v2378, %v2415
        %v2417 = vpop.f32.mrf.mxu0
        %v2418 = vadd.f32 %v2380, %v2417
        %2419 = vmatmul.bf16.gmra.mxu0 %v2238
        %v2420 = vpop.f32.mrf.mxu0
        %v2421 = vadd.f32 %v2383, %v2420
        %v2422 = vpop.f32.mrf.mxu0
        %2423 = vdwg.mxu0
        %v2424 = vadd.f32 %v2048, %v2396
        %v2425 = vadd.f32 %v2049, %v2398
        %v2426 = vadd.f32 %v2050, %v2401
        %v2427 = vadd.f32 %v2051, %v2403
        %v2428 = vadd.f32 %v2052, %v2406
        %v2429 = vadd.f32 %v2053, %v2408
        %v2430 = vadd.f32 %v2054, %v2411
        %v2431 = vadd.f32 %v2055, %v2413
        %v2432 = vadd.f32 %v2056, %v2416
        %v2433 = vadd.f32 %v2057, %v2418
        %v2434 = vadd.f32 %v2058, %v2421
        %v2435 = vld [vmem:[%s4] sm:$0x1]
        %v2437 = vperm.slane %v2435, 0
        %v2439 = vadd.f32 %v2424, %v2437
        %v2440 = vadd.f32 %v2425, %v2437
        %v2441 = vadd.f32 %v2426, %v2437
        %v2442 = vadd.f32 %v2427, %v2437
        %v2443 = vadd.f32 %v2428, %v2437
        %v2444 = vadd.f32 %v2429, %v2437
        %v2445 = vadd.f32 %v2430, %v2437
        %v2446 = vadd.f32 %v2431, %v2437
        %v2447 = vadd.f32 %v2432, %v2437
        %v2448 = vadd.f32 %v2433, %v2437
        %v2449 = vadd.f32 %v2434, %v2437
        %v2450 = vmax.f32 %v2439, 0.0
        %v2451 = vmax.f32 %v2440, 0.0
        %v2452 = vmax.f32 %v2441, 0.0
        %v2453 = vmax.f32 %v2442, 0.0
        %v2454 = vmax.f32 %v2443, 0.0
        %v2455 = vmax.f32 %v2444, 0.0
        %v2456 = vmax.f32 %v2445, 0.0
        %v2457 = vmax.f32 %v2446, 0.0
        %v2458 = vmax.f32 %v2447, 0.0
        %v2459 = vmax.f32 %v2448, 0.0
        %v2460 = vmax.f32 %v2449, 0.0
        %v2462 = vrot.slane %v2451, 2
        %vm2466 = vcmask 1043456
        %v2467 = vrot.slane %v2452, 4
        %v2468 = vrot.slane %v2453, 4
        %v2469 = vsel %vm2466, %v2467, %v2468
        %vm2473 = vcmask 1041408
        %v2474 = vrot.slane %v2453, 6
        %v2475 = vrot.slane %v2454, 6
        %v2476 = vsel %vm2473, %v2474, %v2475
        %vm2481 = vcmask 1045504
        %v2482 = vrot.slane %v2455, 2
        %v2483 = vrot.slane %v2456, 2
        %v2484 = vsel %vm2481, %v2482, %v2483
        %v2488 = vrot.slane %v2456, 4
        %v2489 = vrot.slane %v2457, 4
        %v2490 = vsel %vm2466, %v2488, %v2489
        %v2494 = vrot.slane %v2457, 6
        %v2495 = vrot.slane %v2458, 6
        %v2496 = vsel %vm2473, %v2494, %v2495
        %vm2498 = vcmask 1046528
        %v2499 = vsel %vm2498, %v2450, %v2462
        %v2500 = vsel %vm2481, %v2462, %v2467
        %vm2501 = vcmask 1044480
        %v2502 = vsel %vm2501, %v2469, %v2474
        %v2503 = vsel %vm2466, %v2476, %v2454
        %vm2504 = vcmask 1042432
        %v2505 = vsel %vm2504, %v2455, %v2484
        %v2506 = vsel %vm2473, %v2483, %v2490
        %vm2507 = vcmask 1040384
        %v2508 = vsel %vm2507, %v2489, %v2496
        %v2510 = vrot.slane %v2450, 1
        %v2512 = vrot.slane %v2451, 3
        %v2513 = vrot.slane %v2452, 3
        %v2514 = vsel %vm2501, %v2512, %v2513
        %v2517 = vrot.slane %v2452, 5
        %v2518 = vrot.slane %v2453, 5
        %v2519 = vsel %vm2504, %v2517, %v2518
        %v2522 = vrot.slane %v2453, 7
        %v2523 = vrot.slane %v2454, 7
        %v2524 = vsel %vm2507, %v2522, %v2523
        %v2527 = vrot.slane %v2454, 1
        %v2528 = vrot.slane %v2455, 1
        %v2529 = vsel %vm2498, %v2527, %v2528
        %v2532 = vrot.slane %v2455, 3
        %v2533 = vrot.slane %v2456, 3
        %v2534 = vsel %vm2501, %v2532, %v2533
        %v2537 = vrot.slane %v2456, 5
        %v2538 = vrot.slane %v2457, 5
        %v2539 = vsel %vm2504, %v2537, %v2538
        %v2542 = vrot.slane %v2458, 7
        %v2545 = vrot.slane %v2459, 1
        %v2547 = vsel %vm2498, %v2510, %v2512
        %v2548 = vsel %vm2481, %v2514, %v2517
        %v2549 = vsel %vm2501, %v2519, %v2522
        %v2550 = vsel %vm2466, %v2524, %v2529
        %v2551 = vsel %vm2504, %v2528, %v2534
        %v2552 = vsel %vm2473, %v2533, %v2539
        %v2553 = vsel %vm2507, %v2538, %v2542
        %v2554 = vrot.slane %v2450, 2
        %v2555 = vsel %vm2481, %v2554, %v2462
        %v2557 = vrot.slane %v2451, 4
        %v2558 = vsel %vm2466, %v2557, %v2467
        %v2561 = vrot.slane %v2452, 6
        %v2562 = vsel %vm2473, %v2561, %v2474
        %v2565 = vrot.slane %v2454, 2
        %v2566 = vsel %vm2481, %v2565, %v2482
        %v2569 = vrot.slane %v2455, 4
        %v2570 = vsel %vm2466, %v2569, %v2488
        %v2575 = vrot.slane %v2459, 2
        %v2576 = vrot.slane %v2460, 2
        %v2577 = vsel %vm2481, %v2575, %v2576
        %v2579 = vsel %vm2498, %v2555, %v2557
        %v2580 = vsel %vm2481, %v2558, %v2561
        %v2581 = vsel %vm2501, %v2562, %v2453
        %v2582 = vsel %vm2466, %v2454, %v2566
        %v2583 = vsel %vm2504, %v2482, %v2570
        %v2584 = vsel %vm2473, %v2488, %v2494
        %v2585 = vsel %vm2507, %v2494, %v2458
        %v2586 = vpack.c.bf16 %v2547, %v2499
        %v2587 = vpack.c.bf16 %v2579, %v2579
        %v2588 = vpack.c.bf16 %v2548, %v2500
        %v2589 = vpack.c.bf16 %v2580, %v2580
        %v2590 = vpack.c.bf16 %v2549, %v2502
        %v2591 = vpack.c.bf16 %v2581, %v2581
        %v2592 = vpack.c.bf16 %v2550, %v2503
        %v2593 = vpack.c.bf16 %v2582, %v2582
        %v2594 = vpack.c.bf16 %v2551, %v2505
        %v2595 = vpack.c.bf16 %v2583, %v2583
        %v2596 = vpack.c.bf16 %v2552, %v2506
        %v2597 = vpack.c.bf16 %v2584, %v2584
        %v2598 = vpack.c.bf16 %v2553, %v2508
        %v2599 = vpack.c.bf16 %v2585, %v2585
        %v2600 = vpack.c.bf16 %v2545, %v2459
        %v2601 = vpack.c.bf16 %v2577, %v2577
        %2602 = vst [vmem:[#allocation3] sm:$0xff] %v2586
        %2603 = vst [vmem:[#allocation3 + $0x8] sm:$0xf] %v2587
        %2604 = vst [vmem:[#allocation3 + $0xc] sm:$0xff] %v2588
        %2605 = vst [vmem:[#allocation3 + $0x14] sm:$0xf] %v2589
        %2606 = vst [vmem:[#allocation3 + $0x18] sm:$0xff] %v2590
        %2607 = vst [vmem:[#allocation3 + $0x20] sm:$0xf] %v2591
        %2608 = vst [vmem:[#allocation3 + $0x24] sm:$0xff] %v2592
        %2609 = vst [vmem:[#allocation3 + $0x2c] sm:$0xf] %v2593
        %2610 = vst [vmem:[#allocation3 + $0x30] sm:$0xff] %v2594
        %2611 = vst [vmem:[#allocation3 + $0x38] sm:$0xf] %v2595
        %2612 = vst [vmem:[#allocation3 + $0x3c] sm:$0xff] %v2596
        %2613 = vst [vmem:[#allocation3 + $0x44] sm:$0xf] %v2597
        %2614 = vst [vmem:[#allocation3 + $0x48] sm:$0xff] %v2598
        %2615 = vst [vmem:[#allocation3 + $0x50] sm:$0xf] %v2599
        %vm2616 = vcmask 1043456
        %vm2617 = vsmask.f32 3328
        %vm2618 = vmand %vm2616, %vm2617
        %vm2619 = vcmask 1047556
        %vm2620 = vmand %vm2619, %vm1771
        %vm2621 = vmor %vm2620, %vm2618
        %v2622 = vld [vmem:[#allocation3 + $0x54] sm:$0xff]
        %v2623 = vsel %vm2621, %v2600, %v2622
        %2624 = vst [vmem:[#allocation3 + $0x54] sm:$0xff] %v2623
        %v2625 = vld [vmem:[#allocation3 + $0x5c] sm:$0xf]
        %v2626 = vsel %vm2618, %v2601, %v2625
        %2627 = vst [vmem:[#allocation3 + $0x5c] sm:$0xf] %v2626
        %v2628 = vld [vmem:[#allocation3] sm:$0xff]
        %v2629 = vld [vmem:[#allocation3 + $0x8] sm:$0xf]
        %v2630 = vld [vmem:[#allocation3 + $0xc] sm:$0xff]
        %v2631 = vld [vmem:[#allocation3 + $0x14] sm:$0xf]
        %v2632 = vld [vmem:[#allocation3 + $0x18] sm:$0xff]
        %v2633 = vld [vmem:[#allocation3 + $0x20] sm:$0xf]
        %v2634 = vld [vmem:[#allocation3 + $0x24] sm:$0xff]
        %v2635 = vld [vmem:[#allocation3 + $0x2c] sm:$0xf]
        %v2636 = vld [vmem:[#allocation3 + $0x30] sm:$0xff]
        %v2637 = vld [vmem:[#allocation3 + $0x38] sm:$0xf]
        %v2638 = vld [vmem:[#allocation3 + $0x3c] sm:$0xff]
        %v2639 = vld [vmem:[#allocation3 + $0x44] sm:$0xf]
        %v2640 = vld [vmem:[#allocation3 + $0x48] sm:$0x11]
        %v2641 = vld [vmem:[#allocation3 + $0x50] sm:$0x1]
        %v2642 = vld [vmem:[%s5] sm:$0xf]
        %v2643 = vld [vmem:[%s5 + $0x4] sm:$0xf]
        %v2644 = vld [vmem:[%s5 + $0x8] sm:$0xf]
        %v2645 = vld [vmem:[%s5 + $0xc] sm:$0xf]
        %v2646 = vld [vmem:[%s5 + $0x10] sm:$0xf]
        %v2647 = vld [vmem:[%s5 + $0x14] sm:$0xf]
        %v2648 = vld [vmem:[%s5 + $0x18] sm:$0xf]
        %v2649 = vld [vmem:[%s5 + $0x1c] sm:$0xf]
        %v2650 = vld [vmem:[%s5 + $0x20] sm:$0xf]
        %v2651 = vld [vmem:[%s5 + $0x24] sm:$0xf]
        %v2652 = vld [vmem:[%s5 + $0x28] sm:$0xf]
        %v2653 = vld [vmem:[%s5 + $0x2c] sm:$0xf]
        %v2654 = vld [vmem:[%s5 + $0x30] sm:$0xf]
        %v2655 = vld [vmem:[%s5 + $0x34] sm:$0xf]
        %v2656 = vld [vmem:[%s5 + $0x38] sm:$0xf]
        %v2657 = vld [vmem:[%s5 + $0x3c] sm:$0xf]
        %v2658 = vld [vmem:[%s5 + $0x40] sm:$0xf]
        %v2659 = vld [vmem:[%s5 + $0x44] sm:$0xf]
        %v2660 = vld [vmem:[%s5 + $0x48] sm:$0xf]
        %v2661 = vld [vmem:[%s5 + $0x4c] sm:$0xf]
        %v2662 = vld [vmem:[%s5 + $0x50] sm:$0xf]
        %v2663 = vld [vmem:[%s5 + $0x54] sm:$0xf]
        %v2664 = vld [vmem:[%s5 + $0x58] sm:$0xf]
        %v2665 = vld [vmem:[%s5 + $0x5c] sm:$0xf]
        %v2666 = vld [vmem:[%s5 + $0x60] sm:$0xf]
        %v2667 = vld [vmem:[%s5 + $0x64] sm:$0xf]
        %v2668 = vld [vmem:[%s5 + $0x68] sm:$0xf]
        %v2669 = vld [vmem:[%s5 + $0x6c] sm:$0xf]
        %v2670 = vld [vmem:[%s5 + $0x70] sm:$0xf]
        %v2671 = vld [vmem:[%s5 + $0x74] sm:$0xf]
        %v2672 = vld [vmem:[%s5 + $0x78] sm:$0xf]
        %v2673 = vld [vmem:[%s5 + $0x7c] sm:$0xf]
        %v2674 = vld [vmem:[%s5 + $0x80] sm:$0xf]
        %v2675 = vld [vmem:[%s5 + $0x84] sm:$0xf]
        %v2676 = vld [vmem:[%s5 + $0x88] sm:$0xf]
        %v2677 = vld [vmem:[%s5 + $0x8c] sm:$0xf]
        %v2678 = vld [vmem:[%s5 + $0x90] sm:$0xf]
        %v2679 = vld [vmem:[%s5 + $0x94] sm:$0xf]
        %v2680 = vld [vmem:[%s5 + $0x98] sm:$0xf]
        %v2681 = vld [vmem:[%s5 + $0x9c] sm:$0xf]
        %v2682 = vld [vmem:[%s5 + $0xa0] sm:$0xf]
        %v2683 = vld [vmem:[%s5 + $0xa4] sm:$0xf]
        %v2684 = vld [vmem:[%s5 + $0xa8] sm:$0xf]
        %v2685 = vld [vmem:[%s5 + $0xac] sm:$0xf]
        %v2686 = vld [vmem:[%s5 + $0xb0] sm:$0xf]
        %v2687 = vld [vmem:[%s5 + $0xb4] sm:$0xf]
        %v2688 = vld [vmem:[%s5 + $0xb8] sm:$0xf]
        %v2689 = vld [vmem:[%s5 + $0xbc] sm:$0xf]
        %v2690 = vld [vmem:[#allocation3] sm:$0x88]
        %v2691 = vld [vmem:[#allocation3 + $0x8] sm:$0x8]
        %v2692 = vld [vmem:[#allocation3 + $0x48] sm:$0xff]
        %v2693 = vld [vmem:[#allocation3 + $0x50] sm:$0xf]
        %s2694 = scalar_lea.vmem %s5, 192
        %v2695 = vld [vmem:[%s2694] sm:$0xf]
        %v2696 = vld [vmem:[%s2694 + $0x4] sm:$0xf]
        %v2697 = vld [vmem:[%s2694 + $0x8] sm:$0xf]
        %v2698 = vld [vmem:[%s2694 + $0xc] sm:$0xf]
        %v2699 = vld [vmem:[%s2694 + $0x10] sm:$0xf]
        %v2700 = vld [vmem:[%s2694 + $0x14] sm:$0xf]
        %v2701 = vld [vmem:[%s2694 + $0x18] sm:$0xf]
        %v2702 = vld [vmem:[%s2694 + $0x1c] sm:$0xf]
        %v2703 = vld [vmem:[%s2694 + $0x20] sm:$0xf]
        %v2704 = vld [vmem:[%s2694 + $0x24] sm:$0xf]
        %v2705 = vld [vmem:[%s2694 + $0x28] sm:$0xf]
        %v2706 = vld [vmem:[%s2694 + $0x2c] sm:$0xf]
        %v2707 = vld [vmem:[%s2694 + $0x30] sm:$0xf]
        %v2708 = vld [vmem:[%s2694 + $0x34] sm:$0xf]
        %v2709 = vld [vmem:[%s2694 + $0x38] sm:$0xf]
        %v2710 = vld [vmem:[%s2694 + $0x3c] sm:$0xf]
        %v2711 = vld [vmem:[%s2694 + $0x40] sm:$0xf]
        %v2712 = vld [vmem:[%s2694 + $0x44] sm:$0xf]
        %v2713 = vld [vmem:[%s2694 + $0x48] sm:$0xf]
        %v2714 = vld [vmem:[%s2694 + $0x4c] sm:$0xf]
        %v2715 = vld [vmem:[%s2694 + $0x50] sm:$0xf]
        %v2716 = vld [vmem:[%s2694 + $0x54] sm:$0xf]
        %v2717 = vld [vmem:[%s2694 + $0x58] sm:$0xf]
        %v2718 = vld [vmem:[%s2694 + $0x5c] sm:$0xf]
        %v2719 = vld [vmem:[%s2694 + $0x60] sm:$0xf]
        %v2720 = vld [vmem:[%s2694 + $0x64] sm:$0xf]
        %v2721 = vld [vmem:[%s2694 + $0x68] sm:$0xf]
        %v2722 = vld [vmem:[%s2694 + $0x6c] sm:$0xf]
        %v2723 = vld [vmem:[%s2694 + $0x70] sm:$0xf]
        %v2724 = vld [vmem:[%s2694 + $0x74] sm:$0xf]
        %v2725 = vld [vmem:[%s2694 + $0x78] sm:$0xf]
        %v2726 = vld [vmem:[%s2694 + $0x7c] sm:$0xf]
        %v2727 = vld [vmem:[%s2694 + $0x80] sm:$0xf]
        %v2728 = vld [vmem:[%s2694 + $0x84] sm:$0xf]
        %v2729 = vld [vmem:[%s2694 + $0x88] sm:$0xf]
        %v2730 = vld [vmem:[%s2694 + $0x8c] sm:$0xf]
        %v2731 = vld [vmem:[%s2694 + $0x90] sm:$0xf]
        %v2732 = vld [vmem:[%s2694 + $0x94] sm:$0xf]
        %v2733 = vld [vmem:[%s2694 + $0x98] sm:$0xf]
        %v2734 = vld [vmem:[%s2694 + $0x9c] sm:$0xf]
        %v2735 = vld [vmem:[%s2694 + $0xa0] sm:$0xf]
        %v2736 = vld [vmem:[%s2694 + $0xa4] sm:$0xf]
        %v2737 = vld [vmem:[%s2694 + $0xa8] sm:$0xf]
        %v2738 = vld [vmem:[%s2694 + $0xac] sm:$0xf]
        %v2739 = vld [vmem:[%s2694 + $0xb0] sm:$0xf]
        %v2740 = vld [vmem:[%s2694 + $0xb4] sm:$0xf]
        %v2741 = vld [vmem:[%s2694 + $0xb8] sm:$0xf]
        %v2742 = vld [vmem:[%s2694 + $0xbc] sm:$0xf]
        %v2757 = vunpack.c.l.b16 %v2690
        %v2758 = vunpack.c.h.b16 %v2690
        %v2759 = vunpack.c.l.b16 %v2691
        %v2760 = vunpack.c.l.b16 %v2630
        %v2761 = vunpack.c.h.b16 %v2630
        %v2762 = vunpack.c.l.b16 %v2631
        %v2763 = vunpack.c.l.b16 %v2632
        %v2764 = vunpack.c.h.b16 %v2632
        %v2765 = vunpack.c.l.b16 %v2633
        %v2766 = vunpack.c.l.b16 %v2634
        %v2767 = vunpack.c.h.b16 %v2634
        %v2768 = vunpack.c.l.b16 %v2635
        %v2769 = vunpack.c.l.b16 %v2636
        %v2770 = vunpack.c.h.b16 %v2636
        %v2771 = vunpack.c.l.b16 %v2637
        %v2772 = vunpack.c.l.b16 %v2638
        %v2773 = vunpack.c.h.b16 %v2638
        %v2774 = vunpack.c.l.b16 %v2639
        %v2775 = vunpack.c.l.b16 %v2692
        %v2776 = vunpack.c.h.b16 %v2692
        %v2777 = vunpack.c.l.b16 %v2693
        %v2778 = vpack.c.b16 %v2760, %v2757
        %v2779 = vpack.c.b16 %v2761, %v2758
        %v2780 = vpack.c.b16 %v2762, %v2759
        %v2781 = vpack.c.b16 %v2766, %v2763
        %v2782 = vpack.c.b16 %v2767, %v2764
        %v2783 = vpack.c.b16 %v2768, %v2765
        %v2784 = vpack.c.b16 %v2772, %v2769
        %v2785 = vpack.c.b16 %v2773, %v2770
        %v2786 = vpack.c.b16 %v2774, %v2771
        %v2787 = vpack.c.b16 %v2775, %v2775
        %v2788 = vpack.c.b16 %v2776, %v2776
        %v2789 = vpack.c.b16 %v2777, %v2777
        %vm2790 = vsmask.f32 4352
        %v2792 = vshrl.u32 %v2778, 16
        %v2794 = vrot.slane %v2792, 3
        %v2795 = vshll.u32 %v2778, 16
        %v2797 = vrot.slane %v2795, 4
        %v2798 = vor.u32 %v2794, %v2797
        %v2800 = vshrl.u32 %v2781, 16
        %v2802 = vrot.slane %v2800, 3
        %v2803 = vshll.u32 %v2781, 16
        %v2805 = vrot.slane %v2803, 4
        %v2806 = vor.u32 %v2802, %v2805
        %v2807 = vsel %vm2790, %v2798, %v2806
        %v2809 = vshrl.u32 %v2779, 16
        %v2811 = vrot.slane %v2809, 3
        %v2812 = vshll.u32 %v2779, 16
        %v2814 = vrot.slane %v2812, 4
        %v2815 = vor.u32 %v2811, %v2814
        %v2817 = vshrl.u32 %v2782, 16
        %v2819 = vrot.slane %v2817, 3
        %v2820 = vshll.u32 %v2782, 16
        %v2822 = vrot.slane %v2820, 4
        %v2823 = vor.u32 %v2819, %v2822
        %v2824 = vsel %vm2790, %v2815, %v2823
        %v2826 = vshrl.u32 %v2780, 16
        %v2828 = vrot.slane %v2826, 3
        %v2829 = vshll.u32 %v2780, 16
        %v2831 = vrot.slane %v2829, 4
        %v2832 = vor.u32 %v2828, %v2831
        %v2834 = vshrl.u32 %v2783, 16
        %v2836 = vrot.slane %v2834, 3
        %v2837 = vshll.u32 %v2783, 16
        %v2839 = vrot.slane %v2837, 4
        %v2840 = vor.u32 %v2836, %v2839
        %v2841 = vsel %vm2790, %v2832, %v2840
        %v2843 = vshrl.u32 %v2784, 16
        %v2845 = vrot.slane %v2843, 3
        %v2846 = vshll.u32 %v2784, 16
        %v2848 = vrot.slane %v2846, 4
        %v2849 = vor.u32 %v2845, %v2848
        %v2850 = vsel %vm2790, %v2806, %v2849
        %v2852 = vshrl.u32 %v2785, 16
        %v2854 = vrot.slane %v2852, 3
        %v2855 = vshll.u32 %v2785, 16
        %v2857 = vrot.slane %v2855, 4
        %v2858 = vor.u32 %v2854, %v2857
        %v2859 = vsel %vm2790, %v2823, %v2858
        %v2861 = vshrl.u32 %v2786, 16
        %v2863 = vrot.slane %v2861, 3
        %v2864 = vshll.u32 %v2786, 16
        %v2866 = vrot.slane %v2864, 4
        %v2867 = vor.u32 %v2863, %v2866
        %v2868 = vsel %vm2790, %v2840, %v2867
        %v2870 = vshrl.u32 %v2787, 16
        %v2872 = vrot.slane %v2870, 3
        %v2873 = vshll.u32 %v2787, 16
        %v2875 = vrot.slane %v2873, 4
        %v2876 = vor.u32 %v2872, %v2875
        %v2877 = vsel %vm2790, %v2849, %v2876
        %v2879 = vshrl.u32 %v2788, 16
        %v2881 = vrot.slane %v2879, 3
        %v2882 = vshll.u32 %v2788, 16
        %v2884 = vrot.slane %v2882, 4
        %v2885 = vor.u32 %v2881, %v2884
        %v2886 = vsel %vm2790, %v2858, %v2885
        %v2888 = vshrl.u32 %v2789, 16
        %v2890 = vrot.slane %v2888, 3
        %v2891 = vshll.u32 %v2789, 16
        %v2893 = vrot.slane %v2891, 4
        %v2894 = vor.u32 %v2890, %v2893
        %v2895 = vsel %vm2790, %v2867, %v2894
        %v2956 = vunpack.c.l.b16 %v2695
        %v2957 = vunpack.c.l.b16 %v2696
        %v2958 = vunpack.c.l.b16 %v2697
        %v2959 = vunpack.c.l.b16 %v2698
        %v2960 = vunpack.c.l.b16 %v2699
        %v2961 = vunpack.c.l.b16 %v2700
        %v2962 = vunpack.c.l.b16 %v2701
        %v2963 = vunpack.c.l.b16 %v2702
        %v2964 = vunpack.c.l.b16 %v2703
        %v2965 = vunpack.c.l.b16 %v2704
        %v2966 = vunpack.c.l.b16 %v2705
        %v2967 = vunpack.c.l.b16 %v2706
        %v2968 = vunpack.c.l.b16 %v2707
        %v2969 = vunpack.c.l.b16 %v2708
        %v2970 = vunpack.c.l.b16 %v2709
        %v2971 = vunpack.c.l.b16 %v2710
        %v2972 = vunpack.c.l.b16 %v2711
        %v2973 = vunpack.c.l.b16 %v2712
        %v2974 = vunpack.c.l.b16 %v2713
        %v2975 = vunpack.c.l.b16 %v2714
        %v2976 = vunpack.c.l.b16 %v2715
        %v2977 = vunpack.c.l.b16 %v2716
        %v2978 = vunpack.c.l.b16 %v2717
        %v2979 = vunpack.c.l.b16 %v2718
        %v2980 = vunpack.c.l.b16 %v2719
        %v2981 = vunpack.c.l.b16 %v2720
        %v2982 = vunpack.c.l.b16 %v2721
        %v2983 = vunpack.c.l.b16 %v2722
        %v2984 = vunpack.c.l.b16 %v2723
        %v2985 = vunpack.c.l.b16 %v2724
        %v2986 = vunpack.c.l.b16 %v2725
        %v2987 = vunpack.c.l.b16 %v2726
        %v2988 = vunpack.c.l.b16 %v2727
        %v2989 = vunpack.c.l.b16 %v2728
        %v2990 = vunpack.c.l.b16 %v2729
        %v2991 = vunpack.c.l.b16 %v2730
        %v2992 = vunpack.c.l.b16 %v2731
        %v2993 = vunpack.c.l.b16 %v2732
        %v2994 = vunpack.c.l.b16 %v2733
        %v2995 = vunpack.c.l.b16 %v2734
        %v2996 = vunpack.c.l.b16 %v2735
        %v2997 = vunpack.c.l.b16 %v2736
        %v2998 = vunpack.c.l.b16 %v2737
        %v2999 = vunpack.c.l.b16 %v2738
        %v3000 = vunpack.c.l.b16 %v2739
        %v3001 = vunpack.c.l.b16 %v2740
        %v3002 = vunpack.c.l.b16 %v2741
        %v3003 = vunpack.c.l.b16 %v2742
        %v3004 = vpack.c.b16 %v2957, %v2956
        %v3005 = vpack.c.b16 %v2959, %v2958
        %v3006 = vpack.c.b16 %v2961, %v2960
        %v3007 = vpack.c.b16 %v2963, %v2962
        %v3008 = vpack.c.b16 %v2965, %v2964
        %v3009 = vpack.c.b16 %v2967, %v2966
        %v3010 = vpack.c.b16 %v2969, %v2968
        %v3011 = vpack.c.b16 %v2971, %v2970
        %v3012 = vpack.c.b16 %v2973, %v2972
        %v3013 = vpack.c.b16 %v2975, %v2974
        %v3014 = vpack.c.b16 %v2977, %v2976
        %v3015 = vpack.c.b16 %v2979, %v2978
        %v3016 = vpack.c.b16 %v2981, %v2980
        %v3017 = vpack.c.b16 %v2983, %v2982
        %v3018 = vpack.c.b16 %v2985, %v2984
        %v3019 = vpack.c.b16 %v2987, %v2986
        %v3020 = vpack.c.b16 %v2989, %v2988
        %v3021 = vpack.c.b16 %v2991, %v2990
        %v3022 = vpack.c.b16 %v2993, %v2992
        %v3023 = vpack.c.b16 %v2995, %v2994
        %v3024 = vpack.c.b16 %v2997, %v2996
        %v3025 = vpack.c.b16 %v2999, %v2998
        %v3026 = vpack.c.b16 %v3001, %v3000
        %v3027 = vpack.c.b16 %v3003, %v3002
        %3052 = vmatpush.bf16.msra.mxu0 %v3011
        %3053 = vmatpush.bf16.msra.mxu0 %v3010
        %3054 = vmatpush.bf16.msra.mxu0 %v3009
        %3055 = vmatpush.bf16.msra.mxu0 %v3008
        %3056 = vmatpush.bf16.msra.mxu0 %v3007
        %3057 = vmatpush.bf16.msra.mxu0 %v3006
        %3058 = vmatpush.bf16.msra.mxu0 %v3005
        %3059 = vmatpush.bf16.msra.mxu0 %v3004
        %3060 = vmatmul.bf16.gmra.mxu0 %v2807
        %v3061 = vpop.f32.mrf.mxu0
        %v3062 = vadd.f32 0.0, %v3061
        %v3063 = vpop.f32.mrf.mxu0
        %v3064 = vadd.f32 0.0, %v3063
        %3065 = vmatmul.bf16.gmra.mxu0 %v2850
        %v3066 = vpop.f32.mrf.mxu0
        %v3067 = vadd.f32 0.0, %v3066
        %v3068 = vpop.f32.mrf.mxu0
        %v3069 = vadd.f32 0.0, %v3068
        %3070 = vmatmul.bf16.gmra.mxu0 %v2877
        %v3071 = vpop.f32.mrf.mxu0
        %v3072 = vadd.f32 0.0, %v3071
        %v3073 = vpop.f32.mrf.mxu0
        %v3074 = vadd.f32 0.0, %v3073
        %3075 = vmatmul.bf16.gmra.mxu0 %v2872
        %v3076 = vpop.f32.mrf.mxu0
        %v3077 = vadd.f32 0.0, %v3076
        %v3078 = vpop.f32.mrf.mxu0
        %3079 = vdwg.mxu0
        %3080 = vmatpush.bf16.msra.mxu0 %v3019
        %3081 = vmatpush.bf16.msra.mxu0 %v3018
        %3082 = vmatpush.bf16.msra.mxu0 %v3017
        %3083 = vmatpush.bf16.msra.mxu0 %v3016
        %3084 = vmatpush.bf16.msra.mxu0 %v3015
        %3085 = vmatpush.bf16.msra.mxu0 %v3014
        %3086 = vmatpush.bf16.msra.mxu0 %v3013
        %3087 = vmatpush.bf16.msra.mxu0 %v3012
        %3088 = vmatmul.bf16.gmra.mxu0 %v2824
        %v3089 = vpop.f32.mrf.mxu0
        %v3090 = vadd.f32 %v3062, %v3089
        %v3091 = vpop.f32.mrf.mxu0
        %v3092 = vadd.f32 %v3064, %v3091
        %3093 = vmatmul.bf16.gmra.mxu0 %v2859
        %v3094 = vpop.f32.mrf.mxu0
        %v3095 = vadd.f32 %v3067, %v3094
        %v3096 = vpop.f32.mrf.mxu0
        %v3097 = vadd.f32 %v3069, %v3096
        %3098 = vmatmul.bf16.gmra.mxu0 %v2886
        %v3099 = vpop.f32.mrf.mxu0
        %v3100 = vadd.f32 %v3072, %v3099
        %v3101 = vpop.f32.mrf.mxu0
        %v3102 = vadd.f32 %v3074, %v3101
        %3103 = vmatmul.bf16.gmra.mxu0 %v2881
        %v3104 = vpop.f32.mrf.mxu0
        %v3105 = vadd.f32 %v3077, %v3104
        %v3106 = vpop.f32.mrf.mxu0
        %3107 = vdwg.mxu0
        %3108 = vmatpush.bf16.msra.mxu0 %v3027
        %3109 = vmatpush.bf16.msra.mxu0 %v3026
        %3110 = vmatpush.bf16.msra.mxu0 %v3025
        %3111 = vmatpush.bf16.msra.mxu0 %v3024
        %3112 = vmatpush.bf16.msra.mxu0 %v3023
        %3113 = vmatpush.bf16.msra.mxu0 %v3022
        %3114 = vmatpush.bf16.msra.mxu0 %v3021
        %3115 = vmatpush.bf16.msra.mxu0 %v3020
        %3116 = vmatmul.bf16.gmra.mxu0 %v2841
        %v3117 = vpop.f32.mrf.mxu0
        %v3118 = vadd.f32 %v3090, %v3117
        %v3119 = vpop.f32.mrf.mxu0
        %v3120 = vadd.f32 %v3092, %v3119
        %3121 = vmatmul.bf16.gmra.mxu0 %v2868
        %v3122 = vpop.f32.mrf.mxu0
        %v3123 = vadd.f32 %v3095, %v3122
        %v3124 = vpop.f32.mrf.mxu0
        %v3125 = vadd.f32 %v3097, %v3124
        %3126 = vmatmul.bf16.gmra.mxu0 %v2895
        %v3127 = vpop.f32.mrf.mxu0
        %v3128 = vadd.f32 %v3100, %v3127
        %v3129 = vpop.f32.mrf.mxu0
        %v3130 = vadd.f32 %v3102, %v3129
        %3131 = vmatmul.bf16.gmra.mxu0 %v2890
        %v3132 = vpop.f32.mrf.mxu0
        %v3133 = vadd.f32 %v3105, %v3132
        %v3134 = vpop.f32.mrf.mxu0
        %3135 = vdwg.mxu0
        %v3140 = vunpack.c.l.b16 %v2628
        %v3141 = vunpack.c.h.b16 %v2628
        %v3142 = vunpack.c.l.b16 %v2629
        %v3143 = vunpack.c.l.b16 %v2640
        %v3144 = vunpack.c.h.b16 %v2640
        %v3145 = vunpack.c.l.b16 %v2641
        %v3146 = vpack.c.b16 %v2760, %v3140
        %v3147 = vpack.c.b16 %v2761, %v3141
        %v3148 = vpack.c.b16 %v2762, %v3142
        %v3149 = vpack.c.b16 %v3143, %v3143
        %v3150 = vpack.c.b16 %v3144, %v3144
        %v3151 = vpack.c.b16 %v3145, %v3145
        %v3212 = vunpack.c.l.b16 %v2642
        %v3213 = vunpack.c.l.b16 %v2643
        %v3214 = vunpack.c.l.b16 %v2644
        %v3215 = vunpack.c.l.b16 %v2645
        %v3216 = vunpack.c.l.b16 %v2646
        %v3217 = vunpack.c.l.b16 %v2647
        %v3218 = vunpack.c.l.b16 %v2648
        %v3219 = vunpack.c.l.b16 %v2649
        %v3220 = vunpack.c.l.b16 %v2650
        %v3221 = vunpack.c.l.b16 %v2651
        %v3222 = vunpack.c.l.b16 %v2652
        %v3223 = vunpack.c.l.b16 %v2653
        %v3224 = vunpack.c.l.b16 %v2654
        %v3225 = vunpack.c.l.b16 %v2655
        %v3226 = vunpack.c.l.b16 %v2656
        %v3227 = vunpack.c.l.b16 %v2657
        %v3228 = vunpack.c.l.b16 %v2658
        %v3229 = vunpack.c.l.b16 %v2659
        %v3230 = vunpack.c.l.b16 %v2660
        %v3231 = vunpack.c.l.b16 %v2661
        %v3232 = vunpack.c.l.b16 %v2662
        %v3233 = vunpack.c.l.b16 %v2663
        %v3234 = vunpack.c.l.b16 %v2664
        %v3235 = vunpack.c.l.b16 %v2665
        %v3236 = vunpack.c.l.b16 %v2666
        %v3237 = vunpack.c.l.b16 %v2667
        %v3238 = vunpack.c.l.b16 %v2668
        %v3239 = vunpack.c.l.b16 %v2669
        %v3240 = vunpack.c.l.b16 %v2670
        %v3241 = vunpack.c.l.b16 %v2671
        %v3242 = vunpack.c.l.b16 %v2672
        %v3243 = vunpack.c.l.b16 %v2673
        %v3244 = vunpack.c.l.b16 %v2674
        %v3245 = vunpack.c.l.b16 %v2675
        %v3246 = vunpack.c.l.b16 %v2676
        %v3247 = vunpack.c.l.b16 %v2677
        %v3248 = vunpack.c.l.b16 %v2678
        %v3249 = vunpack.c.l.b16 %v2679
        %v3250 = vunpack.c.l.b16 %v2680
        %v3251 = vunpack.c.l.b16 %v2681
        %v3252 = vunpack.c.l.b16 %v2682
        %v3253 = vunpack.c.l.b16 %v2683
        %v3254 = vunpack.c.l.b16 %v2684
        %v3255 = vunpack.c.l.b16 %v2685
        %v3256 = vunpack.c.l.b16 %v2686
        %v3257 = vunpack.c.l.b16 %v2687
        %v3258 = vunpack.c.l.b16 %v2688
        %v3259 = vunpack.c.l.b16 %v2689
        %v3260 = vpack.c.b16 %v3213, %v3212
        %v3261 = vpack.c.b16 %v3215, %v3214
        %v3262 = vpack.c.b16 %v3217, %v3216
        %v3263 = vpack.c.b16 %v3219, %v3218
        %v3264 = vpack.c.b16 %v3221, %v3220
        %v3265 = vpack.c.b16 %v3223, %v3222
        %v3266 = vpack.c.b16 %v3225, %v3224
        %v3267 = vpack.c.b16 %v3227, %v3226
        %v3268 = vpack.c.b16 %v3229, %v3228
        %v3269 = vpack.c.b16 %v3231, %v3230
        %v3270 = vpack.c.b16 %v3233, %v3232
        %v3271 = vpack.c.b16 %v3235, %v3234
        %v3272 = vpack.c.b16 %v3237, %v3236
        %v3273 = vpack.c.b16 %v3239, %v3238
        %v3274 = vpack.c.b16 %v3241, %v3240
        %v3275 = vpack.c.b16 %v3243, %v3242
        %v3276 = vpack.c.b16 %v3245, %v3244
        %v3277 = vpack.c.b16 %v3247, %v3246
        %v3278 = vpack.c.b16 %v3249, %v3248
        %v3279 = vpack.c.b16 %v3251, %v3250
        %v3280 = vpack.c.b16 %v3253, %v3252
        %v3281 = vpack.c.b16 %v3255, %v3254
        %v3282 = vpack.c.b16 %v3257, %v3256
        %v3283 = vpack.c.b16 %v3259, %v3258
        %3308 = vmatpush.bf16.msra.mxu0 %v3267
        %3309 = vmatpush.bf16.msra.mxu0 %v3266
        %3310 = vmatpush.bf16.msra.mxu0 %v3265
        %3311 = vmatpush.bf16.msra.mxu0 %v3264
        %3312 = vmatpush.bf16.msra.mxu0 %v3263
        %3313 = vmatpush.bf16.msra.mxu0 %v3262
        %3314 = vmatpush.bf16.msra.mxu0 %v3261
        %3315 = vmatpush.bf16.msra.mxu0 %v3260
        %3316 = vmatmul.bf16.gmra.mxu0 %v3146
        %v3317 = vpop.f32.mrf.mxu0
        %v3318 = vadd.f32 %v3118, %v3317
        %v3319 = vpop.f32.mrf.mxu0
        %v3320 = vadd.f32 %v3120, %v3319
        %3321 = vmatmul.bf16.gmra.mxu0 %v2781
        %v3322 = vpop.f32.mrf.mxu0
        %v3323 = vadd.f32 %v3123, %v3322
        %v3324 = vpop.f32.mrf.mxu0
        %v3325 = vadd.f32 %v3125, %v3324
        %3326 = vmatmul.bf16.gmra.mxu0 %v2784
        %v3327 = vpop.f32.mrf.mxu0
        %v3328 = vadd.f32 %v3128, %v3327
        %v3329 = vpop.f32.mrf.mxu0
        %v3330 = vadd.f32 %v3130, %v3329
        %3331 = vmatmul.bf16.gmra.mxu0 %v3149
        %v3332 = vpop.f32.mrf.mxu0
        %v3333 = vadd.f32 %v3133, %v3332
        %v3334 = vpop.f32.mrf.mxu0
        %3335 = vdwg.mxu0
        %3336 = vmatpush.bf16.msra.mxu0 %v3275
        %3337 = vmatpush.bf16.msra.mxu0 %v3274
        %3338 = vmatpush.bf16.msra.mxu0 %v3273
        %3339 = vmatpush.bf16.msra.mxu0 %v3272
        %3340 = vmatpush.bf16.msra.mxu0 %v3271
        %3341 = vmatpush.bf16.msra.mxu0 %v3270
        %3342 = vmatpush.bf16.msra.mxu0 %v3269
        %3343 = vmatpush.bf16.msra.mxu0 %v3268
        %3344 = vmatmul.bf16.gmra.mxu0 %v3147
        %v3345 = vpop.f32.mrf.mxu0
        %v3346 = vadd.f32 %v3318, %v3345
        %v3347 = vpop.f32.mrf.mxu0
        %v3348 = vadd.f32 %v3320, %v3347
        %3349 = vmatmul.bf16.gmra.mxu0 %v2782
        %v3350 = vpop.f32.mrf.mxu0
        %v3351 = vadd.f32 %v3323, %v3350
        %v3352 = vpop.f32.mrf.mxu0
        %v3353 = vadd.f32 %v3325, %v3352
        %3354 = vmatmul.bf16.gmra.mxu0 %v2785
        %v3355 = vpop.f32.mrf.mxu0
        %v3356 = vadd.f32 %v3328, %v3355
        %v3357 = vpop.f32.mrf.mxu0
        %v3358 = vadd.f32 %v3330, %v3357
        %3359 = vmatmul.bf16.gmra.mxu0 %v3150
        %v3360 = vpop.f32.mrf.mxu0
        %v3361 = vadd.f32 %v3333, %v3360
        %v3362 = vpop.f32.mrf.mxu0
        %3363 = vdwg.mxu0
        %3364 = vmatpush.bf16.msra.mxu0 %v3283
        %3365 = vmatpush.bf16.msra.mxu0 %v3282
        %3366 = vmatpush.bf16.msra.mxu0 %v3281
        %3367 = vmatpush.bf16.msra.mxu0 %v3280
        %3368 = vmatpush.bf16.msra.mxu0 %v3279
        %3369 = vmatpush.bf16.msra.mxu0 %v3278
        %3370 = vmatpush.bf16.msra.mxu0 %v3277
        %3371 = vmatpush.bf16.msra.mxu0 %v3276
        %3372 = vmatmul.bf16.gmra.mxu0 %v3148
        %v3373 = vpop.f32.mrf.mxu0
        %v3374 = vadd.f32 %v3346, %v3373
        %v3375 = vpop.f32.mrf.mxu0
        %v3376 = vadd.f32 %v3348, %v3375
        %3377 = vmatmul.bf16.gmra.mxu0 %v2783
        %v3378 = vpop.f32.mrf.mxu0
        %v3379 = vadd.f32 %v3351, %v3378
        %v3380 = vpop.f32.mrf.mxu0
        %v3381 = vadd.f32 %v3353, %v3380
        %3382 = vmatmul.bf16.gmra.mxu0 %v2786
        %v3383 = vpop.f32.mrf.mxu0
        %v3384 = vadd.f32 %v3356, %v3383
        %v3385 = vpop.f32.mrf.mxu0
        %v3386 = vadd.f32 %v3358, %v3385
        %3387 = vmatmul.bf16.gmra.mxu0 %v3151
        %v3388 = vpop.f32.mrf.mxu0
        %v3389 = vadd.f32 %v3361, %v3388
        %v3390 = vpop.f32.mrf.mxu0
        %3391 = vdwg.mxu0
        %v3392 = vld [vmem:[#allocation3 + $0xc] sm:$0x88]
        %v3393 = vld [vmem:[#allocation3 + $0x14] sm:$0x8]
        %v3394 = vld [vmem:[#allocation3 + $0x18] sm:$0xff]
        %v3395 = vld [vmem:[#allocation3 + $0x20] sm:$0xf]
        %v3396 = vld [vmem:[#allocation3 + $0x24] sm:$0xff]
        %v3397 = vld [vmem:[#allocation3 + $0x2c] sm:$0xf]
        %v3398 = vld [vmem:[#allocation3 + $0x30] sm:$0xff]
        %v3399 = vld [vmem:[#allocation3 + $0x38] sm:$0xf]
        %v3400 = vld [vmem:[#allocation3 + $0x3c] sm:$0xff]
        %v3401 = vld [vmem:[#allocation3 + $0x44] sm:$0xf]
        %v3402 = vld [vmem:[#allocation3 + $0x48] sm:$0xff]
        %v3403 = vld [vmem:[#allocation3 + $0x50] sm:$0xf]
        %v3404 = vld [vmem:[#allocation3 + $0x54] sm:$0xff]
        %v3405 = vld [vmem:[#allocation3 + $0x5c] sm:$0xf]
        %s3406 = scalar_lea.vmem %s5, 384
        %v3407 = vld [vmem:[%s3406] sm:$0xf]
        %v3408 = vld [vmem:[%s3406 + $0x4] sm:$0xf]
        %v3409 = vld [vmem:[%s3406 + $0x8] sm:$0xf]
        %v3410 = vld [vmem:[%s3406 + $0xc] sm:$0xf]
        %v3411 = vld [vmem:[%s3406 + $0x10] sm:$0xf]
        %v3412 = vld [vmem:[%s3406 + $0x14] sm:$0xf]
        %v3413 = vld [vmem:[%s3406 + $0x18] sm:$0xf]
        %v3414 = vld [vmem:[%s3406 + $0x1c] sm:$0xf]
        %v3415 = vld [vmem:[%s3406 + $0x20] sm:$0xf]
        %v3416 = vld [vmem:[%s3406 + $0x24] sm:$0xf]
        %v3417 = vld [vmem:[%s3406 + $0x28] sm:$0xf]
        %v3418 = vld [vmem:[%s3406 + $0x2c] sm:$0xf]
        %v3419 = vld [vmem:[%s3406 + $0x30] sm:$0xf]
        %v3420 = vld [vmem:[%s3406 + $0x34] sm:$0xf]
        %v3421 = vld [vmem:[%s3406 + $0x38] sm:$0xf]
        %v3422 = vld [vmem:[%s3406 + $0x3c] sm:$0xf]
        %v3423 = vld [vmem:[%s3406 + $0x40] sm:$0xf]
        %v3424 = vld [vmem:[%s3406 + $0x44] sm:$0xf]
        %v3425 = vld [vmem:[%s3406 + $0x48] sm:$0xf]
        %v3426 = vld [vmem:[%s3406 + $0x4c] sm:$0xf]
        %v3427 = vld [vmem:[%s3406 + $0x50] sm:$0xf]
        %v3428 = vld [vmem:[%s3406 + $0x54] sm:$0xf]
        %v3429 = vld [vmem:[%s3406 + $0x58] sm:$0xf]
        %v3430 = vld [vmem:[%s3406 + $0x5c] sm:$0xf]
        %v3431 = vld [vmem:[%s3406 + $0x60] sm:$0xf]
        %v3432 = vld [vmem:[%s3406 + $0x64] sm:$0xf]
        %v3433 = vld [vmem:[%s3406 + $0x68] sm:$0xf]
        %v3434 = vld [vmem:[%s3406 + $0x6c] sm:$0xf]
        %v3435 = vld [vmem:[%s3406 + $0x70] sm:$0xf]
        %v3436 = vld [vmem:[%s3406 + $0x74] sm:$0xf]
        %v3437 = vld [vmem:[%s3406 + $0x78] sm:$0xf]
        %v3438 = vld [vmem:[%s3406 + $0x7c] sm:$0xf]
        %v3439 = vld [vmem:[%s3406 + $0x80] sm:$0xf]
        %v3440 = vld [vmem:[%s3406 + $0x84] sm:$0xf]
        %v3441 = vld [vmem:[%s3406 + $0x88] sm:$0xf]
        %v3442 = vld [vmem:[%s3406 + $0x8c] sm:$0xf]
        %v3443 = vld [vmem:[%s3406 + $0x90] sm:$0xf]
        %v3444 = vld [vmem:[%s3406 + $0x94] sm:$0xf]
        %v3445 = vld [vmem:[%s3406 + $0x98] sm:$0xf]
        %v3446 = vld [vmem:[%s3406 + $0x9c] sm:$0xf]
        %v3447 = vld [vmem:[%s3406 + $0xa0] sm:$0xf]
        %v3448 = vld [vmem:[%s3406 + $0xa4] sm:$0xf]
        %v3449 = vld [vmem:[%s3406 + $0xa8] sm:$0xf]
        %v3450 = vld [vmem:[%s3406 + $0xac] sm:$0xf]
        %v3451 = vld [vmem:[%s3406 + $0xb0] sm:$0xf]
        %v3452 = vld [vmem:[%s3406 + $0xb4] sm:$0xf]
        %v3453 = vld [vmem:[%s3406 + $0xb8] sm:$0xf]
        %v3454 = vld [vmem:[%s3406 + $0xbc] sm:$0xf]
        %v3469 = vunpack.c.l.b16 %v3392
        %v3470 = vunpack.c.h.b16 %v3392
        %v3471 = vunpack.c.l.b16 %v3393
        %v3472 = vunpack.c.l.b16 %v3394
        %v3473 = vunpack.c.h.b16 %v3394
        %v3474 = vunpack.c.l.b16 %v3395
        %v3475 = vunpack.c.l.b16 %v3396
        %v3476 = vunpack.c.h.b16 %v3396
        %v3477 = vunpack.c.l.b16 %v3397
        %v3478 = vunpack.c.l.b16 %v3398
        %v3479 = vunpack.c.h.b16 %v3398
        %v3480 = vunpack.c.l.b16 %v3399
        %v3481 = vunpack.c.l.b16 %v3400
        %v3482 = vunpack.c.h.b16 %v3400
        %v3483 = vunpack.c.l.b16 %v3401
        %v3484 = vunpack.c.l.b16 %v3402
        %v3485 = vunpack.c.h.b16 %v3402
        %v3486 = vunpack.c.l.b16 %v3403
        %v3487 = vunpack.c.l.b16 %v3404
        %v3488 = vunpack.c.h.b16 %v3404
        %v3489 = vunpack.c.l.b16 %v3405
        %v3490 = vpack.c.b16 %v3472, %v3469
        %v3491 = vpack.c.b16 %v3473, %v3470
        %v3492 = vpack.c.b16 %v3474, %v3471
        %v3493 = vpack.c.b16 %v3478, %v3475
        %v3494 = vpack.c.b16 %v3479, %v3476
        %v3495 = vpack.c.b16 %v3480, %v3477
        %v3496 = vpack.c.b16 %v3484, %v3481
        %v3497 = vpack.c.b16 %v3485, %v3482
        %v3498 = vpack.c.b16 %v3486, %v3483
        %v3499 = vpack.c.b16 %v3487, %v3487
        %v3500 = vpack.c.b16 %v3488, %v3488
        %v3501 = vpack.c.b16 %v3489, %v3489
        %vm3502 = vcmask 1044480
        %v3503 = vrot.slane %v3490, 3
        %v3504 = vrot.slane %v3493, 3
        %v3505 = vsel %vm3502, %v3503, %v3504
        %v3506 = vrot.slane %v3491, 3
        %v3507 = vrot.slane %v3494, 3
        %v3508 = vsel %vm3502, %v3506, %v3507
        %v3509 = vrot.slane %v3492, 3
        %v3510 = vrot.slane %v3495, 3
        %v3511 = vsel %vm3502, %v3509, %v3510
        %v3512 = vrot.slane %v3496, 3
        %v3513 = vsel %vm3502, %v3504, %v3512
        %v3514 = vrot.slane %v3497, 3
        %v3515 = vsel %vm3502, %v3507, %v3514
        %v3516 = vrot.slane %v3498, 3
        %v3517 = vsel %vm3502, %v3510, %v3516
        %v3518 = vrot.slane %v3499, 3
        %v3519 = vsel %vm3502, %v3512, %v3518
        %v3520 = vrot.slane %v3500, 3
        %v3521 = vsel %vm3502, %v3514, %v3520
        %v3522 = vrot.slane %v3501, 3
        %v3523 = vsel %vm3502, %v3516, %v3522
        %v3584 = vunpack.c.l.b16 %v3407
        %v3585 = vunpack.c.l.b16 %v3408
        %v3586 = vunpack.c.l.b16 %v3409
        %v3587 = vunpack.c.l.b16 %v3410
        %v3588 = vunpack.c.l.b16 %v3411
        %v3589 = vunpack.c.l.b16 %v3412
        %v3590 = vunpack.c.l.b16 %v3413
        %v3591 = vunpack.c.l.b16 %v3414
        %v3592 = vunpack.c.l.b16 %v3415
        %v3593 = vunpack.c.l.b16 %v3416
        %v3594 = vunpack.c.l.b16 %v3417
        %v3595 = vunpack.c.l.b16 %v3418
        %v3596 = vunpack.c.l.b16 %v3419
        %v3597 = vunpack.c.l.b16 %v3420
        %v3598 = vunpack.c.l.b16 %v3421
        %v3599 = vunpack.c.l.b16 %v3422
        %v3600 = vunpack.c.l.b16 %v3423
        %v3601 = vunpack.c.l.b16 %v3424
        %v3602 = vunpack.c.l.b16 %v3425
        %v3603 = vunpack.c.l.b16 %v3426
        %v3604 = vunpack.c.l.b16 %v3427
        %v3605 = vunpack.c.l.b16 %v3428
        %v3606 = vunpack.c.l.b16 %v3429
        %v3607 = vunpack.c.l.b16 %v3430
        %v3608 = vunpack.c.l.b16 %v3431
        %v3609 = vunpack.c.l.b16 %v3432
        %v3610 = vunpack.c.l.b16 %v3433
        %v3611 = vunpack.c.l.b16 %v3434
        %v3612 = vunpack.c.l.b16 %v3435
        %v3613 = vunpack.c.l.b16 %v3436
        %v3614 = vunpack.c.l.b16 %v3437
        %v3615 = vunpack.c.l.b16 %v3438
        %v3616 = vunpack.c.l.b16 %v3439
        %v3617 = vunpack.c.l.b16 %v3440
        %v3618 = vunpack.c.l.b16 %v3441
        %v3619 = vunpack.c.l.b16 %v3442
        %v3620 = vunpack.c.l.b16 %v3443
        %v3621 = vunpack.c.l.b16 %v3444
        %v3622 = vunpack.c.l.b16 %v3445
        %v3623 = vunpack.c.l.b16 %v3446
        %v3624 = vunpack.c.l.b16 %v3447
        %v3625 = vunpack.c.l.b16 %v3448
        %v3626 = vunpack.c.l.b16 %v3449
        %v3627 = vunpack.c.l.b16 %v3450
        %v3628 = vunpack.c.l.b16 %v3451
        %v3629 = vunpack.c.l.b16 %v3452
        %v3630 = vunpack.c.l.b16 %v3453
        %v3631 = vunpack.c.l.b16 %v3454
        %v3632 = vpack.c.b16 %v3585, %v3584
        %v3633 = vpack.c.b16 %v3587, %v3586
        %v3634 = vpack.c.b16 %v3589, %v3588
        %v3635 = vpack.c.b16 %v3591, %v3590
        %v3636 = vpack.c.b16 %v3593, %v3592
        %v3637 = vpack.c.b16 %v3595, %v3594
        %v3638 = vpack.c.b16 %v3597, %v3596
        %v3639 = vpack.c.b16 %v3599, %v3598
        %v3640 = vpack.c.b16 %v3601, %v3600
        %v3641 = vpack.c.b16 %v3603, %v3602
        %v3642 = vpack.c.b16 %v3605, %v3604
        %v3643 = vpack.c.b16 %v3607, %v3606
        %v3644 = vpack.c.b16 %v3609, %v3608
        %v3645 = vpack.c.b16 %v3611, %v3610
        %v3646 = vpack.c.b16 %v3613, %v3612
        %v3647 = vpack.c.b16 %v3615, %v3614
        %v3648 = vpack.c.b16 %v3617, %v3616
        %v3649 = vpack.c.b16 %v3619, %v3618
        %v3650 = vpack.c.b16 %v3621, %v3620
        %v3651 = vpack.c.b16 %v3623, %v3622
        %v3652 = vpack.c.b16 %v3625, %v3624
        %v3653 = vpack.c.b16 %v3627, %v3626
        %v3654 = vpack.c.b16 %v3629, %v3628
        %v3655 = vpack.c.b16 %v3631, %v3630
        %3680 = vmatpush.bf16.msra.mxu0 %v3639
        %3681 = vmatpush.bf16.msra.mxu0 %v3638
        %3682 = vmatpush.bf16.msra.mxu0 %v3637
        %3683 = vmatpush.bf16.msra.mxu0 %v3636
        %3684 = vmatpush.bf16.msra.mxu0 %v3635
        %3685 = vmatpush.bf16.msra.mxu0 %v3634
        %3686 = vmatpush.bf16.msra.mxu0 %v3633
        %3687 = vmatpush.bf16.msra.mxu0 %v3632
        %3688 = vmatmul.bf16.gmra.mxu0 %v3505
        %v3689 = vpop.f32.mrf.mxu0
        %v3690 = vadd.f32 0.0, %v3689
        %v3691 = vpop.f32.mrf.mxu0
        %v3692 = vadd.f32 0.0, %v3691
        %3693 = vmatmul.bf16.gmra.mxu0 %v3513
        %v3694 = vpop.f32.mrf.mxu0
        %v3695 = vadd.f32 0.0, %v3694
        %v3696 = vpop.f32.mrf.mxu0
        %v3697 = vadd.f32 0.0, %v3696
        %3698 = vmatmul.bf16.gmra.mxu0 %v3519
        %v3699 = vpop.f32.mrf.mxu0
        %v3700 = vadd.f32 0.0, %v3699
        %v3701 = vpop.f32.mrf.mxu0
        %v3702 = vadd.f32 0.0, %v3701
        %3703 = vmatmul.bf16.gmra.mxu0 %v3518
        %v3704 = vpop.f32.mrf.mxu0
        %v3705 = vadd.f32 0.0, %v3704
        %v3706 = vpop.f32.mrf.mxu0
        %3707 = vdwg.mxu0
        %3708 = vmatpush.bf16.msra.mxu0 %v3647
        %3709 = vmatpush.bf16.msra.mxu0 %v3646
        %3710 = vmatpush.bf16.msra.mxu0 %v3645
        %3711 = vmatpush.bf16.msra.mxu0 %v3644
        %3712 = vmatpush.bf16.msra.mxu0 %v3643
        %3713 = vmatpush.bf16.msra.mxu0 %v3642
        %3714 = vmatpush.bf16.msra.mxu0 %v3641
        %3715 = vmatpush.bf16.msra.mxu0 %v3640
        %3716 = vmatmul.bf16.gmra.mxu0 %v3508
        %v3717 = vpop.f32.mrf.mxu0
        %v3718 = vadd.f32 %v3690, %v3717
        %v3719 = vpop.f32.mrf.mxu0
        %v3720 = vadd.f32 %v3692, %v3719
        %3721 = vmatmul.bf16.gmra.mxu0 %v3515
        %v3722 = vpop.f32.mrf.mxu0
        %v3723 = vadd.f32 %v3695, %v3722
        %v3724 = vpop.f32.mrf.mxu0
        %v3725 = vadd.f32 %v3697, %v3724
        %3726 = vmatmul.bf16.gmra.mxu0 %v3521
        %v3727 = vpop.f32.mrf.mxu0
        %v3728 = vadd.f32 %v3700, %v3727
        %v3729 = vpop.f32.mrf.mxu0
        %v3730 = vadd.f32 %v3702, %v3729
        %3731 = vmatmul.bf16.gmra.mxu0 %v3520
        %v3732 = vpop.f32.mrf.mxu0
        %v3733 = vadd.f32 %v3705, %v3732
        %v3734 = vpop.f32.mrf.mxu0
        %3735 = vdwg.mxu0
        %3736 = vmatpush.bf16.msra.mxu0 %v3655
        %3737 = vmatpush.bf16.msra.mxu0 %v3654
        %3738 = vmatpush.bf16.msra.mxu0 %v3653
        %3739 = vmatpush.bf16.msra.mxu0 %v3652
        %3740 = vmatpush.bf16.msra.mxu0 %v3651
        %3741 = vmatpush.bf16.msra.mxu0 %v3650
        %3742 = vmatpush.bf16.msra.mxu0 %v3649
        %3743 = vmatpush.bf16.msra.mxu0 %v3648
        %3744 = vmatmul.bf16.gmra.mxu0 %v3511
        %v3745 = vpop.f32.mrf.mxu0
        %v3746 = vadd.f32 %v3718, %v3745
        %v3747 = vpop.f32.mrf.mxu0
        %v3748 = vadd.f32 %v3720, %v3747
        %3749 = vmatmul.bf16.gmra.mxu0 %v3517
        %v3750 = vpop.f32.mrf.mxu0
        %v3751 = vadd.f32 %v3723, %v3750
        %v3752 = vpop.f32.mrf.mxu0
        %v3753 = vadd.f32 %v3725, %v3752
        %3754 = vmatmul.bf16.gmra.mxu0 %v3523
        %v3755 = vpop.f32.mrf.mxu0
        %v3756 = vadd.f32 %v3728, %v3755
        %v3757 = vpop.f32.mrf.mxu0
        %v3758 = vadd.f32 %v3730, %v3757
        %3759 = vmatmul.bf16.gmra.mxu0 %v3522
        %v3760 = vpop.f32.mrf.mxu0
        %v3761 = vadd.f32 %v3733, %v3760
        %v3762 = vpop.f32.mrf.mxu0
        %3763 = vdwg.mxu0
        %v3764 = vadd.f32 %v3374, %v3746
        %v3765 = vadd.f32 %v3376, %v3748
        %v3766 = vadd.f32 %v3379, %v3751
        %v3767 = vadd.f32 %v3381, %v3753
        %v3768 = vadd.f32 %v3384, %v3756
        %v3769 = vadd.f32 %v3386, %v3758
        %v3770 = vadd.f32 %v3389, %v3761
        %v3771 = vld [vmem:[%s6] sm:$0x1]
        %v3773 = vperm.slane %v3771, 0
        %v3775 = vadd.f32 %v3764, %v3773
        %v3776 = vadd.f32 %v3765, %v3773
        %v3777 = vadd.f32 %v3766, %v3773
        %v3778 = vadd.f32 %v3767, %v3773
        %v3779 = vadd.f32 %v3768, %v3773
        %v3780 = vadd.f32 %v3769, %v3773
        %v3781 = vadd.f32 %v3770, %v3773
        %v3782 = vmax.f32 %v3775, 0.0
        %v3783 = vmax.f32 %v3776, 0.0
        %v3784 = vmax.f32 %v3777, 0.0
        %v3785 = vmax.f32 %v3778, 0.0
        %v3786 = vmax.f32 %v3779, 0.0
        %v3787 = vmax.f32 %v3780, 0.0
        %v3788 = vmax.f32 %v3781, 0.0
        %v3790 = vrot.slane %v3782, 1
        %3791 = vrot.lane.b32.xlu0 %v3790, 64
        %v3792 = vpop.permute.xlu0 %3791
        %v3794 = vrot.slane %v3782, 2
        %v3796 = vrot.slane %v3782, 3
        %3797 = vrot.lane.b32.xlu0 %v3796, 64
        %v3798 = vpop.permute.xlu0 %3797
        %v3800 = vrot.slane %v3782, 4
        %v3802 = vrot.slane %v3782, 5
        %3803 = vrot.lane.b32.xlu0 %v3802, 64
        %v3804 = vpop.permute.xlu0 %3803
        %v3806 = vrot.slane %v3782, 6
        %v3808 = vrot.slane %v3782, 7
        %3809 = vrot.lane.b32.xlu0 %v3808, 64
        %v3810 = vpop.permute.xlu0 %3809
        %v3813 = vrot.slane %v3783, 1
        %3814 = vrot.lane.b32.xlu0 %v3813, 64
        %v3815 = vpop.permute.xlu0 %3814
        %v3817 = vrot.slane %v3783, 2
        %v3819 = vrot.slane %v3783, 3
        %3820 = vrot.lane.b32.xlu0 %v3819, 64
        %v3821 = vpop.permute.xlu0 %3820
        %v3823 = vrot.slane %v3783, 4
        %v3825 = vrot.slane %v3783, 5
        %3826 = vrot.lane.b32.xlu0 %v3825, 64
        %v3827 = vpop.permute.xlu0 %3826
        %v3829 = vrot.slane %v3783, 6
        %v3831 = vrot.slane %v3783, 7
        %3832 = vrot.lane.b32.xlu0 %v3831, 64
        %v3833 = vpop.permute.xlu0 %3832
        %vm3835 = vcmask 523264
        %v3836 = vsel %vm3835, %v3782, %v3792
        %v3837 = vsel %vm3835, %v3794, %v3798
        %v3838 = vsel %vm3835, %v3800, %v3804
        %v3839 = vsel %vm3835, %v3806, %v3810
        %v3840 = vsel %vm3835, %v3783, %v3815
        %v3841 = vsel %vm3835, %v3817, %v3821
        %v3842 = vsel %vm3835, %v3823, %v3827
        %v3843 = vsel %vm3835, %v3829, %v3833
        %v3845 = vrot.slane %v3784, 1
        %3846 = vrot.lane.b32.xlu0 %v3845, 64
        %v3847 = vpop.permute.xlu0 %3846
        %v3849 = vrot.slane %v3784, 2
        %v3851 = vrot.slane %v3784, 3
        %3852 = vrot.lane.b32.xlu0 %v3851, 64
        %v3853 = vpop.permute.xlu0 %3852
        %v3855 = vrot.slane %v3784, 4
        %v3857 = vrot.slane %v3784, 5
        %3858 = vrot.lane.b32.xlu0 %v3857, 64
        %v3859 = vpop.permute.xlu0 %3858
        %v3861 = vrot.slane %v3784, 6
        %v3863 = vrot.slane %v3784, 7
        %3864 = vrot.lane.b32.xlu0 %v3863, 64
        %v3865 = vpop.permute.xlu0 %3864
        %v3868 = vrot.slane %v3785, 1
        %3869 = vrot.lane.b32.xlu0 %v3868, 64
        %v3870 = vpop.permute.xlu0 %3869
        %v3872 = vrot.slane %v3785, 2
        %v3874 = vrot.slane %v3785, 3
        %3875 = vrot.lane.b32.xlu0 %v3874, 64
        %v3876 = vpop.permute.xlu0 %3875
        %v3878 = vrot.slane %v3785, 4
        %v3880 = vrot.slane %v3785, 5
        %3881 = vrot.lane.b32.xlu0 %v3880, 64
        %v3882 = vpop.permute.xlu0 %3881
        %v3884 = vrot.slane %v3785, 6
        %v3886 = vrot.slane %v3785, 7
        %3887 = vrot.lane.b32.xlu0 %v3886, 64
        %v3888 = vpop.permute.xlu0 %3887
        %v3890 = vsel %vm3835, %v3784, %v3847
        %v3891 = vsel %vm3835, %v3849, %v3853
        %v3892 = vsel %vm3835, %v3855, %v3859
        %v3893 = vsel %vm3835, %v3861, %v3865
        %v3894 = vsel %vm3835, %v3785, %v3870
        %v3895 = vsel %vm3835, %v3872, %v3876
        %v3896 = vsel %vm3835, %v3878, %v3882
        %v3897 = vsel %vm3835, %v3884, %v3888
        %v3899 = vrot.slane %v3786, 1
        %3900 = vrot.lane.b32.xlu0 %v3899, 64
        %v3901 = vpop.permute.xlu0 %3900
        %v3903 = vrot.slane %v3786, 2
        %v3905 = vrot.slane %v3786, 3
        %3906 = vrot.lane.b32.xlu0 %v3905, 64
        %v3907 = vpop.permute.xlu0 %3906
        %v3909 = vrot.slane %v3786, 4
        %v3911 = vrot.slane %v3786, 5
        %3912 = vrot.lane.b32.xlu0 %v3911, 64
        %v3913 = vpop.permute.xlu0 %3912
        %v3915 = vrot.slane %v3786, 6
        %v3917 = vrot.slane %v3786, 7
        %3918 = vrot.lane.b32.xlu0 %v3917, 64
        %v3919 = vpop.permute.xlu0 %3918
        %v3922 = vrot.slane %v3787, 1
        %3923 = vrot.lane.b32.xlu0 %v3922, 64
        %v3924 = vpop.permute.xlu0 %3923
        %v3926 = vrot.slane %v3787, 2
        %v3928 = vrot.slane %v3787, 3
        %3929 = vrot.lane.b32.xlu0 %v3928, 64
        %v3930 = vpop.permute.xlu0 %3929
        %v3932 = vrot.slane %v3787, 4
        %v3934 = vrot.slane %v3787, 5
        %3935 = vrot.lane.b32.xlu0 %v3934, 64
        %v3936 = vpop.permute.xlu0 %3935
        %v3938 = vrot.slane %v3787, 6
        %v3940 = vrot.slane %v3787, 7
        %3941 = vrot.lane.b32.xlu0 %v3940, 64
        %v3942 = vpop.permute.xlu0 %3941
        %v3944 = vsel %vm3835, %v3786, %v3901
        %v3945 = vsel %vm3835, %v3903, %v3907
        %v3946 = vsel %vm3835, %v3909, %v3913
        %v3947 = vsel %vm3835, %v3915, %v3919
        %v3948 = vsel %vm3835, %v3787, %v3924
        %v3949 = vsel %vm3835, %v3926, %v3930
        %v3950 = vsel %vm3835, %v3932, %v3936
        %v3951 = vsel %vm3835, %v3938, %v3942
        %v3976 = vrot.slane %v3837, 7
        %v3977 = vrot.slane %v3838, 6
        %v3978 = vrot.slane %v3839, 5
        %v3979 = vrot.slane %v3840, 4
        %v3980 = vrot.slane %v3841, 3
        %v3981 = vrot.slane %v3842, 2
        %v3982 = vrot.slane %v3843, 1
        %v3983 = vrot.slane %v3891, 7
        %v3984 = vrot.slane %v3892, 6
        %v3985 = vrot.slane %v3893, 5
        %v3986 = vrot.slane %v3894, 4
        %v3987 = vrot.slane %v3895, 3
        %v3988 = vrot.slane %v3896, 2
        %v3989 = vrot.slane %v3897, 1
        %v3990 = vrot.slane %v3945, 7
        %v3991 = vrot.slane %v3946, 6
        %v3992 = vrot.slane %v3947, 5
        %v3993 = vrot.slane %v3948, 4
        %v3994 = vrot.slane %v3949, 3
        %v3995 = vrot.slane %v3950, 2
        %v3996 = vrot.slane %v3951, 1
        %v3997 = vsel %vm2507, %v3836, %v3976
        %vm3998 = vcmask 1042434
        %v3999 = vsel %vm3998, %v3977, %v3978
        %v4000 = vsel %vm2473, %v3997, %v3999
        %vm4001 = vcmask 1044484
        %v4002 = vsel %vm4001, %v3979, %v3980
        %vm4003 = vcmask 1046534
        %v4004 = vsel %vm4003, %v3981, %v3982
        %vm4005 = vcmask 1045508
        %v4006 = vsel %vm4005, %v4002, %v4004
        %v4007 = vsel %vm2466, %v4000, %v4006
        %v4008 = vsel %vm2507, %v3890, %v3983
        %v4009 = vsel %vm3998, %v3984, %v3985
        %v4010 = vsel %vm2473, %v4008, %v4009
        %v4011 = vsel %vm4001, %v3986, %v3987
        %v4012 = vsel %vm4003, %v3988, %v3989
        %v4013 = vsel %vm4005, %v4011, %v4012
        %v4014 = vsel %vm2466, %v4010, %v4013
        %v4015 = vsel %vm2507, %v3944, %v3990
        %v4016 = vsel %vm3998, %v3991, %v3992
        %v4017 = vsel %vm2473, %v4015, %v4016
        %v4018 = vsel %vm4001, %v3993, %v3994
        %v4019 = vsel %vm4003, %v3995, %v3996
        %v4020 = vsel %vm4005, %v4018, %v4019
        %v4021 = vsel %vm2466, %v4017, %v4020
        %4025 = vst [vmem:[#allocation4] sm:$0xff] %v4007
        %4026 = vst [vmem:[#allocation4 + $0x8] sm:$0xff] %v4014
        %4027 = vst [vmem:[#allocation4 + $0x10] sm:$0xff] %v4021
        %v4028 = vlaneseq
        %vm4029 = vcmp.ge.s32.totalorder %v4028, 0
        %vm4030 = vcmp.lt.s32.totalorder %v4028, 64
        %vm4031 = vmand %vm4029, %vm4030
        %4032 = vst.msk [vmem:[#allocation4 + $0x18] sm:$0x1] %vm4031, %v3788
        %v4033 = vld [vmem:[#allocation4] sm:$0xff]
        %v4034 = vld [vmem:[#allocation4 + $0x8] sm:$0xff]
        %v4035 = vld [vmem:[#allocation4 + $0x10] sm:$0xff]
        %v4036 = vld [vmem:[#allocation4 + $0x18] sm:$0x1]
        %v4041 = vperm.slane %v4033, 0
        %v4042 = vperm.slane %v4033, 1
        %v4043 = vperm.slane %v4033, 2
        %v4044 = vperm.slane %v4033, 3
        %v4045 = vperm.slane %v4033, 4
        %v4046 = vperm.slane %v4033, 5
        %v4047 = vperm.slane %v4033, 6
        %v4048 = vperm.slane %v4033, 7
        %v4049 = vperm.slane %v4034, 0
        %v4050 = vperm.slane %v4034, 1
        %v4051 = vperm.slane %v4034, 2
        %v4052 = vperm.slane %v4034, 3
        %v4053 = vperm.slane %v4034, 4
        %v4054 = vperm.slane %v4034, 5
        %v4055 = vperm.slane %v4034, 6
        %v4056 = vperm.slane %v4034, 7
        %v4057 = vperm.slane %v4035, 0
        %v4058 = vperm.slane %v4035, 1
        %v4059 = vperm.slane %v4035, 2
        %v4060 = vperm.slane %v4035, 3
        %v4061 = vperm.slane %v4035, 4
        %v4062 = vperm.slane %v4035, 5
        %v4063 = vperm.slane %v4035, 6
        %v4064 = vperm.slane %v4035, 7
        %v4065 = vperm.slane %v4036, 0
        %v4091 = vpack.c.bf16 %v4041, %v4041
        %v4092 = vpack.c.bf16 %v4042, %v4042
        %v4093 = vpack.c.bf16 %v4043, %v4043
        %v4094 = vpack.c.bf16 %v4044, %v4044
        %v4095 = vpack.c.bf16 %v4045, %v4045
        %v4096 = vpack.c.bf16 %v4046, %v4046
        %v4097 = vpack.c.bf16 %v4047, %v4047
        %v4098 = vpack.c.bf16 %v4048, %v4048
        %v4099 = vpack.c.bf16 %v4049, %v4049
        %v4100 = vpack.c.bf16 %v4050, %v4050
        %v4101 = vpack.c.bf16 %v4051, %v4051
        %v4102 = vpack.c.bf16 %v4052, %v4052
        %v4103 = vpack.c.bf16 %v4053, %v4053
        %v4104 = vpack.c.bf16 %v4054, %v4054
        %v4105 = vpack.c.bf16 %v4055, %v4055
        %v4106 = vpack.c.bf16 %v4056, %v4056
        %v4107 = vpack.c.bf16 %v4057, %v4057
        %v4108 = vpack.c.bf16 %v4058, %v4058
        %v4109 = vpack.c.bf16 %v4059, %v4059
        %v4110 = vpack.c.bf16 %v4060, %v4060
        %v4111 = vpack.c.bf16 %v4061, %v4061
        %v4112 = vpack.c.bf16 %v4062, %v4062
        %v4113 = vpack.c.bf16 %v4063, %v4063
        %v4114 = vpack.c.bf16 %v4064, %v4064
        %v4115 = vpack.c.bf16 %v4065, %v4065
        %v4116 = vld [vmem:[%s7] sm:$0xff]
        %v4117 = vld [vmem:[%s7 + $0x8] sm:$0xff]
        %v4118 = vld [vmem:[%s7 + $0x10] sm:$0xff]
        %v4119 = vld [vmem:[%s7 + $0x18] sm:$0xff]
        %v4120 = vld [vmem:[%s7 + $0x20] sm:$0xff]
        %v4121 = vld [vmem:[%s7 + $0x28] sm:$0xff]
        %v4122 = vld [vmem:[%s7 + $0x30] sm:$0xff]
        %v4123 = vld [vmem:[%s7 + $0x38] sm:$0xff]
        %v4124 = vld [vmem:[%s7 + $0x40] sm:$0xff]
        %v4125 = vld [vmem:[%s7 + $0x48] sm:$0xff]
        %v4126 = vld [vmem:[%s7 + $0x50] sm:$0xff]
        %v4127 = vld [vmem:[%s7 + $0x58] sm:$0xff]
        %v4128 = vld [vmem:[%s7 + $0x60] sm:$0xff]
        %v4129 = vld [vmem:[%s7 + $0x68] sm:$0xff]
        %v4130 = vld [vmem:[%s7 + $0x70] sm:$0xff]
        %v4131 = vld [vmem:[%s7 + $0x78] sm:$0xff]
        %v4132 = vld [vmem:[%s7 + $0x80] sm:$0xff]
        %v4133 = vld [vmem:[%s7 + $0x88] sm:$0xff]
        %v4134 = vld [vmem:[%s7 + $0x90] sm:$0xff]
        %v4135 = vld [vmem:[%s7 + $0x98] sm:$0xff]
        %v4136 = vld [vmem:[%s7 + $0xa0] sm:$0xff]
        %v4137 = vld [vmem:[%s7 + $0xa8] sm:$0xff]
        %v4138 = vld [vmem:[%s7 + $0xb0] sm:$0xff]
        %v4139 = vld [vmem:[%s7 + $0xb8] sm:$0xff]
        %v4140 = vld [vmem:[%s7 + $0xc0] sm:$0xff]
        %v4141 = vld [vmem:[%s7 + $0xc8] sm:$0xff]
        %v4142 = vld [vmem:[%s7 + $0xd0] sm:$0xff]
        %v4143 = vld [vmem:[%s7 + $0xd8] sm:$0xff]
        %v4144 = vld [vmem:[%s7 + $0xe0] sm:$0xff]
        %v4145 = vld [vmem:[%s7 + $0xe8] sm:$0xff]
        %v4146 = vld [vmem:[%s7 + $0xf0] sm:$0xff]
        %v4147 = vld [vmem:[%s7 + $0xf8] sm:$0xff]
        %v4148 = vld [vmem:[%s7 + $0x100] sm:$0xff]
        %v4149 = vld [vmem:[%s7 + $0x108] sm:$0xff]
        %v4150 = vld [vmem:[%s7 + $0x110] sm:$0xff]
        %v4151 = vld [vmem:[%s7 + $0x118] sm:$0xff]
        %v4152 = vld [vmem:[%s7 + $0x120] sm:$0xff]
        %v4153 = vld [vmem:[%s7 + $0x128] sm:$0xff]
        %v4154 = vld [vmem:[%s7 + $0x130] sm:$0xff]
        %v4155 = vld [vmem:[%s7 + $0x138] sm:$0xff]
        %v4156 = vld [vmem:[%s7 + $0x140] sm:$0xff]
        %v4157 = vld [vmem:[%s7 + $0x148] sm:$0xff]
        %v4158 = vld [vmem:[%s7 + $0x150] sm:$0xff]
        %v4159 = vld [vmem:[%s7 + $0x158] sm:$0xff]
        %v4160 = vld [vmem:[%s7 + $0x160] sm:$0xff]
        %v4161 = vld [vmem:[%s7 + $0x168] sm:$0xff]
        %v4162 = vld [vmem:[%s7 + $0x170] sm:$0xff]
        %v4163 = vld [vmem:[%s7 + $0x178] sm:$0xff]
        %v4164 = vld [vmem:[%s7 + $0x180] sm:$0xff]
        %v4165 = vld [vmem:[%s7 + $0x188] sm:$0xff]
        %v4166 = vld [vmem:[%s7 + $0x190] sm:$0xff]
        %v4167 = vld [vmem:[%s7 + $0x198] sm:$0xff]
        %v4168 = vld [vmem:[%s7 + $0x1a0] sm:$0xff]
        %v4169 = vld [vmem:[%s7 + $0x1a8] sm:$0xff]
        %v4170 = vld [vmem:[%s7 + $0x1b0] sm:$0xff]
        %v4171 = vld [vmem:[%s7 + $0x1b8] sm:$0xff]
        %v4172 = vld [vmem:[%s7 + $0x1c0] sm:$0xff]
        %v4173 = vld [vmem:[%s7 + $0x1c8] sm:$0xff]
        %v4174 = vld [vmem:[%s7 + $0x1d0] sm:$0xff]
        %v4175 = vld [vmem:[%s7 + $0x1d8] sm:$0xff]
        %v4176 = vld [vmem:[%s7 + $0x1e0] sm:$0xff]
        %v4177 = vld [vmem:[%s7 + $0x1e8] sm:$0xff]
        %v4178 = vld [vmem:[%s7 + $0x1f0] sm:$0xff]
        %v4179 = vld [vmem:[%s7 + $0x1f8] sm:$0xff]
        %v4180 = vld [vmem:[%s7 + $0x200] sm:$0xff]
        %v4181 = vld [vmem:[%s7 + $0x208] sm:$0xff]
        %v4182 = vld [vmem:[%s7 + $0x210] sm:$0xff]
        %v4183 = vld [vmem:[%s7 + $0x218] sm:$0xff]
        %v4184 = vld [vmem:[%s7 + $0x220] sm:$0xff]
        %v4185 = vld [vmem:[%s7 + $0x228] sm:$0xff]
        %v4186 = vld [vmem:[%s7 + $0x230] sm:$0xff]
        %v4187 = vld [vmem:[%s7 + $0x238] sm:$0xff]
        %v4188 = vld [vmem:[%s7 + $0x240] sm:$0xff]
        %v4189 = vld [vmem:[%s7 + $0x248] sm:$0xff]
        %v4190 = vld [vmem:[%s7 + $0x250] sm:$0xff]
        %v4191 = vld [vmem:[%s7 + $0x258] sm:$0xff]
        %v4192 = vld [vmem:[%s7 + $0x260] sm:$0xff]
        %v4193 = vld [vmem:[%s7 + $0x268] sm:$0xff]
        %v4194 = vld [vmem:[%s7 + $0x270] sm:$0xff]
        %v4195 = vld [vmem:[%s7 + $0x278] sm:$0xff]
        %v4196 = vld [vmem:[%s7 + $0x280] sm:$0xff]
        %v4197 = vld [vmem:[%s7 + $0x288] sm:$0xff]
        %v4198 = vld [vmem:[%s7 + $0x290] sm:$0xff]
        %v4199 = vld [vmem:[%s7 + $0x298] sm:$0xff]
        %v4200 = vld [vmem:[%s7 + $0x2a0] sm:$0xff]
        %v4201 = vld [vmem:[%s7 + $0x2a8] sm:$0xff]
        %v4202 = vld [vmem:[%s7 + $0x2b0] sm:$0xff]
        %v4203 = vld [vmem:[%s7 + $0x2b8] sm:$0xff]
        %v4204 = vld [vmem:[%s7 + $0x2c0] sm:$0xff]
        %v4205 = vld [vmem:[%s7 + $0x2c8] sm:$0xff]
        %v4206 = vld [vmem:[%s7 + $0x2d0] sm:$0xff]
        %v4207 = vld [vmem:[%s7 + $0x2d8] sm:$0xff]
        %v4208 = vld [vmem:[%s7 + $0x2e0] sm:$0xff]
        %v4209 = vld [vmem:[%s7 + $0x2e8] sm:$0xff]
        %v4210 = vld [vmem:[%s7 + $0x2f0] sm:$0xff]
        %v4211 = vld [vmem:[%s7 + $0x2f8] sm:$0xff]
        %v4212 = vld [vmem:[%s7 + $0x300] sm:$0xff]
        %v4213 = vld [vmem:[%s7 + $0x308] sm:$0xff]
        %v4214 = vld [vmem:[%s7 + $0x310] sm:$0xff]
        %v4215 = vld [vmem:[%s7 + $0x318] sm:$0xff]
        %v4216 = vld [vmem:[%s7 + $0x320] sm:$0xff]
        %v4217 = vld [vmem:[%s7 + $0x328] sm:$0xff]
        %v4218 = vld [vmem:[%s7 + $0x330] sm:$0xff]
        %v4219 = vld [vmem:[%s7 + $0x338] sm:$0xff]
        %v4220 = vld [vmem:[%s7 + $0x340] sm:$0xff]
        %v4221 = vld [vmem:[%s7 + $0x348] sm:$0xff]
        %v4222 = vld [vmem:[%s7 + $0x350] sm:$0xff]
        %v4223 = vld [vmem:[%s7 + $0x358] sm:$0xff]
        %v4224 = vld [vmem:[%s7 + $0x360] sm:$0xff]
        %v4225 = vld [vmem:[%s7 + $0x368] sm:$0xff]
        %v4226 = vld [vmem:[%s7 + $0x370] sm:$0xff]
        %v4227 = vld [vmem:[%s7 + $0x378] sm:$0xff]
        %v4228 = vld [vmem:[%s7 + $0x380] sm:$0xff]
        %v4229 = vld [vmem:[%s7 + $0x388] sm:$0xff]
        %v4230 = vld [vmem:[%s7 + $0x390] sm:$0xff]
        %v4231 = vld [vmem:[%s7 + $0x398] sm:$0xff]
        %v4232 = vld [vmem:[%s7 + $0x3a0] sm:$0xff]
        %v4233 = vld [vmem:[%s7 + $0x3a8] sm:$0xff]
        %v4234 = vld [vmem:[%s7 + $0x3b0] sm:$0xff]
        %v4235 = vld [vmem:[%s7 + $0x3b8] sm:$0xff]
        %v4236 = vld [vmem:[%s7 + $0x3c0] sm:$0xff]
        %v4237 = vld [vmem:[%s7 + $0x3c8] sm:$0xff]
        %v4238 = vld [vmem:[%s7 + $0x3d0] sm:$0xff]
        %v4239 = vld [vmem:[%s7 + $0x3d8] sm:$0xff]
        %v4240 = vld [vmem:[%s7 + $0x3e0] sm:$0xff]
        %v4241 = vld [vmem:[%s7 + $0x3e8] sm:$0xff]
        %v4242 = vld [vmem:[%s7 + $0x3f0] sm:$0xff]
        %v4243 = vld [vmem:[%s7 + $0x3f8] sm:$0xff]
        %v4244 = vld [vmem:[%s7 + $0x400] sm:$0xff]
        %v4245 = vld [vmem:[%s7 + $0x408] sm:$0xff]
        %v4246 = vld [vmem:[%s7 + $0x410] sm:$0xff]
        %v4247 = vld [vmem:[%s7 + $0x418] sm:$0xff]
        %v4248 = vld [vmem:[%s7 + $0x420] sm:$0xff]
        %v4249 = vld [vmem:[%s7 + $0x428] sm:$0xff]
        %v4250 = vld [vmem:[%s7 + $0x430] sm:$0xff]
        %v4251 = vld [vmem:[%s7 + $0x438] sm:$0xff]
        %v4252 = vld [vmem:[%s7 + $0x440] sm:$0xff]
        %v4253 = vld [vmem:[%s7 + $0x448] sm:$0xff]
        %v4254 = vld [vmem:[%s7 + $0x450] sm:$0xff]
        %v4255 = vld [vmem:[%s7 + $0x458] sm:$0xff]
        %v4256 = vld [vmem:[%s7 + $0x460] sm:$0xff]
        %v4257 = vld [vmem:[%s7 + $0x468] sm:$0xff]
        %v4258 = vld [vmem:[%s7 + $0x470] sm:$0xff]
        %v4259 = vld [vmem:[%s7 + $0x478] sm:$0xff]
        %v4260 = vld [vmem:[%s7 + $0x480] sm:$0xff]
        %v4261 = vld [vmem:[%s7 + $0x488] sm:$0xff]
        %v4262 = vld [vmem:[%s7 + $0x490] sm:$0xff]
        %v4263 = vld [vmem:[%s7 + $0x498] sm:$0xff]
        %v4264 = vld [vmem:[%s7 + $0x4a0] sm:$0xff]
        %v4265 = vld [vmem:[%s7 + $0x4a8] sm:$0xff]
        %v4266 = vld [vmem:[%s7 + $0x4b0] sm:$0xff]
        %v4267 = vld [vmem:[%s7 + $0x4b8] sm:$0xff]
        %v4268 = vld [vmem:[%s7 + $0x4c0] sm:$0xff]
        %v4269 = vld [vmem:[%s7 + $0x4c8] sm:$0xff]
        %v4270 = vld [vmem:[%s7 + $0x4d0] sm:$0xff]
        %v4271 = vld [vmem:[%s7 + $0x4d8] sm:$0xff]
        %v4272 = vld [vmem:[%s7 + $0x4e0] sm:$0xff]
        %v4273 = vld [vmem:[%s7 + $0x4e8] sm:$0xff]
        %v4274 = vld [vmem:[%s7 + $0x4f0] sm:$0xff]
        %v4275 = vld [vmem:[%s7 + $0x4f8] sm:$0xff]
        %v4276 = vld [vmem:[%s7 + $0x500] sm:$0xff]
        %v4277 = vld [vmem:[%s7 + $0x508] sm:$0xff]
        %v4278 = vld [vmem:[%s7 + $0x510] sm:$0xff]
        %v4279 = vld [vmem:[%s7 + $0x518] sm:$0xff]
        %v4280 = vld [vmem:[%s7 + $0x520] sm:$0xff]
        %v4281 = vld [vmem:[%s7 + $0x528] sm:$0xff]
        %v4282 = vld [vmem:[%s7 + $0x530] sm:$0xff]
        %v4283 = vld [vmem:[%s7 + $0x538] sm:$0xff]
        %v4284 = vld [vmem:[%s7 + $0x540] sm:$0xff]
        %v4285 = vld [vmem:[%s7 + $0x548] sm:$0xff]
        %v4286 = vld [vmem:[%s7 + $0x550] sm:$0xff]
        %v4287 = vld [vmem:[%s7 + $0x558] sm:$0xff]
        %v4288 = vld [vmem:[%s7 + $0x560] sm:$0xff]
        %v4289 = vld [vmem:[%s7 + $0x568] sm:$0xff]
        %v4290 = vld [vmem:[%s7 + $0x570] sm:$0xff]
        %v4291 = vld [vmem:[%s7 + $0x578] sm:$0xff]
        %v4292 = vld [vmem:[%s7 + $0x580] sm:$0xff]
        %v4293 = vld [vmem:[%s7 + $0x588] sm:$0xff]
        %v4294 = vld [vmem:[%s7 + $0x590] sm:$0xff]
        %v4295 = vld [vmem:[%s7 + $0x598] sm:$0xff]
        %v4296 = vld [vmem:[%s7 + $0x5a0] sm:$0xff]
        %v4297 = vld [vmem:[%s7 + $0x5a8] sm:$0xff]
        %v4298 = vld [vmem:[%s7 + $0x5b0] sm:$0xff]
        %v4299 = vld [vmem:[%s7 + $0x5b8] sm:$0xff]
        %v4300 = vld [vmem:[%s7 + $0x5c0] sm:$0xff]
        %v4301 = vld [vmem:[%s7 + $0x5c8] sm:$0xff]
        %v4302 = vld [vmem:[%s7 + $0x5d0] sm:$0xff]
        %v4303 = vld [vmem:[%s7 + $0x5d8] sm:$0xff]
        %v4304 = vld [vmem:[%s7 + $0x5e0] sm:$0xff]
        %v4305 = vld [vmem:[%s7 + $0x5e8] sm:$0xff]
        %v4306 = vld [vmem:[%s7 + $0x5f0] sm:$0xff]
        %v4307 = vld [vmem:[%s7 + $0x5f8] sm:$0xff]
        %v4308 = vld [vmem:[%s7 + $0x600] sm:$0xff]
        %v4309 = vld [vmem:[%s7 + $0x608] sm:$0xff]
        %v4310 = vld [vmem:[%s7 + $0x610] sm:$0xff]
        %v4311 = vld [vmem:[%s7 + $0x618] sm:$0xff]
        %v4312 = vld [vmem:[%s7 + $0x620] sm:$0xff]
        %v4313 = vld [vmem:[%s7 + $0x628] sm:$0xff]
        %v4314 = vld [vmem:[%s7 + $0x630] sm:$0xff]
        %v4315 = vld [vmem:[%s7 + $0x638] sm:$0xff]
        %v4316 = vld [vmem:[%s7 + $0x640] sm:$0xff]
        %v4317 = vld [vmem:[%s7 + $0x648] sm:$0xff]
        %v4318 = vld [vmem:[%s7 + $0x650] sm:$0xff]
        %v4319 = vld [vmem:[%s7 + $0x658] sm:$0xff]
        %v4320 = vld [vmem:[%s7 + $0x660] sm:$0xff]
        %v4321 = vld [vmem:[%s7 + $0x668] sm:$0xff]
        %v4322 = vld [vmem:[%s7 + $0x670] sm:$0xff]
        %v4323 = vld [vmem:[%s7 + $0x678] sm:$0xff]
        %v4324 = vld [vmem:[%s7 + $0x680] sm:$0xff]
        %v4325 = vld [vmem:[%s7 + $0x688] sm:$0xff]
        %v4326 = vld [vmem:[%s7 + $0x690] sm:$0xff]
        %v4327 = vld [vmem:[%s7 + $0x698] sm:$0xff]
        %v4328 = vld [vmem:[%s7 + $0x6a0] sm:$0xff]
        %v4329 = vld [vmem:[%s7 + $0x6a8] sm:$0xff]
        %v4330 = vld [vmem:[%s7 + $0x6b0] sm:$0xff]
        %v4331 = vld [vmem:[%s7 + $0x6b8] sm:$0xff]
        %v4332 = vld [vmem:[%s7 + $0x6c0] sm:$0xff]
        %v4333 = vld [vmem:[%s7 + $0x6c8] sm:$0xff]
        %v4334 = vld [vmem:[%s7 + $0x6d0] sm:$0xff]
        %v4335 = vld [vmem:[%s7 + $0x6d8] sm:$0xff]
        %v4336 = vld [vmem:[%s7 + $0x6e0] sm:$0xff]
        %v4337 = vld [vmem:[%s7 + $0x6e8] sm:$0xff]
        %v4338 = vld [vmem:[%s7 + $0x6f0] sm:$0xff]
        %v4339 = vld [vmem:[%s7 + $0x6f8] sm:$0xff]
        %v4340 = vld [vmem:[%s7 + $0x700] sm:$0xff]
        %v4341 = vld [vmem:[%s7 + $0x708] sm:$0xff]
        %v4342 = vld [vmem:[%s7 + $0x710] sm:$0xff]
        %v4343 = vld [vmem:[%s7 + $0x718] sm:$0xff]
        %v4344 = vld [vmem:[%s7 + $0x720] sm:$0xff]
        %v4345 = vld [vmem:[%s7 + $0x728] sm:$0xff]
        %v4346 = vld [vmem:[%s7 + $0x730] sm:$0xff]
        %v4347 = vld [vmem:[%s7 + $0x738] sm:$0xff]
        %v4348 = vld [vmem:[%s7 + $0x740] sm:$0xff]
        %v4349 = vld [vmem:[%s7 + $0x748] sm:$0xff]
        %v4350 = vld [vmem:[%s7 + $0x750] sm:$0xff]
        %v4351 = vld [vmem:[%s7 + $0x758] sm:$0xff]
        %v4352 = vld [vmem:[%s7 + $0x760] sm:$0xff]
        %v4353 = vld [vmem:[%s7 + $0x768] sm:$0xff]
        %v4354 = vld [vmem:[%s7 + $0x770] sm:$0xff]
        %v4355 = vld [vmem:[%s7 + $0x778] sm:$0xff]
        %v4356 = vld [vmem:[%s7 + $0x780] sm:$0xff]
        %v4357 = vld [vmem:[%s7 + $0x788] sm:$0xff]
        %v4358 = vld [vmem:[%s7 + $0x790] sm:$0xff]
        %v4359 = vld [vmem:[%s7 + $0x798] sm:$0xff]
        %v4360 = vld [vmem:[%s7 + $0x7a0] sm:$0xff]
        %v4361 = vld [vmem:[%s7 + $0x7a8] sm:$0xff]
        %v4362 = vld [vmem:[%s7 + $0x7b0] sm:$0xff]
        %v4363 = vld [vmem:[%s7 + $0x7b8] sm:$0xff]
        %v4364 = vld [vmem:[%s7 + $0x7c0] sm:$0xff]
        %v4365 = vld [vmem:[%s7 + $0x7c8] sm:$0xff]
        %v4366 = vld [vmem:[%s7 + $0x7d0] sm:$0xff]
        %v4367 = vld [vmem:[%s7 + $0x7d8] sm:$0xff]
        %v4368 = vld [vmem:[%s7 + $0x7e0] sm:$0xff]
        %v4369 = vld [vmem:[%s7 + $0x7e8] sm:$0xff]
        %v4370 = vld [vmem:[%s7 + $0x7f0] sm:$0xff]
        %v4371 = vld [vmem:[%s7 + $0x7f8] sm:$0xff]
        %v4372 = vld [vmem:[%s7 + $0x800] sm:$0xff]
        %v4373 = vld [vmem:[%s7 + $0x808] sm:$0xff]
        %v4374 = vld [vmem:[%s7 + $0x810] sm:$0xff]
        %v4375 = vld [vmem:[%s7 + $0x818] sm:$0xff]
        %v4376 = vld [vmem:[%s7 + $0x820] sm:$0xff]
        %v4377 = vld [vmem:[%s7 + $0x828] sm:$0xff]
        %v4378 = vld [vmem:[%s7 + $0x830] sm:$0xff]
        %v4379 = vld [vmem:[%s7 + $0x838] sm:$0xff]
        %v4380 = vld [vmem:[%s7 + $0x840] sm:$0xff]
        %v4381 = vld [vmem:[%s7 + $0x848] sm:$0xff]
        %v4382 = vld [vmem:[%s7 + $0x850] sm:$0xff]
        %v4383 = vld [vmem:[%s7 + $0x858] sm:$0xff]
        %v4384 = vld [vmem:[%s7 + $0x860] sm:$0xff]
        %v4385 = vld [vmem:[%s7 + $0x868] sm:$0xff]
        %v4386 = vld [vmem:[%s7 + $0x870] sm:$0xff]
        %v4387 = vld [vmem:[%s7 + $0x878] sm:$0xff]
        %v4388 = vld [vmem:[%s7 + $0x880] sm:$0xff]
        %v4389 = vld [vmem:[%s7 + $0x888] sm:$0xff]
        %v4390 = vld [vmem:[%s7 + $0x890] sm:$0xff]
        %v4391 = vld [vmem:[%s7 + $0x898] sm:$0xff]
        %v4392 = vld [vmem:[%s7 + $0x8a0] sm:$0xff]
        %v4393 = vld [vmem:[%s7 + $0x8a8] sm:$0xff]
        %v4394 = vld [vmem:[%s7 + $0x8b0] sm:$0xff]
        %v4395 = vld [vmem:[%s7 + $0x8b8] sm:$0xff]
        %v4396 = vld [vmem:[%s7 + $0x8c0] sm:$0xff]
        %v4397 = vld [vmem:[%s7 + $0x8c8] sm:$0xff]
        %v4398 = vld [vmem:[%s7 + $0x8d0] sm:$0xff]
        %v4399 = vld [vmem:[%s7 + $0x8d8] sm:$0xff]
        %v4400 = vld [vmem:[%s7 + $0x8e0] sm:$0xff]
        %v4401 = vld [vmem:[%s7 + $0x8e8] sm:$0xff]
        %v4402 = vld [vmem:[%s7 + $0x8f0] sm:$0xff]
        %v4403 = vld [vmem:[%s7 + $0x8f8] sm:$0xff]
        %v4404 = vld [vmem:[%s7 + $0x900] sm:$0xff]
        %v4405 = vld [vmem:[%s7 + $0x908] sm:$0xff]
        %v4406 = vld [vmem:[%s7 + $0x910] sm:$0xff]
        %v4407 = vld [vmem:[%s7 + $0x918] sm:$0xff]
        %v4408 = vld [vmem:[%s7 + $0x920] sm:$0xff]
        %v4409 = vld [vmem:[%s7 + $0x928] sm:$0xff]
        %v4410 = vld [vmem:[%s7 + $0x930] sm:$0xff]
        %v4411 = vld [vmem:[%s7 + $0x938] sm:$0xff]
        %v4412 = vld [vmem:[%s7 + $0x940] sm:$0xff]
        %v4413 = vld [vmem:[%s7 + $0x948] sm:$0xff]
        %v4414 = vld [vmem:[%s7 + $0x950] sm:$0xff]
        %v4415 = vld [vmem:[%s7 + $0x958] sm:$0xff]
        %v4416 = vld [vmem:[%s7 + $0x960] sm:$0xff]
        %v4417 = vld [vmem:[%s7 + $0x968] sm:$0xff]
        %v4418 = vld [vmem:[%s7 + $0x970] sm:$0xff]
        %v4419 = vld [vmem:[%s7 + $0x978] sm:$0xff]
        %v4420 = vld [vmem:[%s7 + $0x980] sm:$0xff]
        %v4421 = vld [vmem:[%s7 + $0x988] sm:$0xff]
        %v4422 = vld [vmem:[%s7 + $0x990] sm:$0xff]
        %v4423 = vld [vmem:[%s7 + $0x998] sm:$0xff]
        %v4424 = vld [vmem:[%s7 + $0x9a0] sm:$0xff]
        %v4425 = vld [vmem:[%s7 + $0x9a8] sm:$0xff]
        %v4426 = vld [vmem:[%s7 + $0x9b0] sm:$0xff]
        %v4427 = vld [vmem:[%s7 + $0x9b8] sm:$0xff]
        %v4428 = vld [vmem:[%s7 + $0x9c0] sm:$0xff]
        %v4429 = vld [vmem:[%s7 + $0x9c8] sm:$0xff]
        %v4430 = vld [vmem:[%s7 + $0x9d0] sm:$0xff]
        %v4431 = vld [vmem:[%s7 + $0x9d8] sm:$0xff]
        %v4432 = vld [vmem:[%s7 + $0x9e0] sm:$0xff]
        %v4433 = vld [vmem:[%s7 + $0x9e8] sm:$0xff]
        %v4434 = vld [vmem:[%s7 + $0x9f0] sm:$0xff]
        %v4435 = vld [vmem:[%s7 + $0x9f8] sm:$0xff]
        %v4436 = vld [vmem:[%s7 + $0xa00] sm:$0xff]
        %v4437 = vld [vmem:[%s7 + $0xa08] sm:$0xff]
        %v4438 = vld [vmem:[%s7 + $0xa10] sm:$0xff]
        %v4439 = vld [vmem:[%s7 + $0xa18] sm:$0xff]
        %v4440 = vld [vmem:[%s7 + $0xa20] sm:$0xff]
        %v4441 = vld [vmem:[%s7 + $0xa28] sm:$0xff]
        %v4442 = vld [vmem:[%s7 + $0xa30] sm:$0xff]
        %v4443 = vld [vmem:[%s7 + $0xa38] sm:$0xff]
        %v4444 = vld [vmem:[%s7 + $0xa40] sm:$0xff]
        %v4445 = vld [vmem:[%s7 + $0xa48] sm:$0xff]
        %v4446 = vld [vmem:[%s7 + $0xa50] sm:$0xff]
        %v4447 = vld [vmem:[%s7 + $0xa58] sm:$0xff]
        %v4448 = vld [vmem:[%s7 + $0xa60] sm:$0xff]
        %v4449 = vld [vmem:[%s7 + $0xa68] sm:$0xff]
        %v4450 = vld [vmem:[%s7 + $0xa70] sm:$0xff]
        %v4451 = vld [vmem:[%s7 + $0xa78] sm:$0xff]
        %v4452 = vld [vmem:[%s7 + $0xa80] sm:$0xff]
        %v4453 = vld [vmem:[%s7 + $0xa88] sm:$0xff]
        %v4454 = vld [vmem:[%s7 + $0xa90] sm:$0xff]
        %v4455 = vld [vmem:[%s7 + $0xa98] sm:$0xff]
        %v4456 = vld [vmem:[%s7 + $0xaa0] sm:$0xff]
        %v4457 = vld [vmem:[%s7 + $0xaa8] sm:$0xff]
        %v4458 = vld [vmem:[%s7 + $0xab0] sm:$0xff]
        %v4459 = vld [vmem:[%s7 + $0xab8] sm:$0xff]
        %v4460 = vld [vmem:[%s7 + $0xac0] sm:$0xff]
        %v4461 = vld [vmem:[%s7 + $0xac8] sm:$0xff]
        %v4462 = vld [vmem:[%s7 + $0xad0] sm:$0xff]
        %v4463 = vld [vmem:[%s7 + $0xad8] sm:$0xff]
        %v4464 = vld [vmem:[%s7 + $0xae0] sm:$0xff]
        %v4465 = vld [vmem:[%s7 + $0xae8] sm:$0xff]
        %v4466 = vld [vmem:[%s7 + $0xaf0] sm:$0xff]
        %v4467 = vld [vmem:[%s7 + $0xaf8] sm:$0xff]
        %v4468 = vld [vmem:[%s7 + $0xb00] sm:$0xff]
        %v4469 = vld [vmem:[%s7 + $0xb08] sm:$0xff]
        %v4470 = vld [vmem:[%s7 + $0xb10] sm:$0xff]
        %v4471 = vld [vmem:[%s7 + $0xb18] sm:$0xff]
        %v4472 = vld [vmem:[%s7 + $0xb20] sm:$0xff]
        %v4473 = vld [vmem:[%s7 + $0xb28] sm:$0xff]
        %v4474 = vld [vmem:[%s7 + $0xb30] sm:$0xff]
        %v4475 = vld [vmem:[%s7 + $0xb38] sm:$0xff]
        %v4476 = vld [vmem:[%s7 + $0xb40] sm:$0xff]
        %v4477 = vld [vmem:[%s7 + $0xb48] sm:$0xff]
        %v4478 = vld [vmem:[%s7 + $0xb50] sm:$0xff]
        %v4479 = vld [vmem:[%s7 + $0xb58] sm:$0xff]
        %v4480 = vld [vmem:[%s7 + $0xb60] sm:$0xff]
        %v4481 = vld [vmem:[%s7 + $0xb68] sm:$0xff]
        %v4482 = vld [vmem:[%s7 + $0xb70] sm:$0xff]
        %v4483 = vld [vmem:[%s7 + $0xb78] sm:$0xff]
        %v4484 = vld [vmem:[%s7 + $0xb80] sm:$0xff]
        %v4485 = vld [vmem:[%s7 + $0xb88] sm:$0xff]
        %v4486 = vld [vmem:[%s7 + $0xb90] sm:$0xff]
        %v4487 = vld [vmem:[%s7 + $0xb98] sm:$0xff]
        %v4488 = vld [vmem:[%s7 + $0xba0] sm:$0xff]
        %v4489 = vld [vmem:[%s7 + $0xba8] sm:$0xff]
        %v4490 = vld [vmem:[%s7 + $0xbb0] sm:$0xff]
        %v4491 = vld [vmem:[%s7 + $0xbb8] sm:$0xff]
        %v4492 = vld [vmem:[%s7 + $0xbc0] sm:$0xff]
        %v4493 = vld [vmem:[%s7 + $0xbc8] sm:$0xff]
        %v4494 = vld [vmem:[%s7 + $0xbd0] sm:$0xff]
        %v4495 = vld [vmem:[%s7 + $0xbd8] sm:$0xff]
        %v4496 = vld [vmem:[%s7 + $0xbe0] sm:$0xff]
        %v4497 = vld [vmem:[%s7 + $0xbe8] sm:$0xff]
        %v4498 = vld [vmem:[%s7 + $0xbf0] sm:$0xff]
        %v4499 = vld [vmem:[%s7 + $0xbf8] sm:$0xff]
        %v4500 = vld [vmem:[%s7 + $0xc00] sm:$0xff]
        %v4501 = vld [vmem:[%s7 + $0xc08] sm:$0xff]
        %v4502 = vld [vmem:[%s7 + $0xc10] sm:$0xff]
        %v4503 = vld [vmem:[%s7 + $0xc18] sm:$0xff]
        %v4504 = vld [vmem:[%s7 + $0xc20] sm:$0xff]
        %v4505 = vld [vmem:[%s7 + $0xc28] sm:$0xff]
        %v4506 = vld [vmem:[%s7 + $0xc30] sm:$0xff]
        %v4507 = vld [vmem:[%s7 + $0xc38] sm:$0xff]
        %v4508 = vld [vmem:[%s8] sm:$0x3]
        %v4901 = vunpack.c.l.b16 %v4116
        %v4902 = vunpack.c.h.b16 %v4116
        %v4903 = vunpack.c.l.b16 %v4117
        %v4904 = vunpack.c.h.b16 %v4117
        %v4905 = vunpack.c.l.b16 %v4118
        %v4906 = vunpack.c.h.b16 %v4118
        %v4907 = vunpack.c.l.b16 %v4119
        %v4908 = vunpack.c.h.b16 %v4119
        %v4909 = vunpack.c.l.b16 %v4120
        %v4910 = vunpack.c.h.b16 %v4120
        %v4911 = vunpack.c.l.b16 %v4121
        %v4912 = vunpack.c.h.b16 %v4121
        %v4913 = vunpack.c.l.b16 %v4122
        %v4914 = vunpack.c.h.b16 %v4122
        %v4915 = vunpack.c.l.b16 %v4123
        %v4916 = vunpack.c.h.b16 %v4123
        %v4917 = vunpack.c.l.b16 %v4124
        %v4918 = vunpack.c.h.b16 %v4124
        %v4919 = vunpack.c.l.b16 %v4125
        %v4920 = vunpack.c.h.b16 %v4125
        %v4921 = vunpack.c.l.b16 %v4126
        %v4922 = vunpack.c.h.b16 %v4126
        %v4923 = vunpack.c.l.b16 %v4127
        %v4924 = vunpack.c.h.b16 %v4127
        %v4925 = vunpack.c.l.b16 %v4128
        %v4926 = vunpack.c.h.b16 %v4128
        %v4927 = vunpack.c.l.b16 %v4129
        %v4928 = vunpack.c.h.b16 %v4129
        %v4929 = vunpack.c.l.b16 %v4130
        %v4930 = vunpack.c.h.b16 %v4130
        %v4931 = vunpack.c.l.b16 %v4131
        %v4932 = vunpack.c.h.b16 %v4131
        %v4933 = vunpack.c.l.b16 %v4132
        %v4934 = vunpack.c.h.b16 %v4132
        %v4935 = vunpack.c.l.b16 %v4133
        %v4936 = vunpack.c.h.b16 %v4133
        %v4937 = vunpack.c.l.b16 %v4134
        %v4938 = vunpack.c.h.b16 %v4134
        %v4939 = vunpack.c.l.b16 %v4135
        %v4940 = vunpack.c.h.b16 %v4135
        %v4941 = vunpack.c.l.b16 %v4136
        %v4942 = vunpack.c.h.b16 %v4136
        %v4943 = vunpack.c.l.b16 %v4137
        %v4944 = vunpack.c.h.b16 %v4137
        %v4945 = vunpack.c.l.b16 %v4138
        %v4946 = vunpack.c.h.b16 %v4138
        %v4947 = vunpack.c.l.b16 %v4139
        %v4948 = vunpack.c.h.b16 %v4139
        %v4949 = vunpack.c.l.b16 %v4140
        %v4950 = vunpack.c.h.b16 %v4140
        %v4951 = vunpack.c.l.b16 %v4141
        %v4952 = vunpack.c.h.b16 %v4141
        %v4953 = vunpack.c.l.b16 %v4142
        %v4954 = vunpack.c.h.b16 %v4142
        %v4955 = vunpack.c.l.b16 %v4143
        %v4956 = vunpack.c.h.b16 %v4143
        %v4957 = vunpack.c.l.b16 %v4144
        %v4958 = vunpack.c.h.b16 %v4144
        %v4959 = vunpack.c.l.b16 %v4145
        %v4960 = vunpack.c.h.b16 %v4145
        %v4961 = vunpack.c.l.b16 %v4146
        %v4962 = vunpack.c.h.b16 %v4146
        %v4963 = vunpack.c.l.b16 %v4147
        %v4964 = vunpack.c.h.b16 %v4147
        %v4965 = vunpack.c.l.b16 %v4148
        %v4966 = vunpack.c.h.b16 %v4148
        %v4967 = vunpack.c.l.b16 %v4149
        %v4968 = vunpack.c.h.b16 %v4149
        %v4969 = vunpack.c.l.b16 %v4150
        %v4970 = vunpack.c.h.b16 %v4150
        %v4971 = vunpack.c.l.b16 %v4151
        %v4972 = vunpack.c.h.b16 %v4151
        %v4973 = vunpack.c.l.b16 %v4152
        %v4974 = vunpack.c.h.b16 %v4152
        %v4975 = vunpack.c.l.b16 %v4153
        %v4976 = vunpack.c.h.b16 %v4153
        %v4977 = vunpack.c.l.b16 %v4154
        %v4978 = vunpack.c.h.b16 %v4154
        %v4979 = vunpack.c.l.b16 %v4155
        %v4980 = vunpack.c.h.b16 %v4155
        %v4981 = vunpack.c.l.b16 %v4156
        %v4982 = vunpack.c.h.b16 %v4156
        %v4983 = vunpack.c.l.b16 %v4157
        %v4984 = vunpack.c.h.b16 %v4157
        %v4985 = vunpack.c.l.b16 %v4158
        %v4986 = vunpack.c.h.b16 %v4158
        %v4987 = vunpack.c.l.b16 %v4159
        %v4988 = vunpack.c.h.b16 %v4159
        %v4989 = vunpack.c.l.b16 %v4160
        %v4990 = vunpack.c.h.b16 %v4160
        %v4991 = vunpack.c.l.b16 %v4161
        %v4992 = vunpack.c.h.b16 %v4161
        %v4993 = vunpack.c.l.b16 %v4162
        %v4994 = vunpack.c.h.b16 %v4162
        %v4995 = vunpack.c.l.b16 %v4163
        %v4996 = vunpack.c.h.b16 %v4163
        %v4997 = vunpack.c.l.b16 %v4164
        %v4998 = vunpack.c.h.b16 %v4164
        %v4999 = vunpack.c.l.b16 %v4165
        %v5000 = vunpack.c.h.b16 %v4165
        %v5001 = vunpack.c.l.b16 %v4166
        %v5002 = vunpack.c.h.b16 %v4166
        %v5003 = vunpack.c.l.b16 %v4167
        %v5004 = vunpack.c.h.b16 %v4167
        %v5005 = vunpack.c.l.b16 %v4168
        %v5006 = vunpack.c.h.b16 %v4168
        %v5007 = vunpack.c.l.b16 %v4169
        %v5008 = vunpack.c.h.b16 %v4169
        %v5009 = vunpack.c.l.b16 %v4170
        %v5010 = vunpack.c.h.b16 %v4170
        %v5011 = vunpack.c.l.b16 %v4171
        %v5012 = vunpack.c.h.b16 %v4171
        %v5013 = vunpack.c.l.b16 %v4172
        %v5014 = vunpack.c.h.b16 %v4172
        %v5015 = vunpack.c.l.b16 %v4173
        %v5016 = vunpack.c.h.b16 %v4173
        %v5017 = vunpack.c.l.b16 %v4174
        %v5018 = vunpack.c.h.b16 %v4174
        %v5019 = vunpack.c.l.b16 %v4175
        %v5020 = vunpack.c.h.b16 %v4175
        %v5021 = vunpack.c.l.b16 %v4176
        %v5022 = vunpack.c.h.b16 %v4176
        %v5023 = vunpack.c.l.b16 %v4177
        %v5024 = vunpack.c.h.b16 %v4177
        %v5025 = vunpack.c.l.b16 %v4178
        %v5026 = vunpack.c.h.b16 %v4178
        %v5027 = vunpack.c.l.b16 %v4179
        %v5028 = vunpack.c.h.b16 %v4179
        %v5029 = vunpack.c.l.b16 %v4180
        %v5030 = vunpack.c.h.b16 %v4180
        %v5031 = vunpack.c.l.b16 %v4181
        %v5032 = vunpack.c.h.b16 %v4181
        %v5033 = vunpack.c.l.b16 %v4182
        %v5034 = vunpack.c.h.b16 %v4182
        %v5035 = vunpack.c.l.b16 %v4183
        %v5036 = vunpack.c.h.b16 %v4183
        %v5037 = vunpack.c.l.b16 %v4184
        %v5038 = vunpack.c.h.b16 %v4184
        %v5039 = vunpack.c.l.b16 %v4185
        %v5040 = vunpack.c.h.b16 %v4185
        %v5041 = vunpack.c.l.b16 %v4186
        %v5042 = vunpack.c.h.b16 %v4186
        %v5043 = vunpack.c.l.b16 %v4187
        %v5044 = vunpack.c.h.b16 %v4187
        %v5045 = vunpack.c.l.b16 %v4188
        %v5046 = vunpack.c.h.b16 %v4188
        %v5047 = vunpack.c.l.b16 %v4189
        %v5048 = vunpack.c.h.b16 %v4189
        %v5049 = vunpack.c.l.b16 %v4190
        %v5050 = vunpack.c.h.b16 %v4190
        %v5051 = vunpack.c.l.b16 %v4191
        %v5052 = vunpack.c.h.b16 %v4191
        %v5053 = vunpack.c.l.b16 %v4192
        %v5054 = vunpack.c.h.b16 %v4192
        %v5055 = vunpack.c.l.b16 %v4193
        %v5056 = vunpack.c.h.b16 %v4193
        %v5057 = vunpack.c.l.b16 %v4194
        %v5058 = vunpack.c.h.b16 %v4194
        %v5059 = vunpack.c.l.b16 %v4195
        %v5060 = vunpack.c.h.b16 %v4195
        %v5061 = vunpack.c.l.b16 %v4196
        %v5062 = vunpack.c.h.b16 %v4196
        %v5063 = vunpack.c.l.b16 %v4197
        %v5064 = vunpack.c.h.b16 %v4197
        %v5065 = vunpack.c.l.b16 %v4198
        %v5066 = vunpack.c.h.b16 %v4198
        %v5067 = vunpack.c.l.b16 %v4199
        %v5068 = vunpack.c.h.b16 %v4199
        %v5069 = vunpack.c.l.b16 %v4200
        %v5070 = vunpack.c.h.b16 %v4200
        %v5071 = vunpack.c.l.b16 %v4201
        %v5072 = vunpack.c.h.b16 %v4201
        %v5073 = vunpack.c.l.b16 %v4202
        %v5074 = vunpack.c.h.b16 %v4202
        %v5075 = vunpack.c.l.b16 %v4203
        %v5076 = vunpack.c.h.b16 %v4203
        %v5077 = vunpack.c.l.b16 %v4204
        %v5078 = vunpack.c.h.b16 %v4204
        %v5079 = vunpack.c.l.b16 %v4205
        %v5080 = vunpack.c.h.b16 %v4205
        %v5081 = vunpack.c.l.b16 %v4206
        %v5082 = vunpack.c.h.b16 %v4206
        %v5083 = vunpack.c.l.b16 %v4207
        %v5084 = vunpack.c.h.b16 %v4207
        %v5085 = vunpack.c.l.b16 %v4208
        %v5086 = vunpack.c.h.b16 %v4208
        %v5087 = vunpack.c.l.b16 %v4209
        %v5088 = vunpack.c.h.b16 %v4209
        %v5089 = vunpack.c.l.b16 %v4210
        %v5090 = vunpack.c.h.b16 %v4210
        %v5091 = vunpack.c.l.b16 %v4211
        %v5092 = vunpack.c.h.b16 %v4211
        %v5093 = vunpack.c.l.b16 %v4212
        %v5094 = vunpack.c.h.b16 %v4212
        %v5095 = vunpack.c.l.b16 %v4213
        %v5096 = vunpack.c.h.b16 %v4213
        %v5097 = vunpack.c.l.b16 %v4214
        %v5098 = vunpack.c.h.b16 %v4214
        %v5099 = vunpack.c.l.b16 %v4215
        %v5100 = vunpack.c.h.b16 %v4215
        %v5101 = vunpack.c.l.b16 %v4216
        %v5102 = vunpack.c.h.b16 %v4216
        %v5103 = vunpack.c.l.b16 %v4217
        %v5104 = vunpack.c.h.b16 %v4217
        %v5105 = vunpack.c.l.b16 %v4218
        %v5106 = vunpack.c.h.b16 %v4218
        %v5107 = vunpack.c.l.b16 %v4219
        %v5108 = vunpack.c.h.b16 %v4219
        %v5109 = vunpack.c.l.b16 %v4220
        %v5110 = vunpack.c.h.b16 %v4220
        %v5111 = vunpack.c.l.b16 %v4221
        %v5112 = vunpack.c.h.b16 %v4221
        %v5113 = vunpack.c.l.b16 %v4222
        %v5114 = vunpack.c.h.b16 %v4222
        %v5115 = vunpack.c.l.b16 %v4223
        %v5116 = vunpack.c.h.b16 %v4223
        %v5117 = vunpack.c.l.b16 %v4224
        %v5118 = vunpack.c.h.b16 %v4224
        %v5119 = vunpack.c.l.b16 %v4225
        %v5120 = vunpack.c.h.b16 %v4225
        %v5121 = vunpack.c.l.b16 %v4226
        %v5122 = vunpack.c.h.b16 %v4226
        %v5123 = vunpack.c.l.b16 %v4227
        %v5124 = vunpack.c.h.b16 %v4227
        %v5125 = vunpack.c.l.b16 %v4228
        %v5126 = vunpack.c.h.b16 %v4228
        %v5127 = vunpack.c.l.b16 %v4229
        %v5128 = vunpack.c.h.b16 %v4229
        %v5129 = vunpack.c.l.b16 %v4230
        %v5130 = vunpack.c.h.b16 %v4230
        %v5131 = vunpack.c.l.b16 %v4231
        %v5132 = vunpack.c.h.b16 %v4231
        %v5133 = vunpack.c.l.b16 %v4232
        %v5134 = vunpack.c.h.b16 %v4232
        %v5135 = vunpack.c.l.b16 %v4233
        %v5136 = vunpack.c.h.b16 %v4233
        %v5137 = vunpack.c.l.b16 %v4234
        %v5138 = vunpack.c.h.b16 %v4234
        %v5139 = vunpack.c.l.b16 %v4235
        %v5140 = vunpack.c.h.b16 %v4235
        %v5141 = vunpack.c.l.b16 %v4236
        %v5142 = vunpack.c.h.b16 %v4236
        %v5143 = vunpack.c.l.b16 %v4237
        %v5144 = vunpack.c.h.b16 %v4237
        %v5145 = vunpack.c.l.b16 %v4238
        %v5146 = vunpack.c.h.b16 %v4238
        %v5147 = vunpack.c.l.b16 %v4239
        %v5148 = vunpack.c.h.b16 %v4239
        %v5149 = vunpack.c.l.b16 %v4240
        %v5150 = vunpack.c.h.b16 %v4240
        %v5151 = vunpack.c.l.b16 %v4241
        %v5152 = vunpack.c.h.b16 %v4241
        %v5153 = vunpack.c.l.b16 %v4242
        %v5154 = vunpack.c.h.b16 %v4242
        %v5155 = vunpack.c.l.b16 %v4243
        %v5156 = vunpack.c.h.b16 %v4243
        %v5157 = vunpack.c.l.b16 %v4244
        %v5158 = vunpack.c.h.b16 %v4244
        %v5159 = vunpack.c.l.b16 %v4245
        %v5160 = vunpack.c.h.b16 %v4245
        %v5161 = vunpack.c.l.b16 %v4246
        %v5162 = vunpack.c.h.b16 %v4246
        %v5163 = vunpack.c.l.b16 %v4247
        %v5164 = vunpack.c.h.b16 %v4247
        %v5165 = vunpack.c.l.b16 %v4248
        %v5166 = vunpack.c.h.b16 %v4248
        %v5167 = vunpack.c.l.b16 %v4249
        %v5168 = vunpack.c.h.b16 %v4249
        %v5169 = vunpack.c.l.b16 %v4250
        %v5170 = vunpack.c.h.b16 %v4250
        %v5171 = vunpack.c.l.b16 %v4251
        %v5172 = vunpack.c.h.b16 %v4251
        %v5173 = vunpack.c.l.b16 %v4252
        %v5174 = vunpack.c.h.b16 %v4252
        %v5175 = vunpack.c.l.b16 %v4253
        %v5176 = vunpack.c.h.b16 %v4253
        %v5177 = vunpack.c.l.b16 %v4254
        %v5178 = vunpack.c.h.b16 %v4254
        %v5179 = vunpack.c.l.b16 %v4255
        %v5180 = vunpack.c.h.b16 %v4255
        %v5181 = vunpack.c.l.b16 %v4256
        %v5182 = vunpack.c.h.b16 %v4256
        %v5183 = vunpack.c.l.b16 %v4257
        %v5184 = vunpack.c.h.b16 %v4257
        %v5185 = vunpack.c.l.b16 %v4258
        %v5186 = vunpack.c.h.b16 %v4258
        %v5187 = vunpack.c.l.b16 %v4259
        %v5188 = vunpack.c.h.b16 %v4259
        %v5189 = vunpack.c.l.b16 %v4260
        %v5190 = vunpack.c.h.b16 %v4260
        %v5191 = vunpack.c.l.b16 %v4261
        %v5192 = vunpack.c.h.b16 %v4261
        %v5193 = vunpack.c.l.b16 %v4262
        %v5194 = vunpack.c.h.b16 %v4262
        %v5195 = vunpack.c.l.b16 %v4263
        %v5196 = vunpack.c.h.b16 %v4263
        %v5197 = vunpack.c.l.b16 %v4264
        %v5198 = vunpack.c.h.b16 %v4264
        %v5199 = vunpack.c.l.b16 %v4265
        %v5200 = vunpack.c.h.b16 %v4265
        %v5201 = vunpack.c.l.b16 %v4266
        %v5202 = vunpack.c.h.b16 %v4266
        %v5203 = vunpack.c.l.b16 %v4267
        %v5204 = vunpack.c.h.b16 %v4267
        %v5205 = vunpack.c.l.b16 %v4268
        %v5206 = vunpack.c.h.b16 %v4268
        %v5207 = vunpack.c.l.b16 %v4269
        %v5208 = vunpack.c.h.b16 %v4269
        %v5209 = vunpack.c.l.b16 %v4270
        %v5210 = vunpack.c.h.b16 %v4270
        %v5211 = vunpack.c.l.b16 %v4271
        %v5212 = vunpack.c.h.b16 %v4271
        %v5213 = vunpack.c.l.b16 %v4272
        %v5214 = vunpack.c.h.b16 %v4272
        %v5215 = vunpack.c.l.b16 %v4273
        %v5216 = vunpack.c.h.b16 %v4273
        %v5217 = vunpack.c.l.b16 %v4274
        %v5218 = vunpack.c.h.b16 %v4274
        %v5219 = vunpack.c.l.b16 %v4275
        %v5220 = vunpack.c.h.b16 %v4275
        %v5221 = vunpack.c.l.b16 %v4276
        %v5222 = vunpack.c.h.b16 %v4276
        %v5223 = vunpack.c.l.b16 %v4277
        %v5224 = vunpack.c.h.b16 %v4277
        %v5225 = vunpack.c.l.b16 %v4278
        %v5226 = vunpack.c.h.b16 %v4278
        %v5227 = vunpack.c.l.b16 %v4279
        %v5228 = vunpack.c.h.b16 %v4279
        %v5229 = vunpack.c.l.b16 %v4280
        %v5230 = vunpack.c.h.b16 %v4280
        %v5231 = vunpack.c.l.b16 %v4281
        %v5232 = vunpack.c.h.b16 %v4281
        %v5233 = vunpack.c.l.b16 %v4282
        %v5234 = vunpack.c.h.b16 %v4282
        %v5235 = vunpack.c.l.b16 %v4283
        %v5236 = vunpack.c.h.b16 %v4283
        %v5237 = vunpack.c.l.b16 %v4284
        %v5238 = vunpack.c.h.b16 %v4284
        %v5239 = vunpack.c.l.b16 %v4285
        %v5240 = vunpack.c.h.b16 %v4285
        %v5241 = vunpack.c.l.b16 %v4286
        %v5242 = vunpack.c.h.b16 %v4286
        %v5243 = vunpack.c.l.b16 %v4287
        %v5244 = vunpack.c.h.b16 %v4287
        %v5245 = vunpack.c.l.b16 %v4288
        %v5246 = vunpack.c.h.b16 %v4288
        %v5247 = vunpack.c.l.b16 %v4289
        %v5248 = vunpack.c.h.b16 %v4289
        %v5249 = vunpack.c.l.b16 %v4290
        %v5250 = vunpack.c.h.b16 %v4290
        %v5251 = vunpack.c.l.b16 %v4291
        %v5252 = vunpack.c.h.b16 %v4291
        %v5253 = vunpack.c.l.b16 %v4292
        %v5254 = vunpack.c.h.b16 %v4292
        %v5255 = vunpack.c.l.b16 %v4293
        %v5256 = vunpack.c.h.b16 %v4293
        %v5257 = vunpack.c.l.b16 %v4294
        %v5258 = vunpack.c.h.b16 %v4294
        %v5259 = vunpack.c.l.b16 %v4295
        %v5260 = vunpack.c.h.b16 %v4295
        %v5261 = vunpack.c.l.b16 %v4296
        %v5262 = vunpack.c.h.b16 %v4296
        %v5263 = vunpack.c.l.b16 %v4297
        %v5264 = vunpack.c.h.b16 %v4297
        %v5265 = vunpack.c.l.b16 %v4298
        %v5266 = vunpack.c.h.b16 %v4298
        %v5267 = vunpack.c.l.b16 %v4299
        %v5268 = vunpack.c.h.b16 %v4299
        %v5269 = vunpack.c.l.b16 %v4300
        %v5270 = vunpack.c.h.b16 %v4300
        %v5271 = vunpack.c.l.b16 %v4301
        %v5272 = vunpack.c.h.b16 %v4301
        %v5273 = vunpack.c.l.b16 %v4302
        %v5274 = vunpack.c.h.b16 %v4302
        %v5275 = vunpack.c.l.b16 %v4303
        %v5276 = vunpack.c.h.b16 %v4303
        %v5277 = vunpack.c.l.b16 %v4304
        %v5278 = vunpack.c.h.b16 %v4304
        %v5279 = vunpack.c.l.b16 %v4305
        %v5280 = vunpack.c.h.b16 %v4305
        %v5281 = vunpack.c.l.b16 %v4306
        %v5282 = vunpack.c.h.b16 %v4306
        %v5283 = vunpack.c.l.b16 %v4307
        %v5284 = vunpack.c.h.b16 %v4307
        %v5285 = vunpack.c.l.b16 %v4308
        %v5286 = vunpack.c.h.b16 %v4308
        %v5287 = vunpack.c.l.b16 %v4309
        %v5288 = vunpack.c.h.b16 %v4309
        %v5289 = vunpack.c.l.b16 %v4310
        %v5290 = vunpack.c.h.b16 %v4310
        %v5291 = vunpack.c.l.b16 %v4311
        %v5292 = vunpack.c.h.b16 %v4311
        %v5293 = vunpack.c.l.b16 %v4312
        %v5294 = vunpack.c.h.b16 %v4312
        %v5295 = vunpack.c.l.b16 %v4313
        %v5296 = vunpack.c.h.b16 %v4313
        %v5297 = vunpack.c.l.b16 %v4314
        %v5298 = vunpack.c.h.b16 %v4314
        %v5299 = vunpack.c.l.b16 %v4315
        %v5300 = vunpack.c.h.b16 %v4315
        %v5301 = vunpack.c.l.b16 %v4316
        %v5302 = vunpack.c.h.b16 %v4316
        %v5303 = vunpack.c.l.b16 %v4317
        %v5304 = vunpack.c.h.b16 %v4317
        %v5305 = vunpack.c.l.b16 %v4318
        %v5306 = vunpack.c.h.b16 %v4318
        %v5307 = vunpack.c.l.b16 %v4319
        %v5308 = vunpack.c.h.b16 %v4319
        %v5309 = vunpack.c.l.b16 %v4320
        %v5310 = vunpack.c.h.b16 %v4320
        %v5311 = vunpack.c.l.b16 %v4321
        %v5312 = vunpack.c.h.b16 %v4321
        %v5313 = vunpack.c.l.b16 %v4322
        %v5314 = vunpack.c.h.b16 %v4322
        %v5315 = vunpack.c.l.b16 %v4323
        %v5316 = vunpack.c.h.b16 %v4323
        %v5317 = vunpack.c.l.b16 %v4324
        %v5318 = vunpack.c.h.b16 %v4324
        %v5319 = vunpack.c.l.b16 %v4325
        %v5320 = vunpack.c.h.b16 %v4325
        %v5321 = vunpack.c.l.b16 %v4326
        %v5322 = vunpack.c.h.b16 %v4326
        %v5323 = vunpack.c.l.b16 %v4327
        %v5324 = vunpack.c.h.b16 %v4327
        %v5325 = vunpack.c.l.b16 %v4328
        %v5326 = vunpack.c.h.b16 %v4328
        %v5327 = vunpack.c.l.b16 %v4329
        %v5328 = vunpack.c.h.b16 %v4329
        %v5329 = vunpack.c.l.b16 %v4330
        %v5330 = vunpack.c.h.b16 %v4330
        %v5331 = vunpack.c.l.b16 %v4331
        %v5332 = vunpack.c.h.b16 %v4331
        %v5333 = vunpack.c.l.b16 %v4332
        %v5334 = vunpack.c.h.b16 %v4332
        %v5335 = vunpack.c.l.b16 %v4333
        %v5336 = vunpack.c.h.b16 %v4333
        %v5337 = vunpack.c.l.b16 %v4334
        %v5338 = vunpack.c.h.b16 %v4334
        %v5339 = vunpack.c.l.b16 %v4335
        %v5340 = vunpack.c.h.b16 %v4335
        %v5341 = vunpack.c.l.b16 %v4336
        %v5342 = vunpack.c.h.b16 %v4336
        %v5343 = vunpack.c.l.b16 %v4337
        %v5344 = vunpack.c.h.b16 %v4337
        %v5345 = vunpack.c.l.b16 %v4338
        %v5346 = vunpack.c.h.b16 %v4338
        %v5347 = vunpack.c.l.b16 %v4339
        %v5348 = vunpack.c.h.b16 %v4339
        %v5349 = vunpack.c.l.b16 %v4340
        %v5350 = vunpack.c.h.b16 %v4340
        %v5351 = vunpack.c.l.b16 %v4341
        %v5352 = vunpack.c.h.b16 %v4341
        %v5353 = vunpack.c.l.b16 %v4342
        %v5354 = vunpack.c.h.b16 %v4342
        %v5355 = vunpack.c.l.b16 %v4343
        %v5356 = vunpack.c.h.b16 %v4343
        %v5357 = vunpack.c.l.b16 %v4344
        %v5358 = vunpack.c.h.b16 %v4344
        %v5359 = vunpack.c.l.b16 %v4345
        %v5360 = vunpack.c.h.b16 %v4345
        %v5361 = vunpack.c.l.b16 %v4346
        %v5362 = vunpack.c.h.b16 %v4346
        %v5363 = vunpack.c.l.b16 %v4347
        %v5364 = vunpack.c.h.b16 %v4347
        %v5365 = vunpack.c.l.b16 %v4348
        %v5366 = vunpack.c.h.b16 %v4348
        %v5367 = vunpack.c.l.b16 %v4349
        %v5368 = vunpack.c.h.b16 %v4349
        %v5369 = vunpack.c.l.b16 %v4350
        %v5370 = vunpack.c.h.b16 %v4350
        %v5371 = vunpack.c.l.b16 %v4351
        %v5372 = vunpack.c.h.b16 %v4351
        %v5373 = vunpack.c.l.b16 %v4352
        %v5374 = vunpack.c.h.b16 %v4352
        %v5375 = vunpack.c.l.b16 %v4353
        %v5376 = vunpack.c.h.b16 %v4353
        %v5377 = vunpack.c.l.b16 %v4354
        %v5378 = vunpack.c.h.b16 %v4354
        %v5379 = vunpack.c.l.b16 %v4355
        %v5380 = vunpack.c.h.b16 %v4355
        %v5381 = vunpack.c.l.b16 %v4356
        %v5382 = vunpack.c.h.b16 %v4356
        %v5383 = vunpack.c.l.b16 %v4357
        %v5384 = vunpack.c.h.b16 %v4357
        %v5385 = vunpack.c.l.b16 %v4358
        %v5386 = vunpack.c.h.b16 %v4358
        %v5387 = vunpack.c.l.b16 %v4359
        %v5388 = vunpack.c.h.b16 %v4359
        %v5389 = vunpack.c.l.b16 %v4360
        %v5390 = vunpack.c.h.b16 %v4360
        %v5391 = vunpack.c.l.b16 %v4361
        %v5392 = vunpack.c.h.b16 %v4361
        %v5393 = vunpack.c.l.b16 %v4362
        %v5394 = vunpack.c.h.b16 %v4362
        %v5395 = vunpack.c.l.b16 %v4363
        %v5396 = vunpack.c.h.b16 %v4363
        %v5397 = vunpack.c.l.b16 %v4364
        %v5398 = vunpack.c.h.b16 %v4364
        %v5399 = vunpack.c.l.b16 %v4365
        %v5400 = vunpack.c.h.b16 %v4365
        %v5401 = vunpack.c.l.b16 %v4366
        %v5402 = vunpack.c.h.b16 %v4366
        %v5403 = vunpack.c.l.b16 %v4367
        %v5404 = vunpack.c.h.b16 %v4367
        %v5405 = vunpack.c.l.b16 %v4368
        %v5406 = vunpack.c.h.b16 %v4368
        %v5407 = vunpack.c.l.b16 %v4369
        %v5408 = vunpack.c.h.b16 %v4369
        %v5409 = vunpack.c.l.b16 %v4370
        %v5410 = vunpack.c.h.b16 %v4370
        %v5411 = vunpack.c.l.b16 %v4371
        %v5412 = vunpack.c.h.b16 %v4371
        %v5413 = vunpack.c.l.b16 %v4372
        %v5414 = vunpack.c.h.b16 %v4372
        %v5415 = vunpack.c.l.b16 %v4373
        %v5416 = vunpack.c.h.b16 %v4373
        %v5417 = vunpack.c.l.b16 %v4374
        %v5418 = vunpack.c.h.b16 %v4374
        %v5419 = vunpack.c.l.b16 %v4375
        %v5420 = vunpack.c.h.b16 %v4375
        %v5421 = vunpack.c.l.b16 %v4376
        %v5422 = vunpack.c.h.b16 %v4376
        %v5423 = vunpack.c.l.b16 %v4377
        %v5424 = vunpack.c.h.b16 %v4377
        %v5425 = vunpack.c.l.b16 %v4378
        %v5426 = vunpack.c.h.b16 %v4378
        %v5427 = vunpack.c.l.b16 %v4379
        %v5428 = vunpack.c.h.b16 %v4379
        %v5429 = vunpack.c.l.b16 %v4380
        %v5430 = vunpack.c.h.b16 %v4380
        %v5431 = vunpack.c.l.b16 %v4381
        %v5432 = vunpack.c.h.b16 %v4381
        %v5433 = vunpack.c.l.b16 %v4382
        %v5434 = vunpack.c.h.b16 %v4382
        %v5435 = vunpack.c.l.b16 %v4383
        %v5436 = vunpack.c.h.b16 %v4383
        %v5437 = vunpack.c.l.b16 %v4384
        %v5438 = vunpack.c.h.b16 %v4384
        %v5439 = vunpack.c.l.b16 %v4385
        %v5440 = vunpack.c.h.b16 %v4385
        %v5441 = vunpack.c.l.b16 %v4386
        %v5442 = vunpack.c.h.b16 %v4386
        %v5443 = vunpack.c.l.b16 %v4387
        %v5444 = vunpack.c.h.b16 %v4387
        %v5445 = vunpack.c.l.b16 %v4388
        %v5446 = vunpack.c.h.b16 %v4388
        %v5447 = vunpack.c.l.b16 %v4389
        %v5448 = vunpack.c.h.b16 %v4389
        %v5449 = vunpack.c.l.b16 %v4390
        %v5450 = vunpack.c.h.b16 %v4390
        %v5451 = vunpack.c.l.b16 %v4391
        %v5452 = vunpack.c.h.b16 %v4391
        %v5453 = vunpack.c.l.b16 %v4392
        %v5454 = vunpack.c.h.b16 %v4392
        %v5455 = vunpack.c.l.b16 %v4393
        %v5456 = vunpack.c.h.b16 %v4393
        %v5457 = vunpack.c.l.b16 %v4394
        %v5458 = vunpack.c.h.b16 %v4394
        %v5459 = vunpack.c.l.b16 %v4395
        %v5460 = vunpack.c.h.b16 %v4395
        %v5461 = vunpack.c.l.b16 %v4396
        %v5462 = vunpack.c.h.b16 %v4396
        %v5463 = vunpack.c.l.b16 %v4397
        %v5464 = vunpack.c.h.b16 %v4397
        %v5465 = vunpack.c.l.b16 %v4398
        %v5466 = vunpack.c.h.b16 %v4398
        %v5467 = vunpack.c.l.b16 %v4399
        %v5468 = vunpack.c.h.b16 %v4399
        %v5469 = vunpack.c.l.b16 %v4400
        %v5470 = vunpack.c.h.b16 %v4400
        %v5471 = vunpack.c.l.b16 %v4401
        %v5472 = vunpack.c.h.b16 %v4401
        %v5473 = vunpack.c.l.b16 %v4402
        %v5474 = vunpack.c.h.b16 %v4402
        %v5475 = vunpack.c.l.b16 %v4403
        %v5476 = vunpack.c.h.b16 %v4403
        %v5477 = vunpack.c.l.b16 %v4404
        %v5478 = vunpack.c.h.b16 %v4404
        %v5479 = vunpack.c.l.b16 %v4405
        %v5480 = vunpack.c.h.b16 %v4405
        %v5481 = vunpack.c.l.b16 %v4406
        %v5482 = vunpack.c.h.b16 %v4406
        %v5483 = vunpack.c.l.b16 %v4407
        %v5484 = vunpack.c.h.b16 %v4407
        %v5485 = vunpack.c.l.b16 %v4408
        %v5486 = vunpack.c.h.b16 %v4408
        %v5487 = vunpack.c.l.b16 %v4409
        %v5488 = vunpack.c.h.b16 %v4409
        %v5489 = vunpack.c.l.b16 %v4410
        %v5490 = vunpack.c.h.b16 %v4410
        %v5491 = vunpack.c.l.b16 %v4411
        %v5492 = vunpack.c.h.b16 %v4411
        %v5493 = vunpack.c.l.b16 %v4412
        %v5494 = vunpack.c.h.b16 %v4412
        %v5495 = vunpack.c.l.b16 %v4413
        %v5496 = vunpack.c.h.b16 %v4413
        %v5497 = vunpack.c.l.b16 %v4414
        %v5498 = vunpack.c.h.b16 %v4414
        %v5499 = vunpack.c.l.b16 %v4415
        %v5500 = vunpack.c.h.b16 %v4415
        %v5501 = vunpack.c.l.b16 %v4416
        %v5502 = vunpack.c.h.b16 %v4416
        %v5503 = vunpack.c.l.b16 %v4417
        %v5504 = vunpack.c.h.b16 %v4417
        %v5505 = vunpack.c.l.b16 %v4418
        %v5506 = vunpack.c.h.b16 %v4418
        %v5507 = vunpack.c.l.b16 %v4419
        %v5508 = vunpack.c.h.b16 %v4419
        %v5509 = vunpack.c.l.b16 %v4420
        %v5510 = vunpack.c.h.b16 %v4420
        %v5511 = vunpack.c.l.b16 %v4421
        %v5512 = vunpack.c.h.b16 %v4421
        %v5513 = vunpack.c.l.b16 %v4422
        %v5514 = vunpack.c.h.b16 %v4422
        %v5515 = vunpack.c.l.b16 %v4423
        %v5516 = vunpack.c.h.b16 %v4423
        %v5517 = vunpack.c.l.b16 %v4424
        %v5518 = vunpack.c.h.b16 %v4424
        %v5519 = vunpack.c.l.b16 %v4425
        %v5520 = vunpack.c.h.b16 %v4425
        %v5521 = vunpack.c.l.b16 %v4426
        %v5522 = vunpack.c.h.b16 %v4426
        %v5523 = vunpack.c.l.b16 %v4427
        %v5524 = vunpack.c.h.b16 %v4427
        %v5525 = vunpack.c.l.b16 %v4428
        %v5526 = vunpack.c.h.b16 %v4428
        %v5527 = vunpack.c.l.b16 %v4429
        %v5528 = vunpack.c.h.b16 %v4429
        %v5529 = vunpack.c.l.b16 %v4430
        %v5530 = vunpack.c.h.b16 %v4430
        %v5531 = vunpack.c.l.b16 %v4431
        %v5532 = vunpack.c.h.b16 %v4431
        %v5533 = vunpack.c.l.b16 %v4432
        %v5534 = vunpack.c.h.b16 %v4432
        %v5535 = vunpack.c.l.b16 %v4433
        %v5536 = vunpack.c.h.b16 %v4433
        %v5537 = vunpack.c.l.b16 %v4434
        %v5538 = vunpack.c.h.b16 %v4434
        %v5539 = vunpack.c.l.b16 %v4435
        %v5540 = vunpack.c.h.b16 %v4435
        %v5541 = vunpack.c.l.b16 %v4436
        %v5542 = vunpack.c.h.b16 %v4436
        %v5543 = vunpack.c.l.b16 %v4437
        %v5544 = vunpack.c.h.b16 %v4437
        %v5545 = vunpack.c.l.b16 %v4438
        %v5546 = vunpack.c.h.b16 %v4438
        %v5547 = vunpack.c.l.b16 %v4439
        %v5548 = vunpack.c.h.b16 %v4439
        %v5549 = vunpack.c.l.b16 %v4440
        %v5550 = vunpack.c.h.b16 %v4440
        %v5551 = vunpack.c.l.b16 %v4441
        %v5552 = vunpack.c.h.b16 %v4441
        %v5553 = vunpack.c.l.b16 %v4442
        %v5554 = vunpack.c.h.b16 %v4442
        %v5555 = vunpack.c.l.b16 %v4443
        %v5556 = vunpack.c.h.b16 %v4443
        %v5557 = vunpack.c.l.b16 %v4444
        %v5558 = vunpack.c.h.b16 %v4444
        %v5559 = vunpack.c.l.b16 %v4445
        %v5560 = vunpack.c.h.b16 %v4445
        %v5561 = vunpack.c.l.b16 %v4446
        %v5562 = vunpack.c.h.b16 %v4446
        %v5563 = vunpack.c.l.b16 %v4447
        %v5564 = vunpack.c.h.b16 %v4447
        %v5565 = vunpack.c.l.b16 %v4448
        %v5566 = vunpack.c.h.b16 %v4448
        %v5567 = vunpack.c.l.b16 %v4449
        %v5568 = vunpack.c.h.b16 %v4449
        %v5569 = vunpack.c.l.b16 %v4450
        %v5570 = vunpack.c.h.b16 %v4450
        %v5571 = vunpack.c.l.b16 %v4451
        %v5572 = vunpack.c.h.b16 %v4451
        %v5573 = vunpack.c.l.b16 %v4452
        %v5574 = vunpack.c.h.b16 %v4452
        %v5575 = vunpack.c.l.b16 %v4453
        %v5576 = vunpack.c.h.b16 %v4453
        %v5577 = vunpack.c.l.b16 %v4454
        %v5578 = vunpack.c.h.b16 %v4454
        %v5579 = vunpack.c.l.b16 %v4455
        %v5580 = vunpack.c.h.b16 %v4455
        %v5581 = vunpack.c.l.b16 %v4456
        %v5582 = vunpack.c.h.b16 %v4456
        %v5583 = vunpack.c.l.b16 %v4457
        %v5584 = vunpack.c.h.b16 %v4457
        %v5585 = vunpack.c.l.b16 %v4458
        %v5586 = vunpack.c.h.b16 %v4458
        %v5587 = vunpack.c.l.b16 %v4459
        %v5588 = vunpack.c.h.b16 %v4459
        %v5589 = vunpack.c.l.b16 %v4460
        %v5590 = vunpack.c.h.b16 %v4460
        %v5591 = vunpack.c.l.b16 %v4461
        %v5592 = vunpack.c.h.b16 %v4461
        %v5593 = vunpack.c.l.b16 %v4462
        %v5594 = vunpack.c.h.b16 %v4462
        %v5595 = vunpack.c.l.b16 %v4463
        %v5596 = vunpack.c.h.b16 %v4463
        %v5597 = vunpack.c.l.b16 %v4464
        %v5598 = vunpack.c.h.b16 %v4464
        %v5599 = vunpack.c.l.b16 %v4465
        %v5600 = vunpack.c.h.b16 %v4465
        %v5601 = vunpack.c.l.b16 %v4466
        %v5602 = vunpack.c.h.b16 %v4466
        %v5603 = vunpack.c.l.b16 %v4467
        %v5604 = vunpack.c.h.b16 %v4467
        %v5605 = vunpack.c.l.b16 %v4468
        %v5606 = vunpack.c.h.b16 %v4468
        %v5607 = vunpack.c.l.b16 %v4469
        %v5608 = vunpack.c.h.b16 %v4469
        %v5609 = vunpack.c.l.b16 %v4470
        %v5610 = vunpack.c.h.b16 %v4470
        %v5611 = vunpack.c.l.b16 %v4471
        %v5612 = vunpack.c.h.b16 %v4471
        %v5613 = vunpack.c.l.b16 %v4472
        %v5614 = vunpack.c.h.b16 %v4472
        %v5615 = vunpack.c.l.b16 %v4473
        %v5616 = vunpack.c.h.b16 %v4473
        %v5617 = vunpack.c.l.b16 %v4474
        %v5618 = vunpack.c.h.b16 %v4474
        %v5619 = vunpack.c.l.b16 %v4475
        %v5620 = vunpack.c.h.b16 %v4475
        %v5621 = vunpack.c.l.b16 %v4476
        %v5622 = vunpack.c.h.b16 %v4476
        %v5623 = vunpack.c.l.b16 %v4477
        %v5624 = vunpack.c.h.b16 %v4477
        %v5625 = vunpack.c.l.b16 %v4478
        %v5626 = vunpack.c.h.b16 %v4478
        %v5627 = vunpack.c.l.b16 %v4479
        %v5628 = vunpack.c.h.b16 %v4479
        %v5629 = vunpack.c.l.b16 %v4480
        %v5630 = vunpack.c.h.b16 %v4480
        %v5631 = vunpack.c.l.b16 %v4481
        %v5632 = vunpack.c.h.b16 %v4481
        %v5633 = vunpack.c.l.b16 %v4482
        %v5634 = vunpack.c.h.b16 %v4482
        %v5635 = vunpack.c.l.b16 %v4483
        %v5636 = vunpack.c.h.b16 %v4483
        %v5637 = vunpack.c.l.b16 %v4484
        %v5638 = vunpack.c.h.b16 %v4484
        %v5639 = vunpack.c.l.b16 %v4485
        %v5640 = vunpack.c.h.b16 %v4485
        %v5641 = vunpack.c.l.b16 %v4486
        %v5642 = vunpack.c.h.b16 %v4486
        %v5643 = vunpack.c.l.b16 %v4487
        %v5644 = vunpack.c.h.b16 %v4487
        %v5645 = vunpack.c.l.b16 %v4488
        %v5646 = vunpack.c.h.b16 %v4488
        %v5647 = vunpack.c.l.b16 %v4489
        %v5648 = vunpack.c.h.b16 %v4489
        %v5649 = vunpack.c.l.b16 %v4490
        %v5650 = vunpack.c.h.b16 %v4490
        %v5651 = vunpack.c.l.b16 %v4491
        %v5652 = vunpack.c.h.b16 %v4491
        %v5653 = vunpack.c.l.b16 %v4492
        %v5654 = vunpack.c.h.b16 %v4492
        %v5655 = vunpack.c.l.b16 %v4493
        %v5656 = vunpack.c.h.b16 %v4493
        %v5657 = vunpack.c.l.b16 %v4494
        %v5658 = vunpack.c.h.b16 %v4494
        %v5659 = vunpack.c.l.b16 %v4495
        %v5660 = vunpack.c.h.b16 %v4495
        %v5661 = vunpack.c.l.b16 %v4496
        %v5662 = vunpack.c.h.b16 %v4496
        %v5663 = vunpack.c.l.b16 %v4497
        %v5664 = vunpack.c.h.b16 %v4497
        %v5665 = vunpack.c.l.b16 %v4498
        %v5666 = vunpack.c.h.b16 %v4498
        %v5667 = vunpack.c.l.b16 %v4499
        %v5668 = vunpack.c.h.b16 %v4499
        %v5669 = vunpack.c.l.b16 %v4500
        %v5670 = vunpack.c.h.b16 %v4500
        %v5671 = vunpack.c.l.b16 %v4501
        %v5672 = vunpack.c.h.b16 %v4501
        %v5673 = vunpack.c.l.b16 %v4502
        %v5674 = vunpack.c.h.b16 %v4502
        %v5675 = vunpack.c.l.b16 %v4503
        %v5676 = vunpack.c.h.b16 %v4503
        %v5677 = vunpack.c.l.b16 %v4504
        %v5678 = vunpack.c.h.b16 %v4504
        %v5679 = vunpack.c.l.b16 %v4505
        %v5680 = vunpack.c.h.b16 %v4505
        %v5681 = vunpack.c.l.b16 %v4506
        %v5682 = vunpack.c.h.b16 %v4506
        %v5683 = vunpack.c.l.b16 %v4507
        %v5684 = vunpack.c.h.b16 %v4507
        %v5685 = vpack.c.b16 %v4903, %v4901
        %v5686 = vpack.c.b16 %v4904, %v4902
        %v5687 = vpack.c.b16 %v4907, %v4905
        %v5688 = vpack.c.b16 %v4908, %v4906
        %v5689 = vpack.c.b16 %v4911, %v4909
        %v5690 = vpack.c.b16 %v4912, %v4910
        %v5691 = vpack.c.b16 %v4915, %v4913
        %v5692 = vpack.c.b16 %v4916, %v4914
        %v5693 = vpack.c.b16 %v4919, %v4917
        %v5694 = vpack.c.b16 %v4920, %v4918
        %v5695 = vpack.c.b16 %v4923, %v4921
        %v5696 = vpack.c.b16 %v4924, %v4922
        %v5697 = vpack.c.b16 %v4927, %v4925
        %v5698 = vpack.c.b16 %v4928, %v4926
        %v5699 = vpack.c.b16 %v4931, %v4929
        %v5700 = vpack.c.b16 %v4932, %v4930
        %v5701 = vpack.c.b16 %v4935, %v4933
        %v5702 = vpack.c.b16 %v4936, %v4934
        %v5703 = vpack.c.b16 %v4939, %v4937
        %v5704 = vpack.c.b16 %v4940, %v4938
        %v5705 = vpack.c.b16 %v4943, %v4941
        %v5706 = vpack.c.b16 %v4944, %v4942
        %v5707 = vpack.c.b16 %v4947, %v4945
        %v5708 = vpack.c.b16 %v4948, %v4946
        %v5709 = vpack.c.b16 %v4951, %v4949
        %v5710 = vpack.c.b16 %v4952, %v4950
        %v5711 = vpack.c.b16 %v4955, %v4953
        %v5712 = vpack.c.b16 %v4956, %v4954
        %v5713 = vpack.c.b16 %v4959, %v4957
        %v5714 = vpack.c.b16 %v4960, %v4958
        %v5715 = vpack.c.b16 %v4963, %v4961
        %v5716 = vpack.c.b16 %v4964, %v4962
        %v5717 = vpack.c.b16 %v4967, %v4965
        %v5718 = vpack.c.b16 %v4968, %v4966
        %v5719 = vpack.c.b16 %v4971, %v4969
        %v5720 = vpack.c.b16 %v4972, %v4970
        %v5721 = vpack.c.b16 %v4975, %v4973
        %v5722 = vpack.c.b16 %v4976, %v4974
        %v5723 = vpack.c.b16 %v4979, %v4977
        %v5724 = vpack.c.b16 %v4980, %v4978
        %v5725 = vpack.c.b16 %v4983, %v4981
        %v5726 = vpack.c.b16 %v4984, %v4982
        %v5727 = vpack.c.b16 %v4987, %v4985
        %v5728 = vpack.c.b16 %v4988, %v4986
        %v5729 = vpack.c.b16 %v4991, %v4989
        %v5730 = vpack.c.b16 %v4992, %v4990
        %v5731 = vpack.c.b16 %v4995, %v4993
        %v5732 = vpack.c.b16 %v4996, %v4994
        %v5733 = vpack.c.b16 %v4999, %v4997
        %v5734 = vpack.c.b16 %v5000, %v4998
        %v5735 = vpack.c.b16 %v5003, %v5001
        %v5736 = vpack.c.b16 %v5004, %v5002
        %v5737 = vpack.c.b16 %v5007, %v5005
        %v5738 = vpack.c.b16 %v5008, %v5006
        %v5739 = vpack.c.b16 %v5011, %v5009
        %v5740 = vpack.c.b16 %v5012, %v5010
        %v5741 = vpack.c.b16 %v5015, %v5013
        %v5742 = vpack.c.b16 %v5016, %v5014
        %v5743 = vpack.c.b16 %v5019, %v5017
        %v5744 = vpack.c.b16 %v5020, %v5018
        %v5745 = vpack.c.b16 %v5023, %v5021
        %v5746 = vpack.c.b16 %v5024, %v5022
        %v5747 = vpack.c.b16 %v5027, %v5025
        %v5748 = vpack.c.b16 %v5028, %v5026
        %v5749 = vpack.c.b16 %v5031, %v5029
        %v5750 = vpack.c.b16 %v5032, %v5030
        %v5751 = vpack.c.b16 %v5035, %v5033
        %v5752 = vpack.c.b16 %v5036, %v5034
        %v5753 = vpack.c.b16 %v5039, %v5037
        %v5754 = vpack.c.b16 %v5040, %v5038
        %v5755 = vpack.c.b16 %v5043, %v5041
        %v5756 = vpack.c.b16 %v5044, %v5042
        %v5757 = vpack.c.b16 %v5047, %v5045
        %v5758 = vpack.c.b16 %v5048, %v5046
        %v5759 = vpack.c.b16 %v5051, %v5049
        %v5760 = vpack.c.b16 %v5052, %v5050
        %v5761 = vpack.c.b16 %v5055, %v5053
        %v5762 = vpack.c.b16 %v5056, %v5054
        %v5763 = vpack.c.b16 %v5059, %v5057
        %v5764 = vpack.c.b16 %v5060, %v5058
        %v5765 = vpack.c.b16 %v5063, %v5061
        %v5766 = vpack.c.b16 %v5064, %v5062
        %v5767 = vpack.c.b16 %v5067, %v5065
        %v5768 = vpack.c.b16 %v5068, %v5066
        %v5769 = vpack.c.b16 %v5071, %v5069
        %v5770 = vpack.c.b16 %v5072, %v5070
        %v5771 = vpack.c.b16 %v5075, %v5073
        %v5772 = vpack.c.b16 %v5076, %v5074
        %v5773 = vpack.c.b16 %v5079, %v5077
        %v5774 = vpack.c.b16 %v5080, %v5078
        %v5775 = vpack.c.b16 %v5083, %v5081
        %v5776 = vpack.c.b16 %v5084, %v5082
        %v5777 = vpack.c.b16 %v5087, %v5085
        %v5778 = vpack.c.b16 %v5088, %v5086
        %v5779 = vpack.c.b16 %v5091, %v5089
        %v5780 = vpack.c.b16 %v5092, %v5090
        %v5781 = vpack.c.b16 %v5095, %v5093
        %v5782 = vpack.c.b16 %v5096, %v5094
        %v5783 = vpack.c.b16 %v5099, %v5097
        %v5784 = vpack.c.b16 %v5100, %v5098
        %v5785 = vpack.c.b16 %v5103, %v5101
        %v5786 = vpack.c.b16 %v5104, %v5102
        %v5787 = vpack.c.b16 %v5107, %v5105
        %v5788 = vpack.c.b16 %v5108, %v5106
        %v5789 = vpack.c.b16 %v5111, %v5109
        %v5790 = vpack.c.b16 %v5112, %v5110
        %v5791 = vpack.c.b16 %v5115, %v5113
        %v5792 = vpack.c.b16 %v5116, %v5114
        %v5793 = vpack.c.b16 %v5119, %v5117
        %v5794 = vpack.c.b16 %v5120, %v5118
        %v5795 = vpack.c.b16 %v5123, %v5121
        %v5796 = vpack.c.b16 %v5124, %v5122
        %v5797 = vpack.c.b16 %v5127, %v5125
        %v5798 = vpack.c.b16 %v5128, %v5126
        %v5799 = vpack.c.b16 %v5131, %v5129
        %v5800 = vpack.c.b16 %v5132, %v5130
        %v5801 = vpack.c.b16 %v5135, %v5133
        %v5802 = vpack.c.b16 %v5136, %v5134
        %v5803 = vpack.c.b16 %v5139, %v5137
        %v5804 = vpack.c.b16 %v5140, %v5138
        %v5805 = vpack.c.b16 %v5143, %v5141
        %v5806 = vpack.c.b16 %v5144, %v5142
        %v5807 = vpack.c.b16 %v5147, %v5145
        %v5808 = vpack.c.b16 %v5148, %v5146
        %v5809 = vpack.c.b16 %v5151, %v5149
        %v5810 = vpack.c.b16 %v5152, %v5150
        %v5811 = vpack.c.b16 %v5155, %v5153
        %v5812 = vpack.c.b16 %v5156, %v5154
        %v5813 = vpack.c.b16 %v5159, %v5157
        %v5814 = vpack.c.b16 %v5160, %v5158
        %v5815 = vpack.c.b16 %v5163, %v5161
        %v5816 = vpack.c.b16 %v5164, %v5162
        %v5817 = vpack.c.b16 %v5167, %v5165
        %v5818 = vpack.c.b16 %v5168, %v5166
        %v5819 = vpack.c.b16 %v5171, %v5169
        %v5820 = vpack.c.b16 %v5172, %v5170
        %v5821 = vpack.c.b16 %v5175, %v5173
        %v5822 = vpack.c.b16 %v5176, %v5174
        %v5823 = vpack.c.b16 %v5179, %v5177
        %v5824 = vpack.c.b16 %v5180, %v5178
        %v5825 = vpack.c.b16 %v5183, %v5181
        %v5826 = vpack.c.b16 %v5184, %v5182
        %v5827 = vpack.c.b16 %v5187, %v5185
        %v5828 = vpack.c.b16 %v5188, %v5186
        %v5829 = vpack.c.b16 %v5191, %v5189
        %v5830 = vpack.c.b16 %v5192, %v5190
        %v5831 = vpack.c.b16 %v5195, %v5193
        %v5832 = vpack.c.b16 %v5196, %v5194
        %v5833 = vpack.c.b16 %v5199, %v5197
        %v5834 = vpack.c.b16 %v5200, %v5198
        %v5835 = vpack.c.b16 %v5203, %v5201
        %v5836 = vpack.c.b16 %v5204, %v5202
        %v5837 = vpack.c.b16 %v5207, %v5205
        %v5838 = vpack.c.b16 %v5208, %v5206
        %v5839 = vpack.c.b16 %v5211, %v5209
        %v5840 = vpack.c.b16 %v5212, %v5210
        %v5841 = vpack.c.b16 %v5215, %v5213
        %v5842 = vpack.c.b16 %v5216, %v5214
        %v5843 = vpack.c.b16 %v5219, %v5217
        %v5844 = vpack.c.b16 %v5220, %v5218
        %v5845 = vpack.c.b16 %v5223, %v5221
        %v5846 = vpack.c.b16 %v5224, %v5222
        %v5847 = vpack.c.b16 %v5227, %v5225
        %v5848 = vpack.c.b16 %v5228, %v5226
        %v5849 = vpack.c.b16 %v5231, %v5229
        %v5850 = vpack.c.b16 %v5232, %v5230
        %v5851 = vpack.c.b16 %v5235, %v5233
        %v5852 = vpack.c.b16 %v5236, %v5234
        %v5853 = vpack.c.b16 %v5239, %v5237
        %v5854 = vpack.c.b16 %v5240, %v5238
        %v5855 = vpack.c.b16 %v5243, %v5241
        %v5856 = vpack.c.b16 %v5244, %v5242
        %v5857 = vpack.c.b16 %v5247, %v5245
        %v5858 = vpack.c.b16 %v5248, %v5246
        %v5859 = vpack.c.b16 %v5251, %v5249
        %v5860 = vpack.c.b16 %v5252, %v5250
        %v5861 = vpack.c.b16 %v5255, %v5253
        %v5862 = vpack.c.b16 %v5256, %v5254
        %v5863 = vpack.c.b16 %v5259, %v5257
        %v5864 = vpack.c.b16 %v5260, %v5258
        %v5865 = vpack.c.b16 %v5263, %v5261
        %v5866 = vpack.c.b16 %v5264, %v5262
        %v5867 = vpack.c.b16 %v5267, %v5265
        %v5868 = vpack.c.b16 %v5268, %v5266
        %v5869 = vpack.c.b16 %v5271, %v5269
        %v5870 = vpack.c.b16 %v5272, %v5270
        %v5871 = vpack.c.b16 %v5275, %v5273
        %v5872 = vpack.c.b16 %v5276, %v5274
        %v5873 = vpack.c.b16 %v5279, %v5277
        %v5874 = vpack.c.b16 %v5280, %v5278
        %v5875 = vpack.c.b16 %v5283, %v5281
        %v5876 = vpack.c.b16 %v5284, %v5282
        %v5877 = vpack.c.b16 %v5287, %v5285
        %v5878 = vpack.c.b16 %v5288, %v5286
        %v5879 = vpack.c.b16 %v5291, %v5289
        %v5880 = vpack.c.b16 %v5292, %v5290
        %v5881 = vpack.c.b16 %v5295, %v5293
        %v5882 = vpack.c.b16 %v5296, %v5294
        %v5883 = vpack.c.b16 %v5299, %v5297
        %v5884 = vpack.c.b16 %v5300, %v5298
        %v5885 = vpack.c.b16 %v5303, %v5301
        %v5886 = vpack.c.b16 %v5304, %v5302
        %v5887 = vpack.c.b16 %v5307, %v5305
        %v5888 = vpack.c.b16 %v5308, %v5306
        %v5889 = vpack.c.b16 %v5311, %v5309
        %v5890 = vpack.c.b16 %v5312, %v5310
        %v5891 = vpack.c.b16 %v5315, %v5313
        %v5892 = vpack.c.b16 %v5316, %v5314
        %v5893 = vpack.c.b16 %v5319, %v5317
        %v5894 = vpack.c.b16 %v5320, %v5318
        %v5895 = vpack.c.b16 %v5323, %v5321
        %v5896 = vpack.c.b16 %v5324, %v5322
        %v5897 = vpack.c.b16 %v5327, %v5325
        %v5898 = vpack.c.b16 %v5328, %v5326
        %v5899 = vpack.c.b16 %v5331, %v5329
        %v5900 = vpack.c.b16 %v5332, %v5330
        %v5901 = vpack.c.b16 %v5335, %v5333
        %v5902 = vpack.c.b16 %v5336, %v5334
        %v5903 = vpack.c.b16 %v5339, %v5337
        %v5904 = vpack.c.b16 %v5340, %v5338
        %v5905 = vpack.c.b16 %v5343, %v5341
        %v5906 = vpack.c.b16 %v5344, %v5342
        %v5907 = vpack.c.b16 %v5347, %v5345
        %v5908 = vpack.c.b16 %v5348, %v5346
        %v5909 = vpack.c.b16 %v5351, %v5349
        %v5910 = vpack.c.b16 %v5352, %v5350
        %v5911 = vpack.c.b16 %v5355, %v5353
        %v5912 = vpack.c.b16 %v5356, %v5354
        %v5913 = vpack.c.b16 %v5359, %v5357
        %v5914 = vpack.c.b16 %v5360, %v5358
        %v5915 = vpack.c.b16 %v5363, %v5361
        %v5916 = vpack.c.b16 %v5364, %v5362
        %v5917 = vpack.c.b16 %v5367, %v5365
        %v5918 = vpack.c.b16 %v5368, %v5366
        %v5919 = vpack.c.b16 %v5371, %v5369
        %v5920 = vpack.c.b16 %v5372, %v5370
        %v5921 = vpack.c.b16 %v5375, %v5373
        %v5922 = vpack.c.b16 %v5376, %v5374
        %v5923 = vpack.c.b16 %v5379, %v5377
        %v5924 = vpack.c.b16 %v5380, %v5378
        %v5925 = vpack.c.b16 %v5383, %v5381
        %v5926 = vpack.c.b16 %v5384, %v5382
        %v5927 = vpack.c.b16 %v5387, %v5385
        %v5928 = vpack.c.b16 %v5388, %v5386
        %v5929 = vpack.c.b16 %v5391, %v5389
        %v5930 = vpack.c.b16 %v5392, %v5390
        %v5931 = vpack.c.b16 %v5395, %v5393
        %v5932 = vpack.c.b16 %v5396, %v5394
        %v5933 = vpack.c.b16 %v5399, %v5397
        %v5934 = vpack.c.b16 %v5400, %v5398
        %v5935 = vpack.c.b16 %v5403, %v5401
        %v5936 = vpack.c.b16 %v5404, %v5402
        %v5937 = vpack.c.b16 %v5407, %v5405
        %v5938 = vpack.c.b16 %v5408, %v5406
        %v5939 = vpack.c.b16 %v5411, %v5409
        %v5940 = vpack.c.b16 %v5412, %v5410
        %v5941 = vpack.c.b16 %v5415, %v5413
        %v5942 = vpack.c.b16 %v5416, %v5414
        %v5943 = vpack.c.b16 %v5419, %v5417
        %v5944 = vpack.c.b16 %v5420, %v5418
        %v5945 = vpack.c.b16 %v5423, %v5421
        %v5946 = vpack.c.b16 %v5424, %v5422
        %v5947 = vpack.c.b16 %v5427, %v5425
        %v5948 = vpack.c.b16 %v5428, %v5426
        %v5949 = vpack.c.b16 %v5431, %v5429
        %v5950 = vpack.c.b16 %v5432, %v5430
        %v5951 = vpack.c.b16 %v5435, %v5433
        %v5952 = vpack.c.b16 %v5436, %v5434
        %v5953 = vpack.c.b16 %v5439, %v5437
        %v5954 = vpack.c.b16 %v5440, %v5438
        %v5955 = vpack.c.b16 %v5443, %v5441
        %v5956 = vpack.c.b16 %v5444, %v5442
        %v5957 = vpack.c.b16 %v5447, %v5445
        %v5958 = vpack.c.b16 %v5448, %v5446
        %v5959 = vpack.c.b16 %v5451, %v5449
        %v5960 = vpack.c.b16 %v5452, %v5450
        %v5961 = vpack.c.b16 %v5455, %v5453
        %v5962 = vpack.c.b16 %v5456, %v5454
        %v5963 = vpack.c.b16 %v5459, %v5457
        %v5964 = vpack.c.b16 %v5460, %v5458
        %v5965 = vpack.c.b16 %v5463, %v5461
        %v5966 = vpack.c.b16 %v5464, %v5462
        %v5967 = vpack.c.b16 %v5467, %v5465
        %v5968 = vpack.c.b16 %v5468, %v5466
        %v5969 = vpack.c.b16 %v5471, %v5469
        %v5970 = vpack.c.b16 %v5472, %v5470
        %v5971 = vpack.c.b16 %v5475, %v5473
        %v5972 = vpack.c.b16 %v5476, %v5474
        %v5973 = vpack.c.b16 %v5479, %v5477
        %v5974 = vpack.c.b16 %v5480, %v5478
        %v5975 = vpack.c.b16 %v5483, %v5481
        %v5976 = vpack.c.b16 %v5484, %v5482
        %v5977 = vpack.c.b16 %v5487, %v5485
        %v5978 = vpack.c.b16 %v5488, %v5486
        %v5979 = vpack.c.b16 %v5491, %v5489
        %v5980 = vpack.c.b16 %v5492, %v5490
        %v5981 = vpack.c.b16 %v5495, %v5493
        %v5982 = vpack.c.b16 %v5496, %v5494
        %v5983 = vpack.c.b16 %v5499, %v5497
        %v5984 = vpack.c.b16 %v5500, %v5498
        %v5985 = vpack.c.b16 %v5503, %v5501
        %v5986 = vpack.c.b16 %v5504, %v5502
        %v5987 = vpack.c.b16 %v5507, %v5505
        %v5988 = vpack.c.b16 %v5508, %v5506
        %v5989 = vpack.c.b16 %v5511, %v5509
        %v5990 = vpack.c.b16 %v5512, %v5510
        %v5991 = vpack.c.b16 %v5515, %v5513
        %v5992 = vpack.c.b16 %v5516, %v5514
        %v5993 = vpack.c.b16 %v5519, %v5517
        %v5994 = vpack.c.b16 %v5520, %v5518
        %v5995 = vpack.c.b16 %v5523, %v5521
        %v5996 = vpack.c.b16 %v5524, %v5522
        %v5997 = vpack.c.b16 %v5527, %v5525
        %v5998 = vpack.c.b16 %v5528, %v5526
        %v5999 = vpack.c.b16 %v5531, %v5529
        %v6000 = vpack.c.b16 %v5532, %v5530
        %v6001 = vpack.c.b16 %v5535, %v5533
        %v6002 = vpack.c.b16 %v5536, %v5534
        %v6003 = vpack.c.b16 %v5539, %v5537
        %v6004 = vpack.c.b16 %v5540, %v5538
        %v6005 = vpack.c.b16 %v5543, %v5541
        %v6006 = vpack.c.b16 %v5544, %v5542
        %v6007 = vpack.c.b16 %v5547, %v5545
        %v6008 = vpack.c.b16 %v5548, %v5546
        %v6009 = vpack.c.b16 %v5551, %v5549
        %v6010 = vpack.c.b16 %v5552, %v5550
        %v6011 = vpack.c.b16 %v5555, %v5553
        %v6012 = vpack.c.b16 %v5556, %v5554
        %v6013 = vpack.c.b16 %v5559, %v5557
        %v6014 = vpack.c.b16 %v5560, %v5558
        %v6015 = vpack.c.b16 %v5563, %v5561
        %v6016 = vpack.c.b16 %v5564, %v5562
        %v6017 = vpack.c.b16 %v5567, %v5565
        %v6018 = vpack.c.b16 %v5568, %v5566
        %v6019 = vpack.c.b16 %v5571, %v5569
        %v6020 = vpack.c.b16 %v5572, %v5570
        %v6021 = vpack.c.b16 %v5575, %v5573
        %v6022 = vpack.c.b16 %v5576, %v5574
        %v6023 = vpack.c.b16 %v5579, %v5577
        %v6024 = vpack.c.b16 %v5580, %v5578
        %v6025 = vpack.c.b16 %v5583, %v5581
        %v6026 = vpack.c.b16 %v5584, %v5582
        %v6027 = vpack.c.b16 %v5587, %v5585
        %v6028 = vpack.c.b16 %v5588, %v5586
        %v6029 = vpack.c.b16 %v5591, %v5589
        %v6030 = vpack.c.b16 %v5592, %v5590
        %v6031 = vpack.c.b16 %v5595, %v5593
        %v6032 = vpack.c.b16 %v5596, %v5594
        %v6033 = vpack.c.b16 %v5599, %v5597
        %v6034 = vpack.c.b16 %v5600, %v5598
        %v6035 = vpack.c.b16 %v5603, %v5601
        %v6036 = vpack.c.b16 %v5604, %v5602
        %v6037 = vpack.c.b16 %v5607, %v5605
        %v6038 = vpack.c.b16 %v5608, %v5606
        %v6039 = vpack.c.b16 %v5611, %v5609
        %v6040 = vpack.c.b16 %v5612, %v5610
        %v6041 = vpack.c.b16 %v5615, %v5613
        %v6042 = vpack.c.b16 %v5616, %v5614
        %v6043 = vpack.c.b16 %v5619, %v5617
        %v6044 = vpack.c.b16 %v5620, %v5618
        %v6045 = vpack.c.b16 %v5623, %v5621
        %v6046 = vpack.c.b16 %v5624, %v5622
        %v6047 = vpack.c.b16 %v5627, %v5625
        %v6048 = vpack.c.b16 %v5628, %v5626
        %v6049 = vpack.c.b16 %v5631, %v5629
        %v6050 = vpack.c.b16 %v5632, %v5630
        %v6051 = vpack.c.b16 %v5635, %v5633
        %v6052 = vpack.c.b16 %v5636, %v5634
        %v6053 = vpack.c.b16 %v5639, %v5637
        %v6054 = vpack.c.b16 %v5640, %v5638
        %v6055 = vpack.c.b16 %v5643, %v5641
        %v6056 = vpack.c.b16 %v5644, %v5642
        %v6057 = vpack.c.b16 %v5647, %v5645
        %v6058 = vpack.c.b16 %v5648, %v5646
        %v6059 = vpack.c.b16 %v5651, %v5649
        %v6060 = vpack.c.b16 %v5652, %v5650
        %v6061 = vpack.c.b16 %v5655, %v5653
        %v6062 = vpack.c.b16 %v5656, %v5654
        %v6063 = vpack.c.b16 %v5659, %v5657
        %v6064 = vpack.c.b16 %v5660, %v5658
        %v6065 = vpack.c.b16 %v5663, %v5661
        %v6066 = vpack.c.b16 %v5664, %v5662
        %v6067 = vpack.c.b16 %v5667, %v5665
        %v6068 = vpack.c.b16 %v5668, %v5666
        %v6069 = vpack.c.b16 %v5671, %v5669
        %v6070 = vpack.c.b16 %v5672, %v5670
        %v6071 = vpack.c.b16 %v5675, %v5673
        %v6072 = vpack.c.b16 %v5676, %v5674
        %v6073 = vpack.c.b16 %v5679, %v5677
        %v6074 = vpack.c.b16 %v5680, %v5678
        %v6075 = vpack.c.b16 %v5683, %v5681
        %v6076 = vpack.c.b16 %v5684, %v5682
        %v6470 = vperm.slane %v4508, 0
        %v6471 = vperm.slane %v4508, 1
        %v6475 = vsel %vm3835, %v4115, 0
        %6477 = vmatpush.bf16.msra.mxu0 %v5699
        %6478 = vmatpush.bf16.msra.mxu0 %v5697
        %6479 = vmatpush.bf16.msra.mxu0 %v5695
        %6480 = vmatpush.bf16.msra.mxu0 %v5693
        %6481 = vmatpush.bf16.msra.mxu0 %v5691
        %6482 = vmatpush.bf16.msra.mxu0 %v5689
        %6483 = vmatpush.bf16.msra.mxu0 %v5687
        %6484 = vmatpush.bf16.msra.mxu0 %v5685
        %6485 = vmatmul.bf16.gmra.mxu0 %v4091
        %v6486 = vpop.f32.mrf.mxu0
        %v6487 = vadd.f32 %v6470, %v6486
        %v6488 = vpop.f32.mrf.mxu0
        %6489 = vdwg.mxu0
        %6490 = vmatpush.bf16.msra.mxu0 %v5715
        %6491 = vmatpush.bf16.msra.mxu0 %v5713
        %6492 = vmatpush.bf16.msra.mxu0 %v5711
        %6493 = vmatpush.bf16.msra.mxu0 %v5709
        %6494 = vmatpush.bf16.msra.mxu0 %v5707
        %6495 = vmatpush.bf16.msra.mxu0 %v5705
        %6496 = vmatpush.bf16.msra.mxu0 %v5703
        %6497 = vmatpush.bf16.msra.mxu0 %v5701
        %6498 = vmatmul.bf16.gmra.mxu0 %v4092
        %v6499 = vpop.f32.mrf.mxu0
        %v6500 = vadd.f32 %v6487, %v6499
        %v6501 = vpop.f32.mrf.mxu0
        %6502 = vdwg.mxu0
        %6503 = vmatpush.bf16.msra.mxu0 %v5731
        %6504 = vmatpush.bf16.msra.mxu0 %v5729
        %6505 = vmatpush.bf16.msra.mxu0 %v5727
        %6506 = vmatpush.bf16.msra.mxu0 %v5725
        %6507 = vmatpush.bf16.msra.mxu0 %v5723
        %6508 = vmatpush.bf16.msra.mxu0 %v5721
        %6509 = vmatpush.bf16.msra.mxu0 %v5719
        %6510 = vmatpush.bf16.msra.mxu0 %v5717
        %6511 = vmatmul.bf16.gmra.mxu0 %v4093
        %v6512 = vpop.f32.mrf.mxu0
        %v6513 = vadd.f32 %v6500, %v6512
        %v6514 = vpop.f32.mrf.mxu0
        %6515 = vdwg.mxu0
        %6516 = vmatpush.bf16.msra.mxu0 %v5747
        %6517 = vmatpush.bf16.msra.mxu0 %v5745
        %6518 = vmatpush.bf16.msra.mxu0 %v5743
        %6519 = vmatpush.bf16.msra.mxu0 %v5741
        %6520 = vmatpush.bf16.msra.mxu0 %v5739
        %6521 = vmatpush.bf16.msra.mxu0 %v5737
        %6522 = vmatpush.bf16.msra.mxu0 %v5735
        %6523 = vmatpush.bf16.msra.mxu0 %v5733
        %6524 = vmatmul.bf16.gmra.mxu0 %v4094
        %v6525 = vpop.f32.mrf.mxu0
        %v6526 = vadd.f32 %v6513, %v6525
        %v6527 = vpop.f32.mrf.mxu0
        %6528 = vdwg.mxu0
        %6529 = vmatpush.bf16.msra.mxu0 %v5763
        %6530 = vmatpush.bf16.msra.mxu0 %v5761
        %6531 = vmatpush.bf16.msra.mxu0 %v5759
        %6532 = vmatpush.bf16.msra.mxu0 %v5757
        %6533 = vmatpush.bf16.msra.mxu0 %v5755
        %6534 = vmatpush.bf16.msra.mxu0 %v5753
        %6535 = vmatpush.bf16.msra.mxu0 %v5751
        %6536 = vmatpush.bf16.msra.mxu0 %v5749
        %6537 = vmatmul.bf16.gmra.mxu0 %v4095
        %v6538 = vpop.f32.mrf.mxu0
        %v6539 = vadd.f32 %v6526, %v6538
        %v6540 = vpop.f32.mrf.mxu0
        %6541 = vdwg.mxu0
        %6542 = vmatpush.bf16.msra.mxu0 %v5779
        %6543 = vmatpush.bf16.msra.mxu0 %v5777
        %6544 = vmatpush.bf16.msra.mxu0 %v5775
        %6545 = vmatpush.bf16.msra.mxu0 %v5773
        %6546 = vmatpush.bf16.msra.mxu0 %v5771
        %6547 = vmatpush.bf16.msra.mxu0 %v5769
        %6548 = vmatpush.bf16.msra.mxu0 %v5767
        %6549 = vmatpush.bf16.msra.mxu0 %v5765
        %6550 = vmatmul.bf16.gmra.mxu0 %v4096
        %v6551 = vpop.f32.mrf.mxu0
        %v6552 = vadd.f32 %v6539, %v6551
        %v6553 = vpop.f32.mrf.mxu0
        %6554 = vdwg.mxu0
        %6555 = vmatpush.bf16.msra.mxu0 %v5795
        %6556 = vmatpush.bf16.msra.mxu0 %v5793
        %6557 = vmatpush.bf16.msra.mxu0 %v5791
        %6558 = vmatpush.bf16.msra.mxu0 %v5789
        %6559 = vmatpush.bf16.msra.mxu0 %v5787
        %6560 = vmatpush.bf16.msra.mxu0 %v5785
        %6561 = vmatpush.bf16.msra.mxu0 %v5783
        %6562 = vmatpush.bf16.msra.mxu0 %v5781
        %6563 = vmatmul.bf16.gmra.mxu0 %v4097
        %v6564 = vpop.f32.mrf.mxu0
        %v6565 = vadd.f32 %v6552, %v6564
        %v6566 = vpop.f32.mrf.mxu0
        %6567 = vdwg.mxu0
        %6568 = vmatpush.bf16.msra.mxu0 %v5811
        %6569 = vmatpush.bf16.msra.mxu0 %v5809
        %6570 = vmatpush.bf16.msra.mxu0 %v5807
        %6571 = vmatpush.bf16.msra.mxu0 %v5805
        %6572 = vmatpush.bf16.msra.mxu0 %v5803
        %6573 = vmatpush.bf16.msra.mxu0 %v5801
        %6574 = vmatpush.bf16.msra.mxu0 %v5799
        %6575 = vmatpush.bf16.msra.mxu0 %v5797
        %6576 = vmatmul.bf16.gmra.mxu0 %v4098
        %v6577 = vpop.f32.mrf.mxu0
        %v6578 = vadd.f32 %v6565, %v6577
        %v6579 = vpop.f32.mrf.mxu0
        %6580 = vdwg.mxu0
        %6581 = vmatpush.bf16.msra.mxu0 %v5827
        %6582 = vmatpush.bf16.msra.mxu0 %v5825
        %6583 = vmatpush.bf16.msra.mxu0 %v5823
        %6584 = vmatpush.bf16.msra.mxu0 %v5821
        %6585 = vmatpush.bf16.msra.mxu0 %v5819
        %6586 = vmatpush.bf16.msra.mxu0 %v5817
        %6587 = vmatpush.bf16.msra.mxu0 %v5815
        %6588 = vmatpush.bf16.msra.mxu0 %v5813
        %6589 = vmatmul.bf16.gmra.mxu0 %v4099
        %v6590 = vpop.f32.mrf.mxu0
        %v6591 = vadd.f32 %v6578, %v6590
        %v6592 = vpop.f32.mrf.mxu0
        %6593 = vdwg.mxu0
        %6594 = vmatpush.bf16.msra.mxu0 %v5843
        %6595 = vmatpush.bf16.msra.mxu0 %v5841
        %6596 = vmatpush.bf16.msra.mxu0 %v5839
        %6597 = vmatpush.bf16.msra.mxu0 %v5837
        %6598 = vmatpush.bf16.msra.mxu0 %v5835
        %6599 = vmatpush.bf16.msra.mxu0 %v5833
        %6600 = vmatpush.bf16.msra.mxu0 %v5831
        %6601 = vmatpush.bf16.msra.mxu0 %v5829
        %6602 = vmatmul.bf16.gmra.mxu0 %v4100
        %v6603 = vpop.f32.mrf.mxu0
        %v6604 = vadd.f32 %v6591, %v6603
        %v6605 = vpop.f32.mrf.mxu0
        %6606 = vdwg.mxu0
        %6607 = vmatpush.bf16.msra.mxu0 %v5859
        %6608 = vmatpush.bf16.msra.mxu0 %v5857
        %6609 = vmatpush.bf16.msra.mxu0 %v5855
        %6610 = vmatpush.bf16.msra.mxu0 %v5853
        %6611 = vmatpush.bf16.msra.mxu0 %v5851
        %6612 = vmatpush.bf16.msra.mxu0 %v5849
        %6613 = vmatpush.bf16.msra.mxu0 %v5847
        %6614 = vmatpush.bf16.msra.mxu0 %v5845
        %6615 = vmatmul.bf16.gmra.mxu0 %v4101
        %v6616 = vpop.f32.mrf.mxu0
        %v6617 = vadd.f32 %v6604, %v6616
        %v6618 = vpop.f32.mrf.mxu0
        %6619 = vdwg.mxu0
        %6620 = vmatpush.bf16.msra.mxu0 %v5875
        %6621 = vmatpush.bf16.msra.mxu0 %v5873
        %6622 = vmatpush.bf16.msra.mxu0 %v5871
        %6623 = vmatpush.bf16.msra.mxu0 %v5869
        %6624 = vmatpush.bf16.msra.mxu0 %v5867
        %6625 = vmatpush.bf16.msra.mxu0 %v5865
        %6626 = vmatpush.bf16.msra.mxu0 %v5863
        %6627 = vmatpush.bf16.msra.mxu0 %v5861
        %6628 = vmatmul.bf16.gmra.mxu0 %v4102
        %v6629 = vpop.f32.mrf.mxu0
        %v6630 = vadd.f32 %v6617, %v6629
        %v6631 = vpop.f32.mrf.mxu0
        %6632 = vdwg.mxu0
        %6633 = vmatpush.bf16.msra.mxu0 %v5891
        %6634 = vmatpush.bf16.msra.mxu0 %v5889
        %6635 = vmatpush.bf16.msra.mxu0 %v5887
        %6636 = vmatpush.bf16.msra.mxu0 %v5885
        %6637 = vmatpush.bf16.msra.mxu0 %v5883
        %6638 = vmatpush.bf16.msra.mxu0 %v5881
        %6639 = vmatpush.bf16.msra.mxu0 %v5879
        %6640 = vmatpush.bf16.msra.mxu0 %v5877
        %6641 = vmatmul.bf16.gmra.mxu0 %v4103
        %v6642 = vpop.f32.mrf.mxu0
        %v6643 = vadd.f32 %v6630, %v6642
        %v6644 = vpop.f32.mrf.mxu0
        %6645 = vdwg.mxu0
        %6646 = vmatpush.bf16.msra.mxu0 %v5907
        %6647 = vmatpush.bf16.msra.mxu0 %v5905
        %6648 = vmatpush.bf16.msra.mxu0 %v5903
        %6649 = vmatpush.bf16.msra.mxu0 %v5901
        %6650 = vmatpush.bf16.msra.mxu0 %v5899
        %6651 = vmatpush.bf16.msra.mxu0 %v5897
        %6652 = vmatpush.bf16.msra.mxu0 %v5895
        %6653 = vmatpush.bf16.msra.mxu0 %v5893
        %6654 = vmatmul.bf16.gmra.mxu0 %v4104
        %v6655 = vpop.f32.mrf.mxu0
        %v6656 = vadd.f32 %v6643, %v6655
        %v6657 = vpop.f32.mrf.mxu0
        %6658 = vdwg.mxu0
        %6659 = vmatpush.bf16.msra.mxu0 %v5923
        %6660 = vmatpush.bf16.msra.mxu0 %v5921
        %6661 = vmatpush.bf16.msra.mxu0 %v5919
        %6662 = vmatpush.bf16.msra.mxu0 %v5917
        %6663 = vmatpush.bf16.msra.mxu0 %v5915
        %6664 = vmatpush.bf16.msra.mxu0 %v5913
        %6665 = vmatpush.bf16.msra.mxu0 %v5911
        %6666 = vmatpush.bf16.msra.mxu0 %v5909
        %6667 = vmatmul.bf16.gmra.mxu0 %v4105
        %v6668 = vpop.f32.mrf.mxu0
        %v6669 = vadd.f32 %v6656, %v6668
        %v6670 = vpop.f32.mrf.mxu0
        %6671 = vdwg.mxu0
        %6672 = vmatpush.bf16.msra.mxu0 %v5939
        %6673 = vmatpush.bf16.msra.mxu0 %v5937
        %6674 = vmatpush.bf16.msra.mxu0 %v5935
        %6675 = vmatpush.bf16.msra.mxu0 %v5933
        %6676 = vmatpush.bf16.msra.mxu0 %v5931
        %6677 = vmatpush.bf16.msra.mxu0 %v5929
        %6678 = vmatpush.bf16.msra.mxu0 %v5927
        %6679 = vmatpush.bf16.msra.mxu0 %v5925
        %6680 = vmatmul.bf16.gmra.mxu0 %v4106
        %v6681 = vpop.f32.mrf.mxu0
        %v6682 = vadd.f32 %v6669, %v6681
        %v6683 = vpop.f32.mrf.mxu0
        %6684 = vdwg.mxu0
        %6685 = vmatpush.bf16.msra.mxu0 %v5955
        %6686 = vmatpush.bf16.msra.mxu0 %v5953
        %6687 = vmatpush.bf16.msra.mxu0 %v5951
        %6688 = vmatpush.bf16.msra.mxu0 %v5949
        %6689 = vmatpush.bf16.msra.mxu0 %v5947
        %6690 = vmatpush.bf16.msra.mxu0 %v5945
        %6691 = vmatpush.bf16.msra.mxu0 %v5943
        %6692 = vmatpush.bf16.msra.mxu0 %v5941
        %6693 = vmatmul.bf16.gmra.mxu0 %v4107
        %v6694 = vpop.f32.mrf.mxu0
        %v6695 = vadd.f32 %v6682, %v6694
        %v6696 = vpop.f32.mrf.mxu0
        %6697 = vdwg.mxu0
        %6698 = vmatpush.bf16.msra.mxu0 %v5971
        %6699 = vmatpush.bf16.msra.mxu0 %v5969
        %6700 = vmatpush.bf16.msra.mxu0 %v5967
        %6701 = vmatpush.bf16.msra.mxu0 %v5965
        %6702 = vmatpush.bf16.msra.mxu0 %v5963
        %6703 = vmatpush.bf16.msra.mxu0 %v5961
        %6704 = vmatpush.bf16.msra.mxu0 %v5959
        %6705 = vmatpush.bf16.msra.mxu0 %v5957
        %6706 = vmatmul.bf16.gmra.mxu0 %v4108
        %v6707 = vpop.f32.mrf.mxu0
        %v6708 = vadd.f32 %v6695, %v6707
        %v6709 = vpop.f32.mrf.mxu0
        %6710 = vdwg.mxu0
        %6711 = vmatpush.bf16.msra.mxu0 %v5987
        %6712 = vmatpush.bf16.msra.mxu0 %v5985
        %6713 = vmatpush.bf16.msra.mxu0 %v5983
        %6714 = vmatpush.bf16.msra.mxu0 %v5981
        %6715 = vmatpush.bf16.msra.mxu0 %v5979
        %6716 = vmatpush.bf16.msra.mxu0 %v5977
        %6717 = vmatpush.bf16.msra.mxu0 %v5975
        %6718 = vmatpush.bf16.msra.mxu0 %v5973
        %6719 = vmatmul.bf16.gmra.mxu0 %v4109
        %v6720 = vpop.f32.mrf.mxu0
        %v6721 = vadd.f32 %v6708, %v6720
        %v6722 = vpop.f32.mrf.mxu0
        %6723 = vdwg.mxu0
        %6724 = vmatpush.bf16.msra.mxu0 %v6003
        %6725 = vmatpush.bf16.msra.mxu0 %v6001
        %6726 = vmatpush.bf16.msra.mxu0 %v5999
        %6727 = vmatpush.bf16.msra.mxu0 %v5997
        %6728 = vmatpush.bf16.msra.mxu0 %v5995
        %6729 = vmatpush.bf16.msra.mxu0 %v5993
        %6730 = vmatpush.bf16.msra.mxu0 %v5991
        %6731 = vmatpush.bf16.msra.mxu0 %v5989
        %6732 = vmatmul.bf16.gmra.mxu0 %v4110
        %v6733 = vpop.f32.mrf.mxu0
        %v6734 = vadd.f32 %v6721, %v6733
        %v6735 = vpop.f32.mrf.mxu0
        %6736 = vdwg.mxu0
        %6737 = vmatpush.bf16.msra.mxu0 %v6019
        %6738 = vmatpush.bf16.msra.mxu0 %v6017
        %6739 = vmatpush.bf16.msra.mxu0 %v6015
        %6740 = vmatpush.bf16.msra.mxu0 %v6013
        %6741 = vmatpush.bf16.msra.mxu0 %v6011
        %6742 = vmatpush.bf16.msra.mxu0 %v6009
        %6743 = vmatpush.bf16.msra.mxu0 %v6007
        %6744 = vmatpush.bf16.msra.mxu0 %v6005
        %6745 = vmatmul.bf16.gmra.mxu0 %v4111
        %v6746 = vpop.f32.mrf.mxu0
        %v6747 = vadd.f32 %v6734, %v6746
        %v6748 = vpop.f32.mrf.mxu0
        %6749 = vdwg.mxu0
        %6750 = vmatpush.bf16.msra.mxu0 %v6035
        %6751 = vmatpush.bf16.msra.mxu0 %v6033
        %6752 = vmatpush.bf16.msra.mxu0 %v6031
        %6753 = vmatpush.bf16.msra.mxu0 %v6029
        %6754 = vmatpush.bf16.msra.mxu0 %v6027
        %6755 = vmatpush.bf16.msra.mxu0 %v6025
        %6756 = vmatpush.bf16.msra.mxu0 %v6023
        %6757 = vmatpush.bf16.msra.mxu0 %v6021
        %6758 = vmatmul.bf16.gmra.mxu0 %v4112
        %v6759 = vpop.f32.mrf.mxu0
        %v6760 = vadd.f32 %v6747, %v6759
        %v6761 = vpop.f32.mrf.mxu0
        %6762 = vdwg.mxu0
        %6763 = vmatpush.bf16.msra.mxu0 %v6051
        %6764 = vmatpush.bf16.msra.mxu0 %v6049
        %6765 = vmatpush.bf16.msra.mxu0 %v6047
        %6766 = vmatpush.bf16.msra.mxu0 %v6045
        %6767 = vmatpush.bf16.msra.mxu0 %v6043
        %6768 = vmatpush.bf16.msra.mxu0 %v6041
        %6769 = vmatpush.bf16.msra.mxu0 %v6039
        %6770 = vmatpush.bf16.msra.mxu0 %v6037
        %6771 = vmatmul.bf16.gmra.mxu0 %v4113
        %v6772 = vpop.f32.mrf.mxu0
        %v6773 = vadd.f32 %v6760, %v6772
        %v6774 = vpop.f32.mrf.mxu0
        %6775 = vdwg.mxu0
        %6776 = vmatpush.bf16.msra.mxu0 %v6067
        %6777 = vmatpush.bf16.msra.mxu0 %v6065
        %6778 = vmatpush.bf16.msra.mxu0 %v6063
        %6779 = vmatpush.bf16.msra.mxu0 %v6061
        %6780 = vmatpush.bf16.msra.mxu0 %v6059
        %6781 = vmatpush.bf16.msra.mxu0 %v6057
        %6782 = vmatpush.bf16.msra.mxu0 %v6055
        %6783 = vmatpush.bf16.msra.mxu0 %v6053
        %6784 = vmatmul.bf16.gmra.mxu0 %v4114
        %v6785 = vpop.f32.mrf.mxu0
        %v6786 = vadd.f32 %v6773, %v6785
        %v6787 = vpop.f32.mrf.mxu0
        %6788 = vdwg.mxu0
        %6789 = vmatpush.bf16.msra.mxu0 0
        %6790 = vmatpush.bf16.msra.mxu0 0
        %6791 = vmatpush.bf16.msra.mxu0 0
        %6792 = vmatpush.bf16.msra.mxu0 0
        %6793 = vmatpush.bf16.msra.mxu0 %v6075
        %6794 = vmatpush.bf16.msra.mxu0 %v6073
        %6795 = vmatpush.bf16.msra.mxu0 %v6071
        %6796 = vmatpush.bf16.msra.mxu0 %v6069
        %6797 = vmatmul.bf16.gmra.mxu0 %v6475
        %v6798 = vpop.f32.mrf.mxu0
        %v6799 = vadd.f32 %v6786, %v6798
        %v6800 = vpop.f32.mrf.mxu0
        %6801 = vdwg.mxu0
        %6802 = vmatpush.bf16.msra.mxu0 %v5700
        %6803 = vmatpush.bf16.msra.mxu0 %v5698
        %6804 = vmatpush.bf16.msra.mxu0 %v5696
        %6805 = vmatpush.bf16.msra.mxu0 %v5694
        %6806 = vmatpush.bf16.msra.mxu0 %v5692
        %6807 = vmatpush.bf16.msra.mxu0 %v5690
        %6808 = vmatpush.bf16.msra.mxu0 %v5688
        %6809 = vmatpush.bf16.msra.mxu0 %v5686
        %6810 = vmatmul.bf16.gmra.mxu0 %v4091
        %v6811 = vpop.f32.mrf.mxu0
        %v6812 = vadd.f32 %v6471, %v6811
        %v6813 = vpop.f32.mrf.mxu0
        %6814 = vdwg.mxu0
        %6815 = vmatpush.bf16.msra.mxu0 %v5716
        %6816 = vmatpush.bf16.msra.mxu0 %v5714
        %6817 = vmatpush.bf16.msra.mxu0 %v5712
        %6818 = vmatpush.bf16.msra.mxu0 %v5710
        %6819 = vmatpush.bf16.msra.mxu0 %v5708
        %6820 = vmatpush.bf16.msra.mxu0 %v5706
        %6821 = vmatpush.bf16.msra.mxu0 %v5704
        %6822 = vmatpush.bf16.msra.mxu0 %v5702
        %6823 = vmatmul.bf16.gmra.mxu0 %v4092
        %v6824 = vpop.f32.mrf.mxu0
        %v6825 = vadd.f32 %v6812, %v6824
        %v6826 = vpop.f32.mrf.mxu0
        %6827 = vdwg.mxu0
        %6828 = vmatpush.bf16.msra.mxu0 %v5732
        %6829 = vmatpush.bf16.msra.mxu0 %v5730
        %6830 = vmatpush.bf16.msra.mxu0 %v5728
        %6831 = vmatpush.bf16.msra.mxu0 %v5726
        %6832 = vmatpush.bf16.msra.mxu0 %v5724
        %6833 = vmatpush.bf16.msra.mxu0 %v5722
        %6834 = vmatpush.bf16.msra.mxu0 %v5720
        %6835 = vmatpush.bf16.msra.mxu0 %v5718
        %6836 = vmatmul.bf16.gmra.mxu0 %v4093
        %v6837 = vpop.f32.mrf.mxu0
        %v6838 = vadd.f32 %v6825, %v6837
        %v6839 = vpop.f32.mrf.mxu0
        %6840 = vdwg.mxu0
        %6841 = vmatpush.bf16.msra.mxu0 %v5748
        %6842 = vmatpush.bf16.msra.mxu0 %v5746
        %6843 = vmatpush.bf16.msra.mxu0 %v5744
        %6844 = vmatpush.bf16.msra.mxu0 %v5742
        %6845 = vmatpush.bf16.msra.mxu0 %v5740
        %6846 = vmatpush.bf16.msra.mxu0 %v5738
        %6847 = vmatpush.bf16.msra.mxu0 %v5736
        %6848 = vmatpush.bf16.msra.mxu0 %v5734
        %6849 = vmatmul.bf16.gmra.mxu0 %v4094
        %v6850 = vpop.f32.mrf.mxu0
        %v6851 = vadd.f32 %v6838, %v6850
        %v6852 = vpop.f32.mrf.mxu0
        %6853 = vdwg.mxu0
        %6854 = vmatpush.bf16.msra.mxu0 %v5764
        %6855 = vmatpush.bf16.msra.mxu0 %v5762
        %6856 = vmatpush.bf16.msra.mxu0 %v5760
        %6857 = vmatpush.bf16.msra.mxu0 %v5758
        %6858 = vmatpush.bf16.msra.mxu0 %v5756
        %6859 = vmatpush.bf16.msra.mxu0 %v5754
        %6860 = vmatpush.bf16.msra.mxu0 %v5752
        %6861 = vmatpush.bf16.msra.mxu0 %v5750
        %6862 = vmatmul.bf16.gmra.mxu0 %v4095
        %v6863 = vpop.f32.mrf.mxu0
        %v6864 = vadd.f32 %v6851, %v6863
        %v6865 = vpop.f32.mrf.mxu0
        %6866 = vdwg.mxu0
        %6867 = vmatpush.bf16.msra.mxu0 %v5780
        %6868 = vmatpush.bf16.msra.mxu0 %v5778
        %6869 = vmatpush.bf16.msra.mxu0 %v5776
        %6870 = vmatpush.bf16.msra.mxu0 %v5774
        %6871 = vmatpush.bf16.msra.mxu0 %v5772
        %6872 = vmatpush.bf16.msra.mxu0 %v5770
        %6873 = vmatpush.bf16.msra.mxu0 %v5768
        %6874 = vmatpush.bf16.msra.mxu0 %v5766
        %6875 = vmatmul.bf16.gmra.mxu0 %v4096
        %v6876 = vpop.f32.mrf.mxu0
        %v6877 = vadd.f32 %v6864, %v6876
        %v6878 = vpop.f32.mrf.mxu0
        %6879 = vdwg.mxu0
        %6880 = vmatpush.bf16.msra.mxu0 %v5796
        %6881 = vmatpush.bf16.msra.mxu0 %v5794
        %6882 = vmatpush.bf16.msra.mxu0 %v5792
        %6883 = vmatpush.bf16.msra.mxu0 %v5790
        %6884 = vmatpush.bf16.msra.mxu0 %v5788
        %6885 = vmatpush.bf16.msra.mxu0 %v5786
        %6886 = vmatpush.bf16.msra.mxu0 %v5784
        %6887 = vmatpush.bf16.msra.mxu0 %v5782
        %6888 = vmatmul.bf16.gmra.mxu0 %v4097
        %v6889 = vpop.f32.mrf.mxu0
        %v6890 = vadd.f32 %v6877, %v6889
        %v6891 = vpop.f32.mrf.mxu0
        %6892 = vdwg.mxu0
        %6893 = vmatpush.bf16.msra.mxu0 %v5812
        %6894 = vmatpush.bf16.msra.mxu0 %v5810
        %6895 = vmatpush.bf16.msra.mxu0 %v5808
        %6896 = vmatpush.bf16.msra.mxu0 %v5806
        %6897 = vmatpush.bf16.msra.mxu0 %v5804
        %6898 = vmatpush.bf16.msra.mxu0 %v5802
        %6899 = vmatpush.bf16.msra.mxu0 %v5800
        %6900 = vmatpush.bf16.msra.mxu0 %v5798
        %6901 = vmatmul.bf16.gmra.mxu0 %v4098
        %v6902 = vpop.f32.mrf.mxu0
        %v6903 = vadd.f32 %v6890, %v6902
        %v6904 = vpop.f32.mrf.mxu0
        %6905 = vdwg.mxu0
        %6906 = vmatpush.bf16.msra.mxu0 %v5828
        %6907 = vmatpush.bf16.msra.mxu0 %v5826
        %6908 = vmatpush.bf16.msra.mxu0 %v5824
        %6909 = vmatpush.bf16.msra.mxu0 %v5822
        %6910 = vmatpush.bf16.msra.mxu0 %v5820
        %6911 = vmatpush.bf16.msra.mxu0 %v5818
        %6912 = vmatpush.bf16.msra.mxu0 %v5816
        %6913 = vmatpush.bf16.msra.mxu0 %v5814
        %6914 = vmatmul.bf16.gmra.mxu0 %v4099
        %v6915 = vpop.f32.mrf.mxu0
        %v6916 = vadd.f32 %v6903, %v6915
        %v6917 = vpop.f32.mrf.mxu0
        %6918 = vdwg.mxu0
        %6919 = vmatpush.bf16.msra.mxu0 %v5844
        %6920 = vmatpush.bf16.msra.mxu0 %v5842
        %6921 = vmatpush.bf16.msra.mxu0 %v5840
        %6922 = vmatpush.bf16.msra.mxu0 %v5838
        %6923 = vmatpush.bf16.msra.mxu0 %v5836
        %6924 = vmatpush.bf16.msra.mxu0 %v5834
        %6925 = vmatpush.bf16.msra.mxu0 %v5832
        %6926 = vmatpush.bf16.msra.mxu0 %v5830
        %6927 = vmatmul.bf16.gmra.mxu0 %v4100
        %v6928 = vpop.f32.mrf.mxu0
        %v6929 = vadd.f32 %v6916, %v6928
        %v6930 = vpop.f32.mrf.mxu0
        %6931 = vdwg.mxu0
        %6932 = vmatpush.bf16.msra.mxu0 %v5860
        %6933 = vmatpush.bf16.msra.mxu0 %v5858
        %6934 = vmatpush.bf16.msra.mxu0 %v5856
        %6935 = vmatpush.bf16.msra.mxu0 %v5854
        %6936 = vmatpush.bf16.msra.mxu0 %v5852
        %6937 = vmatpush.bf16.msra.mxu0 %v5850
        %6938 = vmatpush.bf16.msra.mxu0 %v5848
        %6939 = vmatpush.bf16.msra.mxu0 %v5846
        %6940 = vmatmul.bf16.gmra.mxu0 %v4101
        %v6941 = vpop.f32.mrf.mxu0
        %v6942 = vadd.f32 %v6929, %v6941
        %v6943 = vpop.f32.mrf.mxu0
        %6944 = vdwg.mxu0
        %6945 = vmatpush.bf16.msra.mxu0 %v5876
        %6946 = vmatpush.bf16.msra.mxu0 %v5874
        %6947 = vmatpush.bf16.msra.mxu0 %v5872
        %6948 = vmatpush.bf16.msra.mxu0 %v5870
        %6949 = vmatpush.bf16.msra.mxu0 %v5868
        %6950 = vmatpush.bf16.msra.mxu0 %v5866
        %6951 = vmatpush.bf16.msra.mxu0 %v5864
        %6952 = vmatpush.bf16.msra.mxu0 %v5862
        %6953 = vmatmul.bf16.gmra.mxu0 %v4102
        %v6954 = vpop.f32.mrf.mxu0
        %v6955 = vadd.f32 %v6942, %v6954
        %v6956 = vpop.f32.mrf.mxu0
        %6957 = vdwg.mxu0
        %6958 = vmatpush.bf16.msra.mxu0 %v5892
        %6959 = vmatpush.bf16.msra.mxu0 %v5890
        %6960 = vmatpush.bf16.msra.mxu0 %v5888
        %6961 = vmatpush.bf16.msra.mxu0 %v5886
        %6962 = vmatpush.bf16.msra.mxu0 %v5884
        %6963 = vmatpush.bf16.msra.mxu0 %v5882
        %6964 = vmatpush.bf16.msra.mxu0 %v5880
        %6965 = vmatpush.bf16.msra.mxu0 %v5878
        %6966 = vmatmul.bf16.gmra.mxu0 %v4103
        %v6967 = vpop.f32.mrf.mxu0
        %v6968 = vadd.f32 %v6955, %v6967
        %v6969 = vpop.f32.mrf.mxu0
        %6970 = vdwg.mxu0
        %6971 = vmatpush.bf16.msra.mxu0 %v5908
        %6972 = vmatpush.bf16.msra.mxu0 %v5906
        %6973 = vmatpush.bf16.msra.mxu0 %v5904
        %6974 = vmatpush.bf16.msra.mxu0 %v5902
        %6975 = vmatpush.bf16.msra.mxu0 %v5900
        %6976 = vmatpush.bf16.msra.mxu0 %v5898
        %6977 = vmatpush.bf16.msra.mxu0 %v5896
        %6978 = vmatpush.bf16.msra.mxu0 %v5894
        %6979 = vmatmul.bf16.gmra.mxu0 %v4104
        %v6980 = vpop.f32.mrf.mxu0
        %v6981 = vadd.f32 %v6968, %v6980
        %v6982 = vpop.f32.mrf.mxu0
        %6983 = vdwg.mxu0
        %6984 = vmatpush.bf16.msra.mxu0 %v5924
        %6985 = vmatpush.bf16.msra.mxu0 %v5922
        %6986 = vmatpush.bf16.msra.mxu0 %v5920
        %6987 = vmatpush.bf16.msra.mxu0 %v5918
        %6988 = vmatpush.bf16.msra.mxu0 %v5916
        %6989 = vmatpush.bf16.msra.mxu0 %v5914
        %6990 = vmatpush.bf16.msra.mxu0 %v5912
        %6991 = vmatpush.bf16.msra.mxu0 %v5910
        %6992 = vmatmul.bf16.gmra.mxu0 %v4105
        %v6993 = vpop.f32.mrf.mxu0
        %v6994 = vadd.f32 %v6981, %v6993
        %v6995 = vpop.f32.mrf.mxu0
        %6996 = vdwg.mxu0
        %6997 = vmatpush.bf16.msra.mxu0 %v5940
        %6998 = vmatpush.bf16.msra.mxu0 %v5938
        %6999 = vmatpush.bf16.msra.mxu0 %v5936
        %7000 = vmatpush.bf16.msra.mxu0 %v5934
        %7001 = vmatpush.bf16.msra.mxu0 %v5932
        %7002 = vmatpush.bf16.msra.mxu0 %v5930
        %7003 = vmatpush.bf16.msra.mxu0 %v5928
        %7004 = vmatpush.bf16.msra.mxu0 %v5926
        %7005 = vmatmul.bf16.gmra.mxu0 %v4106
        %v7006 = vpop.f32.mrf.mxu0
        %v7007 = vadd.f32 %v6994, %v7006
        %v7008 = vpop.f32.mrf.mxu0
        %7009 = vdwg.mxu0
        %7010 = vmatpush.bf16.msra.mxu0 %v5956
        %7011 = vmatpush.bf16.msra.mxu0 %v5954
        %7012 = vmatpush.bf16.msra.mxu0 %v5952
        %7013 = vmatpush.bf16.msra.mxu0 %v5950
        %7014 = vmatpush.bf16.msra.mxu0 %v5948
        %7015 = vmatpush.bf16.msra.mxu0 %v5946
        %7016 = vmatpush.bf16.msra.mxu0 %v5944
        %7017 = vmatpush.bf16.msra.mxu0 %v5942
        %7018 = vmatmul.bf16.gmra.mxu0 %v4107
        %v7019 = vpop.f32.mrf.mxu0
        %v7020 = vadd.f32 %v7007, %v7019
        %v7021 = vpop.f32.mrf.mxu0
        %7022 = vdwg.mxu0
        %7023 = vmatpush.bf16.msra.mxu0 %v5972
        %7024 = vmatpush.bf16.msra.mxu0 %v5970
        %7025 = vmatpush.bf16.msra.mxu0 %v5968
        %7026 = vmatpush.bf16.msra.mxu0 %v5966
        %7027 = vmatpush.bf16.msra.mxu0 %v5964
        %7028 = vmatpush.bf16.msra.mxu0 %v5962
        %7029 = vmatpush.bf16.msra.mxu0 %v5960
        %7030 = vmatpush.bf16.msra.mxu0 %v5958
        %7031 = vmatmul.bf16.gmra.mxu0 %v4108
        %v7032 = vpop.f32.mrf.mxu0
        %v7033 = vadd.f32 %v7020, %v7032
        %v7034 = vpop.f32.mrf.mxu0
        %7035 = vdwg.mxu0
        %7036 = vmatpush.bf16.msra.mxu0 %v5988
        %7037 = vmatpush.bf16.msra.mxu0 %v5986
        %7038 = vmatpush.bf16.msra.mxu0 %v5984
        %7039 = vmatpush.bf16.msra.mxu0 %v5982
        %7040 = vmatpush.bf16.msra.mxu0 %v5980
        %7041 = vmatpush.bf16.msra.mxu0 %v5978
        %7042 = vmatpush.bf16.msra.mxu0 %v5976
        %7043 = vmatpush.bf16.msra.mxu0 %v5974
        %7044 = vmatmul.bf16.gmra.mxu0 %v4109
        %v7045 = vpop.f32.mrf.mxu0
        %v7046 = vadd.f32 %v7033, %v7045
        %v7047 = vpop.f32.mrf.mxu0
        %7048 = vdwg.mxu0
        %7049 = vmatpush.bf16.msra.mxu0 %v6004
        %7050 = vmatpush.bf16.msra.mxu0 %v6002
        %7051 = vmatpush.bf16.msra.mxu0 %v6000
        %7052 = vmatpush.bf16.msra.mxu0 %v5998
        %7053 = vmatpush.bf16.msra.mxu0 %v5996
        %7054 = vmatpush.bf16.msra.mxu0 %v5994
        %7055 = vmatpush.bf16.msra.mxu0 %v5992
        %7056 = vmatpush.bf16.msra.mxu0 %v5990
        %7057 = vmatmul.bf16.gmra.mxu0 %v4110
        %v7058 = vpop.f32.mrf.mxu0
        %v7059 = vadd.f32 %v7046, %v7058
        %v7060 = vpop.f32.mrf.mxu0
        %7061 = vdwg.mxu0
        %7062 = vmatpush.bf16.msra.mxu0 %v6020
        %7063 = vmatpush.bf16.msra.mxu0 %v6018
        %7064 = vmatpush.bf16.msra.mxu0 %v6016
        %7065 = vmatpush.bf16.msra.mxu0 %v6014
        %7066 = vmatpush.bf16.msra.mxu0 %v6012
        %7067 = vmatpush.bf16.msra.mxu0 %v6010
        %7068 = vmatpush.bf16.msra.mxu0 %v6008
        %7069 = vmatpush.bf16.msra.mxu0 %v6006
        %7070 = vmatmul.bf16.gmra.mxu0 %v4111
        %v7071 = vpop.f32.mrf.mxu0
        %v7072 = vadd.f32 %v7059, %v7071
        %v7073 = vpop.f32.mrf.mxu0
        %7074 = vdwg.mxu0
        %7075 = vmatpush.bf16.msra.mxu0 %v6036
        %7076 = vmatpush.bf16.msra.mxu0 %v6034
        %7077 = vmatpush.bf16.msra.mxu0 %v6032
        %7078 = vmatpush.bf16.msra.mxu0 %v6030
        %7079 = vmatpush.bf16.msra.mxu0 %v6028
        %7080 = vmatpush.bf16.msra.mxu0 %v6026
        %7081 = vmatpush.bf16.msra.mxu0 %v6024
        %7082 = vmatpush.bf16.msra.mxu0 %v6022
        %7083 = vmatmul.bf16.gmra.mxu0 %v4112
        %v7084 = vpop.f32.mrf.mxu0
        %v7085 = vadd.f32 %v7072, %v7084
        %v7086 = vpop.f32.mrf.mxu0
        %7087 = vdwg.mxu0
        %7088 = vmatpush.bf16.msra.mxu0 %v6052
        %7089 = vmatpush.bf16.msra.mxu0 %v6050
        %7090 = vmatpush.bf16.msra.mxu0 %v6048
        %7091 = vmatpush.bf16.msra.mxu0 %v6046
        %7092 = vmatpush.bf16.msra.mxu0 %v6044
        %7093 = vmatpush.bf16.msra.mxu0 %v6042
        %7094 = vmatpush.bf16.msra.mxu0 %v6040
        %7095 = vmatpush.bf16.msra.mxu0 %v6038
        %7096 = vmatmul.bf16.gmra.mxu0 %v4113
        %v7097 = vpop.f32.mrf.mxu0
        %v7098 = vadd.f32 %v7085, %v7097
        %v7099 = vpop.f32.mrf.mxu0
        %7100 = vdwg.mxu0
        %7101 = vmatpush.bf16.msra.mxu0 %v6068
        %7102 = vmatpush.bf16.msra.mxu0 %v6066
        %7103 = vmatpush.bf16.msra.mxu0 %v6064
        %7104 = vmatpush.bf16.msra.mxu0 %v6062
        %7105 = vmatpush.bf16.msra.mxu0 %v6060
        %7106 = vmatpush.bf16.msra.mxu0 %v6058
        %7107 = vmatpush.bf16.msra.mxu0 %v6056
        %7108 = vmatpush.bf16.msra.mxu0 %v6054
        %7109 = vmatmul.bf16.gmra.mxu0 %v4114
        %v7110 = vpop.f32.mrf.mxu0
        %v7111 = vadd.f32 %v7098, %v7110
        %v7112 = vpop.f32.mrf.mxu0
        %7113 = vdwg.mxu0
        %7114 = vmatpush.bf16.msra.mxu0 0
        %7115 = vmatpush.bf16.msra.mxu0 0
        %7116 = vmatpush.bf16.msra.mxu0 0
        %7117 = vmatpush.bf16.msra.mxu0 0
        %7118 = vmatpush.bf16.msra.mxu0 %v6076
        %7119 = vmatpush.bf16.msra.mxu0 %v6074
        %7120 = vmatpush.bf16.msra.mxu0 %v6072
        %7121 = vmatpush.bf16.msra.mxu0 %v6070
        %7122 = vmatmul.bf16.gmra.mxu0 %v6475
        %v7123 = vpop.f32.mrf.mxu0
        %v7124 = vadd.f32 %v7111, %v7123
        %v7125 = vpop.f32.mrf.mxu0
        %7126 = vdwg.mxu0
        %v7127 = vmax.f32 %v6799, 0.0
        %v7128 = vmax.f32 %v7124, 0.0
        %v7129 = vpack.c.bf16 %v7127, %v7127
        %v7130 = vpack.c.bf16 %v7128, %v7128
        %v7131 = vld [vmem:[%s9] sm:$0xf]
        %v7132 = vld [vmem:[%s9 + $0x4] sm:$0xf]
        %v7133 = vld [vmem:[%s9 + $0x8] sm:$0xf]
        %v7134 = vld [vmem:[%s9 + $0xc] sm:$0xf]
        %v7135 = vld [vmem:[%s9 + $0x10] sm:$0xf]
        %v7136 = vld [vmem:[%s9 + $0x14] sm:$0xf]
        %v7137 = vld [vmem:[%s9 + $0x18] sm:$0xf]
        %v7138 = vld [vmem:[%s9 + $0x1c] sm:$0xf]
        %v7139 = vld [vmem:[%s9 + $0x20] sm:$0xf]
        %v7140 = vld [vmem:[%s9 + $0x24] sm:$0xf]
        %v7141 = vld [vmem:[%s9 + $0x28] sm:$0xf]
        %v7142 = vld [vmem:[%s9 + $0x2c] sm:$0xf]
        %v7143 = vld [vmem:[%s9 + $0x30] sm:$0xf]
        %v7144 = vld [vmem:[%s9 + $0x34] sm:$0xf]
        %v7145 = vld [vmem:[%s9 + $0x38] sm:$0xf]
        %v7146 = vld [vmem:[%s9 + $0x3c] sm:$0xf]
        %v7147 = vld [vmem:[%s9 + $0x40] sm:$0xf]
        %v7148 = vld [vmem:[%s9 + $0x44] sm:$0xf]
        %v7149 = vld [vmem:[%s9 + $0x48] sm:$0xf]
        %v7150 = vld [vmem:[%s9 + $0x4c] sm:$0xf]
        %v7151 = vld [vmem:[%s9 + $0x50] sm:$0xf]
        %v7152 = vld [vmem:[%s9 + $0x54] sm:$0xf]
        %v7153 = vld [vmem:[%s9 + $0x58] sm:$0xf]
        %v7154 = vld [vmem:[%s9 + $0x5c] sm:$0xf]
        %v7155 = vld [vmem:[%s9 + $0x60] sm:$0xf]
        %v7156 = vld [vmem:[%s9 + $0x64] sm:$0xf]
        %v7157 = vld [vmem:[%s9 + $0x68] sm:$0xf]
        %v7158 = vld [vmem:[%s9 + $0x6c] sm:$0xf]
        %v7159 = vld [vmem:[%s9 + $0x70] sm:$0xf]
        %v7160 = vld [vmem:[%s9 + $0x74] sm:$0xf]
        %v7161 = vld [vmem:[%s9 + $0x78] sm:$0xf]
        %v7162 = vld [vmem:[%s9 + $0x7c] sm:$0xf]
        %v7163 = vld [vmem:[%s10] sm:$0x1]
        %v7196 = vunpack.c.l.b16 %v7131
        %v7197 = vunpack.c.l.b16 %v7132
        %v7198 = vunpack.c.l.b16 %v7133
        %v7199 = vunpack.c.l.b16 %v7134
        %v7200 = vunpack.c.l.b16 %v7135
        %v7201 = vunpack.c.l.b16 %v7136
        %v7202 = vunpack.c.l.b16 %v7137
        %v7203 = vunpack.c.l.b16 %v7138
        %v7204 = vunpack.c.l.b16 %v7139
        %v7205 = vunpack.c.l.b16 %v7140
        %v7206 = vunpack.c.l.b16 %v7141
        %v7207 = vunpack.c.l.b16 %v7142
        %v7208 = vunpack.c.l.b16 %v7143
        %v7209 = vunpack.c.l.b16 %v7144
        %v7210 = vunpack.c.l.b16 %v7145
        %v7211 = vunpack.c.l.b16 %v7146
        %v7212 = vunpack.c.l.b16 %v7147
        %v7213 = vunpack.c.l.b16 %v7148
        %v7214 = vunpack.c.l.b16 %v7149
        %v7215 = vunpack.c.l.b16 %v7150
        %v7216 = vunpack.c.l.b16 %v7151
        %v7217 = vunpack.c.l.b16 %v7152
        %v7218 = vunpack.c.l.b16 %v7153
        %v7219 = vunpack.c.l.b16 %v7154
        %v7220 = vunpack.c.l.b16 %v7155
        %v7221 = vunpack.c.l.b16 %v7156
        %v7222 = vunpack.c.l.b16 %v7157
        %v7223 = vunpack.c.l.b16 %v7158
        %v7224 = vunpack.c.l.b16 %v7159
        %v7225 = vunpack.c.l.b16 %v7160
        %v7226 = vunpack.c.l.b16 %v7161
        %v7227 = vunpack.c.l.b16 %v7162
        %v7228 = vpack.c.b16 %v7197, %v7196
        %v7229 = vpack.c.b16 %v7199, %v7198
        %v7230 = vpack.c.b16 %v7201, %v7200
        %v7231 = vpack.c.b16 %v7203, %v7202
        %v7232 = vpack.c.b16 %v7205, %v7204
        %v7233 = vpack.c.b16 %v7207, %v7206
        %v7234 = vpack.c.b16 %v7209, %v7208
        %v7235 = vpack.c.b16 %v7211, %v7210
        %v7236 = vpack.c.b16 %v7213, %v7212
        %v7237 = vpack.c.b16 %v7215, %v7214
        %v7238 = vpack.c.b16 %v7217, %v7216
        %v7239 = vpack.c.b16 %v7219, %v7218
        %v7240 = vpack.c.b16 %v7221, %v7220
        %v7241 = vpack.c.b16 %v7223, %v7222
        %v7242 = vpack.c.b16 %v7225, %v7224
        %v7243 = vpack.c.b16 %v7227, %v7226
        %7260 = vmatpush.bf16.msra.mxu0 %v7235
        %7261 = vmatpush.bf16.msra.mxu0 %v7234
        %7262 = vmatpush.bf16.msra.mxu0 %v7233
        %7263 = vmatpush.bf16.msra.mxu0 %v7232
        %7264 = vmatpush.bf16.msra.mxu0 %v7231
        %7265 = vmatpush.bf16.msra.mxu0 %v7230
        %7266 = vmatpush.bf16.msra.mxu0 %v7229
        %7267 = vmatpush.bf16.msra.mxu0 %v7228
        %7268 = vmatmul.bf16.gmra.mxu0 %v7129
        %v7269 = vpop.f32.mrf.mxu0
        %v7270 = vadd.f32 %v7163, %v7269
        %v7271 = vpop.f32.mrf.mxu0
        %7272 = vdwg.mxu0
        %7273 = vmatpush.bf16.msra.mxu0 %v7243
        %7274 = vmatpush.bf16.msra.mxu0 %v7242
        %7275 = vmatpush.bf16.msra.mxu0 %v7241
        %7276 = vmatpush.bf16.msra.mxu0 %v7240
        %7277 = vmatpush.bf16.msra.mxu0 %v7239
        %7278 = vmatpush.bf16.msra.mxu0 %v7238
        %7279 = vmatpush.bf16.msra.mxu0 %v7237
        %7280 = vmatpush.bf16.msra.mxu0 %v7236
        %7281 = vmatmul.bf16.gmra.mxu0 %v7130
        %v7282 = vpop.f32.mrf.mxu0
        %v7283 = vadd.f32 %v7270, %v7282
        %v7284 = vpop.f32.mrf.mxu0
        %7285 = vdwg.mxu0
        %v7286 = vsel %vm2507, %v7283, -inf
        %7287 = vmax.xlane.f32.xlu0 %v7286
        %v7288 = vpop.xlane.xlu0 %7287
        %v7289 = vsub.f32 %v7283, %v7288
        %v7290 = vmul.f32 %v7289, 1.442695
        %v7291 = vpow.pop %v7290
        %v7292 = vsel %vm2507, %v7291, 0.0
        %7293 = vadd.xlane.f32.xlu0 %v7292
        %v7294 = vpop.xlane.xlu0 %7293
        %v7295 = vrcp.pop %v7294
        %v7296 = vmul.f32 %v7294, %v7295
        %v7297 = vsub.f32 1.0, %v7296
        %v7298 = vmul.f32 %v7295, %v7297
        %v7299 = vadd.f32 %v7295, %v7298
        %vm7300 = vweird.f32 %v7294
        %vm7301 = vweird.f32 %v7295
        %vm7302 = vmor %vm7300, %vm7301
        %v7303 = vsel %vm7302, %v7295, %v7299
        %v7304 = vand.u32 2147483647, %v7294
        %vm7305 = vcmp.eq.f32.partialorder %v7304, 8.507059e+37
        %v7306 = vand.u32 %v7294, 2147483648
        %v7307 = vor.u32 1.1754944e-38, %v7306
        %v7308 = vsel %vm7305, %v7307, %v7303
        %v7309 = vmul.f32 %v7291, %v7308
        %7310 = vst [vmem:[%s378] sm:$0x1] %v7309
        %s7311 = sand.u32 %s269, 1
        %s7312 = scalar_lea.sflag [#allocation6], %s7311
        %s7313 = sand.u32 %s269, 1
        %s7314 = scalar_lea.vmem [#allocation5], %s7313
        // Predicated region
        $region65: #{policy_forward.1} parent=63 // pred_check
          %p7315 = pneg %p279
        $region66: #{policy_forward.1} parent=63 // pred_check_branch
          %7317 = sbr.rel (%p7315) target = $region68
        $region67: #{policy_forward.1} parent=63 // pred_region
          %7319 = vsyncadd %s7312, 0
          %s7320 = scalar_lea.hbm %s11, %s25
          %s7322 = sshll.u32 %s7314, 4
          %s7323 = int_to_ptr.vmem [resolvable:$true] %s7322
          %s7324 = sshll.u32 %s7320, 4
          %s7325 = int_to_ptr.hbm [resolvable:$true] %s7324
          %7327 = dma.vmem_to_hbm [thread:$0]  %s7323, 16, %s7325, %s7312
        $region68: #{policy_forward.1} parent=63 // pred_fallthru
          _
      $region64: #{policy_forward.1} parent=5 // pred_fallthru
        _
      %p7328 = scmp.le.s32.totalorder 2, %s20
      // Predicated region
      $region69: #{policy_forward.1} parent=5 // pred_check
        %p7329 = pneg %p7328
      $region70: #{policy_forward.1} parent=5 // pred_check_branch
        %7331 = sbr.rel (%p7329) target = $region72
      $region71: #{policy_forward.1} parent=5 // pred_region
        %s7332 = ssub.s32 %s20, 2
        // Predicated region
        $region73: #{policy_forward.1} parent=71 // pred_check
          %p7333 = pneg %p285
        $region74: #{policy_forward.1} parent=71 // pred_check_branch
          %7335 = sbr.rel (%p7333) target = $region76
        $region75: #{policy_forward.1} parent=71 // pred_region
          %s7336 = sand.u32 %s270, 1
          %s7337 = scalar_lea.sflag [#allocation6], %s7336
          %s7338 = sand.u32 %s270, 1
          %s7339 = scalar_lea.vmem [#allocation5], %s7338
          %7341 = dma.done %s7337, 16
        $region76: #{policy_forward.1} parent=71 // pred_fallthru
          _
      $region72: #{policy_forward.1} parent=5 // pred_fallthru
        _
    $region6: #{policy_forward.1} parent=1 // loop_footer
      %s24 = sadd.s32 1, %s20
    $region7: #{policy_forward.1} parent=1 // loop_footer_branch
      %19 = sbr.rel target = $region3
    $region8: #{policy_forward.1} parent=1 // loop_exit
      _
    %7342 = vsyncpa [#allocation6], 1
    %s7343 = scalar_lea.sflag [#allocation6], 1
    %7344 = vsyncpa %s7343, 1

</llo_original>
